<compile_context>
chip_gen: v5e
topology: v5e:2x2
jax: 0.10.0
libtpu: 0.0.40
codegen_flags: <defaults>
</compile_context>

<pallas_src>
import functools
import math

import jax
import jax.numpy as jnp
from jax import lax
from jax.experimental import pallas as pl
from jax.experimental.pallas import tpu as pltpu


# -----------------------------------------------------------------------------
# Small helpers
# -----------------------------------------------------------------------------
def _cdiv(a, b):
    return -(-a // b)


def _round_up(a, b):
    return _cdiv(a, b) * b


def _vmem_capacity_bytes():
    try:
        return int(pltpu.get_tpu_info().vmem_capacity_bytes)
    except Exception:
        return 64 * 1024 * 1024  # conservative fallback (v7x per-core VMEM)


_VMEM_CAP = _vmem_capacity_bytes()
# Row-tile cap: 1024 on 128 MiB VMEM parts (v5e/v6e), 512 on 64 MiB parts (v7x).
_TM_MAX = 1024 if _VMEM_CAP > 96 * 1024 * 1024 else 512


# -----------------------------------------------------------------------------
# Pallas kernel: conv as a sum over kh*kw taps.
#   x_ref : (1, G, Ls, C_in)   flattened parity sub-images (whole image, VMEM resident)
#   w_ref : (T, C_in, C_out_p) per-tap weight matrices (C_out padded to mult. of 128)
#   b_ref : (1, C_out_p)       f32 bias
#   o_ref : (1, tm, C_out_p)   one output row tile
#   acc   : (tm, C_out_p) f32  VMEM scratch accumulator
# -----------------------------------------------------------------------------
def _conv_taps_kernel(x_ref, w_ref, b_ref, o_ref, acc_ref, *, taps, tm, apply_relu):
    row0 = pl.multiple_of(pl.program_id(1) * tm, 8)
    acc_ref[...] = jnp.zeros_like(acc_ref)
    for t, (g, start) in enumerate(taps):            # static unroll (9 or 25 taps)
        xs = x_ref[0, g, pl.ds(row0 + start, tm), :]  # (tm, C_in) contiguous slice
        acc_ref[...] += jnp.dot(xs, w_ref[t], preferred_element_type=jnp.float32)
    res = acc_ref[...] + b_ref[...]                   # (1, C_out_p) broadcasts
    if apply_relu:
        res = jnp.maximum(res, 0.0)
    o_ref[0] = res.astype(o_ref.dtype)


# -----------------------------------------------------------------------------
# One conv layer: XLA-side prep (pad / parity-split / flatten — 1x traffic) + Pallas.
# Returns NHWC activation with C_out zero-padded to a multiple of 128.
# -----------------------------------------------------------------------------
def _conv2d_taps(x_nhwc, w_oihw, bias, *, stride, pad, apply_abs, apply_relu,
                 compute_dtype):
    n, h, w, c_act = x_nhwc.shape
    c_out, c_in_w, kh, kw = w_oihw.shape
    s = stride
    ho = (h + 2 * pad - kh) // s + 1
    wo = (w + 2 * pad - kw) // s + 1

    # Parity sub-image geometry (stride-s conv == stride-1 taps on s*s sub-images).
    hs = ho + (kh - 1) // s
    ws = wo + (kw - 1) // s
    G = s * s
    T = kh * kw

    # ---- activation prep (fuses into one XLA pass: abs + pad + parity split) ----
    xin = x_nhwc.astype(compute_dtype)
    if apply_abs:
        xin = jnp.abs(xin)
    hp, wp = h + 2 * pad, w + 2 * pad
    eh = max(0, s * hs - hp)          # extra zero rows so every parity image has hs rows
    ew = max(0, s * ws - wp)
    xp = jnp.pad(xin, ((0, 0), (pad, pad + eh), (pad, pad + ew), (0, 0)))
    subs = [xp[:, p::s, q::s, :][:, :hs, :ws, :] for p in range(s) for q in range(s)]
    xg = jnp.stack(subs, axis=1)                       # (N, G, hs, ws, C)

    # ---- output-row tiling over the flattened (ho, ws) output grid ----
    lo = ho * ws
    n_mb = max(1, _cdiv(lo, _TM_MAX))
    tm = _round_up(_cdiv(lo, n_mb), 8)
    lo_p = tm * n_mb

    taps = []
    for i in range(kh):
        for j in range(kw):
            taps.append(((i % s) * s + (j % s), (i // s) * ws + (j // s)))
    max_start = max(st for _, st in taps)
    ls_p = max(_round_up(max_start + lo_p, 8), _round_up(hs * ws, 8))

    x_flat = xg.reshape(n, G, hs * ws, c_act)
    x_flat = jnp.pad(x_flat, ((0, 0), (0, 0), (0, ls_p - hs * ws), (0, 0)))

    # ---- weights: OIHW -> (T, C_in_act, C_out_p), zero-padded ----
    c_out_p = _round_up(c_out, 128)
    w_t = jnp.transpose(w_oihw, (2, 3, 1, 0)).reshape(T, c_in_w, c_out)
    w_t = jnp.pad(w_t, ((0, 0), (0, c_act - c_in_w), (0, c_out_p - c_out)))
    w_t = w_t.astype(compute_dtype)
    b_p = jnp.pad(bias, (0, c_out_p - c_out)).reshape(1, c_out_p).astype(jnp.float32)

    assert tm % 8 == 0 and c_out_p % 128 == 0

    # ---- VMEM budget + cost estimate ----
    item = jnp.dtype(compute_dtype).itemsize
    x_block_b = G * ls_p * c_act * item
    w_b = T * c_act * c_out_p * item
    o_block_b = tm * c_out_p * item
    acc_b = tm * c_out_p * 4
    needed = 2 * (x_block_b + w_b + o_block_b) + acc_b + (1 << 20)
    vmem_limit = int(min(max(needed * 3 // 2, 32 * 1024 * 1024),
                         int(_VMEM_CAP * 0.9)))
    flops = 2 * n * n_mb * tm * T * c_act * c_out_p
    bytes_accessed = (x_flat.size * item + w_t.size * item + b_p.size * 4
                      + n * lo_p * c_out_p * item)

    kernel = functools.partial(_conv_taps_kernel, taps=taps, tm=tm,
                               apply_relu=apply_relu)

    out_flat = pl.pallas_call(
        kernel,
        out_shape=jax.ShapeDtypeStruct((n, lo_p, c_out_p), compute_dtype),
        grid_spec=pltpu.PrefetchScalarGridSpec(
            num_scalar_prefetch=0,
            grid=(n, n_mb),
            in_specs=[
                pl.BlockSpec((1, G, ls_p, c_act), lambda bi, mi: (bi, 0, 0, 0)),
                pl.BlockSpec((T, c_act, c_out_p), lambda bi, mi: (0, 0, 0)),
                pl.BlockSpec((1, c_out_p), lambda bi, mi: (0, 0)),
            ],
            out_specs=pl.BlockSpec((1, tm, c_out_p), lambda bi, mi: (bi, mi, 0)),
            scratch_shapes=[pltpu.VMEM((tm, c_out_p), jnp.float32)],
        ),
        compiler_params=pltpu.CompilerParams(
            dimension_semantics=("parallel", "parallel"),
            vmem_limit_bytes=vmem_limit,
        ),
        cost_estimate=pl.CostEstimate(
            flops=int(flops), transcendentals=0, bytes_accessed=int(bytes_accessed)),
    )(x_flat, w_t, b_p)

    # Drop junk rows / junk columns; keep the zero-padded channels for the next layer.
    out = out_flat[:, :lo, :].reshape(n, ho, ws, c_out_p)[:, :, :wo, :]
    return out


# -----------------------------------------------------------------------------
# Parameter init (mirrors the PyTorch __init__):
#   xavier_normal_(w, gain) => std = gain * sqrt(2 / (fan_in + fan_out)), bias = 0.01
# -----------------------------------------------------------------------------
def _xavier_normal(key, c_out, c_in, kh, kw, gain):
    fan_in = c_in * kh * kw
    fan_out = c_out * kh * kw
    std = gain * math.sqrt(2.0 / (fan_in + fan_out))
    return std * jax.random.normal(key, (c_out, c_in, kh, kw), dtype=jnp.float32)


def init_params(key, out_channel_N, out_channel_M):
    k1, k2, k3 = jax.random.split(key, 3)
    gain1 = math.sqrt(2.0 * (out_channel_M + out_channel_N)
                      / (out_channel_M + out_channel_M))
    return {
        "w1": _xavier_normal(k1, out_channel_N, out_channel_M, 3, 3, gain1),
        "b1": jnp.full((out_channel_N,), 0.01, jnp.float32),
        "w2": _xavier_normal(k2, out_channel_N, out_channel_N, 5, 5, math.sqrt(2.0)),
        "b2": jnp.full((out_channel_N,), 0.01, jnp.float32),
        "w3": _xavier_normal(k3, out_channel_N, out_channel_N, 5, 5, math.sqrt(2.0)),
        "b3": jnp.full((out_channel_N,), 0.01, jnp.float32),
    }


# -----------------------------------------------------------------------------
# Forward pass: NCHW in, NCHW out (matches PyTorch module semantics).
# compute_dtype=jnp.bfloat16 enables the v6e/v7x fast path (f32 MXU accumulation).
# -----------------------------------------------------------------------------
@functools.partial(jax.jit, static_argnames=("compute_dtype",))
def analysis_prior_net(params, x_nchw, compute_dtype=jnp.float32):
    x = jnp.transpose(x_nchw, (0, 2, 3, 1))                        # NCHW -> NHWC
    x = _conv2d_taps(x, params["w1"], params["b1"], stride=1, pad=1,
                     apply_abs=True, apply_relu=True, compute_dtype=compute_dtype)
    x = _conv2d_taps(x, params["w2"], params["b2"], stride=2, pad=2,
                     apply_abs=False, apply_relu=True, compute_dtype=compute_dtype)
    x = _conv2d_taps(x, params["w3"], params["b3"], stride=2, pad=2,
                     apply_abs=False, apply_relu=False, compute_dtype=compute_dtype)
    c_out = params["w3"].shape[0]
    x = x[..., :c_out].astype(jnp.float32)                         # drop channel pad
    return jnp.transpose(x, (0, 3, 1, 2))                          # NHWC -> NCHW


# -----------------------------------------------------------------------------
# Pure-JAX reference (lax.conv) for correctness checking.
# -----------------------------------------------------------------------------
def _ref_forward(params, x_nchw):
    dn = ("NCHW", "OIHW", "NCHW")

    def conv(x, w, b, stride, pad):
        y = lax.conv_general_dilated(
            x, w, window_strides=(stride, stride),
            padding=[(pad, pad), (pad, pad)], dimension_numbers=dn)
        return y + b.reshape(1, -1, 1, 1)

    x = jnp.abs(x_nchw)
    x = jnp.maximum(conv(x, params["w1"], params["b1"], 1, 1), 0.0)
    x = jnp.maximum(conv(x, params["w2"], params["b2"], 2, 2), 0.0)
    x = conv(x, params["w3"], params["b3"], 2, 2)
    return x


if __name__ == "__main__":
    # Small, shape-consistent configuration (PyTorch defaults are N=192, M=320).
    out_channel_N = 16   # "out_channel_N"
    out_channel_M = 8    # "out_channel_M" (input channel count)
    batch, spatial = 2, 16

    key = jax.random.PRNGKey(0)
    kp, kx = jax.random.split(key)
    params = init_params(kp, out_channel_N, out_channel_M)
    x = jax.random.normal(kx, (batch, out_channel_M, spatial, spatial), jnp.float32)

    ref = jax.block_until_ready(_ref_forward(params, x))

    # f32 path (semantic default) — tight check vs lax.conv.
    out_f32 = jax.block_until_ready(
        analysis_prior_net(params, x, compute_dtype=jnp.float32))
    assert out_f32.shape == (batch, out_channel_N, spatial // 4, spatial // 4), out_f32.shape
    assert jnp.allclose(out_f32, ref, atol=2e-3, rtol=2e-3), "f32 mismatch vs lax.conv"

    # bf16 inputs/weights with f32 accumulation (v6e/v7x fast path) — loose check.
    out_bf16 = jax.block_until_ready(
        analysis_prior_net(params, x, compute_dtype=jnp.bfloat16))
    assert out_bf16.shape == out_f32.shape
    assert jnp.allclose(out_bf16, ref, atol=6e-2, rtol=6e-2), "bf16 mismatch vs lax.conv"

    print("KERNEL_OK")
</pallas_src>

<mosaic_0001>
module attributes {stable_mosaic.version = 11 : i64} {
  func.func @_conv_taps_kernel(%arg0: i32, %arg1: i32, %arg2: memref<1x1x328x8xf32, #tpu.memory_space<vmem>>, %arg3: memref<9x8x128xf32, #tpu.memory_space<vmem>>, %arg4: memref<1x128xf32, #tpu.memory_space<vmem>>, %arg5: memref<1x288x128xf32, #tpu.memory_space<vmem>>, %arg6: memref<288x128xf32, #tpu.memory_space<vmem>>) attributes {dimension_semantics = [#tpu.dimension_semantics<parallel>, #tpu.dimension_semantics<parallel>], iteration_bounds = array<i64: 2, 1>, scalar_prefetch = 0 : i64, scratch_operands = 1 : i64, tpu.core_type = #tpu.core_type<tc>, window_params = [{transform_indices = @transform_0, window_bounds = array<i64: 1, 1, 328, 8>}, {pipeline_mode = #tpu.pipeline_mode<synchronous>, transform_indices = @transform_1, window_bounds = array<i64: 9, 8, 128>}, {pipeline_mode = #tpu.pipeline_mode<synchronous>, transform_indices = @transform_2, window_bounds = array<i64: 1, 128>}, {transform_indices = @transform_3, window_bounds = array<i64: 1, 288, 128>}]} {
    %c288_i32 = arith.constant 288 : i32
    %0 = arith.muli %arg1, %c288_i32 : i32
    %1 = tpu.assume_multiple %0, 8 : i32
    %cst = arith.constant 0.000000e+00 : f32
    %2 = vector.broadcast %cst : f32 to vector<288x128xf32>
    %c0 = arith.constant 0 : index
    %c0_0 = arith.constant 0 : index
    %3 = vector.load %arg6[%c0, %c0_0] : memref<288x128xf32, #tpu.memory_space<vmem>>, vector<288x128xf32>
    tpu.vector_store %arg6[%c0, %c0_0], %2 {strides = array<i32>} : memref<288x128xf32, #tpu.memory_space<vmem>>, vector<288x128xf32>,
    %c0_i32 = arith.constant 0 : i32
    %4 = arith.addi %1, %c0_i32 : i32
    %c0_1 = arith.constant 0 : index
    %c0_2 = arith.constant 0 : index
    %5 = arith.index_cast %4 : i32 to index
    %c0_3 = arith.constant 0 : index
    %6 = vector.load %arg2[%c0_1, %c0_2, %5, %c0_3] : memref<1x1x328x8xf32, #tpu.memory_space<vmem>>, vector<1x1x288x8xf32>
    %7 = vector.shape_cast %6 : vector<1x1x288x8xf32> to vector<288x8xf32>
    %c0_4 = arith.constant 0 : index
    %c0_5 = arith.constant 0 : index
    %8 = vector.load %arg6[%c0_4, %c0_5] : memref<288x128xf32, #tpu.memory_space<vmem>>, vector<288x128xf32>
    %c0_6 = arith.constant 0 : index
    %c0_7 = arith.constant 0 : index
    %c0_8 = arith.constant 0 : index
    %9 = vector.load %arg3[%c0_6, %c0_7, %c0_8] : memref<9x8x128xf32, #tpu.memory_space<vmem>>, vector<1x8x128xf32>
    %10 = vector.shape_cast %9 : vector<1x8x128xf32> to vector<8x128xf32>
    %cst_9 = arith.constant dense<0.000000e+00> : vector<288x128xf32>
    %11 = tpu.matmul %7, %10, %cst_9 {dimension_numbers = #tpu.dot_dimension_numbers<[1], [0], [0], [1], [0, 0, 1, 1], [], []>} : vector<288x8xf32>, vector<8x128xf32>, vector<288x128xf32> -> vector<288x128xf32>
    %12 = arith.addf %8, %11 : vector<288x128xf32>
    %c0_10 = arith.constant 0 : index
    %c0_11 = arith.constant 0 : index
    %13 = vector.load %arg6[%c0_10, %c0_11] : memref<288x128xf32, #tpu.memory_space<vmem>>, vector<288x128xf32>
    tpu.vector_store %arg6[%c0_10, %c0_11], %12 {strides = array<i32>} : memref<288x128xf32, #tpu.memory_space<vmem>>, vector<288x128xf32>,
    %c1_i32 = arith.constant 1 : i32
    %14 = arith.addi %1, %c1_i32 : i32
    %c0_12 = arith.constant 0 : index
    %c0_13 = arith.constant 0 : index
    %15 = arith.index_cast %14 : i32 to index
    %c0_14 = arith.constant 0 : index
    %16 = vector.load %arg2[%c0_12, %c0_13, %15, %c0_14] : memref<1x1x328x8xf32, #tpu.memory_space<vmem>>, vector<1x1x288x8xf32>
    %17 = vector.shape_cast %16 : vector<1x1x288x8xf32> to vector<288x8xf32>
    %c0_15 = arith.constant 0 : index
    %c0_16 = arith.constant 0 : index
    %18 = vector.load %arg6[%c0_15, %c0_16] : memref<288x128xf32, #tpu.memory_space<vmem>>, vector<288x128xf32>
    %c1 = arith.constant 1 : index
    %c0_17 = arith.constant 0 : index
    %c0_18 = arith.constant 0 : index
    %19 = vector.load %arg3[%c1, %c0_17, %c0_18] : memref<9x8x128xf32, #tpu.memory_space<vmem>>, vector<1x8x128xf32>
    %20 = vector.shape_cast %19 : vector<1x8x128xf32> to vector<8x128xf32>
    %cst_19 = arith.constant dense<0.000000e+00> : vector<288x128xf32>
    %21 = tpu.matmul %17, %20, %cst_19 {dimension_numbers = #tpu.dot_dimension_numbers<[1], [0], [0], [1], [0, 0, 1, 1], [], []>} : vector<288x8xf32>, vector<8x128xf32>, vector<288x128xf32> -> vector<288x128xf32>
    %22 = arith.addf %18, %21 : vector<288x128xf32>
    %c0_20 = arith.constant 0 : index
    %c0_21 = arith.constant 0 : index
    %23 = vector.load %arg6[%c0_20, %c0_21] : memref<288x128xf32, #tpu.memory_space<vmem>>, vector<288x128xf32>
    tpu.vector_store %arg6[%c0_20, %c0_21], %22 {strides = array<i32>} : memref<288x128xf32, #tpu.memory_space<vmem>>, vector<288x128xf32>,
    %c2_i32 = arith.constant 2 : i32
    %24 = arith.addi %1, %c2_i32 : i32
    %c0_22 = arith.constant 0 : index
    %c0_23 = arith.constant 0 : index
    %25 = arith.index_cast %24 : i32 to index
    %c0_24 = arith.constant 0 : index
    %26 = vector.load %arg2[%c0_22, %c0_23, %25, %c0_24] : memref<1x1x328x8xf32, #tpu.memory_space<vmem>>, vector<1x1x288x8xf32>
    %27 = vector.shape_cast %26 : vector<1x1x288x8xf32> to vector<288x8xf32>
    %c0_25 = arith.constant 0 : index
    %c0_26 = arith.constant 0 : index
    %28 = vector.load %arg6[%c0_25, %c0_26] : memref<288x128xf32, #tpu.memory_space<vmem>>, vector<288x128xf32>
    %c2 = arith.constant 2 : index
    %c0_27 = arith.constant 0 : index
    %c0_28 = arith.constant 0 : index
    %29 = vector.load %arg3[%c2, %c0_27, %c0_28] : memref<9x8x128xf32, #tpu.memory_space<vmem>>, vector<1x8x128xf32>
    %30 = vector.shape_cast %29 : vector<1x8x128xf32> to vector<8x128xf32>
    %cst_29 = arith.constant dense<0.000000e+00> : vector<288x128xf32>
    %31 = tpu.matmul %27, %30, %cst_29 {dimension_numbers = #tpu.dot_dimension_numbers<[1], [0], [0], [1], [0, 0, 1, 1], [], []>} : vector<288x8xf32>, vector<8x128xf32>, vector<288x128xf32> -> vector<288x128xf32>
    %32 = arith.addf %28, %31 : vector<288x128xf32>
    %c0_30 = arith.constant 0 : index
    %c0_31 = arith.constant 0 : index
    %33 = vector.load %arg6[%c0_30, %c0_31] : memref<288x128xf32, #tpu.memory_space<vmem>>, vector<288x128xf32>
    tpu.vector_store %arg6[%c0_30, %c0_31], %32 {strides = array<i32>} : memref<288x128xf32, #tpu.memory_space<vmem>>, vector<288x128xf32>,
    %c18_i32 = arith.constant 18 : i32
    %34 = arith.addi %1, %c18_i32 : i32
    %c0_32 = arith.constant 0 : index
    %c0_33 = arith.constant 0 : index
    %35 = arith.index_cast %34 : i32 to index
    %c0_34 = arith.constant 0 : index
    %36 = vector.load %arg2[%c0_32, %c0_33, %35, %c0_34] : memref<1x1x328x8xf32, #tpu.memory_space<vmem>>, vector<1x1x288x8xf32>
    %37 = vector.shape_cast %36 : vector<1x1x288x8xf32> to vector<288x8xf32>
    %c0_35 = arith.constant 0 : index
    %c0_36 = arith.constant 0 : index
    %38 = vector.load %arg6[%c0_35, %c0_36] : memref<288x128xf32, #tpu.memory_space<vmem>>, vector<288x128xf32>
    %c3 = arith.constant 3 : index
    %c0_37 = arith.constant 0 : index
    %c0_38 = arith.constant 0 : index
    %39 = vector.load %arg3[%c3, %c0_37, %c0_38] : memref<9x8x128xf32, #tpu.memory_space<vmem>>, vector<1x8x128xf32>
    %40 = vector.shape_cast %39 : vector<1x8x128xf32> to vector<8x128xf32>
    %cst_39 = arith.constant dense<0.000000e+00> : vector<288x128xf32>
    %41 = tpu.matmul %37, %40, %cst_39 {dimension_numbers = #tpu.dot_dimension_numbers<[1], [0], [0], [1], [0, 0, 1, 1], [], []>} : vector<288x8xf32>, vector<8x128xf32>, vector<288x128xf32> -> vector<288x128xf32>
    %42 = arith.addf %38, %41 : vector<288x128xf32>
    %c0_40 = arith.constant 0 : index
    %c0_41 = arith.constant 0 : index
    %43 = vector.load %arg6[%c0_40, %c0_41] : memref<288x128xf32, #tpu.memory_space<vmem>>, vector<288x128xf32>
    tpu.vector_store %arg6[%c0_40, %c0_41], %42 {strides = array<i32>} : memref<288x128xf32, #tpu.memory_space<vmem>>, vector<288x128xf32>,
    %c19_i32 = arith.constant 19 : i32
    %44 = arith.addi %1, %c19_i32 : i32
    %c0_42 = arith.constant 0 : index
    %c0_43 = arith.constant 0 : index
    %45 = arith.index_cast %44 : i32 to index
    %c0_44 = arith.constant 0 : index
    %46 = vector.load %arg2[%c0_42, %c0_43, %45, %c0_44] : memref<1x1x328x8xf32, #tpu.memory_space<vmem>>, vector<1x1x288x8xf32>
    %47 = vector.shape_cast %46 : vector<1x1x288x8xf32> to vector<288x8xf32>
    %c0_45 = arith.constant 0 : index
    %c0_46 = arith.constant 0 : index
    %48 = vector.load %arg6[%c0_45, %c0_46] : memref<288x128xf32, #tpu.memory_space<vmem>>, vector<288x128xf32>
    %c4 = arith.constant 4 : index
    %c0_47 = arith.constant 0 : index
    %c0_48 = arith.constant 0 : index
    %49 = vector.load %arg3[%c4, %c0_47, %c0_48] : memref<9x8x128xf32, #tpu.memory_space<vmem>>, vector<1x8x128xf32>
    %50 = vector.shape_cast %49 : vector<1x8x128xf32> to vector<8x128xf32>
    %cst_49 = arith.constant dense<0.000000e+00> : vector<288x128xf32>
    %51 = tpu.matmul %47, %50, %cst_49 {dimension_numbers = #tpu.dot_dimension_numbers<[1], [0], [0], [1], [0, 0, 1, 1], [], []>} : vector<288x8xf32>, vector<8x128xf32>, vector<288x128xf32> -> vector<288x128xf32>
    %52 = arith.addf %48, %51 : vector<288x128xf32>
    %c0_50 = arith.constant 0 : index
    %c0_51 = arith.constant 0 : index
    %53 = vector.load %arg6[%c0_50, %c0_51] : memref<288x128xf32, #tpu.memory_space<vmem>>, vector<288x128xf32>
    tpu.vector_store %arg6[%c0_50, %c0_51], %52 {strides = array<i32>} : memref<288x128xf32, #tpu.memory_space<vmem>>, vector<288x128xf32>,
    %c20_i32 = arith.constant 20 : i32
    %54 = arith.addi %1, %c20_i32 : i32
    %c0_52 = arith.constant 0 : index
    %c0_53 = arith.constant 0 : index
    %55 = arith.index_cast %54 : i32 to index
    %c0_54 = arith.constant 0 : index
    %56 = vector.load %arg2[%c0_52, %c0_53, %55, %c0_54] : memref<1x1x328x8xf32, #tpu.memory_space<vmem>>, vector<1x1x288x8xf32>
    %57 = vector.shape_cast %56 : vector<1x1x288x8xf32> to vector<288x8xf32>
    %c0_55 = arith.constant 0 : index
    %c0_56 = arith.constant 0 : index
    %58 = vector.load %arg6[%c0_55, %c0_56] : memref<288x128xf32, #tpu.memory_space<vmem>>, vector<288x128xf32>
    %c5 = arith.constant 5 : index
    %c0_57 = arith.constant 0 : index
    %c0_58 = arith.constant 0 : index
    %59 = vector.load %arg3[%c5, %c0_57, %c0_58] : memref<9x8x128xf32, #tpu.memory_space<vmem>>, vector<1x8x128xf32>
    %60 = vector.shape_cast %59 : vector<1x8x128xf32> to vector<8x128xf32>
    %cst_59 = arith.constant dense<0.000000e+00> : vector<288x128xf32>
    %61 = tpu.matmul %57, %60, %cst_59 {dimension_numbers = #tpu.dot_dimension_numbers<[1], [0], [0], [1], [0, 0, 1, 1], [], []>} : vector<288x8xf32>, vector<8x128xf32>, vector<288x128xf32> -> vector<288x128xf32>
    %62 = arith.addf %58, %61 : vector<288x128xf32>
    %c0_60 = arith.constant 0 : index
    %c0_61 = arith.constant 0 : index
    %63 = vector.load %arg6[%c0_60, %c0_61] : memref<288x128xf32, #tpu.memory_space<vmem>>, vector<288x128xf32>
    tpu.vector_store %arg6[%c0_60, %c0_61], %62 {strides = array<i32>} : memref<288x128xf32, #tpu.memory_space<vmem>>, vector<288x128xf32>,
    %c36_i32 = arith.constant 36 : i32
    %64 = arith.addi %1, %c36_i32 : i32
    %c0_62 = arith.constant 0 : index
    %c0_63 = arith.constant 0 : index
    %65 = arith.index_cast %64 : i32 to index
    %c0_64 = arith.constant 0 : index
    %66 = vector.load %arg2[%c0_62, %c0_63, %65, %c0_64] : memref<1x1x328x8xf32, #tpu.memory_space<vmem>>, vector<1x1x288x8xf32>
    %67 = vector.shape_cast %66 : vector<1x1x288x8xf32> to vector<288x8xf32>
    %c0_65 = arith.constant 0 : index
    %c0_66 = arith.constant 0 : index
    %68 = vector.load %arg6[%c0_65, %c0_66] : memref<288x128xf32, #tpu.memory_space<vmem>>, vector<288x128xf32>
    %c6 = arith.constant 6 : index
    %c0_67 = arith.constant 0 : index
    %c0_68 = arith.constant 0 : index
    %69 = vector.load %arg3[%c6, %c0_67, %c0_68] : memref<9x8x128xf32, #tpu.memory_space<vmem>>, vector<1x8x128xf32>
    %70 = vector.shape_cast %69 : vector<1x8x128xf32> to vector<8x128xf32>
    %cst_69 = arith.constant dense<0.000000e+00> : vector<288x128xf32>
    %71 = tpu.matmul %67, %70, %cst_69 {dimension_numbers = #tpu.dot_dimension_numbers<[1], [0], [0], [1], [0, 0, 1, 1], [], []>} : vector<288x8xf32>, vector<8x128xf32>, vector<288x128xf32> -> vector<288x128xf32>
    %72 = arith.addf %68, %71 : vector<288x128xf32>
    %c0_70 = arith.constant 0 : index
    %c0_71 = arith.constant 0 : index
    %73 = vector.load %arg6[%c0_70, %c0_71] : memref<288x128xf32, #tpu.memory_space<vmem>>, vector<288x128xf32>
    tpu.vector_store %arg6[%c0_70, %c0_71], %72 {strides = array<i32>} : memref<288x128xf32, #tpu.memory_space<vmem>>, vector<288x128xf32>,
    %c37_i32 = arith.constant 37 : i32
    %74 = arith.addi %1, %c37_i32 : i32
    %c0_72 = arith.constant 0 : index
    %c0_73 = arith.constant 0 : index
    %75 = arith.index_cast %74 : i32 to index
    %c0_74 = arith.constant 0 : index
    %76 = vector.load %arg2[%c0_72, %c0_73, %75, %c0_74] : memref<1x1x328x8xf32, #tpu.memory_space<vmem>>, vector<1x1x288x8xf32>
    %77 = vector.shape_cast %76 : vector<1x1x288x8xf32> to vector<288x8xf32>
    %c0_75 = arith.constant 0 : index
    %c0_76 = arith.constant 0 : index
    %78 = vector.load %arg6[%c0_75, %c0_76] : memref<288x128xf32, #tpu.memory_space<vmem>>, vector<288x128xf32>
    %c7 = arith.constant 7 : index
    %c0_77 = arith.constant 0 : index
    %c0_78 = arith.constant 0 : index
    %79 = vector.load %arg3[%c7, %c0_77, %c0_78] : memref<9x8x128xf32, #tpu.memory_space<vmem>>, vector<1x8x128xf32>
    %80 = vector.shape_cast %79 : vector<1x8x128xf32> to vector<8x128xf32>
    %cst_79 = arith.constant dense<0.000000e+00> : vector<288x128xf32>
    %81 = tpu.matmul %77, %80, %cst_79 {dimension_numbers = #tpu.dot_dimension_numbers<[1], [0], [0], [1], [0, 0, 1, 1], [], []>} : vector<288x8xf32>, vector<8x128xf32>, vector<288x128xf32> -> vector<288x128xf32>
    %82 = arith.addf %78, %81 : vector<288x128xf32>
    %c0_80 = arith.constant 0 : index
    %c0_81 = arith.constant 0 : index
    %83 = vector.load %arg6[%c0_80, %c0_81] : memref<288x128xf32, #tpu.memory_space<vmem>>, vector<288x128xf32>
    tpu.vector_store %arg6[%c0_80, %c0_81], %82 {strides = array<i32>} : memref<288x128xf32, #tpu.memory_space<vmem>>, vector<288x128xf32>,
    %c38_i32 = arith.constant 38 : i32
    %84 = arith.addi %1, %c38_i32 : i32
    %c0_82 = arith.constant 0 : index
    %c0_83 = arith.constant 0 : index
    %85 = arith.index_cast %84 : i32 to index
    %c0_84 = arith.constant 0 : index
    %86 = vector.load %arg2[%c0_82, %c0_83, %85, %c0_84] : memref<1x1x328x8xf32, #tpu.memory_space<vmem>>, vector<1x1x288x8xf32>
    %87 = vector.shape_cast %86 : vector<1x1x288x8xf32> to vector<288x8xf32>
    %c0_85 = arith.constant 0 : index
    %c0_86 = arith.constant 0 : index
    %88 = vector.load %arg6[%c0_85, %c0_86] : memref<288x128xf32, #tpu.memory_space<vmem>>, vector<288x128xf32>
    %c8 = arith.constant 8 : index
    %c0_87 = arith.constant 0 : index
    %c0_88 = arith.constant 0 : index
    %89 = vector.load %arg3[%c8, %c0_87, %c0_88] : memref<9x8x128xf32, #tpu.memory_space<vmem>>, vector<1x8x128xf32>
    %90 = vector.shape_cast %89 : vector<1x8x128xf32> to vector<8x128xf32>
    %cst_89 = arith.constant dense<0.000000e+00> : vector<288x128xf32>
    %91 = tpu.matmul %87, %90, %cst_89 {dimension_numbers = #tpu.dot_dimension_numbers<[1], [0], [0], [1], [0, 0, 1, 1], [], []>} : vector<288x8xf32>, vector<8x128xf32>, vector<288x128xf32> -> vector<288x128xf32>
    %92 = arith.addf %88, %91 : vector<288x128xf32>
    %c0_90 = arith.constant 0 : index
    %c0_91 = arith.constant 0 : index
    %93 = vector.load %arg6[%c0_90, %c0_91] : memref<288x128xf32, #tpu.memory_space<vmem>>, vector<288x128xf32>
    tpu.vector_store %arg6[%c0_90, %c0_91], %92 {strides = array<i32>} : memref<288x128xf32, #tpu.memory_space<vmem>>, vector<288x128xf32>,
    %c0_92 = arith.constant 0 : index
    %c0_93 = arith.constant 0 : index
    %94 = vector.load %arg6[%c0_92, %c0_93] : memref<288x128xf32, #tpu.memory_space<vmem>>, vector<288x128xf32>
    %c0_94 = arith.constant 0 : index
    %c0_95 = arith.constant 0 : index
    %95 = vector.load %arg4[%c0_94, %c0_95] : memref<1x128xf32, #tpu.memory_space<vmem>>, vector<1x128xf32>
    %96 = vector.broadcast %95 : vector<1x128xf32> to vector<288x128xf32>
    %97 = arith.addf %94, %96 : vector<288x128xf32>
    %cst_96 = arith.constant 0.000000e+00 : f32
    %98 = vector.broadcast %cst_96 : f32 to vector<288x128xf32>
    %99 = arith.maximumf %97, %98 : vector<288x128xf32>
    %c0_97 = arith.constant 0 : index
    %c0_98 = arith.constant 0 : index
    %c0_99 = arith.constant 0 : index
    %100 = vector.load %arg5[%c0_97, %c0_98, %c0_99] : memref<1x288x128xf32, #tpu.memory_space<vmem>>, vector<1x288x128xf32>
    %101 = vector.shape_cast %100 : vector<1x288x128xf32> to vector<288x128xf32>
    %102 = vector.shape_cast %99 : vector<288x128xf32> to vector<1x288x128xf32>
    tpu.vector_store %arg5[%c0_97, %c0_98, %c0_99], %102 {strides = array<i32>} : memref<1x288x128xf32, #tpu.memory_space<vmem>>, vector<1x288x128xf32>,
    return
  }
  func.func @transform_0(%arg0: i32, %arg1: i32) -> (i32, i32, i32, i32) {
    %c0_i32 = arith.constant 0 : i32
    %c0_i32_0 = arith.constant 0 : i32
    %c0_i32_1 = arith.constant 0 : i32
    %c0_i32_2 = arith.constant 0 : i32
    return %arg0, %c0_i32, %c0_i32_0, %c0_i32_1 : i32, i32, i32, i32
  }
  func.func @transform_1(%arg0: i32, %arg1: i32) -> (i32, i32, i32) {
    %c0_i32 = arith.constant 0 : i32
    %c0_i32_0 = arith.constant 0 : i32
    %c0_i32_1 = arith.constant 0 : i32
    %c0_i32_2 = arith.constant 0 : i32
    return %c0_i32, %c0_i32_0, %c0_i32_1 : i32, i32, i32
  }
  func.func @transform_2(%arg0: i32, %arg1: i32) -> (i32, i32) {
    %c0_i32 = arith.constant 0 : i32
    %c0_i32_0 = arith.constant 0 : i32
    %c0_i32_1 = arith.constant 0 : i32
    return %c0_i32, %c0_i32_0 : i32, i32
  }
  func.func @transform_3(%arg0: i32, %arg1: i32) -> (i32, i32, i32) {
    %c0_i32 = arith.constant 0 : i32
    %c0_i32_0 = arith.constant 0 : i32
    return %arg0, %arg1, %c0_i32 : i32, i32, i32
  }
}

module attributes {stable_mosaic.version = 11 : i64} {
  func.func @_conv_taps_kernel(%arg0: i32, %arg1: i32, %arg2: memref<1x4x104x128xf32, #tpu.memory_space<vmem>>, %arg3: memref<25x128x128xf32, #tpu.memory_space<vmem>>, %arg4: memref<1x128xf32, #tpu.memory_space<vmem>>, %arg5: memref<1x80x128xf32, #tpu.memory_space<vmem>>, %arg6: memref<80x128xf32, #tpu.memory_space<vmem>>) attributes {dimension_semantics = [#tpu.dimension_semantics<parallel>, #tpu.dimension_semantics<parallel>], iteration_bounds = array<i64: 2, 1>, scalar_prefetch = 0 : i64, scratch_operands = 1 : i64, tpu.core_type = #tpu.core_type<tc>, window_params = [{transform_indices = @transform_0, window_bounds = array<i64: 1, 4, 104, 128>}, {pipeline_mode = #tpu.pipeline_mode<synchronous>, transform_indices = @transform_1, window_bounds = array<i64: 25, 128, 128>}, {pipeline_mode = #tpu.pipeline_mode<synchronous>, transform_indices = @transform_2, window_bounds = array<i64: 1, 128>}, {transform_indices = @transform_3, window_bounds = array<i64: 1, 80, 128>}]} {
    %c80_i32 = arith.constant 80 : i32
    %0 = arith.muli %arg1, %c80_i32 : i32
    %1 = tpu.assume_multiple %0, 8 : i32
    %cst = arith.constant 0.000000e+00 : f32
    %2 = vector.broadcast %cst : f32 to vector<80x128xf32>
    %c0 = arith.constant 0 : index
    %c0_0 = arith.constant 0 : index
    %3 = vector.load %arg6[%c0, %c0_0] : memref<80x128xf32, #tpu.memory_space<vmem>>, vector<80x128xf32>
    tpu.vector_store %arg6[%c0, %c0_0], %2 {strides = array<i32>} : memref<80x128xf32, #tpu.memory_space<vmem>>, vector<80x128xf32>,
    %c0_i32 = arith.constant 0 : i32
    %4 = arith.addi %1, %c0_i32 : i32
    %c0_1 = arith.constant 0 : index
    %c0_2 = arith.constant 0 : index
    %5 = arith.index_cast %4 : i32 to index
    %c0_3 = arith.constant 0 : index
    %6 = vector.load %arg2[%c0_1, %c0_2, %5, %c0_3] : memref<1x4x104x128xf32, #tpu.memory_space<vmem>>, vector<1x1x80x128xf32>
    %7 = vector.shape_cast %6 : vector<1x1x80x128xf32> to vector<80x128xf32>
    %c0_4 = arith.constant 0 : index
    %c0_5 = arith.constant 0 : index
    %8 = vector.load %arg6[%c0_4, %c0_5] : memref<80x128xf32, #tpu.memory_space<vmem>>, vector<80x128xf32>
    %c0_6 = arith.constant 0 : index
    %c0_7 = arith.constant 0 : index
    %c0_8 = arith.constant 0 : index
    %9 = vector.load %arg3[%c0_6, %c0_7, %c0_8] : memref<25x128x128xf32, #tpu.memory_space<vmem>>, vector<1x128x128xf32>
    %10 = vector.shape_cast %9 : vector<1x128x128xf32> to vector<128x128xf32>
    %cst_9 = arith.constant dense<0.000000e+00> : vector<80x128xf32>
    %11 = tpu.matmul %7, %10, %cst_9 {dimension_numbers = #tpu.dot_dimension_numbers<[1], [0], [0], [1], [0, 0, 1, 1], [], []>} : vector<80x128xf32>, vector<128x128xf32>, vector<80x128xf32> -> vector<80x128xf32>
    %12 = arith.addf %8, %11 : vector<80x128xf32>
    %c0_10 = arith.constant 0 : index
    %c0_11 = arith.constant 0 : index
    %13 = vector.load %arg6[%c0_10, %c0_11] : memref<80x128xf32, #tpu.memory_space<vmem>>, vector<80x128xf32>
    tpu.vector_store %arg6[%c0_10, %c0_11], %12 {strides = array<i32>} : memref<80x128xf32, #tpu.memory_space<vmem>>, vector<80x128xf32>,
    %c0_i32_12 = arith.constant 0 : i32
    %14 = arith.addi %1, %c0_i32_12 : i32
    %c0_13 = arith.constant 0 : index
    %c1 = arith.constant 1 : index
    %15 = arith.index_cast %14 : i32 to index
    %c0_14 = arith.constant 0 : index
    %16 = vector.load %arg2[%c0_13, %c1, %15, %c0_14] : memref<1x4x104x128xf32, #tpu.memory_space<vmem>>, vector<1x1x80x128xf32>
    %17 = vector.shape_cast %16 : vector<1x1x80x128xf32> to vector<80x128xf32>
    %c0_15 = arith.constant 0 : index
    %c0_16 = arith.constant 0 : index
    %18 = vector.load %arg6[%c0_15, %c0_16] : memref<80x128xf32, #tpu.memory_space<vmem>>, vector<80x128xf32>
    %c1_17 = arith.constant 1 : index
    %c0_18 = arith.constant 0 : index
    %c0_19 = arith.constant 0 : index
    %19 = vector.load %arg3[%c1_17, %c0_18, %c0_19] : memref<25x128x128xf32, #tpu.memory_space<vmem>>, vector<1x128x128xf32>
    %20 = vector.shape_cast %19 : vector<1x128x128xf32> to vector<128x128xf32>
    %cst_20 = arith.constant dense<0.000000e+00> : vector<80x128xf32>
    %21 = tpu.matmul %17, %20, %cst_20 {dimension_numbers = #tpu.dot_dimension_numbers<[1], [0], [0], [1], [0, 0, 1, 1], [], []>} : vector<80x128xf32>, vector<128x128xf32>, vector<80x128xf32> -> vector<80x128xf32>
    %22 = arith.addf %18, %21 : vector<80x128xf32>
    %c0_21 = arith.constant 0 : index
    %c0_22 = arith.constant 0 : index
    %23 = vector.load %arg6[%c0_21, %c0_22] : memref<80x128xf32, #tpu.memory_space<vmem>>, vector<80x128xf32>
    tpu.vector_store %arg6[%c0_21, %c0_22], %22 {strides = array<i32>} : memref<80x128xf32, #tpu.memory_space<vmem>>, vector<80x128xf32>,
    %c1_i32 = arith.constant 1 : i32
    %24 = arith.addi %1, %c1_i32 : i32
    %c0_23 = arith.constant 0 : index
    %c0_24 = arith.constant 0 : index
    %25 = arith.index_cast %24 : i32 to index
    %c0_25 = arith.constant 0 : index
    %26 = vector.load %arg2[%c0_23, %c0_24, %25, %c0_25] : memref<1x4x104x128xf32, #tpu.memory_space<vmem>>, vector<1x1x80x128xf32>
    %27 = vector.shape_cast %26 : vector<1x1x80x128xf32> to vector<80x128xf32>
    %c0_26 = arith.constant 0 : index
    %c0_27 = arith.constant 0 : index
    %28 = vector.load %arg6[%c0_26, %c0_27] : memref<80x128xf32, #tpu.memory_space<vmem>>, vector<80x128xf32>
    %c2 = arith.constant 2 : index
    %c0_28 = arith.constant 0 : index
    %c0_29 = arith.constant 0 : index
    %29 = vector.load %arg3[%c2, %c0_28, %c0_29] : memref<25x128x128xf32, #tpu.memory_space<vmem>>, vector<1x128x128xf32>
    %30 = vector.shape_cast %29 : vector<1x128x128xf32> to vector<128x128xf32>
    %cst_30 = arith.constant dense<0.000000e+00> : vector<80x128xf32>
    %31 = tpu.matmul %27, %30, %cst_30 {dimension_numbers = #tpu.dot_dimension_numbers<[1], [0], [0], [1], [0, 0, 1, 1], [], []>} : vector<80x128xf32>, vector<128x128xf32>, vector<80x128xf32> -> vector<80x128xf32>
    %32 = arith.addf %28, %31 : vector<80x128xf32>
    %c0_31 = arith.constant 0 : index
    %c0_32 = arith.constant 0 : index
    %33 = vector.load %arg6[%c0_31, %c0_32] : memref<80x128xf32, #tpu.memory_space<vmem>>, vector<80x128xf32>
    tpu.vector_store %arg6[%c0_31, %c0_32], %32 {strides = array<i32>} : memref<80x128xf32, #tpu.memory_space<vmem>>, vector<80x128xf32>,
    %c1_i32_33 = arith.constant 1 : i32
    %34 = arith.addi %1, %c1_i32_33 : i32
    %c0_34 = arith.constant 0 : index
    %c1_35 = arith.constant 1 : index
    %35 = arith.index_cast %34 : i32 to index
    %c0_36 = arith.constant 0 : index
    %36 = vector.load %arg2[%c0_34, %c1_35, %35, %c0_36] : memref<1x4x104x128xf32, #tpu.memory_space<vmem>>, vector<1x1x80x128xf32>
    %37 = vector.shape_cast %36 : vector<1x1x80x128xf32> to vector<80x128xf32>
    %c0_37 = arith.constant 0 : index
    %c0_38 = arith.constant 0 : index
    %38 = vector.load %arg6[%c0_37, %c0_38] : memref<80x128xf32, #tpu.memory_space<vmem>>, vector<80x128xf32>
    %c3 = arith.constant 3 : index
    %c0_39 = arith.constant 0 : index
    %c0_40 = arith.constant 0 : index
    %39 = vector.load %arg3[%c3, %c0_39, %c0_40] : memref<25x128x128xf32, #tpu.memory_space<vmem>>, vector<1x128x128xf32>
    %40 = vector.shape_cast %39 : vector<1x128x128xf32> to vector<128x128xf32>
    %cst_41 = arith.constant dense<0.000000e+00> : vector<80x128xf32>
    %41 = tpu.matmul %37, %40, %cst_41 {dimension_numbers = #tpu.dot_dimension_numbers<[1], [0], [0], [1], [0, 0, 1, 1], [], []>} : vector<80x128xf32>, vector<128x128xf32>, vector<80x128xf32> -> vector<80x128xf32>
    %42 = arith.addf %38, %41 : vector<80x128xf32>
    %c0_42 = arith.constant 0 : index
    %c0_43 = arith.constant 0 : index
    %43 = vector.load %arg6[%c0_42, %c0_43] : memref<80x128xf32, #tpu.memory_space<vmem>>, vector<80x128xf32>
    tpu.vector_store %arg6[%c0_42, %c0_43], %42 {strides = array<i32>} : memref<80x128xf32, #tpu.memory_space<vmem>>, vector<80x128xf32>,
    %c2_i32 = arith.constant 2 : i32
    %44 = arith.addi %1, %c2_i32 : i32
    %c0_44 = arith.constant 0 : index
    %c0_45 = arith.constant 0 : index
    %45 = arith.index_cast %44 : i32 to index
    %c0_46 = arith.constant 0 : index
    %46 = vector.load %arg2[%c0_44, %c0_45, %45, %c0_46] : memref<1x4x104x128xf32, #tpu.memory_space<vmem>>, vector<1x1x80x128xf32>
    %47 = vector.shape_cast %46 : vector<1x1x80x128xf32> to vector<80x128xf32>
    %c0_47 = arith.constant 0 : index
    %c0_48 = arith.constant 0 : index
    %48 = vector.load %arg6[%c0_47, %c0_48] : memref<80x128xf32, #tpu.memory_space<vmem>>, vector<80x128xf32>
    %c4 = arith.constant 4 : index
    %c0_49 = arith.constant 0 : index
    %c0_50 = arith.constant 0 : index
    %49 = vector.load %arg3[%c4, %c0_49, %c0_50] : memref<25x128x128xf32, #tpu.memory_space<vmem>>, vector<1x128x128xf32>
    %50 = vector.shape_cast %49 : vector<1x128x128xf32> to vector<128x128xf32>
    %cst_51 = arith.constant dense<0.000000e+00> : vector<80x128xf32>
    %51 = tpu.matmul %47, %50, %cst_51 {dimension_numbers = #tpu.dot_dimension_numbers<[1], [0], [0], [1], [0, 0, 1, 1], [], []>} : vector<80x128xf32>, vector<128x128xf32>, vector<80x128xf32> -> vector<80x128xf32>
    %52 = arith.addf %48, %51 : vector<80x128xf32>
    %c0_52 = arith.constant 0 : index
    %c0_53 = arith.constant 0 : index
    %53 = vector.load %arg6[%c0_52, %c0_53] : memref<80x128xf32, #tpu.memory_space<vmem>>, vector<80x128xf32>
    tpu.vector_store %arg6[%c0_52, %c0_53], %52 {strides = array<i32>} : memref<80x128xf32, #tpu.memory_space<vmem>>, vector<80x128xf32>,
    %c0_i32_54 = arith.constant 0 : i32
    %54 = arith.addi %1, %c0_i32_54 : i32
    %c0_55 = arith.constant 0 : index
    %c2_56 = arith.constant 2 : index
    %55 = arith.index_cast %54 : i32 to index
    %c0_57 = arith.constant 0 : index
    %56 = vector.load %arg2[%c0_55, %c2_56, %55, %c0_57] : memref<1x4x104x128xf32, #tpu.memory_space<vmem>>, vector<1x1x80x128xf32>
    %57 = vector.shape_cast %56 : vector<1x1x80x128xf32> to vector<80x128xf32>
    %c0_58 = arith.constant 0 : index
    %c0_59 = arith.constant 0 : index
    %58 = vector.load %arg6[%c0_58, %c0_59] : memref<80x128xf32, #tpu.memory_space<vmem>>, vector<80x128xf32>
    %c5 = arith.constant 5 : index
    %c0_60 = arith.constant 0 : index
    %c0_61 = arith.constant 0 : index
    %59 = vector.load %arg3[%c5, %c0_60, %c0_61] : memref<25x128x128xf32, #tpu.memory_space<vmem>>, vector<1x128x128xf32>
    %60 = vector.shape_cast %59 : vector<1x128x128xf32> to vector<128x128xf32>
    %cst_62 = arith.constant dense<0.000000e+00> : vector<80x128xf32>
    %61 = tpu.matmul %57, %60, %cst_62 {dimension_numbers = #tpu.dot_dimension_numbers<[1], [0], [0], [1], [0, 0, 1, 1], [], []>} : vector<80x128xf32>, vector<128x128xf32>, vector<80x128xf32> -> vector<80x128xf32>
    %62 = arith.addf %58, %61 : vector<80x128xf32>
    %c0_63 = arith.constant 0 : index
    %c0_64 = arith.constant 0 : index
    %63 = vector.load %arg6[%c0_63, %c0_64] : memref<80x128xf32, #tpu.memory_space<vmem>>, vector<80x128xf32>
    tpu.vector_store %arg6[%c0_63, %c0_64], %62 {strides = array<i32>} : memref<80x128xf32, #tpu.memory_space<vmem>>, vector<80x128xf32>,
    %c0_i32_65 = arith.constant 0 : i32
    %64 = arith.addi %1, %c0_i32_65 : i32
    %c0_66 = arith.constant 0 : index
    %c3_67 = arith.constant 3 : index
    %65 = arith.index_cast %64 : i32 to index
    %c0_68 = arith.constant 0 : index
    %66 = vector.load %arg2[%c0_66, %c3_67, %65, %c0_68] : memref<1x4x104x128xf32, #tpu.memory_space<vmem>>, vector<1x1x80x128xf32>
    %67 = vector.shape_cast %66 : vector<1x1x80x128xf32> to vector<80x128xf32>
    %c0_69 = arith.constant 0 : index
    %c0_70 = arith.constant 0 : index
    %68 = vector.load %arg6[%c0_69, %c0_70] : memref<80x128xf32, #tpu.memory_space<vmem>>, vector<80x128xf32>
    %c6 = arith.constant 6 : index
    %c0_71 = arith.constant 0 : index
    %c0_72 = arith.constant 0 : index
    %69 = vector.load %arg3[%c6, %c0_71, %c0_72] : memref<25x128x128xf32, #tpu.memory_space<vmem>>, vector<1x128x128xf32>
    %70 = vector.shape_cast %69 : vector<1x128x128xf32> to vector<128x128xf32>
    %cst_73 = arith.constant dense<0.000000e+00> : vector<80x128xf32>
    %71 = tpu.matmul %67, %70, %cst_73 {dimension_numbers = #tpu.dot_dimension_numbers<[1], [0], [0], [1], [0, 0, 1, 1], [], []>} : vector<80x128xf32>, vector<128x128xf32>, vector<80x128xf32> -> vector<80x128xf32>
    %72 = arith.addf %68, %71 : vector<80x128xf32>
    %c0_74 = arith.constant 0 : index
    %c0_75 = arith.constant 0 : index
    %73 = vector.load %arg6[%c0_74, %c0_75] : memref<80x128xf32, #tpu.memory_space<vmem>>, vector<80x128xf32>
    tpu.vector_store %arg6[%c0_74, %c0_75], %72 {strides = array<i32>} : memref<80x128xf32, #tpu.memory_space<vmem>>, vector<80x128xf32>,
    %c1_i32_76 = arith.constant 1 : i32
    %74 = arith.addi %1, %c1_i32_76 : i32
    %c0_77 = arith.constant 0 : index
    %c2_78 = arith.constant 2 : index
    %75 = arith.index_cast %74 : i32 to index
    %c0_79 = arith.constant 0 : index
    %76 = vector.load %arg2[%c0_77, %c2_78, %75, %c0_79] : memref<1x4x104x128xf32, #tpu.memory_space<vmem>>, vector<1x1x80x128xf32>
    %77 = vector.shape_cast %76 : vector<1x1x80x128xf32> to vector<80x128xf32>
    %c0_80 = arith.constant 0 : index
    %c0_81 = arith.constant 0 : index
    %78 = vector.load %arg6[%c0_80, %c0_81] : memref<80x128xf32, #tpu.memory_space<vmem>>, vector<80x128xf32>
    %c7 = arith.constant 7 : index
    %c0_82 = arith.constant 0 : index
    %c0_83 = arith.constant 0 : index
    %79 = vector.load %arg3[%c7, %c0_82, %c0_83] : memref<25x128x128xf32, #tpu.memory_space<vmem>>, vector<1x128x128xf32>
    %80 = vector.shape_cast %79 : vector<1x128x128xf32> to vector<128x128xf32>
    %cst_84 = arith.constant dense<0.000000e+00> : vector<80x128xf32>
    %81 = tpu.matmul %77, %80, %cst_84 {dimension_numbers = #tpu.dot_dimension_numbers<[1], [0], [0], [1], [0, 0, 1, 1], [], []>} : vector<80x128xf32>, vector<128x128xf32>, vector<80x128xf32> -> vector<80x128xf32>
    %82 = arith.addf %78, %81 : vector<80x128xf32>
    %c0_85 = arith.constant 0 : index
    %c0_86 = arith.constant 0 : index
    %83 = vector.load %arg6[%c0_85, %c0_86] : memref<80x128xf32, #tpu.memory_space<vmem>>, vector<80x128xf32>
    tpu.vector_store %arg6[%c0_85, %c0_86], %82 {strides = array<i32>} : memref<80x128xf32, #tpu.memory_space<vmem>>, vector<80x128xf32>,
    %c1_i32_87 = arith.constant 1 : i32
    %84 = arith.addi %1, %c1_i32_87 : i32
    %c0_88 = arith.constant 0 : index
    %c3_89 = arith.constant 3 : index
    %85 = arith.index_cast %84 : i32 to index
    %c0_90 = arith.constant 0 : index
    %86 = vector.load %arg2[%c0_88, %c3_89, %85, %c0_90] : memref<1x4x104x128xf32, #tpu.memory_space<vmem>>, vector<1x1x80x128xf32>
    %87 = vector.shape_cast %86 : vector<1x1x80x128xf32> to vector<80x128xf32>
    %c0_91 = arith.constant 0 : index
    %c0_92 = arith.constant 0 : index
    %88 = vector.load %arg6[%c0_91, %c0_92] : memref<80x128xf32, #tpu.memory_space<vmem>>, vector<80x128xf32>
    %c8 = arith.constant 8 : index
    %c0_93 = arith.constant 0 : index
    %c0_94 = arith.constant 0 : index
    %89 = vector.load %arg3[%c8, %c0_93, %c0_94] : memref<25x128x128xf32, #tpu.memory_space<vmem>>, vector<1x128x128xf32>
    %90 = vector.shape_cast %89 : vector<1x128x128xf32> to vector<128x128xf32>
    %cst_95 = arith.constant dense<0.000000e+00> : vector<80x128xf32>
    %91 = tpu.matmul %87, %90, %cst_95 {dimension_numbers = #tpu.dot_dimension_numbers<[1], [0], [0], [1], [0, 0, 1, 1], [], []>} : vector<80x128xf32>, vector<128x128xf32>, vector<80x128xf32> -> vector<80x128xf32>
    %92 = arith.addf %88, %91 : vector<80x128xf32>
    %c0_96 = arith.constant 0 : index
    %c0_97 = arith.constant 0 : index
    %93 = vector.load %arg6[%c0_96, %c0_97] : memref<80x128xf32, #tpu.memory_space<vmem>>, vector<80x128xf32>
    tpu.vector_store %arg6[%c0_96, %c0_97], %92 {strides = array<i32>} : memref<80x128xf32, #tpu.memory_space<vmem>>, vector<80x128xf32>,
    %c2_i32_98 = arith.constant 2 : i32
    %94 = arith.addi %1, %c2_i32_98 : i32
    %c0_99 = arith.constant 0 : index
    %c2_100 = arith.constant 2 : index
    %95 = arith.index_cast %94 : i32 to index
    %c0_101 = arith.constant 0 : index
    %96 = vector.load %arg2[%c0_99, %c2_100, %95, %c0_101] : memref<1x4x104x128xf32, #tpu.memory_space<vmem>>, vector<1x1x80x128xf32>
    %97 = vector.shape_cast %96 : vector<1x1x80x128xf32> to vector<80x128xf32>
    %c0_102 = arith.constant 0 : index
    %c0_103 = arith.constant 0 : index
    %98 = vector.load %arg6[%c0_102, %c0_103] : memref<80x128xf32, #tpu.memory_space<vmem>>, vector<80x128xf32>
    %c9 = arith.constant 9 : index
    %c0_104 = arith.constant 0 : index
    %c0_105 = arith.constant 0 : index
    %99 = vector.load %arg3[%c9, %c0_104, %c0_105] : memref<25x128x128xf32, #tpu.memory_space<vmem>>, vector<1x128x128xf32>
    %100 = vector.shape_cast %99 : vector<1x128x128xf32> to vector<128x128xf32>
    %cst_106 = arith.constant dense<0.000000e+00> : vector<80x128xf32>
    %101 = tpu.matmul %97, %100, %cst_106 {dimension_numbers = #tpu.dot_dimension_numbers<[1], [0], [0], [1], [0, 0, 1, 1], [], []>} : vector<80x128xf32>, vector<128x128xf32>, vector<80x128xf32> -> vector<80x128xf32>
    %102 = arith.addf %98, %101 : vector<80x128xf32>
    %c0_107 = arith.constant 0 : index
    %c0_108 = arith.constant 0 : index
    %103 = vector.load %arg6[%c0_107, %c0_108] : memref<80x128xf32, #tpu.memory_space<vmem>>, vector<80x128xf32>
    tpu.vector_store %arg6[%c0_107, %c0_108], %102 {strides = array<i32>} : memref<80x128xf32, #tpu.memory_space<vmem>>, vector<80x128xf32>,
    %c10_i32 = arith.constant 10 : i32
    %104 = arith.addi %1, %c10_i32 : i32
    %c0_109 = arith.constant 0 : index
    %c0_110 = arith.constant 0 : index
    %105 = arith.index_cast %104 : i32 to index
    %c0_111 = arith.constant 0 : index
    %106 = vector.load %arg2[%c0_109, %c0_110, %105, %c0_111] : memref<1x4x104x128xf32, #tpu.memory_space<vmem>>, vector<1x1x80x128xf32>
    %107 = vector.shape_cast %106 : vector<1x1x80x128xf32> to vector<80x128xf32>
    %c0_112 = arith.constant 0 : index
    %c0_113 = arith.constant 0 : index
    %108 = vector.load %arg6[%c0_112, %c0_113] : memref<80x128xf32, #tpu.memory_space<vmem>>, vector<80x128xf32>
    %c10 = arith.constant 10 : index
    %c0_114 = arith.constant 0 : index
    %c0_115 = arith.constant 0 : index
    %109 = vector.load %arg3[%c10, %c0_114, %c0_115] : memref<25x128x128xf32, #tpu.memory_space<vmem>>, vector<1x128x128xf32>
    %110 = vector.shape_cast %109 : vector<1x128x128xf32> to vector<128x128xf32>
    %cst_116 = arith.constant dense<0.000000e+00> : vector<80x128xf32>
    %111 = tpu.matmul %107, %110, %cst_116 {dimension_numbers = #tpu.dot_dimension_numbers<[1], [0], [0], [1], [0, 0, 1, 1], [], []>} : vector<80x128xf32>, vector<128x128xf32>, vector<80x128xf32> -> vector<80x128xf32>
    %112 = arith.addf %108, %111 : vector<80x128xf32>
    %c0_117 = arith.constant 0 : index
    %c0_118 = arith.constant 0 : index
    %113 = vector.load %arg6[%c0_117, %c0_118] : memref<80x128xf32, #tpu.memory_space<vmem>>, vector<80x128xf32>
    tpu.vector_store %arg6[%c0_117, %c0_118], %112 {strides = array<i32>} : memref<80x128xf32, #tpu.memory_space<vmem>>, vector<80x128xf32>,
    %c10_i32_119 = arith.constant 10 : i32
    %114 = arith.addi %1, %c10_i32_119 : i32
    %c0_120 = arith.constant 0 : index
    %c1_121 = arith.constant 1 : index
    %115 = arith.index_cast %114 : i32 to index
    %c0_122 = arith.constant 0 : index
    %116 = vector.load %arg2[%c0_120, %c1_121, %115, %c0_122] : memref<1x4x104x128xf32, #tpu.memory_space<vmem>>, vector<1x1x80x128xf32>
    %117 = vector.shape_cast %116 : vector<1x1x80x128xf32> to vector<80x128xf32>
    %c0_123 = arith.constant 0 : index
    %c0_124 = arith.constant 0 : index
    %118 = vector.load %arg6[%c0_123, %c0_124] : memref<80x128xf32, #tpu.memory_space<vmem>>, vector<80x128xf32>
    %c11 = arith.constant 11 : index
    %c0_125 = arith.constant 0 : index
    %c0_126 = arith.constant 0 : index
    %119 = vector.load %arg3[%c11, %c0_125, %c0_126] : memref<25x128x128xf32, #tpu.memory_space<vmem>>, vector<1x128x128xf32>
    %120 = vector.shape_cast %119 : vector<1x128x128xf32> to vector<128x128xf32>
    %cst_127 = arith.constant dense<0.000000e+00> : vector<80x128xf32>
    %121 = tpu.matmul %117, %120, %cst_127 {dimension_numbers = #tpu.dot_dimension_numbers<[1], [0], [0], [1], [0, 0, 1, 1], [], []>} : vector<80x128xf32>, vector<128x128xf32>, vector<80x128xf32> -> vector<80x128xf32>
    %122 = arith.addf %118, %121 : vector<80x128xf32>
    %c0_128 = arith.constant 0 : index
    %c0_129 = arith.constant 0 : index
    %123 = vector.load %arg6[%c0_128, %c0_129] : memref<80x128xf32, #tpu.memory_space<vmem>>, vector<80x128xf32>
    tpu.vector_store %arg6[%c0_128, %c0_129], %122 {strides = array<i32>} : memref<80x128xf32, #tpu.memory_space<vmem>>, vector<80x128xf32>,
    %c11_i32 = arith.constant 11 : i32
    %124 = arith.addi %1, %c11_i32 : i32
    %c0_130 = arith.constant 0 : index
    %c0_131 = arith.constant 0 : index
    %125 = arith.index_cast %124 : i32 to index
    %c0_132 = arith.constant 0 : index
    %126 = vector.load %arg2[%c0_130, %c0_131, %125, %c0_132] : memref<1x4x104x128xf32, #tpu.memory_space<vmem>>, vector<1x1x80x128xf32>
    %127 = vector.shape_cast %126 : vector<1x1x80x128xf32> to vector<80x128xf32>
    %c0_133 = arith.constant 0 : index
    %c0_134 = arith.constant 0 : index
    %128 = vector.load %arg6[%c0_133, %c0_134] : memref<80x128xf32, #tpu.memory_space<vmem>>, vector<80x128xf32>
    %c12 = arith.constant 12 : index
    %c0_135 = arith.constant 0 : index
    %c0_136 = arith.constant 0 : index
    %129 = vector.load %arg3[%c12, %c0_135, %c0_136] : memref<25x128x128xf32, #tpu.memory_space<vmem>>, vector<1x128x128xf32>
    %130 = vector.shape_cast %129 : vector<1x128x128xf32> to vector<128x128xf32>
    %cst_137 = arith.constant dense<0.000000e+00> : vector<80x128xf32>
    %131 = tpu.matmul %127, %130, %cst_137 {dimension_numbers = #tpu.dot_dimension_numbers<[1], [0], [0], [1], [0, 0, 1, 1], [], []>} : vector<80x128xf32>, vector<128x128xf32>, vector<80x128xf32> -> vector<80x128xf32>
    %132 = arith.addf %128, %131 : vector<80x128xf32>
    %c0_138 = arith.constant 0 : index
    %c0_139 = arith.constant 0 : index
    %133 = vector.load %arg6[%c0_138, %c0_139] : memref<80x128xf32, #tpu.memory_space<vmem>>, vector<80x128xf32>
    tpu.vector_store %arg6[%c0_138, %c0_139], %132 {strides = array<i32>} : memref<80x128xf32, #tpu.memory_space<vmem>>, vector<80x128xf32>,
    %c11_i32_140 = arith.constant 11 : i32
    %134 = arith.addi %1, %c11_i32_140 : i32
    %c0_141 = arith.constant 0 : index
    %c1_142 = arith.constant 1 : index
    %135 = arith.index_cast %134 : i32 to index
    %c0_143 = arith.constant 0 : index
    %136 = vector.load %arg2[%c0_141, %c1_142, %135, %c0_143] : memref<1x4x104x128xf32, #tpu.memory_space<vmem>>, vector<1x1x80x128xf32>
    %137 = vector.shape_cast %136 : vector<1x1x80x128xf32> to vector<80x128xf32>
    %c0_144 = arith.constant 0 : index
    %c0_145 = arith.constant 0 : index
    %138 = vector.load %arg6[%c0_144, %c0_145] : memref<80x128xf32, #tpu.memory_space<vmem>>, vector<80x128xf32>
    %c13 = arith.constant 13 : index
    %c0_146 = arith.constant 0 : index
    %c0_147 = arith.constant 0 : index
    %139 = vector.load %arg3[%c13, %c0_146, %c0_147] : memref<25x128x128xf32, #tpu.memory_space<vmem>>, vector<1x128x128xf32>
    %140 = vector.shape_cast %139 : vector<1x128x128xf32> to vector<128x128xf32>
    %cst_148 = arith.constant dense<0.000000e+00> : vector<80x128xf32>
    %141 = tpu.matmul %137, %140, %cst_148 {dimension_numbers = #tpu.dot_dimension_numbers<[1], [0], [0], [1], [0, 0, 1, 1], [], []>} : vector<80x128xf32>, vector<128x128xf32>, vector<80x128xf32> -> vector<80x128xf32>
    %142 = arith.addf %138, %141 : vector<80x128xf32>
    %c0_149 = arith.constant 0 : index
    %c0_150 = arith.constant 0 : index
    %143 = vector.load %arg6[%c0_149, %c0_150] : memref<80x128xf32, #tpu.memory_space<vmem>>, vector<80x128xf32>
    tpu.vector_store %arg6[%c0_149, %c0_150], %142 {strides = array<i32>} : memref<80x128xf32, #tpu.memory_space<vmem>>, vector<80x128xf32>,
    %c12_i32 = arith.constant 12 : i32
    %144 = arith.addi %1, %c12_i32 : i32
    %c0_151 = arith.constant 0 : index
    %c0_152 = arith.constant 0 : index
    %145 = arith.index_cast %144 : i32 to index
    %c0_153 = arith.constant 0 : index
    %146 = vector.load %arg2[%c0_151, %c0_152, %145, %c0_153] : memref<1x4x104x128xf32, #tpu.memory_space<vmem>>, vector<1x1x80x128xf32>
    %147 = vector.shape_cast %146 : vector<1x1x80x128xf32> to vector<80x128xf32>
    %c0_154 = arith.constant 0 : index
    %c0_155 = arith.constant 0 : index
    %148 = vector.load %arg6[%c0_154, %c0_155] : memref<80x128xf32, #tpu.memory_space<vmem>>, vector<80x128xf32>
    %c14 = arith.constant 14 : index
    %c0_156 = arith.constant 0 : index
    %c0_157 = arith.constant 0 : index
    %149 = vector.load %arg3[%c14, %c0_156, %c0_157] : memref<25x128x128xf32, #tpu.memory_space<vmem>>, vector<1x128x128xf32>
    %150 = vector.shape_cast %149 : vector<1x128x128xf32> to vector<128x128xf32>
    %cst_158 = arith.constant dense<0.000000e+00> : vector<80x128xf32>
    %151 = tpu.matmul %147, %150, %cst_158 {dimension_numbers = #tpu.dot_dimension_numbers<[1], [0], [0], [1], [0, 0, 1, 1], [], []>} : vector<80x128xf32>, vector<128x128xf32>, vector<80x128xf32> -> vector<80x128xf32>
    %152 = arith.addf %148, %151 : vector<80x128xf32>
    %c0_159 = arith.constant 0 : index
    %c0_160 = arith.constant 0 : index
    %153 = vector.load %arg6[%c0_159, %c0_160] : memref<80x128xf32, #tpu.memory_space<vmem>>, vector<80x128xf32>
    tpu.vector_store %arg6[%c0_159, %c0_160], %152 {strides = array<i32>} : memref<80x128xf32, #tpu.memory_space<vmem>>, vector<80x128xf32>,
    %c10_i32_161 = arith.constant 10 : i32
    %154 = arith.addi %1, %c10_i32_161 : i32
    %c0_162 = arith.constant 0 : index
    %c2_163 = arith.constant 2 : index
    %155 = arith.index_cast %154 : i32 to index
    %c0_164 = arith.constant 0 : index
    %156 = vector.load %arg2[%c0_162, %c2_163, %155, %c0_164] : memref<1x4x104x128xf32, #tpu.memory_space<vmem>>, vector<1x1x80x128xf32>
    %157 = vector.shape_cast %156 : vector<1x1x80x128xf32> to vector<80x128xf32>
    %c0_165 = arith.constant 0 : index
    %c0_166 = arith.constant 0 : index
    %158 = vector.load %arg6[%c0_165, %c0_166] : memref<80x128xf32, #tpu.memory_space<vmem>>, vector<80x128xf32>
    %c15 = arith.constant 15 : index
    %c0_167 = arith.constant 0 : index
    %c0_168 = arith.constant 0 : index
    %159 = vector.load %arg3[%c15, %c0_167, %c0_168] : memref<25x128x128xf32, #tpu.memory_space<vmem>>, vector<1x128x128xf32>
    %160 = vector.shape_cast %159 : vector<1x128x128xf32> to vector<128x128xf32>
    %cst_169 = arith.constant dense<0.000000e+00> : vector<80x128xf32>
    %161 = tpu.matmul %157, %160, %cst_169 {dimension_numbers = #tpu.dot_dimension_numbers<[1], [0], [0], [1], [0, 0, 1, 1], [], []>} : vector<80x128xf32>, vector<128x128xf32>, vector<80x128xf32> -> vector<80x128xf32>
    %162 = arith.addf %158, %161 : vector<80x128xf32>
    %c0_170 = arith.constant 0 : index
    %c0_171 = arith.constant 0 : index
    %163 = vector.load %arg6[%c0_170, %c0_171] : memref<80x128xf32, #tpu.memory_space<vmem>>, vector<80x128xf32>
    tpu.vector_store %arg6[%c0_170, %c0_171], %162 {strides = array<i32>} : memref<80x128xf32, #tpu.memory_space<vmem>>, vector<80x128xf32>,
    %c10_i32_172 = arith.constant 10 : i32
    %164 = arith.addi %1, %c10_i32_172 : i32
    %c0_173 = arith.constant 0 : index
    %c3_174 = arith.constant 3 : index
    %165 = arith.index_cast %164 : i32 to index
    %c0_175 = arith.constant 0 : index
    %166 = vector.load %arg2[%c0_173, %c3_174, %165, %c0_175] : memref<1x4x104x128xf32, #tpu.memory_space<vmem>>, vector<1x1x80x128xf32>
    %167 = vector.shape_cast %166 : vector<1x1x80x128xf32> to vector<80x128xf32>
    %c0_176 = arith.constant 0 : index
    %c0_177 = arith.constant 0 : index
    %168 = vector.load %arg6[%c0_176, %c0_177] : memref<80x128xf32, #tpu.memory_space<vmem>>, vector<80x128xf32>
    %c16 = arith.constant 16 : index
    %c0_178 = arith.constant 0 : index
    %c0_179 = arith.constant 0 : index
    %169 = vector.load %arg3[%c16, %c0_178, %c0_179] : memref<25x128x128xf32, #tpu.memory_space<vmem>>, vector<1x128x128xf32>
    %170 = vector.shape_cast %169 : vector<1x128x128xf32> to vector<128x128xf32>
    %cst_180 = arith.constant dense<0.000000e+00> : vector<80x128xf32>
    %171 = tpu.matmul %167, %170, %cst_180 {dimension_numbers = #tpu.dot_dimension_numbers<[1], [0], [0], [1], [0, 0, 1, 1], [], []>} : vector<80x128xf32>, vector<128x128xf32>, vector<80x128xf32> -> vector<80x128xf32>
    %172 = arith.addf %168, %171 : vector<80x128xf32>
    %c0_181 = arith.constant 0 : index
    %c0_182 = arith.constant 0 : index
    %173 = vector.load %arg6[%c0_181, %c0_182] : memref<80x128xf32, #tpu.memory_space<vmem>>, vector<80x128xf32>
    tpu.vector_store %arg6[%c0_181, %c0_182], %172 {strides = array<i32>} : memref<80x128xf32, #tpu.memory_space<vmem>>, vector<80x128xf32>,
    %c11_i32_183 = arith.constant 11 : i32
    %174 = arith.addi %1, %c11_i32_183 : i32
    %c0_184 = arith.constant 0 : index
    %c2_185 = arith.constant 2 : index
    %175 = arith.index_cast %174 : i32 to index
    %c0_186 = arith.constant 0 : index
    %176 = vector.load %arg2[%c0_184, %c2_185, %175, %c0_186] : memref<1x4x104x128xf32, #tpu.memory_space<vmem>>, vector<1x1x80x128xf32>
    %177 = vector.shape_cast %176 : vector<1x1x80x128xf32> to vector<80x128xf32>
    %c0_187 = arith.constant 0 : index
    %c0_188 = arith.constant 0 : index
    %178 = vector.load %arg6[%c0_187, %c0_188] : memref<80x128xf32, #tpu.memory_space<vmem>>, vector<80x128xf32>
    %c17 = arith.constant 17 : index
    %c0_189 = arith.constant 0 : index
    %c0_190 = arith.constant 0 : index
    %179 = vector.load %arg3[%c17, %c0_189, %c0_190] : memref<25x128x128xf32, #tpu.memory_space<vmem>>, vector<1x128x128xf32>
    %180 = vector.shape_cast %179 : vector<1x128x128xf32> to vector<128x128xf32>
    %cst_191 = arith.constant dense<0.000000e+00> : vector<80x128xf32>
    %181 = tpu.matmul %177, %180, %cst_191 {dimension_numbers = #tpu.dot_dimension_numbers<[1], [0], [0], [1], [0, 0, 1, 1], [], []>} : vector<80x128xf32>, vector<128x128xf32>, vector<80x128xf32> -> vector<80x128xf32>
    %182 = arith.addf %178, %181 : vector<80x128xf32>
    %c0_192 = arith.constant 0 : index
    %c0_193 = arith.constant 0 : index
    %183 = vector.load %arg6[%c0_192, %c0_193] : memref<80x128xf32, #tpu.memory_space<vmem>>, vector<80x128xf32>
    tpu.vector_store %arg6[%c0_192, %c0_193], %182 {strides = array<i32>} : memref<80x128xf32, #tpu.memory_space<vmem>>, vector<80x128xf32>,
    %c11_i32_194 = arith.constant 11 : i32
    %184 = arith.addi %1, %c11_i32_194 : i32
    %c0_195 = arith.constant 0 : index
    %c3_196 = arith.constant 3 : index
    %185 = arith.index_cast %184 : i32 to index
    %c0_197 = arith.constant 0 : index
    %186 = vector.load %arg2[%c0_195, %c3_196, %185, %c0_197] : memref<1x4x104x128xf32, #tpu.memory_space<vmem>>, vector<1x1x80x128xf32>
    %187 = vector.shape_cast %186 : vector<1x1x80x128xf32> to vector<80x128xf32>
    %c0_198 = arith.constant 0 : index
    %c0_199 = arith.constant 0 : index
    %188 = vector.load %arg6[%c0_198, %c0_199] : memref<80x128xf32, #tpu.memory_space<vmem>>, vector<80x128xf32>
    %c18 = arith.constant 18 : index
    %c0_200 = arith.constant 0 : index
    %c0_201 = arith.constant 0 : index
    %189 = vector.load %arg3[%c18, %c0_200, %c0_201] : memref<25x128x128xf32, #tpu.memory_space<vmem>>, vector<1x128x128xf32>
    %190 = vector.shape_cast %189 : vector<1x128x128xf32> to vector<128x128xf32>
    %cst_202 = arith.constant dense<0.000000e+00> : vector<80x128xf32>
    %191 = tpu.matmul %187, %190, %cst_202 {dimension_numbers = #tpu.dot_dimension_numbers<[1], [0], [0], [1], [0, 0, 1, 1], [], []>} : vector<80x128xf32>, vector<128x128xf32>, vector<80x128xf32> -> vector<80x128xf32>
    %192 = arith.addf %188, %191 : vector<80x128xf32>
    %c0_203 = arith.constant 0 : index
    %c0_204 = arith.constant 0 : index
    %193 = vector.load %arg6[%c0_203, %c0_204] : memref<80x128xf32, #tpu.memory_space<vmem>>, vector<80x128xf32>
    tpu.vector_store %arg6[%c0_203, %c0_204], %192 {strides = array<i32>} : memref<80x128xf32, #tpu.memory_space<vmem>>, vector<80x128xf32>,
    %c12_i32_205 = arith.constant 12 : i32
    %194 = arith.addi %1, %c12_i32_205 : i32
    %c0_206 = arith.constant 0 : index
    %c2_207 = arith.constant 2 : index
    %195 = arith.index_cast %194 : i32 to index
    %c0_208 = arith.constant 0 : index
    %196 = vector.load %arg2[%c0_206, %c2_207, %195, %c0_208] : memref<1x4x104x128xf32, #tpu.memory_space<vmem>>, vector<1x1x80x128xf32>
    %197 = vector.shape_cast %196 : vector<1x1x80x128xf32> to vector<80x128xf32>
    %c0_209 = arith.constant 0 : index
    %c0_210 = arith.constant 0 : index
    %198 = vector.load %arg6[%c0_209, %c0_210] : memref<80x128xf32, #tpu.memory_space<vmem>>, vector<80x128xf32>
    %c19 = arith.constant 19 : index
    %c0_211 = arith.constant 0 : index
    %c0_212 = arith.constant 0 : index
    %199 = vector.load %arg3[%c19, %c0_211, %c0_212] : memref<25x128x128xf32, #tpu.memory_space<vmem>>, vector<1x128x128xf32>
    %200 = vector.shape_cast %199 : vector<1x128x128xf32> to vector<128x128xf32>
    %cst_213 = arith.constant dense<0.000000e+00> : vector<80x128xf32>
    %201 = tpu.matmul %197, %200, %cst_213 {dimension_numbers = #tpu.dot_dimension_numbers<[1], [0], [0], [1], [0, 0, 1, 1], [], []>} : vector<80x128xf32>, vector<128x128xf32>, vector<80x128xf32> -> vector<80x128xf32>
    %202 = arith.addf %198, %201 : vector<80x128xf32>
    %c0_214 = arith.constant 0 : index
    %c0_215 = arith.constant 0 : index
    %203 = vector.load %arg6[%c0_214, %c0_215] : memref<80x128xf32, #tpu.memory_space<vmem>>, vector<80x128xf32>
    tpu.vector_store %arg6[%c0_214, %c0_215], %202 {strides = array<i32>} : memref<80x128xf32, #tpu.memory_space<vmem>>, vector<80x128xf32>,
    %c20_i32 = arith.constant 20 : i32
    %204 = arith.addi %1, %c20_i32 : i32
    %c0_216 = arith.constant 0 : index
    %c0_217 = arith.constant 0 : index
    %205 = arith.index_cast %204 : i32 to index
    %c0_218 = arith.constant 0 : index
    %206 = vector.load %arg2[%c0_216, %c0_217, %205, %c0_218] : memref<1x4x104x128xf32, #tpu.memory_space<vmem>>, vector<1x1x80x128xf32>
    %207 = vector.shape_cast %206 : vector<1x1x80x128xf32> to vector<80x128xf32>
    %c0_219 = arith.constant 0 : index
    %c0_220 = arith.constant 0 : index
    %208 = vector.load %arg6[%c0_219, %c0_220] : memref<80x128xf32, #tpu.memory_space<vmem>>, vector<80x128xf32>
    %c20 = arith.constant 20 : index
    %c0_221 = arith.constant 0 : index
    %c0_222 = arith.constant 0 : index
    %209 = vector.load %arg3[%c20, %c0_221, %c0_222] : memref<25x128x128xf32, #tpu.memory_space<vmem>>, vector<1x128x128xf32>
    %210 = vector.shape_cast %209 : vector<1x128x128xf32> to vector<128x128xf32>
    %cst_223 = arith.constant dense<0.000000e+00> : vector<80x128xf32>
    %211 = tpu.matmul %207, %210, %cst_223 {dimension_numbers = #tpu.dot_dimension_numbers<[1], [0], [0], [1], [0, 0, 1, 1], [], []>} : vector<80x128xf32>, vector<128x128xf32>, vector<80x128xf32> -> vector<80x128xf32>
    %212 = arith.addf %208, %211 : vector<80x128xf32>
    %c0_224 = arith.constant 0 : index
    %c0_225 = arith.constant 0 : index
    %213 = vector.load %arg6[%c0_224, %c0_225] : memref<80x128xf32, #tpu.memory_space<vmem>>, vector<80x128xf32>
    tpu.vector_store %arg6[%c0_224, %c0_225], %212 {strides = array<i32>} : memref<80x128xf32, #tpu.memory_space<vmem>>, vector<80x128xf32>,
    %c20_i32_226 = arith.constant 20 : i32
    %214 = arith.addi %1, %c20_i32_226 : i32
    %c0_227 = arith.constant 0 : index
    %c1_228 = arith.constant 1 : index
    %215 = arith.index_cast %214 : i32 to index
    %c0_229 = arith.constant 0 : index
    %216 = vector.load %arg2[%c0_227, %c1_228, %215, %c0_229] : memref<1x4x104x128xf32, #tpu.memory_space<vmem>>, vector<1x1x80x128xf32>
    %217 = vector.shape_cast %216 : vector<1x1x80x128xf32> to vector<80x128xf32>
    %c0_230 = arith.constant 0 : index
    %c0_231 = arith.constant 0 : index
    %218 = vector.load %arg6[%c0_230, %c0_231] : memref<80x128xf32, #tpu.memory_space<vmem>>, vector<80x128xf32>
    %c21 = arith.constant 21 : index
    %c0_232 = arith.constant 0 : index
    %c0_233 = arith.constant 0 : index
    %219 = vector.load %arg3[%c21, %c0_232, %c0_233] : memref<25x128x128xf32, #tpu.memory_space<vmem>>, vector<1x128x128xf32>
    %220 = vector.shape_cast %219 : vector<1x128x128xf32> to vector<128x128xf32>
    %cst_234 = arith.constant dense<0.000000e+00> : vector<80x128xf32>
    %221 = tpu.matmul %217, %220, %cst_234 {dimension_numbers = #tpu.dot_dimension_numbers<[1], [0], [0], [1], [0, 0, 1, 1], [], []>} : vector<80x128xf32>, vector<128x128xf32>, vector<80x128xf32> -> vector<80x128xf32>
    %222 = arith.addf %218, %221 : vector<80x128xf32>
    %c0_235 = arith.constant 0 : index
    %c0_236 = arith.constant 0 : index
    %223 = vector.load %arg6[%c0_235, %c0_236] : memref<80x128xf32, #tpu.memory_space<vmem>>, vector<80x128xf32>
    tpu.vector_store %arg6[%c0_235, %c0_236], %222 {strides = array<i32>} : memref<80x128xf32, #tpu.memory_space<vmem>>, vector<80x128xf32>,
    %c21_i32 = arith.constant 21 : i32
    %224 = arith.addi %1, %c21_i32 : i32
    %c0_237 = arith.constant 0 : index
    %c0_238 = arith.constant 0 : index
    %225 = arith.index_cast %224 : i32 to index
    %c0_239 = arith.constant 0 : index
    %226 = vector.load %arg2[%c0_237, %c0_238, %225, %c0_239] : memref<1x4x104x128xf32, #tpu.memory_space<vmem>>, vector<1x1x80x128xf32>
    %227 = vector.shape_cast %226 : vector<1x1x80x128xf32> to vector<80x128xf32>
    %c0_240 = arith.constant 0 : index
    %c0_241 = arith.constant 0 : index
    %228 = vector.load %arg6[%c0_240, %c0_241] : memref<80x128xf32, #tpu.memory_space<vmem>>, vector<80x128xf32>
    %c22 = arith.constant 22 : index
    %c0_242 = arith.constant 0 : index
    %c0_243 = arith.constant 0 : index
    %229 = vector.load %arg3[%c22, %c0_242, %c0_243] : memref<25x128x128xf32, #tpu.memory_space<vmem>>, vector<1x128x128xf32>
    %230 = vector.shape_cast %229 : vector<1x128x128xf32> to vector<128x128xf32>
    %cst_244 = arith.constant dense<0.000000e+00> : vector<80x128xf32>
    %231 = tpu.matmul %227, %230, %cst_244 {dimension_numbers = #tpu.dot_dimension_numbers<[1], [0], [0], [1], [0, 0, 1, 1], [], []>} : vector<80x128xf32>, vector<128x128xf32>, vector<80x128xf32> -> vector<80x128xf32>
    %232 = arith.addf %228, %231 : vector<80x128xf32>
    %c0_245 = arith.constant 0 : index
    %c0_246 = arith.constant 0 : index
    %233 = vector.load %arg6[%c0_245, %c0_246] : memref<80x128xf32, #tpu.memory_space<vmem>>, vector<80x128xf32>
    tpu.vector_store %arg6[%c0_245, %c0_246], %232 {strides = array<i32>} : memref<80x128xf32, #tpu.memory_space<vmem>>, vector<80x128xf32>,
    %c21_i32_247 = arith.constant 21 : i32
    %234 = arith.addi %1, %c21_i32_247 : i32
    %c0_248 = arith.constant 0 : index
    %c1_249 = arith.constant 1 : index
    %235 = arith.index_cast %234 : i32 to index
    %c0_250 = arith.constant 0 : index
    %236 = vector.load %arg2[%c0_248, %c1_249, %235, %c0_250] : memref<1x4x104x128xf32, #tpu.memory_space<vmem>>, vector<1x1x80x128xf32>
    %237 = vector.shape_cast %236 : vector<1x1x80x128xf32> to vector<80x128xf32>
    %c0_251 = arith.constant 0 : index
    %c0_252 = arith.constant 0 : index
    %238 = vector.load %arg6[%c0_251, %c0_252] : memref<80x128xf32, #tpu.memory_space<vmem>>, vector<80x128xf32>
    %c23 = arith.constant 23 : index
    %c0_253 = arith.constant 0 : index
    %c0_254 = arith.constant 0 : index
    %239 = vector.load %arg3[%c23, %c0_253, %c0_254] : memref<25x128x128xf32, #tpu.memory_space<vmem>>, vector<1x128x128xf32>
    %240 = vector.shape_cast %239 : vector<1x128x128xf32> to vector<128x128xf32>
    %cst_255 = arith.constant dense<0.000000e+00> : vector<80x128xf32>
    %241 = tpu.matmul %237, %240, %cst_255 {dimension_numbers = #tpu.dot_dimension_numbers<[1], [0], [0], [1], [0, 0, 1, 1], [], []>} : vector<80x128xf32>, vector<128x128xf32>, vector<80x128xf32> -> vector<80x128xf32>
    %242 = arith.addf %238, %241 : vector<80x128xf32>
    %c0_256 = arith.constant 0 : index
    %c0_257 = arith.constant 0 : index
    %243 = vector.load %arg6[%c0_256, %c0_257] : memref<80x128xf32, #tpu.memory_space<vmem>>, vector<80x128xf32>
    tpu.vector_store %arg6[%c0_256, %c0_257], %242 {strides = array<i32>} : memref<80x128xf32, #tpu.memory_space<vmem>>, vector<80x128xf32>,
    %c22_i32 = arith.constant 22 : i32
    %244 = arith.addi %1, %c22_i32 : i32
    %c0_258 = arith.constant 0 : index
    %c0_259 = arith.constant 0 : index
    %245 = arith.index_cast %244 : i32 to index
    %c0_260 = arith.constant 0 : index
    %246 = vector.load %arg2[%c0_258, %c0_259, %245, %c0_260] : memref<1x4x104x128xf32, #tpu.memory_space<vmem>>, vector<1x1x80x128xf32>
    %247 = vector.shape_cast %246 : vector<1x1x80x128xf32> to vector<80x128xf32>
    %c0_261 = arith.constant 0 : index
    %c0_262 = arith.constant 0 : index
    %248 = vector.load %arg6[%c0_261, %c0_262] : memref<80x128xf32, #tpu.memory_space<vmem>>, vector<80x128xf32>
    %c24 = arith.constant 24 : index
    %c0_263 = arith.constant 0 : index
    %c0_264 = arith.constant 0 : index
    %249 = vector.load %arg3[%c24, %c0_263, %c0_264] : memref<25x128x128xf32, #tpu.memory_space<vmem>>, vector<1x128x128xf32>
    %250 = vector.shape_cast %249 : vector<1x128x128xf32> to vector<128x128xf32>
    %cst_265 = arith.constant dense<0.000000e+00> : vector<80x128xf32>
    %251 = tpu.matmul %247, %250, %cst_265 {dimension_numbers = #tpu.dot_dimension_numbers<[1], [0], [0], [1], [0, 0, 1, 1], [], []>} : vector<80x128xf32>, vector<128x128xf32>, vector<80x128xf32> -> vector<80x128xf32>
    %252 = arith.addf %248, %251 : vector<80x128xf32>
    %c0_266 = arith.constant 0 : index
    %c0_267 = arith.constant 0 : index
    %253 = vector.load %arg6[%c0_266, %c0_267] : memref<80x128xf32, #tpu.memory_space<vmem>>, vector<80x128xf32>
    tpu.vector_store %arg6[%c0_266, %c0_267], %252 {strides = array<i32>} : memref<80x128xf32, #tpu.memory_space<vmem>>, vector<80x128xf32>,
    %c0_268 = arith.constant 0 : index
    %c0_269 = arith.constant 0 : index
    %254 = vector.load %arg6[%c0_268, %c0_269] : memref<80x128xf32, #tpu.memory_space<vmem>>, vector<80x128xf32>
    %c0_270 = arith.constant 0 : index
    %c0_271 = arith.constant 0 : index
    %255 = vector.load %arg4[%c0_270, %c0_271] : memref<1x128xf32, #tpu.memory_space<vmem>>, vector<1x128xf32>
    %256 = vector.broadcast %255 : vector<1x128xf32> to vector<80x128xf32>
    %257 = arith.addf %254, %256 : vector<80x128xf32>
    %cst_272 = arith.constant 0.000000e+00 : f32
    %258 = vector.broadcast %cst_272 : f32 to vector<80x128xf32>
    %259 = arith.maximumf %257, %258 : vector<80x128xf32>
    %c0_273 = arith.constant 0 : index
    %c0_274 = arith.constant 0 : index
    %c0_275 = arith.constant 0 : index
    %260 = vector.load %arg5[%c0_273, %c0_274, %c0_275] : memref<1x80x128xf32, #tpu.memory_space<vmem>>, vector<1x80x128xf32>
    %261 = vector.shape_cast %260 : vector<1x80x128xf32> to vector<80x128xf32>
    %262 = vector.shape_cast %259 : vector<80x128xf32> to vector<1x80x128xf32>
    tpu.vector_store %arg5[%c0_273, %c0_274, %c0_275], %262 {strides = array<i32>} : memref<1x80x128xf32, #tpu.memory_space<vmem>>, vector<1x80x128xf32>,
    return
  }
  func.func @transform_0(%arg0: i32, %arg1: i32) -> (i32, i32, i32, i32) {
    %c0_i32 = arith.constant 0 : i32
    %c0_i32_0 = arith.constant 0 : i32
    %c0_i32_1 = arith.constant 0 : i32
    %c0_i32_2 = arith.constant 0 : i32
    return %arg0, %c0_i32, %c0_i32_0, %c0_i32_1 : i32, i32, i32, i32
  }
  func.func @transform_1(%arg0: i32, %arg1: i32) -> (i32, i32, i32) {
    %c0_i32 = arith.constant 0 : i32
    %c0_i32_0 = arith.constant 0 : i32
    %c0_i32_1 = arith.constant 0 : i32
    %c0_i32_2 = arith.constant 0 : i32
    return %c0_i32, %c0_i32_0, %c0_i32_1 : i32, i32, i32
  }
  func.func @transform_2(%arg0: i32, %arg1: i32) -> (i32, i32) {
    %c0_i32 = arith.constant 0 : i32
    %c0_i32_0 = arith.constant 0 : i32
    %c0_i32_1 = arith.constant 0 : i32
    return %c0_i32, %c0_i32_0 : i32, i32
  }
  func.func @transform_3(%arg0: i32, %arg1: i32) -> (i32, i32, i32) {
    %c0_i32 = arith.constant 0 : i32
    %c0_i32_0 = arith.constant 0 : i32
    return %arg0, %arg1, %c0_i32 : i32, i32, i32
  }
}

module attributes {stable_mosaic.version = 11 : i64} {
  func.func @_conv_taps_kernel(%arg0: i32, %arg1: i32, %arg2: memref<1x4x40x128xf32, #tpu.memory_space<vmem>>, %arg3: memref<25x128x128xf32, #tpu.memory_space<vmem>>, %arg4: memref<1x128xf32, #tpu.memory_space<vmem>>, %arg5: memref<1x24x128xf32, #tpu.memory_space<vmem>>, %arg6: memref<24x128xf32, #tpu.memory_space<vmem>>) attributes {dimension_semantics = [#tpu.dimension_semantics<parallel>, #tpu.dimension_semantics<parallel>], iteration_bounds = array<i64: 2, 1>, scalar_prefetch = 0 : i64, scratch_operands = 1 : i64, tpu.core_type = #tpu.core_type<tc>, window_params = [{transform_indices = @transform_0, window_bounds = array<i64: 1, 4, 40, 128>}, {pipeline_mode = #tpu.pipeline_mode<synchronous>, transform_indices = @transform_1, window_bounds = array<i64: 25, 128, 128>}, {pipeline_mode = #tpu.pipeline_mode<synchronous>, transform_indices = @transform_2, window_bounds = array<i64: 1, 128>}, {transform_indices = @transform_3, window_bounds = array<i64: 1, 24, 128>}]} {
    %c24_i32 = arith.constant 24 : i32
    %0 = arith.muli %arg1, %c24_i32 : i32
    %1 = tpu.assume_multiple %0, 8 : i32
    %cst = arith.constant 0.000000e+00 : f32
    %2 = vector.broadcast %cst : f32 to vector<24x128xf32>
    %c0 = arith.constant 0 : index
    %c0_0 = arith.constant 0 : index
    %3 = vector.load %arg6[%c0, %c0_0] : memref<24x128xf32, #tpu.memory_space<vmem>>, vector<24x128xf32>
    tpu.vector_store %arg6[%c0, %c0_0], %2 {strides = array<i32>} : memref<24x128xf32, #tpu.memory_space<vmem>>, vector<24x128xf32>,
    %c0_i32 = arith.constant 0 : i32
    %4 = arith.addi %1, %c0_i32 : i32
    %c0_1 = arith.constant 0 : index
    %c0_2 = arith.constant 0 : index
    %5 = arith.index_cast %4 : i32 to index
    %c0_3 = arith.constant 0 : index
    %6 = vector.load %arg2[%c0_1, %c0_2, %5, %c0_3] : memref<1x4x40x128xf32, #tpu.memory_space<vmem>>, vector<1x1x24x128xf32>
    %7 = vector.shape_cast %6 : vector<1x1x24x128xf32> to vector<24x128xf32>
    %c0_4 = arith.constant 0 : index
    %c0_5 = arith.constant 0 : index
    %8 = vector.load %arg6[%c0_4, %c0_5] : memref<24x128xf32, #tpu.memory_space<vmem>>, vector<24x128xf32>
    %c0_6 = arith.constant 0 : index
    %c0_7 = arith.constant 0 : index
    %c0_8 = arith.constant 0 : index
    %9 = vector.load %arg3[%c0_6, %c0_7, %c0_8] : memref<25x128x128xf32, #tpu.memory_space<vmem>>, vector<1x128x128xf32>
    %10 = vector.shape_cast %9 : vector<1x128x128xf32> to vector<128x128xf32>
    %cst_9 = arith.constant dense<0.000000e+00> : vector<24x128xf32>
    %11 = tpu.matmul %7, %10, %cst_9 {dimension_numbers = #tpu.dot_dimension_numbers<[1], [0], [0], [1], [0, 0, 1, 1], [], []>} : vector<24x128xf32>, vector<128x128xf32>, vector<24x128xf32> -> vector<24x128xf32>
    %12 = arith.addf %8, %11 : vector<24x128xf32>
    %c0_10 = arith.constant 0 : index
    %c0_11 = arith.constant 0 : index
    %13 = vector.load %arg6[%c0_10, %c0_11] : memref<24x128xf32, #tpu.memory_space<vmem>>, vector<24x128xf32>
    tpu.vector_store %arg6[%c0_10, %c0_11], %12 {strides = array<i32>} : memref<24x128xf32, #tpu.memory_space<vmem>>, vector<24x128xf32>,
    %c0_i32_12 = arith.constant 0 : i32
    %14 = arith.addi %1, %c0_i32_12 : i32
    %c0_13 = arith.constant 0 : index
    %c1 = arith.constant 1 : index
    %15 = arith.index_cast %14 : i32 to index
    %c0_14 = arith.constant 0 : index
    %16 = vector.load %arg2[%c0_13, %c1, %15, %c0_14] : memref<1x4x40x128xf32, #tpu.memory_space<vmem>>, vector<1x1x24x128xf32>
    %17 = vector.shape_cast %16 : vector<1x1x24x128xf32> to vector<24x128xf32>
    %c0_15 = arith.constant 0 : index
    %c0_16 = arith.constant 0 : index
    %18 = vector.load %arg6[%c0_15, %c0_16] : memref<24x128xf32, #tpu.memory_space<vmem>>, vector<24x128xf32>
    %c1_17 = arith.constant 1 : index
    %c0_18 = arith.constant 0 : index
    %c0_19 = arith.constant 0 : index
    %19 = vector.load %arg3[%c1_17, %c0_18, %c0_19] : memref<25x128x128xf32, #tpu.memory_space<vmem>>, vector<1x128x128xf32>
    %20 = vector.shape_cast %19 : vector<1x128x128xf32> to vector<128x128xf32>
    %cst_20 = arith.constant dense<0.000000e+00> : vector<24x128xf32>
    %21 = tpu.matmul %17, %20, %cst_20 {dimension_numbers = #tpu.dot_dimension_numbers<[1], [0], [0], [1], [0, 0, 1, 1], [], []>} : vector<24x128xf32>, vector<128x128xf32>, vector<24x128xf32> -> vector<24x128xf32>
    %22 = arith.addf %18, %21 : vector<24x128xf32>
    %c0_21 = arith.constant 0 : index
    %c0_22 = arith.constant 0 : index
    %23 = vector.load %arg6[%c0_21, %c0_22] : memref<24x128xf32, #tpu.memory_space<vmem>>, vector<24x128xf32>
    tpu.vector_store %arg6[%c0_21, %c0_22], %22 {strides = array<i32>} : memref<24x128xf32, #tpu.memory_space<vmem>>, vector<24x128xf32>,
    %c1_i32 = arith.constant 1 : i32
    %24 = arith.addi %1, %c1_i32 : i32
    %c0_23 = arith.constant 0 : index
    %c0_24 = arith.constant 0 : index
    %25 = arith.index_cast %24 : i32 to index
    %c0_25 = arith.constant 0 : index
    %26 = vector.load %arg2[%c0_23, %c0_24, %25, %c0_25] : memref<1x4x40x128xf32, #tpu.memory_space<vmem>>, vector<1x1x24x128xf32>
    %27 = vector.shape_cast %26 : vector<1x1x24x128xf32> to vector<24x128xf32>
    %c0_26 = arith.constant 0 : index
    %c0_27 = arith.constant 0 : index
    %28 = vector.load %arg6[%c0_26, %c0_27] : memref<24x128xf32, #tpu.memory_space<vmem>>, vector<24x128xf32>
    %c2 = arith.constant 2 : index
    %c0_28 = arith.constant 0 : index
    %c0_29 = arith.constant 0 : index
    %29 = vector.load %arg3[%c2, %c0_28, %c0_29] : memref<25x128x128xf32, #tpu.memory_space<vmem>>, vector<1x128x128xf32>
    %30 = vector.shape_cast %29 : vector<1x128x128xf32> to vector<128x128xf32>
    %cst_30 = arith.constant dense<0.000000e+00> : vector<24x128xf32>
    %31 = tpu.matmul %27, %30, %cst_30 {dimension_numbers = #tpu.dot_dimension_numbers<[1], [0], [0], [1], [0, 0, 1, 1], [], []>} : vector<24x128xf32>, vector<128x128xf32>, vector<24x128xf32> -> vector<24x128xf32>
    %32 = arith.addf %28, %31 : vector<24x128xf32>
    %c0_31 = arith.constant 0 : index
    %c0_32 = arith.constant 0 : index
    %33 = vector.load %arg6[%c0_31, %c0_32] : memref<24x128xf32, #tpu.memory_space<vmem>>, vector<24x128xf32>
    tpu.vector_store %arg6[%c0_31, %c0_32], %32 {strides = array<i32>} : memref<24x128xf32, #tpu.memory_space<vmem>>, vector<24x128xf32>,
    %c1_i32_33 = arith.constant 1 : i32
    %34 = arith.addi %1, %c1_i32_33 : i32
    %c0_34 = arith.constant 0 : index
    %c1_35 = arith.constant 1 : index
    %35 = arith.index_cast %34 : i32 to index
    %c0_36 = arith.constant 0 : index
    %36 = vector.load %arg2[%c0_34, %c1_35, %35, %c0_36] : memref<1x4x40x128xf32, #tpu.memory_space<vmem>>, vector<1x1x24x128xf32>
    %37 = vector.shape_cast %36 : vector<1x1x24x128xf32> to vector<24x128xf32>
    %c0_37 = arith.constant 0 : index
    %c0_38 = arith.constant 0 : index
    %38 = vector.load %arg6[%c0_37, %c0_38] : memref<24x128xf32, #tpu.memory_space<vmem>>, vector<24x128xf32>
    %c3 = arith.constant 3 : index
    %c0_39 = arith.constant 0 : index
    %c0_40 = arith.constant 0 : index
    %39 = vector.load %arg3[%c3, %c0_39, %c0_40] : memref<25x128x128xf32, #tpu.memory_space<vmem>>, vector<1x128x128xf32>
    %40 = vector.shape_cast %39 : vector<1x128x128xf32> to vector<128x128xf32>
    %cst_41 = arith.constant dense<0.000000e+00> : vector<24x128xf32>
    %41 = tpu.matmul %37, %40, %cst_41 {dimension_numbers = #tpu.dot_dimension_numbers<[1], [0], [0], [1], [0, 0, 1, 1], [], []>} : vector<24x128xf32>, vector<128x128xf32>, vector<24x128xf32> -> vector<24x128xf32>
    %42 = arith.addf %38, %41 : vector<24x128xf32>
    %c0_42 = arith.constant 0 : index
    %c0_43 = arith.constant 0 : index
    %43 = vector.load %arg6[%c0_42, %c0_43] : memref<24x128xf32, #tpu.memory_space<vmem>>, vector<24x128xf32>
    tpu.vector_store %arg6[%c0_42, %c0_43], %42 {strides = array<i32>} : memref<24x128xf32, #tpu.memory_space<vmem>>, vector<24x128xf32>,
    %c2_i32 = arith.constant 2 : i32
    %44 = arith.addi %1, %c2_i32 : i32
    %c0_44 = arith.constant 0 : index
    %c0_45 = arith.constant 0 : index
    %45 = arith.index_cast %44 : i32 to index
    %c0_46 = arith.constant 0 : index
    %46 = vector.load %arg2[%c0_44, %c0_45, %45, %c0_46] : memref<1x4x40x128xf32, #tpu.memory_space<vmem>>, vector<1x1x24x128xf32>
    %47 = vector.shape_cast %46 : vector<1x1x24x128xf32> to vector<24x128xf32>
    %c0_47 = arith.constant 0 : index
    %c0_48 = arith.constant 0 : index
    %48 = vector.load %arg6[%c0_47, %c0_48] : memref<24x128xf32, #tpu.memory_space<vmem>>, vector<24x128xf32>
    %c4 = arith.constant 4 : index
    %c0_49 = arith.constant 0 : index
    %c0_50 = arith.constant 0 : index
    %49 = vector.load %arg3[%c4, %c0_49, %c0_50] : memref<25x128x128xf32, #tpu.memory_space<vmem>>, vector<1x128x128xf32>
    %50 = vector.shape_cast %49 : vector<1x128x128xf32> to vector<128x128xf32>
    %cst_51 = arith.constant dense<0.000000e+00> : vector<24x128xf32>
    %51 = tpu.matmul %47, %50, %cst_51 {dimension_numbers = #tpu.dot_dimension_numbers<[1], [0], [0], [1], [0, 0, 1, 1], [], []>} : vector<24x128xf32>, vector<128x128xf32>, vector<24x128xf32> -> vector<24x128xf32>
    %52 = arith.addf %48, %51 : vector<24x128xf32>
    %c0_52 = arith.constant 0 : index
    %c0_53 = arith.constant 0 : index
    %53 = vector.load %arg6[%c0_52, %c0_53] : memref<24x128xf32, #tpu.memory_space<vmem>>, vector<24x128xf32>
    tpu.vector_store %arg6[%c0_52, %c0_53], %52 {strides = array<i32>} : memref<24x128xf32, #tpu.memory_space<vmem>>, vector<24x128xf32>,
    %c0_i32_54 = arith.constant 0 : i32
    %54 = arith.addi %1, %c0_i32_54 : i32
    %c0_55 = arith.constant 0 : index
    %c2_56 = arith.constant 2 : index
    %55 = arith.index_cast %54 : i32 to index
    %c0_57 = arith.constant 0 : index
    %56 = vector.load %arg2[%c0_55, %c2_56, %55, %c0_57] : memref<1x4x40x128xf32, #tpu.memory_space<vmem>>, vector<1x1x24x128xf32>
    %57 = vector.shape_cast %56 : vector<1x1x24x128xf32> to vector<24x128xf32>
    %c0_58 = arith.constant 0 : index
    %c0_59 = arith.constant 0 : index
    %58 = vector.load %arg6[%c0_58, %c0_59] : memref<24x128xf32, #tpu.memory_space<vmem>>, vector<24x128xf32>
    %c5 = arith.constant 5 : index
    %c0_60 = arith.constant 0 : index
    %c0_61 = arith.constant 0 : index
    %59 = vector.load %arg3[%c5, %c0_60, %c0_61] : memref<25x128x128xf32, #tpu.memory_space<vmem>>, vector<1x128x128xf32>
    %60 = vector.shape_cast %59 : vector<1x128x128xf32> to vector<128x128xf32>
    %cst_62 = arith.constant dense<0.000000e+00> : vector<24x128xf32>
    %61 = tpu.matmul %57, %60, %cst_62 {dimension_numbers = #tpu.dot_dimension_numbers<[1], [0], [0], [1], [0, 0, 1, 1], [], []>} : vector<24x128xf32>, vector<128x128xf32>, vector<24x128xf32> -> vector<24x128xf32>
    %62 = arith.addf %58, %61 : vector<24x128xf32>
    %c0_63 = arith.constant 0 : index
    %c0_64 = arith.constant 0 : index
    %63 = vector.load %arg6[%c0_63, %c0_64] : memref<24x128xf32, #tpu.memory_space<vmem>>, vector<24x128xf32>
    tpu.vector_store %arg6[%c0_63, %c0_64], %62 {strides = array<i32>} : memref<24x128xf32, #tpu.memory_space<vmem>>, vector<24x128xf32>,
    %c0_i32_65 = arith.constant 0 : i32
    %64 = arith.addi %1, %c0_i32_65 : i32
    %c0_66 = arith.constant 0 : index
    %c3_67 = arith.constant 3 : index
    %65 = arith.index_cast %64 : i32 to index
    %c0_68 = arith.constant 0 : index
    %66 = vector.load %arg2[%c0_66, %c3_67, %65, %c0_68] : memref<1x4x40x128xf32, #tpu.memory_space<vmem>>, vector<1x1x24x128xf32>
    %67 = vector.shape_cast %66 : vector<1x1x24x128xf32> to vector<24x128xf32>
    %c0_69 = arith.constant 0 : index
    %c0_70 = arith.constant 0 : index
    %68 = vector.load %arg6[%c0_69, %c0_70] : memref<24x128xf32, #tpu.memory_space<vmem>>, vector<24x128xf32>
    %c6 = arith.constant 6 : index
    %c0_71 = arith.constant 0 : index
    %c0_72 = arith.constant 0 : index
    %69 = vector.load %arg3[%c6, %c0_71, %c0_72] : memref<25x128x128xf32, #tpu.memory_space<vmem>>, vector<1x128x128xf32>
    %70 = vector.shape_cast %69 : vector<1x128x128xf32> to vector<128x128xf32>
    %cst_73 = arith.constant dense<0.000000e+00> : vector<24x128xf32>
    %71 = tpu.matmul %67, %70, %cst_73 {dimension_numbers = #tpu.dot_dimension_numbers<[1], [0], [0], [1], [0, 0, 1, 1], [], []>} : vector<24x128xf32>, vector<128x128xf32>, vector<24x128xf32> -> vector<24x128xf32>
    %72 = arith.addf %68, %71 : vector<24x128xf32>
    %c0_74 = arith.constant 0 : index
    %c0_75 = arith.constant 0 : index
    %73 = vector.load %arg6[%c0_74, %c0_75] : memref<24x128xf32, #tpu.memory_space<vmem>>, vector<24x128xf32>
    tpu.vector_store %arg6[%c0_74, %c0_75], %72 {strides = array<i32>} : memref<24x128xf32, #tpu.memory_space<vmem>>, vector<24x128xf32>,
    %c1_i32_76 = arith.constant 1 : i32
    %74 = arith.addi %1, %c1_i32_76 : i32
    %c0_77 = arith.constant 0 : index
    %c2_78 = arith.constant 2 : index
    %75 = arith.index_cast %74 : i32 to index
    %c0_79 = arith.constant 0 : index
    %76 = vector.load %arg2[%c0_77, %c2_78, %75, %c0_79] : memref<1x4x40x128xf32, #tpu.memory_space<vmem>>, vector<1x1x24x128xf32>
    %77 = vector.shape_cast %76 : vector<1x1x24x128xf32> to vector<24x128xf32>
    %c0_80 = arith.constant 0 : index
    %c0_81 = arith.constant 0 : index
    %78 = vector.load %arg6[%c0_80, %c0_81] : memref<24x128xf32, #tpu.memory_space<vmem>>, vector<24x128xf32>
    %c7 = arith.constant 7 : index
    %c0_82 = arith.constant 0 : index
    %c0_83 = arith.constant 0 : index
    %79 = vector.load %arg3[%c7, %c0_82, %c0_83] : memref<25x128x128xf32, #tpu.memory_space<vmem>>, vector<1x128x128xf32>
    %80 = vector.shape_cast %79 : vector<1x128x128xf32> to vector<128x128xf32>
    %cst_84 = arith.constant dense<0.000000e+00> : vector<24x128xf32>
    %81 = tpu.matmul %77, %80, %cst_84 {dimension_numbers = #tpu.dot_dimension_numbers<[1], [0], [0], [1], [0, 0, 1, 1], [], []>} : vector<24x128xf32>, vector<128x128xf32>, vector<24x128xf32> -> vector<24x128xf32>
    %82 = arith.addf %78, %81 : vector<24x128xf32>
    %c0_85 = arith.constant 0 : index
    %c0_86 = arith.constant 0 : index
    %83 = vector.load %arg6[%c0_85, %c0_86] : memref<24x128xf32, #tpu.memory_space<vmem>>, vector<24x128xf32>
    tpu.vector_store %arg6[%c0_85, %c0_86], %82 {strides = array<i32>} : memref<24x128xf32, #tpu.memory_space<vmem>>, vector<24x128xf32>,
    %c1_i32_87 = arith.constant 1 : i32
    %84 = arith.addi %1, %c1_i32_87 : i32
    %c0_88 = arith.constant 0 : index
    %c3_89 = arith.constant 3 : index
    %85 = arith.index_cast %84 : i32 to index
    %c0_90 = arith.constant 0 : index
    %86 = vector.load %arg2[%c0_88, %c3_89, %85, %c0_90] : memref<1x4x40x128xf32, #tpu.memory_space<vmem>>, vector<1x1x24x128xf32>
    %87 = vector.shape_cast %86 : vector<1x1x24x128xf32> to vector<24x128xf32>
    %c0_91 = arith.constant 0 : index
    %c0_92 = arith.constant 0 : index
    %88 = vector.load %arg6[%c0_91, %c0_92] : memref<24x128xf32, #tpu.memory_space<vmem>>, vector<24x128xf32>
    %c8 = arith.constant 8 : index
    %c0_93 = arith.constant 0 : index
    %c0_94 = arith.constant 0 : index
    %89 = vector.load %arg3[%c8, %c0_93, %c0_94] : memref<25x128x128xf32, #tpu.memory_space<vmem>>, vector<1x128x128xf32>
    %90 = vector.shape_cast %89 : vector<1x128x128xf32> to vector<128x128xf32>
    %cst_95 = arith.constant dense<0.000000e+00> : vector<24x128xf32>
    %91 = tpu.matmul %87, %90, %cst_95 {dimension_numbers = #tpu.dot_dimension_numbers<[1], [0], [0], [1], [0, 0, 1, 1], [], []>} : vector<24x128xf32>, vector<128x128xf32>, vector<24x128xf32> -> vector<24x128xf32>
    %92 = arith.addf %88, %91 : vector<24x128xf32>
    %c0_96 = arith.constant 0 : index
    %c0_97 = arith.constant 0 : index
    %93 = vector.load %arg6[%c0_96, %c0_97] : memref<24x128xf32, #tpu.memory_space<vmem>>, vector<24x128xf32>
    tpu.vector_store %arg6[%c0_96, %c0_97], %92 {strides = array<i32>} : memref<24x128xf32, #tpu.memory_space<vmem>>, vector<24x128xf32>,
    %c2_i32_98 = arith.constant 2 : i32
    %94 = arith.addi %1, %c2_i32_98 : i32
    %c0_99 = arith.constant 0 : index
    %c2_100 = arith.constant 2 : index
    %95 = arith.index_cast %94 : i32 to index
    %c0_101 = arith.constant 0 : index
    %96 = vector.load %arg2[%c0_99, %c2_100, %95, %c0_101] : memref<1x4x40x128xf32, #tpu.memory_space<vmem>>, vector<1x1x24x128xf32>
    %97 = vector.shape_cast %96 : vector<1x1x24x128xf32> to vector<24x128xf32>
    %c0_102 = arith.constant 0 : index
    %c0_103 = arith.constant 0 : index
    %98 = vector.load %arg6[%c0_102, %c0_103] : memref<24x128xf32, #tpu.memory_space<vmem>>, vector<24x128xf32>
    %c9 = arith.constant 9 : index
    %c0_104 = arith.constant 0 : index
    %c0_105 = arith.constant 0 : index
    %99 = vector.load %arg3[%c9, %c0_104, %c0_105] : memref<25x128x128xf32, #tpu.memory_space<vmem>>, vector<1x128x128xf32>
    %100 = vector.shape_cast %99 : vector<1x128x128xf32> to vector<128x128xf32>
    %cst_106 = arith.constant dense<0.000000e+00> : vector<24x128xf32>
    %101 = tpu.matmul %97, %100, %cst_106 {dimension_numbers = #tpu.dot_dimension_numbers<[1], [0], [0], [1], [0, 0, 1, 1], [], []>} : vector<24x128xf32>, vector<128x128xf32>, vector<24x128xf32> -> vector<24x128xf32>
    %102 = arith.addf %98, %101 : vector<24x128xf32>
    %c0_107 = arith.constant 0 : index
    %c0_108 = arith.constant 0 : index
    %103 = vector.load %arg6[%c0_107, %c0_108] : memref<24x128xf32, #tpu.memory_space<vmem>>, vector<24x128xf32>
    tpu.vector_store %arg6[%c0_107, %c0_108], %102 {strides = array<i32>} : memref<24x128xf32, #tpu.memory_space<vmem>>, vector<24x128xf32>,
    %c6_i32 = arith.constant 6 : i32
    %104 = arith.addi %1, %c6_i32 : i32
    %c0_109 = arith.constant 0 : index
    %c0_110 = arith.constant 0 : index
    %105 = arith.index_cast %104 : i32 to index
    %c0_111 = arith.constant 0 : index
    %106 = vector.load %arg2[%c0_109, %c0_110, %105, %c0_111] : memref<1x4x40x128xf32, #tpu.memory_space<vmem>>, vector<1x1x24x128xf32>
    %107 = vector.shape_cast %106 : vector<1x1x24x128xf32> to vector<24x128xf32>
    %c0_112 = arith.constant 0 : index
    %c0_113 = arith.constant 0 : index
    %108 = vector.load %arg6[%c0_112, %c0_113] : memref<24x128xf32, #tpu.memory_space<vmem>>, vector<24x128xf32>
    %c10 = arith.constant 10 : index
    %c0_114 = arith.constant 0 : index
    %c0_115 = arith.constant 0 : index
    %109 = vector.load %arg3[%c10, %c0_114, %c0_115] : memref<25x128x128xf32, #tpu.memory_space<vmem>>, vector<1x128x128xf32>
    %110 = vector.shape_cast %109 : vector<1x128x128xf32> to vector<128x128xf32>
    %cst_116 = arith.constant dense<0.000000e+00> : vector<24x128xf32>
    %111 = tpu.matmul %107, %110, %cst_116 {dimension_numbers = #tpu.dot_dimension_numbers<[1], [0], [0], [1], [0, 0, 1, 1], [], []>} : vector<24x128xf32>, vector<128x128xf32>, vector<24x128xf32> -> vector<24x128xf32>
    %112 = arith.addf %108, %111 : vector<24x128xf32>
    %c0_117 = arith.constant 0 : index
    %c0_118 = arith.constant 0 : index
    %113 = vector.load %arg6[%c0_117, %c0_118] : memref<24x128xf32, #tpu.memory_space<vmem>>, vector<24x128xf32>
    tpu.vector_store %arg6[%c0_117, %c0_118], %112 {strides = array<i32>} : memref<24x128xf32, #tpu.memory_space<vmem>>, vector<24x128xf32>,
    %c6_i32_119 = arith.constant 6 : i32
    %114 = arith.addi %1, %c6_i32_119 : i32
    %c0_120 = arith.constant 0 : index
    %c1_121 = arith.constant 1 : index
    %115 = arith.index_cast %114 : i32 to index
    %c0_122 = arith.constant 0 : index
    %116 = vector.load %arg2[%c0_120, %c1_121, %115, %c0_122] : memref<1x4x40x128xf32, #tpu.memory_space<vmem>>, vector<1x1x24x128xf32>
    %117 = vector.shape_cast %116 : vector<1x1x24x128xf32> to vector<24x128xf32>
    %c0_123 = arith.constant 0 : index
    %c0_124 = arith.constant 0 : index
    %118 = vector.load %arg6[%c0_123, %c0_124] : memref<24x128xf32, #tpu.memory_space<vmem>>, vector<24x128xf32>
    %c11 = arith.constant 11 : index
    %c0_125 = arith.constant 0 : index
    %c0_126 = arith.constant 0 : index
    %119 = vector.load %arg3[%c11, %c0_125, %c0_126] : memref<25x128x128xf32, #tpu.memory_space<vmem>>, vector<1x128x128xf32>
    %120 = vector.shape_cast %119 : vector<1x128x128xf32> to vector<128x128xf32>
    %cst_127 = arith.constant dense<0.000000e+00> : vector<24x128xf32>
    %121 = tpu.matmul %117, %120, %cst_127 {dimension_numbers = #tpu.dot_dimension_numbers<[1], [0], [0], [1], [0, 0, 1, 1], [], []>} : vector<24x128xf32>, vector<128x128xf32>, vector<24x128xf32> -> vector<24x128xf32>
    %122 = arith.addf %118, %121 : vector<24x128xf32>
    %c0_128 = arith.constant 0 : index
    %c0_129 = arith.constant 0 : index
    %123 = vector.load %arg6[%c0_128, %c0_129] : memref<24x128xf32, #tpu.memory_space<vmem>>, vector<24x128xf32>
    tpu.vector_store %arg6[%c0_128, %c0_129], %122 {strides = array<i32>} : memref<24x128xf32, #tpu.memory_space<vmem>>, vector<24x128xf32>,
    %c7_i32 = arith.constant 7 : i32
    %124 = arith.addi %1, %c7_i32 : i32
    %c0_130 = arith.constant 0 : index
    %c0_131 = arith.constant 0 : index
    %125 = arith.index_cast %124 : i32 to index
    %c0_132 = arith.constant 0 : index
    %126 = vector.load %arg2[%c0_130, %c0_131, %125, %c0_132] : memref<1x4x40x128xf32, #tpu.memory_space<vmem>>, vector<1x1x24x128xf32>
    %127 = vector.shape_cast %126 : vector<1x1x24x128xf32> to vector<24x128xf32>
    %c0_133 = arith.constant 0 : index
    %c0_134 = arith.constant 0 : index
    %128 = vector.load %arg6[%c0_133, %c0_134] : memref<24x128xf32, #tpu.memory_space<vmem>>, vector<24x128xf32>
    %c12 = arith.constant 12 : index
    %c0_135 = arith.constant 0 : index
    %c0_136 = arith.constant 0 : index
    %129 = vector.load %arg3[%c12, %c0_135, %c0_136] : memref<25x128x128xf32, #tpu.memory_space<vmem>>, vector<1x128x128xf32>
    %130 = vector.shape_cast %129 : vector<1x128x128xf32> to vector<128x128xf32>
    %cst_137 = arith.constant dense<0.000000e+00> : vector<24x128xf32>
    %131 = tpu.matmul %127, %130, %cst_137 {dimension_numbers = #tpu.dot_dimension_numbers<[1], [0], [0], [1], [0, 0, 1, 1], [], []>} : vector<24x128xf32>, vector<128x128xf32>, vector<24x128xf32> -> vector<24x128xf32>
    %132 = arith.addf %128, %131 : vector<24x128xf32>
    %c0_138 = arith.constant 0 : index
    %c0_139 = arith.constant 0 : index
    %133 = vector.load %arg6[%c0_138, %c0_139] : memref<24x128xf32, #tpu.memory_space<vmem>>, vector<24x128xf32>
    tpu.vector_store %arg6[%c0_138, %c0_139], %132 {strides = array<i32>} : memref<24x128xf32, #tpu.memory_space<vmem>>, vector<24x128xf32>,
    %c7_i32_140 = arith.constant 7 : i32
    %134 = arith.addi %1, %c7_i32_140 : i32
    %c0_141 = arith.constant 0 : index
    %c1_142 = arith.constant 1 : index
    %135 = arith.index_cast %134 : i32 to index
    %c0_143 = arith.constant 0 : index
    %136 = vector.load %arg2[%c0_141, %c1_142, %135, %c0_143] : memref<1x4x40x128xf32, #tpu.memory_space<vmem>>, vector<1x1x24x128xf32>
    %137 = vector.shape_cast %136 : vector<1x1x24x128xf32> to vector<24x128xf32>
    %c0_144 = arith.constant 0 : index
    %c0_145 = arith.constant 0 : index
    %138 = vector.load %arg6[%c0_144, %c0_145] : memref<24x128xf32, #tpu.memory_space<vmem>>, vector<24x128xf32>
    %c13 = arith.constant 13 : index
    %c0_146 = arith.constant 0 : index
    %c0_147 = arith.constant 0 : index
    %139 = vector.load %arg3[%c13, %c0_146, %c0_147] : memref<25x128x128xf32, #tpu.memory_space<vmem>>, vector<1x128x128xf32>
    %140 = vector.shape_cast %139 : vector<1x128x128xf32> to vector<128x128xf32>
    %cst_148 = arith.constant dense<0.000000e+00> : vector<24x128xf32>
    %141 = tpu.matmul %137, %140, %cst_148 {dimension_numbers = #tpu.dot_dimension_numbers<[1], [0], [0], [1], [0, 0, 1, 1], [], []>} : vector<24x128xf32>, vector<128x128xf32>, vector<24x128xf32> -> vector<24x128xf32>
    %142 = arith.addf %138, %141 : vector<24x128xf32>
    %c0_149 = arith.constant 0 : index
    %c0_150 = arith.constant 0 : index
    %143 = vector.load %arg6[%c0_149, %c0_150] : memref<24x128xf32, #tpu.memory_space<vmem>>, vector<24x128xf32>
    tpu.vector_store %arg6[%c0_149, %c0_150], %142 {strides = array<i32>} : memref<24x128xf32, #tpu.memory_space<vmem>>, vector<24x128xf32>,
    %c8_i32 = arith.constant 8 : i32
    %144 = arith.addi %1, %c8_i32 : i32
    %c0_151 = arith.constant 0 : index
    %c0_152 = arith.constant 0 : index
    %145 = arith.index_cast %144 : i32 to index
    %c0_153 = arith.constant 0 : index
    %146 = vector.load %arg2[%c0_151, %c0_152, %145, %c0_153] : memref<1x4x40x128xf32, #tpu.memory_space<vmem>>, vector<1x1x24x128xf32>
    %147 = vector.shape_cast %146 : vector<1x1x24x128xf32> to vector<24x128xf32>
    %c0_154 = arith.constant 0 : index
    %c0_155 = arith.constant 0 : index
    %148 = vector.load %arg6[%c0_154, %c0_155] : memref<24x128xf32, #tpu.memory_space<vmem>>, vector<24x128xf32>
    %c14 = arith.constant 14 : index
    %c0_156 = arith.constant 0 : index
    %c0_157 = arith.constant 0 : index
    %149 = vector.load %arg3[%c14, %c0_156, %c0_157] : memref<25x128x128xf32, #tpu.memory_space<vmem>>, vector<1x128x128xf32>
    %150 = vector.shape_cast %149 : vector<1x128x128xf32> to vector<128x128xf32>
    %cst_158 = arith.constant dense<0.000000e+00> : vector<24x128xf32>
    %151 = tpu.matmul %147, %150, %cst_158 {dimension_numbers = #tpu.dot_dimension_numbers<[1], [0], [0], [1], [0, 0, 1, 1], [], []>} : vector<24x128xf32>, vector<128x128xf32>, vector<24x128xf32> -> vector<24x128xf32>
    %152 = arith.addf %148, %151 : vector<24x128xf32>
    %c0_159 = arith.constant 0 : index
    %c0_160 = arith.constant 0 : index
    %153 = vector.load %arg6[%c0_159, %c0_160] : memref<24x128xf32, #tpu.memory_space<vmem>>, vector<24x128xf32>
    tpu.vector_store %arg6[%c0_159, %c0_160], %152 {strides = array<i32>} : memref<24x128xf32, #tpu.memory_space<vmem>>, vector<24x128xf32>,
    %c6_i32_161 = arith.constant 6 : i32
    %154 = arith.addi %1, %c6_i32_161 : i32
    %c0_162 = arith.constant 0 : index
    %c2_163 = arith.constant 2 : index
    %155 = arith.index_cast %154 : i32 to index
    %c0_164 = arith.constant 0 : index
    %156 = vector.load %arg2[%c0_162, %c2_163, %155, %c0_164] : memref<1x4x40x128xf32, #tpu.memory_space<vmem>>, vector<1x1x24x128xf32>
    %157 = vector.shape_cast %156 : vector<1x1x24x128xf32> to vector<24x128xf32>
    %c0_165 = arith.constant 0 : index
    %c0_166 = arith.constant 0 : index
    %158 = vector.load %arg6[%c0_165, %c0_166] : memref<24x128xf32, #tpu.memory_space<vmem>>, vector<24x128xf32>
    %c15 = arith.constant 15 : index
    %c0_167 = arith.constant 0 : index
    %c0_168 = arith.constant 0 : index
    %159 = vector.load %arg3[%c15, %c0_167, %c0_168] : memref<25x128x128xf32, #tpu.memory_space<vmem>>, vector<1x128x128xf32>
    %160 = vector.shape_cast %159 : vector<1x128x128xf32> to vector<128x128xf32>
    %cst_169 = arith.constant dense<0.000000e+00> : vector<24x128xf32>
    %161 = tpu.matmul %157, %160, %cst_169 {dimension_numbers = #tpu.dot_dimension_numbers<[1], [0], [0], [1], [0, 0, 1, 1], [], []>} : vector<24x128xf32>, vector<128x128xf32>, vector<24x128xf32> -> vector<24x128xf32>
    %162 = arith.addf %158, %161 : vector<24x128xf32>
    %c0_170 = arith.constant 0 : index
    %c0_171 = arith.constant 0 : index
    %163 = vector.load %arg6[%c0_170, %c0_171] : memref<24x128xf32, #tpu.memory_space<vmem>>, vector<24x128xf32>
    tpu.vector_store %arg6[%c0_170, %c0_171], %162 {strides = array<i32>} : memref<24x128xf32, #tpu.memory_space<vmem>>, vector<24x128xf32>,
    %c6_i32_172 = arith.constant 6 : i32
    %164 = arith.addi %1, %c6_i32_172 : i32
    %c0_173 = arith.constant 0 : index
    %c3_174 = arith.constant 3 : index
    %165 = arith.index_cast %164 : i32 to index
    %c0_175 = arith.constant 0 : index
    %166 = vector.load %arg2[%c0_173, %c3_174, %165, %c0_175] : memref<1x4x40x128xf32, #tpu.memory_space<vmem>>, vector<1x1x24x128xf32>
    %167 = vector.shape_cast %166 : vector<1x1x24x128xf32> to vector<24x128xf32>
    %c0_176 = arith.constant 0 : index
    %c0_177 = arith.constant 0 : index
    %168 = vector.load %arg6[%c0_176, %c0_177] : memref<24x128xf32, #tpu.memory_space<vmem>>, vector<24x128xf32>
    %c16 = arith.constant 16 : index
    %c0_178 = arith.constant 0 : index
    %c0_179 = arith.constant 0 : index
    %169 = vector.load %arg3[%c16, %c0_178, %c0_179] : memref<25x128x128xf32, #tpu.memory_space<vmem>>, vector<1x128x128xf32>
    %170 = vector.shape_cast %169 : vector<1x128x128xf32> to vector<128x128xf32>
    %cst_180 = arith.constant dense<0.000000e+00> : vector<24x128xf32>
    %171 = tpu.matmul %167, %170, %cst_180 {dimension_numbers = #tpu.dot_dimension_numbers<[1], [0], [0], [1], [0, 0, 1, 1], [], []>} : vector<24x128xf32>, vector<128x128xf32>, vector<24x128xf32> -> vector<24x128xf32>
    %172 = arith.addf %168, %171 : vector<24x128xf32>
    %c0_181 = arith.constant 0 : index
    %c0_182 = arith.constant 0 : index
    %173 = vector.load %arg6[%c0_181, %c0_182] : memref<24x128xf32, #tpu.memory_space<vmem>>, vector<24x128xf32>
    tpu.vector_store %arg6[%c0_181, %c0_182], %172 {strides = array<i32>} : memref<24x128xf32, #tpu.memory_space<vmem>>, vector<24x128xf32>,
    %c7_i32_183 = arith.constant 7 : i32
    %174 = arith.addi %1, %c7_i32_183 : i32
    %c0_184 = arith.constant 0 : index
    %c2_185 = arith.constant 2 : index
    %175 = arith.index_cast %174 : i32 to index
    %c0_186 = arith.constant 0 : index
    %176 = vector.load %arg2[%c0_184, %c2_185, %175, %c0_186] : memref<1x4x40x128xf32, #tpu.memory_space<vmem>>, vector<1x1x24x128xf32>
    %177 = vector.shape_cast %176 : vector<1x1x24x128xf32> to vector<24x128xf32>
    %c0_187 = arith.constant 0 : index
    %c0_188 = arith.constant 0 : index
    %178 = vector.load %arg6[%c0_187, %c0_188] : memref<24x128xf32, #tpu.memory_space<vmem>>, vector<24x128xf32>
    %c17 = arith.constant 17 : index
    %c0_189 = arith.constant 0 : index
    %c0_190 = arith.constant 0 : index
    %179 = vector.load %arg3[%c17, %c0_189, %c0_190] : memref<25x128x128xf32, #tpu.memory_space<vmem>>, vector<1x128x128xf32>
    %180 = vector.shape_cast %179 : vector<1x128x128xf32> to vector<128x128xf32>
    %cst_191 = arith.constant dense<0.000000e+00> : vector<24x128xf32>
    %181 = tpu.matmul %177, %180, %cst_191 {dimension_numbers = #tpu.dot_dimension_numbers<[1], [0], [0], [1], [0, 0, 1, 1], [], []>} : vector<24x128xf32>, vector<128x128xf32>, vector<24x128xf32> -> vector<24x128xf32>
    %182 = arith.addf %178, %181 : vector<24x128xf32>
    %c0_192 = arith.constant 0 : index
    %c0_193 = arith.constant 0 : index
    %183 = vector.load %arg6[%c0_192, %c0_193] : memref<24x128xf32, #tpu.memory_space<vmem>>, vector<24x128xf32>
    tpu.vector_store %arg6[%c0_192, %c0_193], %182 {strides = array<i32>} : memref<24x128xf32, #tpu.memory_space<vmem>>, vector<24x128xf32>,
    %c7_i32_194 = arith.constant 7 : i32
    %184 = arith.addi %1, %c7_i32_194 : i32
    %c0_195 = arith.constant 0 : index
    %c3_196 = arith.constant 3 : index
    %185 = arith.index_cast %184 : i32 to index
    %c0_197 = arith.constant 0 : index
    %186 = vector.load %arg2[%c0_195, %c3_196, %185, %c0_197] : memref<1x4x40x128xf32, #tpu.memory_space<vmem>>, vector<1x1x24x128xf32>
    %187 = vector.shape_cast %186 : vector<1x1x24x128xf32> to vector<24x128xf32>
    %c0_198 = arith.constant 0 : index
    %c0_199 = arith.constant 0 : index
    %188 = vector.load %arg6[%c0_198, %c0_199] : memref<24x128xf32, #tpu.memory_space<vmem>>, vector<24x128xf32>
    %c18 = arith.constant 18 : index
    %c0_200 = arith.constant 0 : index
    %c0_201 = arith.constant 0 : index
    %189 = vector.load %arg3[%c18, %c0_200, %c0_201] : memref<25x128x128xf32, #tpu.memory_space<vmem>>, vector<1x128x128xf32>
    %190 = vector.shape_cast %189 : vector<1x128x128xf32> to vector<128x128xf32>
    %cst_202 = arith.constant dense<0.000000e+00> : vector<24x128xf32>
    %191 = tpu.matmul %187, %190, %cst_202 {dimension_numbers = #tpu.dot_dimension_numbers<[1], [0], [0], [1], [0, 0, 1, 1], [], []>} : vector<24x128xf32>, vector<128x128xf32>, vector<24x128xf32> -> vector<24x128xf32>
    %192 = arith.addf %188, %191 : vector<24x128xf32>
    %c0_203 = arith.constant 0 : index
    %c0_204 = arith.constant 0 : index
    %193 = vector.load %arg6[%c0_203, %c0_204] : memref<24x128xf32, #tpu.memory_space<vmem>>, vector<24x128xf32>
    tpu.vector_store %arg6[%c0_203, %c0_204], %192 {strides = array<i32>} : memref<24x128xf32, #tpu.memory_space<vmem>>, vector<24x128xf32>,
    %c8_i32_205 = arith.constant 8 : i32
    %194 = arith.addi %1, %c8_i32_205 : i32
    %c0_206 = arith.constant 0 : index
    %c2_207 = arith.constant 2 : index
    %195 = arith.index_cast %194 : i32 to index
    %c0_208 = arith.constant 0 : index
    %196 = vector.load %arg2[%c0_206, %c2_207, %195, %c0_208] : memref<1x4x40x128xf32, #tpu.memory_space<vmem>>, vector<1x1x24x128xf32>
    %197 = vector.shape_cast %196 : vector<1x1x24x128xf32> to vector<24x128xf32>
    %c0_209 = arith.constant 0 : index
    %c0_210 = arith.constant 0 : index
    %198 = vector.load %arg6[%c0_209, %c0_210] : memref<24x128xf32, #tpu.memory_space<vmem>>, vector<24x128xf32>
    %c19 = arith.constant 19 : index
    %c0_211 = arith.constant 0 : index
    %c0_212 = arith.constant 0 : index
    %199 = vector.load %arg3[%c19, %c0_211, %c0_212] : memref<25x128x128xf32, #tpu.memory_space<vmem>>, vector<1x128x128xf32>
    %200 = vector.shape_cast %199 : vector<1x128x128xf32> to vector<128x128xf32>
    %cst_213 = arith.constant dense<0.000000e+00> : vector<24x128xf32>
    %201 = tpu.matmul %197, %200, %cst_213 {dimension_numbers = #tpu.dot_dimension_numbers<[1], [0], [0], [1], [0, 0, 1, 1], [], []>} : vector<24x128xf32>, vector<128x128xf32>, vector<24x128xf32> -> vector<24x128xf32>
    %202 = arith.addf %198, %201 : vector<24x128xf32>
    %c0_214 = arith.constant 0 : index
    %c0_215 = arith.constant 0 : index
    %203 = vector.load %arg6[%c0_214, %c0_215] : memref<24x128xf32, #tpu.memory_space<vmem>>, vector<24x128xf32>
    tpu.vector_store %arg6[%c0_214, %c0_215], %202 {strides = array<i32>} : memref<24x128xf32, #tpu.memory_space<vmem>>, vector<24x128xf32>,
    %c12_i32 = arith.constant 12 : i32
    %204 = arith.addi %1, %c12_i32 : i32
    %c0_216 = arith.constant 0 : index
    %c0_217 = arith.constant 0 : index
    %205 = arith.index_cast %204 : i32 to index
    %c0_218 = arith.constant 0 : index
    %206 = vector.load %arg2[%c0_216, %c0_217, %205, %c0_218] : memref<1x4x40x128xf32, #tpu.memory_space<vmem>>, vector<1x1x24x128xf32>
    %207 = vector.shape_cast %206 : vector<1x1x24x128xf32> to vector<24x128xf32>
    %c0_219 = arith.constant 0 : index
    %c0_220 = arith.constant 0 : index
    %208 = vector.load %arg6[%c0_219, %c0_220] : memref<24x128xf32, #tpu.memory_space<vmem>>, vector<24x128xf32>
    %c20 = arith.constant 20 : index
    %c0_221 = arith.constant 0 : index
    %c0_222 = arith.constant 0 : index
    %209 = vector.load %arg3[%c20, %c0_221, %c0_222] : memref<25x128x128xf32, #tpu.memory_space<vmem>>, vector<1x128x128xf32>
    %210 = vector.shape_cast %209 : vector<1x128x128xf32> to vector<128x128xf32>
    %cst_223 = arith.constant dense<0.000000e+00> : vector<24x128xf32>
    %211 = tpu.matmul %207, %210, %cst_223 {dimension_numbers = #tpu.dot_dimension_numbers<[1], [0], [0], [1], [0, 0, 1, 1], [], []>} : vector<24x128xf32>, vector<128x128xf32>, vector<24x128xf32> -> vector<24x128xf32>
    %212 = arith.addf %208, %211 : vector<24x128xf32>
    %c0_224 = arith.constant 0 : index
    %c0_225 = arith.constant 0 : index
    %213 = vector.load %arg6[%c0_224, %c0_225] : memref<24x128xf32, #tpu.memory_space<vmem>>, vector<24x128xf32>
    tpu.vector_store %arg6[%c0_224, %c0_225], %212 {strides = array<i32>} : memref<24x128xf32, #tpu.memory_space<vmem>>, vector<24x128xf32>,
    %c12_i32_226 = arith.constant 12 : i32
    %214 = arith.addi %1, %c12_i32_226 : i32
    %c0_227 = arith.constant 0 : index
    %c1_228 = arith.constant 1 : index
    %215 = arith.index_cast %214 : i32 to index
    %c0_229 = arith.constant 0 : index
    %216 = vector.load %arg2[%c0_227, %c1_228, %215, %c0_229] : memref<1x4x40x128xf32, #tpu.memory_space<vmem>>, vector<1x1x24x128xf32>
    %217 = vector.shape_cast %216 : vector<1x1x24x128xf32> to vector<24x128xf32>
    %c0_230 = arith.constant 0 : index
    %c0_231 = arith.constant 0 : index
    %218 = vector.load %arg6[%c0_230, %c0_231] : memref<24x128xf32, #tpu.memory_space<vmem>>, vector<24x128xf32>
    %c21 = arith.constant 21 : index
    %c0_232 = arith.constant 0 : index
    %c0_233 = arith.constant 0 : index
    %219 = vector.load %arg3[%c21, %c0_232, %c0_233] : memref<25x128x128xf32, #tpu.memory_space<vmem>>, vector<1x128x128xf32>
    %220 = vector.shape_cast %219 : vector<1x128x128xf32> to vector<128x128xf32>
    %cst_234 = arith.constant dense<0.000000e+00> : vector<24x128xf32>
    %221 = tpu.matmul %217, %220, %cst_234 {dimension_numbers = #tpu.dot_dimension_numbers<[1], [0], [0], [1], [0, 0, 1, 1], [], []>} : vector<24x128xf32>, vector<128x128xf32>, vector<24x128xf32> -> vector<24x128xf32>
    %222 = arith.addf %218, %221 : vector<24x128xf32>
    %c0_235 = arith.constant 0 : index
    %c0_236 = arith.constant 0 : index
    %223 = vector.load %arg6[%c0_235, %c0_236] : memref<24x128xf32, #tpu.memory_space<vmem>>, vector<24x128xf32>
    tpu.vector_store %arg6[%c0_235, %c0_236], %222 {strides = array<i32>} : memref<24x128xf32, #tpu.memory_space<vmem>>, vector<24x128xf32>,
    %c13_i32 = arith.constant 13 : i32
    %224 = arith.addi %1, %c13_i32 : i32
    %c0_237 = arith.constant 0 : index
    %c0_238 = arith.constant 0 : index
    %225 = arith.index_cast %224 : i32 to index
    %c0_239 = arith.constant 0 : index
    %226 = vector.load %arg2[%c0_237, %c0_238, %225, %c0_239] : memref<1x4x40x128xf32, #tpu.memory_space<vmem>>, vector<1x1x24x128xf32>
    %227 = vector.shape_cast %226 : vector<1x1x24x128xf32> to vector<24x128xf32>
    %c0_240 = arith.constant 0 : index
    %c0_241 = arith.constant 0 : index
    %228 = vector.load %arg6[%c0_240, %c0_241] : memref<24x128xf32, #tpu.memory_space<vmem>>, vector<24x128xf32>
    %c22 = arith.constant 22 : index
    %c0_242 = arith.constant 0 : index
    %c0_243 = arith.constant 0 : index
    %229 = vector.load %arg3[%c22, %c0_242, %c0_243] : memref<25x128x128xf32, #tpu.memory_space<vmem>>, vector<1x128x128xf32>
    %230 = vector.shape_cast %229 : vector<1x128x128xf32> to vector<128x128xf32>
    %cst_244 = arith.constant dense<0.000000e+00> : vector<24x128xf32>
    %231 = tpu.matmul %227, %230, %cst_244 {dimension_numbers = #tpu.dot_dimension_numbers<[1], [0], [0], [1], [0, 0, 1, 1], [], []>} : vector<24x128xf32>, vector<128x128xf32>, vector<24x128xf32> -> vector<24x128xf32>
    %232 = arith.addf %228, %231 : vector<24x128xf32>
    %c0_245 = arith.constant 0 : index
    %c0_246 = arith.constant 0 : index
    %233 = vector.load %arg6[%c0_245, %c0_246] : memref<24x128xf32, #tpu.memory_space<vmem>>, vector<24x128xf32>
    tpu.vector_store %arg6[%c0_245, %c0_246], %232 {strides = array<i32>} : memref<24x128xf32, #tpu.memory_space<vmem>>, vector<24x128xf32>,
    %c13_i32_247 = arith.constant 13 : i32
    %234 = arith.addi %1, %c13_i32_247 : i32
    %c0_248 = arith.constant 0 : index
    %c1_249 = arith.constant 1 : index
    %235 = arith.index_cast %234 : i32 to index
    %c0_250 = arith.constant 0 : index
    %236 = vector.load %arg2[%c0_248, %c1_249, %235, %c0_250] : memref<1x4x40x128xf32, #tpu.memory_space<vmem>>, vector<1x1x24x128xf32>
    %237 = vector.shape_cast %236 : vector<1x1x24x128xf32> to vector<24x128xf32>
    %c0_251 = arith.constant 0 : index
    %c0_252 = arith.constant 0 : index
    %238 = vector.load %arg6[%c0_251, %c0_252] : memref<24x128xf32, #tpu.memory_space<vmem>>, vector<24x128xf32>
    %c23 = arith.constant 23 : index
    %c0_253 = arith.constant 0 : index
    %c0_254 = arith.constant 0 : index
    %239 = vector.load %arg3[%c23, %c0_253, %c0_254] : memref<25x128x128xf32, #tpu.memory_space<vmem>>, vector<1x128x128xf32>
    %240 = vector.shape_cast %239 : vector<1x128x128xf32> to vector<128x128xf32>
    %cst_255 = arith.constant dense<0.000000e+00> : vector<24x128xf32>
    %241 = tpu.matmul %237, %240, %cst_255 {dimension_numbers = #tpu.dot_dimension_numbers<[1], [0], [0], [1], [0, 0, 1, 1], [], []>} : vector<24x128xf32>, vector<128x128xf32>, vector<24x128xf32> -> vector<24x128xf32>
    %242 = arith.addf %238, %241 : vector<24x128xf32>
    %c0_256 = arith.constant 0 : index
    %c0_257 = arith.constant 0 : index
    %243 = vector.load %arg6[%c0_256, %c0_257] : memref<24x128xf32, #tpu.memory_space<vmem>>, vector<24x128xf32>
    tpu.vector_store %arg6[%c0_256, %c0_257], %242 {strides = array<i32>} : memref<24x128xf32, #tpu.memory_space<vmem>>, vector<24x128xf32>,
    %c14_i32 = arith.constant 14 : i32
    %244 = arith.addi %1, %c14_i32 : i32
    %c0_258 = arith.constant 0 : index
    %c0_259 = arith.constant 0 : index
    %245 = arith.index_cast %244 : i32 to index
    %c0_260 = arith.constant 0 : index
    %246 = vector.load %arg2[%c0_258, %c0_259, %245, %c0_260] : memref<1x4x40x128xf32, #tpu.memory_space<vmem>>, vector<1x1x24x128xf32>
    %247 = vector.shape_cast %246 : vector<1x1x24x128xf32> to vector<24x128xf32>
    %c0_261 = arith.constant 0 : index
    %c0_262 = arith.constant 0 : index
    %248 = vector.load %arg6[%c0_261, %c0_262] : memref<24x128xf32, #tpu.memory_space<vmem>>, vector<24x128xf32>
    %c24 = arith.constant 24 : index
    %c0_263 = arith.constant 0 : index
    %c0_264 = arith.constant 0 : index
    %249 = vector.load %arg3[%c24, %c0_263, %c0_264] : memref<25x128x128xf32, #tpu.memory_space<vmem>>, vector<1x128x128xf32>
    %250 = vector.shape_cast %249 : vector<1x128x128xf32> to vector<128x128xf32>
    %cst_265 = arith.constant dense<0.000000e+00> : vector<24x128xf32>
    %251 = tpu.matmul %247, %250, %cst_265 {dimension_numbers = #tpu.dot_dimension_numbers<[1], [0], [0], [1], [0, 0, 1, 1], [], []>} : vector<24x128xf32>, vector<128x128xf32>, vector<24x128xf32> -> vector<24x128xf32>
    %252 = arith.addf %248, %251 : vector<24x128xf32>
    %c0_266 = arith.constant 0 : index
    %c0_267 = arith.constant 0 : index
    %253 = vector.load %arg6[%c0_266, %c0_267] : memref<24x128xf32, #tpu.memory_space<vmem>>, vector<24x128xf32>
    tpu.vector_store %arg6[%c0_266, %c0_267], %252 {strides = array<i32>} : memref<24x128xf32, #tpu.memory_space<vmem>>, vector<24x128xf32>,
    %c0_268 = arith.constant 0 : index
    %c0_269 = arith.constant 0 : index
    %254 = vector.load %arg6[%c0_268, %c0_269] : memref<24x128xf32, #tpu.memory_space<vmem>>, vector<24x128xf32>
    %c0_270 = arith.constant 0 : index
    %c0_271 = arith.constant 0 : index
    %255 = vector.load %arg4[%c0_270, %c0_271] : memref<1x128xf32, #tpu.memory_space<vmem>>, vector<1x128xf32>
    %256 = vector.broadcast %255 : vector<1x128xf32> to vector<24x128xf32>
    %257 = arith.addf %254, %256 : vector<24x128xf32>
    %c0_272 = arith.constant 0 : index
    %c0_273 = arith.constant 0 : index
    %c0_274 = arith.constant 0 : index
    %258 = vector.load %arg5[%c0_272, %c0_273, %c0_274] : memref<1x24x128xf32, #tpu.memory_space<vmem>>, vector<1x24x128xf32>
    %259 = vector.shape_cast %258 : vector<1x24x128xf32> to vector<24x128xf32>
    %260 = vector.shape_cast %257 : vector<24x128xf32> to vector<1x24x128xf32>
    tpu.vector_store %arg5[%c0_272, %c0_273, %c0_274], %260 {strides = array<i32>} : memref<1x24x128xf32, #tpu.memory_space<vmem>>, vector<1x24x128xf32>,
    return
  }
  func.func @transform_0(%arg0: i32, %arg1: i32) -> (i32, i32, i32, i32) {
    %c0_i32 = arith.constant 0 : i32
    %c0_i32_0 = arith.constant 0 : i32
    %c0_i32_1 = arith.constant 0 : i32
    %c0_i32_2 = arith.constant 0 : i32
    return %arg0, %c0_i32, %c0_i32_0, %c0_i32_1 : i32, i32, i32, i32
  }
  func.func @transform_1(%arg0: i32, %arg1: i32) -> (i32, i32, i32) {
    %c0_i32 = arith.constant 0 : i32
    %c0_i32_0 = arith.constant 0 : i32
    %c0_i32_1 = arith.constant 0 : i32
    %c0_i32_2 = arith.constant 0 : i32
    return %c0_i32, %c0_i32_0, %c0_i32_1 : i32, i32, i32
  }
  func.func @transform_2(%arg0: i32, %arg1: i32) -> (i32, i32) {
    %c0_i32 = arith.constant 0 : i32
    %c0_i32_0 = arith.constant 0 : i32
    %c0_i32_1 = arith.constant 0 : i32
    return %c0_i32, %c0_i32_0 : i32, i32
  }
  func.func @transform_3(%arg0: i32, %arg1: i32) -> (i32, i32, i32) {
    %c0_i32 = arith.constant 0 : i32
    %c0_i32_0 = arith.constant 0 : i32
    return %arg0, %arg1, %c0_i32 : i32, i32, i32
  }
}

</mosaic_0001>

<llo_original>
// kernel: analysis_prior_net.3
$region0: #{analysis_prior_net.3}
  #allocation0 [shape = 'u32[]', space=smem, size = 0x4, offset = 0x4, fixed_abs, tag = 'smem constant byte address 0x4 - core index']
  #allocation1 [shape = 'u32[72,128]{1,0:T(1,128)}', space=vmem, size = 0x9000, scoped, tag = 'internal scratch']
  #allocation2 [shape = 'f32[288,128]{1,0:T(8,128)}', space=vmem, size = 0x24000, scoped, tag = 'scratch operand']
  %s0 = inlined_call_operand.vmem [shape: f32[2,1,328,8], index: 0, kind: input, shape index: {}]
  %s1 = inlined_call_operand.vmem [shape: f32[9,8,128], index: 1, kind: input, shape index: {}]
  %s2 = inlined_call_operand.vmem [shape: f32[1,128], index: 2, kind: input, shape index: {}]
  %s3 = inlined_call_operand.vmem [shape: f32[2,288,128], index: 3, kind: output, shape index: {}]
  %s4 = sld [smem:[#allocation0]]
  $region45: #{analysis_prior_net.3} parent=0
    _
  %s6 = ssub.s32 1, %s4
  %s7 = scalar_select 0, %s6, %s4
  loop: start=0, step=1, limit=4
  $region2: #{analysis_prior_net.3} parent=0 // loop_pre_header
    _
  $region3: #{analysis_prior_net.3} parent=0 // loop_header
    %s9 = sphi 0, %s13
    %p10 = scmp.ge.s32.totalorder %s9, 4
    %s16 = sphi 0, %s28
    %s17 = sphi 0, %s24
    %s18 = sphi 0, %s16
    %s19 = sphi 0, %s17
    %s20 = sphi 0, %s18
    %s21 = sphi 0, %s19
    %s31 = sphi 0, %s33
    %s34 = sphi 0, %s31
    %s35 = sphi 0, %s34
    %s51 = sphi 0, %s35
    %s55 = sphi 0, %s55
    %s57 = sphi 0, %s55
    %s58 = sphi 0, %s57
    %s72 = sphi 0, %s58
    %s76 = sphi 0, %s76
    %s78 = sphi 0, %s76
    %s79 = sphi 0, %s78
    %s93 = sphi 0, %s79
    %s101 = sphi 0, %s103
    %s104 = sphi 0, %s101
    %s105 = sphi 0, %s104
    %s121 = sphi 0, %s105
  $region4: #{analysis_prior_net.3} parent=0 // loop_header_branch
    %12 = sbr.rel (%p10) target = $region8
  $region5: #{analysis_prior_net.3} parent=0 // loop_body
    %s14 = ssub.s32 %s9, 1
    %s15 = ssub.s32 %s9, 2
    %s22 = sadd.s32 1, %s17
    %p23 = scmp.ge.s32.totalorder %s22, 1
    %s24 = scalar_select %p23, 0, %s22
    %s25 = sadd.s32 1, %s16
    %s26 = scalar_select %p23, %s25, %s16
    %p27 = scmp.ge.s32.totalorder %s26, 2
    %s28 = scalar_select %p27, 0, %s26
    %s29 = ssub.s32 %s16, %s28
    %p30 = scmp.eq.s32.totalorder %s29, 0
    %s32 = sadd.s32 %s31, 1
    %s33 = scalar_select %p30, %s31, %s32
    %p36 = pneg %p30
    %p37 = scmp.eq.s32.totalorder %s9, 1
    %p38 = por %p36, %p37
    %p39 = scmp.ne.s32.totalorder %s31, %s34
    %p40 = scmp.eq.s32.totalorder %s9, 0
    %p41 = por %p39, %p40
    %p42 = scmp.ne.s32.totalorder %s31, %s34
    %p43 = scmp.eq.s32.totalorder %s14, 1
    %p44 = por %p42, %p43
    %p45 = scmp.ne.s32.totalorder %s34, %s35
    %p46 = scmp.eq.s32.totalorder %s14, 0
    %p47 = por %p45, %p46
    %p48 = scmp.ne.s32.totalorder %s34, %s35
    %p49 = scmp.eq.s32.totalorder %s15, 1
    %p50 = por %p48, %p49
    %p52 = scmp.ne.s32.totalorder %s35, %s51
    %p53 = scmp.eq.s32.totalorder %s15, 0
    %p54 = por %p52, %p53
    %s56 = sadd.s32 %s55, 1
    %p59 = scmp.eq.s32.totalorder %s9, 1
    %p60 = scmp.ne.s32.totalorder %s55, %s57
    %p61 = scmp.eq.s32.totalorder %s9, 0
    %p62 = por %p60, %p61
    %p63 = scmp.ne.s32.totalorder %s55, %s57
    %p64 = scmp.eq.s32.totalorder %s14, 1
    %p65 = por %p63, %p64
    %p66 = scmp.ne.s32.totalorder %s57, %s58
    %p67 = scmp.eq.s32.totalorder %s14, 0
    %p68 = por %p66, %p67
    %p69 = scmp.ne.s32.totalorder %s57, %s58
    %p70 = scmp.eq.s32.totalorder %s15, 1
    %p71 = por %p69, %p70
    %p73 = scmp.ne.s32.totalorder %s58, %s72
    %p74 = scmp.eq.s32.totalorder %s15, 0
    %p75 = por %p73, %p74
    %s77 = sadd.s32 %s76, 1
    %p80 = scmp.eq.s32.totalorder %s9, 1
    %p81 = scmp.ne.s32.totalorder %s76, %s78
    %p82 = scmp.eq.s32.totalorder %s9, 0
    %p83 = por %p81, %p82
    %p84 = scmp.ne.s32.totalorder %s76, %s78
    %p85 = scmp.eq.s32.totalorder %s14, 1
    %p86 = por %p84, %p85
    %p87 = scmp.ne.s32.totalorder %s78, %s79
    %p88 = scmp.eq.s32.totalorder %s14, 0
    %p89 = por %p87, %p88
    %p90 = scmp.ne.s32.totalorder %s78, %s79
    %p91 = scmp.eq.s32.totalorder %s15, 1
    %p92 = por %p90, %p91
    %p94 = scmp.ne.s32.totalorder %s79, %s93
    %p95 = scmp.eq.s32.totalorder %s15, 0
    %p96 = por %p94, %p95
    %s97 = ssub.s32 %s16, %s28
    %s98 = ssub.s32 %s17, %s24
    %s99 = sor.u32 %s97, %s98
    %p100 = scmp.eq.s32.totalorder %s99, 0
    %s102 = sadd.s32 %s101, 1
    %s103 = scalar_select %p100, %s101, %s102
    %p106 = pneg %p100
    %p107 = scmp.eq.s32.totalorder %s9, 1
    %p108 = por %p106, %p107
    %p109 = scmp.ne.s32.totalorder %s101, %s104
    %p110 = scmp.eq.s32.totalorder %s9, 0
    %p111 = por %p109, %p110
    %p112 = scmp.ne.s32.totalorder %s101, %s104
    %p113 = scmp.eq.s32.totalorder %s14, 1
    %p114 = por %p112, %p113
    %p115 = scmp.ne.s32.totalorder %s104, %s105
    %p116 = scmp.eq.s32.totalorder %s14, 0
    %p117 = por %p115, %p116
    %p118 = scmp.ne.s32.totalorder %s104, %s105
    %p119 = scmp.eq.s32.totalorder %s15, 1
    %p120 = por %p118, %p119
    %p122 = scmp.ne.s32.totalorder %s105, %s121
    %p123 = scmp.eq.s32.totalorder %s15, 0
    %p124 = por %p122, %p123
    %p125 = scmp.le.s32.totalorder 1, %s9
    %p126 = scmp.lt.s32.totalorder %s9, 3
    %p127 = pnand %p125, %p126
    %p128 = pneg %p127
    // Predicated region
    $region9: #{analysis_prior_net.3} parent=5 // pred_check
      _
    $region10: #{analysis_prior_net.3} parent=5 // pred_check_branch
      %130 = sbr.rel (%p127) target = $region12
    $region11: #{analysis_prior_net.3} parent=5 // pred_region
      %s131 = ssub.s32 %s9, 1
      // Predicated region
      $region13: #{analysis_prior_net.3} parent=11 // pred_check
        %p132 = pneg %p68
      $region14: #{analysis_prior_net.3} parent=11 // pred_check_branch
        %134 = sbr.rel (%p132) target = $region16
      $region15: #{analysis_prior_net.3} parent=11 // pred_region
        _
      $region16: #{analysis_prior_net.3} parent=11 // pred_fallthru
        _
      // Predicated region
      $region17: #{analysis_prior_net.3} parent=11 // pred_check
        %p135 = pneg %p89
      $region18: #{analysis_prior_net.3} parent=11 // pred_check_branch
        %137 = sbr.rel (%p135) target = $region20
      $region19: #{analysis_prior_net.3} parent=11 // pred_region
        _
      $region20: #{analysis_prior_net.3} parent=11 // pred_fallthru
        _
    $region12: #{analysis_prior_net.3} parent=5 // pred_fallthru
      _
    %p138 = scmp.lt.s32.totalorder %s9, 2
    // Predicated region
    $region21: #{analysis_prior_net.3} parent=5 // pred_check
      %p139 = pneg %p138
    $region22: #{analysis_prior_net.3} parent=5 // pred_check_branch
      %141 = sbr.rel (%p139) target = $region24
    $region23: #{analysis_prior_net.3} parent=5 // pred_region
      // Predicated region
      $region25: #{analysis_prior_net.3} parent=23 // pred_check
        %p142 = pneg %p41
      $region26: #{analysis_prior_net.3} parent=23 // pred_check_branch
        %144 = sbr.rel (%p142) target = $region28
      $region27: #{analysis_prior_net.3} parent=23 // pred_region
        %p145 = scmp.lt.s32.totalorder %s16, 1
        %s146 = scalar_select %p145, %s16, 1
        %s147 = smul.addr %s146, 41
        %s148 = smul.addr %s147, 8
        %s149 = scalar_lea.vmem %s0, %s148
      $region28: #{analysis_prior_net.3} parent=23 // pred_fallthru
        _
    $region24: #{analysis_prior_net.3} parent=5 // pred_fallthru
      _
    %p150 = scmp.le.s32.totalorder 1, %s9
    %p151 = scmp.lt.s32.totalorder %s9, 3
    %p152 = pnand %p150, %p151
    %p153 = pneg %p152
    // Predicated region
    $region29: #{analysis_prior_net.3} parent=5 // pred_check
      _
    $region30: #{analysis_prior_net.3} parent=5 // pred_check_branch
      %155 = sbr.rel (%p152) target = $region32
    $region31: #{analysis_prior_net.3} parent=5 // pred_region
      %s156 = ssub.s32 %s9, 1
      %p157 = scmp.lt.s32.totalorder %s18, 1
      %s158 = scalar_select %p157, %s18, 1
      %s159 = smul.addr %s158, 41
      %s160 = smul.addr %s159, 8
      %s161 = scalar_lea.vmem %s0, %s160
      %p162 = pneg %p47
      %p163 = pneg %p44
      %p164 = pneg %p68
      %p165 = pneg %p65
      %p166 = pneg %p89
      %p167 = pneg %p86
      %p168 = pneg %p117
      %p169 = pneg %p114
      %s170 = smul.u32 36, %s19
      %p171 = scmp.lt.s32.totalorder %s18, 1
      %s172 = scalar_select %p171, %s18, 1
      %p173 = scmp.lt.s32.totalorder %s170, 35
      %s174 = scalar_select %p173, %s170, 35
      %s175 = smul.addr %s172, 36
      %s176 = sadd.s32 %s174, %s175
      %s177 = smul.addr %s176, 8
      %s178 = scalar_lea.vmem %s3, %s177
      %p179 = scmp.lt.s32.totalorder %s18, 1
      %s180 = scalar_select %p179, %s18, 1
      %s181 = smul.addr %s180, 41
      %s182 = smul.addr %s181, 8
      %s183 = scalar_lea.vmem %s0, %s182
      %s184 = smul.u32 36, %s19
      %p185 = scmp.lt.s32.totalorder %s18, 1
      %s186 = scalar_select %p185, %s18, 1
      %p187 = scmp.lt.s32.totalorder %s184, 35
      %s188 = scalar_select %p187, %s184, 35
      %s189 = smul.addr %s186, 36
      %s190 = sadd.s32 %s188, %s189
      %s191 = smul.addr %s190, 8
      %s192 = scalar_lea.vmem %s3, %s191
      %s193 = smul.u32 36, %s19
      %s194 = smul.u32 %s19, 288
      %195 = vst [vmem:[#allocation2] sm:$0xff] 0.0
      %196 = vst [vmem:[#allocation2 + $0x8] sm:$0xff] 0.0
      %197 = vst [vmem:[#allocation2 + $0x10] sm:$0xff] 0.0
      %198 = vst [vmem:[#allocation2 + $0x18] sm:$0xff] 0.0
      %199 = vst [vmem:[#allocation2 + $0x20] sm:$0xff] 0.0
      %200 = vst [vmem:[#allocation2 + $0x28] sm:$0xff] 0.0
      %201 = vst [vmem:[#allocation2 + $0x30] sm:$0xff] 0.0
      %202 = vst [vmem:[#allocation2 + $0x38] sm:$0xff] 0.0
      %203 = vst [vmem:[#allocation2 + $0x40] sm:$0xff] 0.0
      %204 = vst [vmem:[#allocation2 + $0x48] sm:$0xff] 0.0
      %205 = vst [vmem:[#allocation2 + $0x50] sm:$0xff] 0.0
      %206 = vst [vmem:[#allocation2 + $0x58] sm:$0xff] 0.0
      %207 = vst [vmem:[#allocation2 + $0x60] sm:$0xff] 0.0
      %208 = vst [vmem:[#allocation2 + $0x68] sm:$0xff] 0.0
      %209 = vst [vmem:[#allocation2 + $0x70] sm:$0xff] 0.0
      %210 = vst [vmem:[#allocation2 + $0x78] sm:$0xff] 0.0
      %211 = vst [vmem:[#allocation2 + $0x80] sm:$0xff] 0.0
      %212 = vst [vmem:[#allocation2 + $0x88] sm:$0xff] 0.0
      %213 = vst [vmem:[#allocation2 + $0x90] sm:$0xff] 0.0
      %214 = vst [vmem:[#allocation2 + $0x98] sm:$0xff] 0.0
      %215 = vst [vmem:[#allocation2 + $0xa0] sm:$0xff] 0.0
      %216 = vst [vmem:[#allocation2 + $0xa8] sm:$0xff] 0.0
      %217 = vst [vmem:[#allocation2 + $0xb0] sm:$0xff] 0.0
      %218 = vst [vmem:[#allocation2 + $0xb8] sm:$0xff] 0.0
      %219 = vst [vmem:[#allocation2 + $0xc0] sm:$0xff] 0.0
      %220 = vst [vmem:[#allocation2 + $0xc8] sm:$0xff] 0.0
      %221 = vst [vmem:[#allocation2 + $0xd0] sm:$0xff] 0.0
      %222 = vst [vmem:[#allocation2 + $0xd8] sm:$0xff] 0.0
      %223 = vst [vmem:[#allocation2 + $0xe0] sm:$0xff] 0.0
      %224 = vst [vmem:[#allocation2 + $0xe8] sm:$0xff] 0.0
      %225 = vst [vmem:[#allocation2 + $0xf0] sm:$0xff] 0.0
      %226 = vst [vmem:[#allocation2 + $0xf8] sm:$0xff] 0.0
      %227 = vst [vmem:[#allocation2 + $0x100] sm:$0xff] 0.0
      %228 = vst [vmem:[#allocation2 + $0x108] sm:$0xff] 0.0
      %229 = vst [vmem:[#allocation2 + $0x110] sm:$0xff] 0.0
      %230 = vst [vmem:[#allocation2 + $0x118] sm:$0xff] 0.0
      %s231 = scalar_lea.vmem %s183, %s194
      %v232 = vld [vmem:[%s231] sm:$0xff]
      %v233 = vld [vmem:[%s231 + $0x8] sm:$0xff]
      %v234 = vld [vmem:[%s231 + $0x10] sm:$0xff]
      %v235 = vld [vmem:[%s231 + $0x18] sm:$0xff]
      %v236 = vld [vmem:[%s231 + $0x20] sm:$0xff]
      %v237 = vld [vmem:[%s231 + $0x28] sm:$0xff]
      %v238 = vld [vmem:[%s231 + $0x30] sm:$0xff]
      %v239 = vld [vmem:[%s231 + $0x38] sm:$0xff]
      %v240 = vld [vmem:[%s231 + $0x40] sm:$0xff]
      %v241 = vld [vmem:[%s231 + $0x48] sm:$0xff]
      %v242 = vld [vmem:[%s231 + $0x50] sm:$0xff]
      %v243 = vld [vmem:[%s231 + $0x58] sm:$0xff]
      %v244 = vld [vmem:[%s231 + $0x60] sm:$0xff]
      %v245 = vld [vmem:[%s231 + $0x68] sm:$0xff]
      %v246 = vld [vmem:[%s231 + $0x70] sm:$0xff]
      %v247 = vld [vmem:[%s231 + $0x78] sm:$0xff]
      %v248 = vld [vmem:[%s231 + $0x80] sm:$0xff]
      %v249 = vld [vmem:[%s231 + $0x88] sm:$0xff]
      %v250 = vld [vmem:[%s231 + $0x90] sm:$0xff]
      %v251 = vld [vmem:[%s231 + $0x98] sm:$0xff]
      %v252 = vld [vmem:[%s231 + $0xa0] sm:$0xff]
      %v253 = vld [vmem:[%s231 + $0xa8] sm:$0xff]
      %v254 = vld [vmem:[%s231 + $0xb0] sm:$0xff]
      %v255 = vld [vmem:[%s231 + $0xb8] sm:$0xff]
      %v256 = vld [vmem:[%s231 + $0xc0] sm:$0xff]
      %v257 = vld [vmem:[%s231 + $0xc8] sm:$0xff]
      %v258 = vld [vmem:[%s231 + $0xd0] sm:$0xff]
      %v259 = vld [vmem:[%s231 + $0xd8] sm:$0xff]
      %v260 = vld [vmem:[%s231 + $0xe0] sm:$0xff]
      %v261 = vld [vmem:[%s231 + $0xe8] sm:$0xff]
      %v262 = vld [vmem:[%s231 + $0xf0] sm:$0xff]
      %v263 = vld [vmem:[%s231 + $0xf8] sm:$0xff]
      %v264 = vld [vmem:[%s231 + $0x100] sm:$0xff]
      %v265 = vld [vmem:[%s231 + $0x108] sm:$0xff]
      %v266 = vld [vmem:[%s231 + $0x110] sm:$0xff]
      %v267 = vld [vmem:[%s231 + $0x118] sm:$0xff]
      %v268 = vld [vmem:[#allocation2] sm:$0xff]
      %v269 = vld [vmem:[#allocation2 + $0x8] sm:$0xff]
      %v270 = vld [vmem:[#allocation2 + $0x10] sm:$0xff]
      %v271 = vld [vmem:[#allocation2 + $0x18] sm:$0xff]
      %v272 = vld [vmem:[#allocation2 + $0x20] sm:$0xff]
      %v273 = vld [vmem:[#allocation2 + $0x28] sm:$0xff]
      %v274 = vld [vmem:[#allocation2 + $0x30] sm:$0xff]
      %v275 = vld [vmem:[#allocation2 + $0x38] sm:$0xff]
      %v276 = vld [vmem:[#allocation2 + $0x40] sm:$0xff]
      %v277 = vld [vmem:[#allocation2 + $0x48] sm:$0xff]
      %v278 = vld [vmem:[#allocation2 + $0x50] sm:$0xff]
      %v279 = vld [vmem:[#allocation2 + $0x58] sm:$0xff]
      %v280 = vld [vmem:[#allocation2 + $0x60] sm:$0xff]
      %v281 = vld [vmem:[#allocation2 + $0x68] sm:$0xff]
      %v282 = vld [vmem:[#allocation2 + $0x70] sm:$0xff]
      %v283 = vld [vmem:[#allocation2 + $0x78] sm:$0xff]
      %v284 = vld [vmem:[#allocation2 + $0x80] sm:$0xff]
      %v285 = vld [vmem:[#allocation2 + $0x88] sm:$0xff]
      %v286 = vld [vmem:[#allocation2 + $0x90] sm:$0xff]
      %v287 = vld [vmem:[#allocation2 + $0x98] sm:$0xff]
      %v288 = vld [vmem:[#allocation2 + $0xa0] sm:$0xff]
      %v289 = vld [vmem:[#allocation2 + $0xa8] sm:$0xff]
      %v290 = vld [vmem:[#allocation2 + $0xb0] sm:$0xff]
      %v291 = vld [vmem:[#allocation2 + $0xb8] sm:$0xff]
      %v292 = vld [vmem:[#allocation2 + $0xc0] sm:$0xff]
      %v293 = vld [vmem:[#allocation2 + $0xc8] sm:$0xff]
      %v294 = vld [vmem:[#allocation2 + $0xd0] sm:$0xff]
      %v295 = vld [vmem:[#allocation2 + $0xd8] sm:$0xff]
      %v296 = vld [vmem:[#allocation2 + $0xe0] sm:$0xff]
      %v297 = vld [vmem:[#allocation2 + $0xe8] sm:$0xff]
      %v298 = vld [vmem:[#allocation2 + $0xf0] sm:$0xff]
      %v299 = vld [vmem:[#allocation2 + $0xf8] sm:$0xff]
      %v300 = vld [vmem:[#allocation2 + $0x100] sm:$0xff]
      %v301 = vld [vmem:[#allocation2 + $0x108] sm:$0xff]
      %v302 = vld [vmem:[#allocation2 + $0x110] sm:$0xff]
      %v303 = vld [vmem:[#allocation2 + $0x118] sm:$0xff]
      %v304 = vld [vmem:[%s1] sm:$0xff]
      %vm305 = vcmask 64512
      %v307 = vsel %vm305, %v232, 0
      %v310 = vsel %vm305, %v233, 0
      %v313 = vsel %vm305, %v234, 0
      %v316 = vsel %vm305, %v235, 0
      %v319 = vsel %vm305, %v236, 0
      %v322 = vsel %vm305, %v237, 0
      %v325 = vsel %vm305, %v238, 0
      %v328 = vsel %vm305, %v239, 0
      %v331 = vsel %vm305, %v240, 0
      %v334 = vsel %vm305, %v241, 0
      %v337 = vsel %vm305, %v242, 0
      %v340 = vsel %vm305, %v243, 0
      %v343 = vsel %vm305, %v244, 0
      %v346 = vsel %vm305, %v245, 0
      %v349 = vsel %vm305, %v246, 0
      %v352 = vsel %vm305, %v247, 0
      %v355 = vsel %vm305, %v248, 0
      %v358 = vsel %vm305, %v249, 0
      %v361 = vsel %vm305, %v250, 0
      %v364 = vsel %vm305, %v251, 0
      %v367 = vsel %vm305, %v252, 0
      %v370 = vsel %vm305, %v253, 0
      %v373 = vsel %vm305, %v254, 0
      %v376 = vsel %vm305, %v255, 0
      %v379 = vsel %vm305, %v256, 0
      %v382 = vsel %vm305, %v257, 0
      %v385 = vsel %vm305, %v258, 0
      %v388 = vsel %vm305, %v259, 0
      %v391 = vsel %vm305, %v260, 0
      %v394 = vsel %vm305, %v261, 0
      %v397 = vsel %vm305, %v262, 0
      %v400 = vsel %vm305, %v263, 0
      %v403 = vsel %vm305, %v264, 0
      %v406 = vsel %vm305, %v265, 0
      %v409 = vsel %vm305, %v266, 0
      %v412 = vsel %vm305, %v267, 0
      %414 = vmatpush.msra.mxu0 0.0
      %415 = vmatpush.msra.mxu0 0.0
      %416 = vmatpush.msra.mxu0 0.0
      %417 = vmatpush.msra.mxu0 0.0
      %418 = vmatpush.msra.mxu0 0.0
      %419 = vmatpush.msra.mxu0 0.0
      %420 = vmatpush.msra.mxu0 0.0
      %421 = vmatpush.msra.mxu0 0.0
      %422 = vmatpush.msra.mxu0 0.0
      %423 = vmatpush.msra.mxu0 0.0
      %424 = vmatpush.msra.mxu0 0.0
      %425 = vmatpush.msra.mxu0 0.0
      %426 = vmatpush.msra.mxu0 0.0
      %427 = vmatpush.msra.mxu0 0.0
      %428 = vmatpush.msra.mxu0 0.0
      %429 = vmatpush.msra.mxu0 %v304
      %430 = vmatmul.f32.gmra.mxu0 %v307
      %v431 = vpop.f32.mrf.mxu0
      %v432 = vadd.f32 0.0, %v431
      %433 = vmatmul.f32.gmra.mxu0 %v310
      %v434 = vpop.f32.mrf.mxu0
      %v435 = vadd.f32 0.0, %v434
      %436 = vmatmul.f32.gmra.mxu0 %v313
      %v437 = vpop.f32.mrf.mxu0
      %v438 = vadd.f32 0.0, %v437
      %439 = vmatmul.f32.gmra.mxu0 %v316
      %v440 = vpop.f32.mrf.mxu0
      %v441 = vadd.f32 0.0, %v440
      %442 = vmatmul.f32.gmra.mxu0 %v319
      %v443 = vpop.f32.mrf.mxu0
      %v444 = vadd.f32 0.0, %v443
      %445 = vmatmul.f32.gmra.mxu0 %v322
      %v446 = vpop.f32.mrf.mxu0
      %v447 = vadd.f32 0.0, %v446
      %448 = vmatmul.f32.gmra.mxu0 %v325
      %v449 = vpop.f32.mrf.mxu0
      %v450 = vadd.f32 0.0, %v449
      %451 = vmatmul.f32.gmra.mxu0 %v328
      %v452 = vpop.f32.mrf.mxu0
      %v453 = vadd.f32 0.0, %v452
      %454 = vmatmul.f32.gmra.mxu0 %v331
      %v455 = vpop.f32.mrf.mxu0
      %v456 = vadd.f32 0.0, %v455
      %457 = vmatmul.f32.gmra.mxu0 %v334
      %v458 = vpop.f32.mrf.mxu0
      %v459 = vadd.f32 0.0, %v458
      %460 = vmatmul.f32.gmra.mxu0 %v337
      %v461 = vpop.f32.mrf.mxu0
      %v462 = vadd.f32 0.0, %v461
      %463 = vmatmul.f32.gmra.mxu0 %v340
      %v464 = vpop.f32.mrf.mxu0
      %v465 = vadd.f32 0.0, %v464
      %466 = vmatmul.f32.gmra.mxu0 %v343
      %v467 = vpop.f32.mrf.mxu0
      %v468 = vadd.f32 0.0, %v467
      %469 = vmatmul.f32.gmra.mxu0 %v346
      %v470 = vpop.f32.mrf.mxu0
      %v471 = vadd.f32 0.0, %v470
      %472 = vmatmul.f32.gmra.mxu0 %v349
      %v473 = vpop.f32.mrf.mxu0
      %v474 = vadd.f32 0.0, %v473
      %475 = vmatmul.f32.gmra.mxu0 %v352
      %v476 = vpop.f32.mrf.mxu0
      %v477 = vadd.f32 0.0, %v476
      %478 = vmatmul.f32.gmra.mxu0 %v355
      %v479 = vpop.f32.mrf.mxu0
      %v480 = vadd.f32 0.0, %v479
      %481 = vmatmul.f32.gmra.mxu0 %v358
      %v482 = vpop.f32.mrf.mxu0
      %v483 = vadd.f32 0.0, %v482
      %484 = vmatmul.f32.gmra.mxu0 %v361
      %v485 = vpop.f32.mrf.mxu0
      %v486 = vadd.f32 0.0, %v485
      %487 = vmatmul.f32.gmra.mxu0 %v364
      %v488 = vpop.f32.mrf.mxu0
      %v489 = vadd.f32 0.0, %v488
      %490 = vmatmul.f32.gmra.mxu0 %v367
      %v491 = vpop.f32.mrf.mxu0
      %v492 = vadd.f32 0.0, %v491
      %493 = vmatmul.f32.gmra.mxu0 %v370
      %v494 = vpop.f32.mrf.mxu0
      %v495 = vadd.f32 0.0, %v494
      %496 = vmatmul.f32.gmra.mxu0 %v373
      %v497 = vpop.f32.mrf.mxu0
      %v498 = vadd.f32 0.0, %v497
      %499 = vmatmul.f32.gmra.mxu0 %v376
      %v500 = vpop.f32.mrf.mxu0
      %v501 = vadd.f32 0.0, %v500
      %502 = vmatmul.f32.gmra.mxu0 %v379
      %v503 = vpop.f32.mrf.mxu0
      %v504 = vadd.f32 0.0, %v503
      %505 = vmatmul.f32.gmra.mxu0 %v382
      %v506 = vpop.f32.mrf.mxu0
      %v507 = vadd.f32 0.0, %v506
      %508 = vmatmul.f32.gmra.mxu0 %v385
      %v509 = vpop.f32.mrf.mxu0
      %v510 = vadd.f32 0.0, %v509
      %511 = vmatmul.f32.gmra.mxu0 %v388
      %v512 = vpop.f32.mrf.mxu0
      %v513 = vadd.f32 0.0, %v512
      %514 = vmatmul.f32.gmra.mxu0 %v391
      %v515 = vpop.f32.mrf.mxu0
      %v516 = vadd.f32 0.0, %v515
      %517 = vmatmul.f32.gmra.mxu0 %v394
      %v518 = vpop.f32.mrf.mxu0
      %v519 = vadd.f32 0.0, %v518
      %520 = vmatmul.f32.gmra.mxu0 %v397
      %v521 = vpop.f32.mrf.mxu0
      %v522 = vadd.f32 0.0, %v521
      %523 = vmatmul.f32.gmra.mxu0 %v400
      %v524 = vpop.f32.mrf.mxu0
      %v525 = vadd.f32 0.0, %v524
      %526 = vmatmul.f32.gmra.mxu0 %v403
      %v527 = vpop.f32.mrf.mxu0
      %v528 = vadd.f32 0.0, %v527
      %529 = vmatmul.f32.gmra.mxu0 %v406
      %v530 = vpop.f32.mrf.mxu0
      %v531 = vadd.f32 0.0, %v530
      %532 = vmatmul.f32.gmra.mxu0 %v409
      %v533 = vpop.f32.mrf.mxu0
      %v534 = vadd.f32 0.0, %v533
      %535 = vmatmul.f32.gmra.mxu0 %v412
      %v536 = vpop.f32.mrf.mxu0
      %v537 = vadd.f32 0.0, %v536
      %538 = vdwg.mxu0
      %v539 = vadd.f32 %v268, %v432
      %v540 = vadd.f32 %v269, %v435
      %v541 = vadd.f32 %v270, %v438
      %v542 = vadd.f32 %v271, %v441
      %v543 = vadd.f32 %v272, %v444
      %v544 = vadd.f32 %v273, %v447
      %v545 = vadd.f32 %v274, %v450
      %v546 = vadd.f32 %v275, %v453
      %v547 = vadd.f32 %v276, %v456
      %v548 = vadd.f32 %v277, %v459
      %v549 = vadd.f32 %v278, %v462
      %v550 = vadd.f32 %v279, %v465
      %v551 = vadd.f32 %v280, %v468
      %v552 = vadd.f32 %v281, %v471
      %v553 = vadd.f32 %v282, %v474
      %v554 = vadd.f32 %v283, %v477
      %v555 = vadd.f32 %v284, %v480
      %v556 = vadd.f32 %v285, %v483
      %v557 = vadd.f32 %v286, %v486
      %v558 = vadd.f32 %v287, %v489
      %v559 = vadd.f32 %v288, %v492
      %v560 = vadd.f32 %v289, %v495
      %v561 = vadd.f32 %v290, %v498
      %v562 = vadd.f32 %v291, %v501
      %v563 = vadd.f32 %v292, %v504
      %v564 = vadd.f32 %v293, %v507
      %v565 = vadd.f32 %v294, %v510
      %v566 = vadd.f32 %v295, %v513
      %v567 = vadd.f32 %v296, %v516
      %v568 = vadd.f32 %v297, %v519
      %v569 = vadd.f32 %v298, %v522
      %v570 = vadd.f32 %v299, %v525
      %v571 = vadd.f32 %v300, %v528
      %v572 = vadd.f32 %v301, %v531
      %v573 = vadd.f32 %v302, %v534
      %v574 = vadd.f32 %v303, %v537
      %575 = vst [vmem:[#allocation2] sm:$0xff] %v539
      %576 = vst [vmem:[#allocation2 + $0x8] sm:$0xff] %v540
      %577 = vst [vmem:[#allocation2 + $0x10] sm:$0xff] %v541
      %578 = vst [vmem:[#allocation2 + $0x18] sm:$0xff] %v542
      %579 = vst [vmem:[#allocation2 + $0x20] sm:$0xff] %v543
      %580 = vst [vmem:[#allocation2 + $0x28] sm:$0xff] %v544
      %581 = vst [vmem:[#allocation2 + $0x30] sm:$0xff] %v545
      %582 = vst [vmem:[#allocation2 + $0x38] sm:$0xff] %v546
      %583 = vst [vmem:[#allocation2 + $0x40] sm:$0xff] %v547
      %584 = vst [vmem:[#allocation2 + $0x48] sm:$0xff] %v548
      %585 = vst [vmem:[#allocation2 + $0x50] sm:$0xff] %v549
      %586 = vst [vmem:[#allocation2 + $0x58] sm:$0xff] %v550
      %587 = vst [vmem:[#allocation2 + $0x60] sm:$0xff] %v551
      %588 = vst [vmem:[#allocation2 + $0x68] sm:$0xff] %v552
      %589 = vst [vmem:[#allocation2 + $0x70] sm:$0xff] %v553
      %590 = vst [vmem:[#allocation2 + $0x78] sm:$0xff] %v554
      %591 = vst [vmem:[#allocation2 + $0x80] sm:$0xff] %v555
      %592 = vst [vmem:[#allocation2 + $0x88] sm:$0xff] %v556
      %593 = vst [vmem:[#allocation2 + $0x90] sm:$0xff] %v557
      %594 = vst [vmem:[#allocation2 + $0x98] sm:$0xff] %v558
      %595 = vst [vmem:[#allocation2 + $0xa0] sm:$0xff] %v559
      %596 = vst [vmem:[#allocation2 + $0xa8] sm:$0xff] %v560
      %597 = vst [vmem:[#allocation2 + $0xb0] sm:$0xff] %v561
      %598 = vst [vmem:[#allocation2 + $0xb8] sm:$0xff] %v562
      %599 = vst [vmem:[#allocation2 + $0xc0] sm:$0xff] %v563
      %600 = vst [vmem:[#allocation2 + $0xc8] sm:$0xff] %v564
      %601 = vst [vmem:[#allocation2 + $0xd0] sm:$0xff] %v565
      %602 = vst [vmem:[#allocation2 + $0xd8] sm:$0xff] %v566
      %603 = vst [vmem:[#allocation2 + $0xe0] sm:$0xff] %v567
      %604 = vst [vmem:[#allocation2 + $0xe8] sm:$0xff] %v568
      %605 = vst [vmem:[#allocation2 + $0xf0] sm:$0xff] %v569
      %606 = vst [vmem:[#allocation2 + $0xf8] sm:$0xff] %v570
      %607 = vst [vmem:[#allocation2 + $0x100] sm:$0xff] %v571
      %608 = vst [vmem:[#allocation2 + $0x108] sm:$0xff] %v572
      %609 = vst [vmem:[#allocation2 + $0x110] sm:$0xff] %v573
      %610 = vst [vmem:[#allocation2 + $0x118] sm:$0xff] %v574
      %s611 = sadd.s32 %s194, 1
      %s612 = scalar_lea.vmem %s183, %s611
      %v613 = vld [vmem:[%s612] sm:$0xff]
      %v614 = vld [vmem:[%s612 + $0x8] sm:$0xff]
      %v615 = vld [vmem:[%s612 + $0x10] sm:$0xff]
      %v616 = vld [vmem:[%s612 + $0x18] sm:$0xff]
      %v617 = vld [vmem:[%s612 + $0x20] sm:$0xff]
      %v618 = vld [vmem:[%s612 + $0x28] sm:$0xff]
      %v619 = vld [vmem:[%s612 + $0x30] sm:$0xff]
      %v620 = vld [vmem:[%s612 + $0x38] sm:$0xff]
      %v621 = vld [vmem:[%s612 + $0x40] sm:$0xff]
      %v622 = vld [vmem:[%s612 + $0x48] sm:$0xff]
      %v623 = vld [vmem:[%s612 + $0x50] sm:$0xff]
      %v624 = vld [vmem:[%s612 + $0x58] sm:$0xff]
      %v625 = vld [vmem:[%s612 + $0x60] sm:$0xff]
      %v626 = vld [vmem:[%s612 + $0x68] sm:$0xff]
      %v627 = vld [vmem:[%s612 + $0x70] sm:$0xff]
      %v628 = vld [vmem:[%s612 + $0x78] sm:$0xff]
      %v629 = vld [vmem:[%s612 + $0x80] sm:$0xff]
      %v630 = vld [vmem:[%s612 + $0x88] sm:$0xff]
      %v631 = vld [vmem:[%s612 + $0x90] sm:$0xff]
      %v632 = vld [vmem:[%s612 + $0x98] sm:$0xff]
      %v633 = vld [vmem:[%s612 + $0xa0] sm:$0xff]
      %v634 = vld [vmem:[%s612 + $0xa8] sm:$0xff]
      %v635 = vld [vmem:[%s612 + $0xb0] sm:$0xff]
      %v636 = vld [vmem:[%s612 + $0xb8] sm:$0xff]
      %v637 = vld [vmem:[%s612 + $0xc0] sm:$0xff]
      %v638 = vld [vmem:[%s612 + $0xc8] sm:$0xff]
      %v639 = vld [vmem:[%s612 + $0xd0] sm:$0xff]
      %v640 = vld [vmem:[%s612 + $0xd8] sm:$0xff]
      %v641 = vld [vmem:[%s612 + $0xe0] sm:$0xff]
      %v642 = vld [vmem:[%s612 + $0xe8] sm:$0xff]
      %v643 = vld [vmem:[%s612 + $0xf0] sm:$0xff]
      %v644 = vld [vmem:[%s612 + $0xf8] sm:$0xff]
      %v645 = vld [vmem:[%s612 + $0x100] sm:$0xff]
      %v646 = vld [vmem:[%s612 + $0x108] sm:$0xff]
      %v647 = vld [vmem:[%s612 + $0x110] sm:$0xff]
      %v648 = vld [vmem:[%s612 + $0x118] sm:$0xff]
      %v649 = vld [vmem:[#allocation2] sm:$0xff]
      %v650 = vld [vmem:[#allocation2 + $0x8] sm:$0xff]
      %v651 = vld [vmem:[#allocation2 + $0x10] sm:$0xff]
      %v652 = vld [vmem:[#allocation2 + $0x18] sm:$0xff]
      %v653 = vld [vmem:[#allocation2 + $0x20] sm:$0xff]
      %v654 = vld [vmem:[#allocation2 + $0x28] sm:$0xff]
      %v655 = vld [vmem:[#allocation2 + $0x30] sm:$0xff]
      %v656 = vld [vmem:[#allocation2 + $0x38] sm:$0xff]
      %v657 = vld [vmem:[#allocation2 + $0x40] sm:$0xff]
      %v658 = vld [vmem:[#allocation2 + $0x48] sm:$0xff]
      %v659 = vld [vmem:[#allocation2 + $0x50] sm:$0xff]
      %v660 = vld [vmem:[#allocation2 + $0x58] sm:$0xff]
      %v661 = vld [vmem:[#allocation2 + $0x60] sm:$0xff]
      %v662 = vld [vmem:[#allocation2 + $0x68] sm:$0xff]
      %v663 = vld [vmem:[#allocation2 + $0x70] sm:$0xff]
      %v664 = vld [vmem:[#allocation2 + $0x78] sm:$0xff]
      %v665 = vld [vmem:[#allocation2 + $0x80] sm:$0xff]
      %v666 = vld [vmem:[#allocation2 + $0x88] sm:$0xff]
      %v667 = vld [vmem:[#allocation2 + $0x90] sm:$0xff]
      %v668 = vld [vmem:[#allocation2 + $0x98] sm:$0xff]
      %v669 = vld [vmem:[#allocation2 + $0xa0] sm:$0xff]
      %v670 = vld [vmem:[#allocation2 + $0xa8] sm:$0xff]
      %v671 = vld [vmem:[#allocation2 + $0xb0] sm:$0xff]
      %v672 = vld [vmem:[#allocation2 + $0xb8] sm:$0xff]
      %v673 = vld [vmem:[#allocation2 + $0xc0] sm:$0xff]
      %v674 = vld [vmem:[#allocation2 + $0xc8] sm:$0xff]
      %v675 = vld [vmem:[#allocation2 + $0xd0] sm:$0xff]
      %v676 = vld [vmem:[#allocation2 + $0xd8] sm:$0xff]
      %v677 = vld [vmem:[#allocation2 + $0xe0] sm:$0xff]
      %v678 = vld [vmem:[#allocation2 + $0xe8] sm:$0xff]
      %v679 = vld [vmem:[#allocation2 + $0xf0] sm:$0xff]
      %v680 = vld [vmem:[#allocation2 + $0xf8] sm:$0xff]
      %v681 = vld [vmem:[#allocation2 + $0x100] sm:$0xff]
      %v682 = vld [vmem:[#allocation2 + $0x108] sm:$0xff]
      %v683 = vld [vmem:[#allocation2 + $0x110] sm:$0xff]
      %v684 = vld [vmem:[#allocation2 + $0x118] sm:$0xff]
      %s685 = scalar_lea.vmem %s1, 8
      %v686 = vld [vmem:[%s685] sm:$0xff]
      %v688 = vsel %vm305, %v613, 0
      %v691 = vsel %vm305, %v614, 0
      %v694 = vsel %vm305, %v615, 0
      %v697 = vsel %vm305, %v616, 0
      %v700 = vsel %vm305, %v617, 0
      %v703 = vsel %vm305, %v618, 0
      %v706 = vsel %vm305, %v619, 0
      %v709 = vsel %vm305, %v620, 0
      %v712 = vsel %vm305, %v621, 0
      %v715 = vsel %vm305, %v622, 0
      %v718 = vsel %vm305, %v623, 0
      %v721 = vsel %vm305, %v624, 0
      %v724 = vsel %vm305, %v625, 0
      %v727 = vsel %vm305, %v626, 0
      %v730 = vsel %vm305, %v627, 0
      %v733 = vsel %vm305, %v628, 0
      %v736 = vsel %vm305, %v629, 0
      %v739 = vsel %vm305, %v630, 0
      %v742 = vsel %vm305, %v631, 0
      %v745 = vsel %vm305, %v632, 0
      %v748 = vsel %vm305, %v633, 0
      %v751 = vsel %vm305, %v634, 0
      %v754 = vsel %vm305, %v635, 0
      %v757 = vsel %vm305, %v636, 0
      %v760 = vsel %vm305, %v637, 0
      %v763 = vsel %vm305, %v638, 0
      %v766 = vsel %vm305, %v639, 0
      %v769 = vsel %vm305, %v640, 0
      %v772 = vsel %vm305, %v641, 0
      %v775 = vsel %vm305, %v642, 0
      %v778 = vsel %vm305, %v643, 0
      %v781 = vsel %vm305, %v644, 0
      %v784 = vsel %vm305, %v645, 0
      %v787 = vsel %vm305, %v646, 0
      %v790 = vsel %vm305, %v647, 0
      %v793 = vsel %vm305, %v648, 0
      %795 = vmatpush.msra.mxu0 0.0
      %796 = vmatpush.msra.mxu0 0.0
      %797 = vmatpush.msra.mxu0 0.0
      %798 = vmatpush.msra.mxu0 0.0
      %799 = vmatpush.msra.mxu0 0.0
      %800 = vmatpush.msra.mxu0 0.0
      %801 = vmatpush.msra.mxu0 0.0
      %802 = vmatpush.msra.mxu0 0.0
      %803 = vmatpush.msra.mxu0 0.0
      %804 = vmatpush.msra.mxu0 0.0
      %805 = vmatpush.msra.mxu0 0.0
      %806 = vmatpush.msra.mxu0 0.0
      %807 = vmatpush.msra.mxu0 0.0
      %808 = vmatpush.msra.mxu0 0.0
      %809 = vmatpush.msra.mxu0 0.0
      %810 = vmatpush.msra.mxu0 %v686
      %811 = vmatmul.f32.gmra.mxu0 %v688
      %v812 = vpop.f32.mrf.mxu0
      %v813 = vadd.f32 0.0, %v812
      %814 = vmatmul.f32.gmra.mxu0 %v691
      %v815 = vpop.f32.mrf.mxu0
      %v816 = vadd.f32 0.0, %v815
      %817 = vmatmul.f32.gmra.mxu0 %v694
      %v818 = vpop.f32.mrf.mxu0
      %v819 = vadd.f32 0.0, %v818
      %820 = vmatmul.f32.gmra.mxu0 %v697
      %v821 = vpop.f32.mrf.mxu0
      %v822 = vadd.f32 0.0, %v821
      %823 = vmatmul.f32.gmra.mxu0 %v700
      %v824 = vpop.f32.mrf.mxu0
      %v825 = vadd.f32 0.0, %v824
      %826 = vmatmul.f32.gmra.mxu0 %v703
      %v827 = vpop.f32.mrf.mxu0
      %v828 = vadd.f32 0.0, %v827
      %829 = vmatmul.f32.gmra.mxu0 %v706
      %v830 = vpop.f32.mrf.mxu0
      %v831 = vadd.f32 0.0, %v830
      %832 = vmatmul.f32.gmra.mxu0 %v709
      %v833 = vpop.f32.mrf.mxu0
      %v834 = vadd.f32 0.0, %v833
      %835 = vmatmul.f32.gmra.mxu0 %v712
      %v836 = vpop.f32.mrf.mxu0
      %v837 = vadd.f32 0.0, %v836
      %838 = vmatmul.f32.gmra.mxu0 %v715
      %v839 = vpop.f32.mrf.mxu0
      %v840 = vadd.f32 0.0, %v839
      %841 = vmatmul.f32.gmra.mxu0 %v718
      %v842 = vpop.f32.mrf.mxu0
      %v843 = vadd.f32 0.0, %v842
      %844 = vmatmul.f32.gmra.mxu0 %v721
      %v845 = vpop.f32.mrf.mxu0
      %v846 = vadd.f32 0.0, %v845
      %847 = vmatmul.f32.gmra.mxu0 %v724
      %v848 = vpop.f32.mrf.mxu0
      %v849 = vadd.f32 0.0, %v848
      %850 = vmatmul.f32.gmra.mxu0 %v727
      %v851 = vpop.f32.mrf.mxu0
      %v852 = vadd.f32 0.0, %v851
      %853 = vmatmul.f32.gmra.mxu0 %v730
      %v854 = vpop.f32.mrf.mxu0
      %v855 = vadd.f32 0.0, %v854
      %856 = vmatmul.f32.gmra.mxu0 %v733
      %v857 = vpop.f32.mrf.mxu0
      %v858 = vadd.f32 0.0, %v857
      %859 = vmatmul.f32.gmra.mxu0 %v736
      %v860 = vpop.f32.mrf.mxu0
      %v861 = vadd.f32 0.0, %v860
      %862 = vmatmul.f32.gmra.mxu0 %v739
      %v863 = vpop.f32.mrf.mxu0
      %v864 = vadd.f32 0.0, %v863
      %865 = vmatmul.f32.gmra.mxu0 %v742
      %v866 = vpop.f32.mrf.mxu0
      %v867 = vadd.f32 0.0, %v866
      %868 = vmatmul.f32.gmra.mxu0 %v745
      %v869 = vpop.f32.mrf.mxu0
      %v870 = vadd.f32 0.0, %v869
      %871 = vmatmul.f32.gmra.mxu0 %v748
      %v872 = vpop.f32.mrf.mxu0
      %v873 = vadd.f32 0.0, %v872
      %874 = vmatmul.f32.gmra.mxu0 %v751
      %v875 = vpop.f32.mrf.mxu0
      %v876 = vadd.f32 0.0, %v875
      %877 = vmatmul.f32.gmra.mxu0 %v754
      %v878 = vpop.f32.mrf.mxu0
      %v879 = vadd.f32 0.0, %v878
      %880 = vmatmul.f32.gmra.mxu0 %v757
      %v881 = vpop.f32.mrf.mxu0
      %v882 = vadd.f32 0.0, %v881
      %883 = vmatmul.f32.gmra.mxu0 %v760
      %v884 = vpop.f32.mrf.mxu0
      %v885 = vadd.f32 0.0, %v884
      %886 = vmatmul.f32.gmra.mxu0 %v763
      %v887 = vpop.f32.mrf.mxu0
      %v888 = vadd.f32 0.0, %v887
      %889 = vmatmul.f32.gmra.mxu0 %v766
      %v890 = vpop.f32.mrf.mxu0
      %v891 = vadd.f32 0.0, %v890
      %892 = vmatmul.f32.gmra.mxu0 %v769
      %v893 = vpop.f32.mrf.mxu0
      %v894 = vadd.f32 0.0, %v893
      %895 = vmatmul.f32.gmra.mxu0 %v772
      %v896 = vpop.f32.mrf.mxu0
      %v897 = vadd.f32 0.0, %v896
      %898 = vmatmul.f32.gmra.mxu0 %v775
      %v899 = vpop.f32.mrf.mxu0
      %v900 = vadd.f32 0.0, %v899
      %901 = vmatmul.f32.gmra.mxu0 %v778
      %v902 = vpop.f32.mrf.mxu0
      %v903 = vadd.f32 0.0, %v902
      %904 = vmatmul.f32.gmra.mxu0 %v781
      %v905 = vpop.f32.mrf.mxu0
      %v906 = vadd.f32 0.0, %v905
      %907 = vmatmul.f32.gmra.mxu0 %v784
      %v908 = vpop.f32.mrf.mxu0
      %v909 = vadd.f32 0.0, %v908
      %910 = vmatmul.f32.gmra.mxu0 %v787
      %v911 = vpop.f32.mrf.mxu0
      %v912 = vadd.f32 0.0, %v911
      %913 = vmatmul.f32.gmra.mxu0 %v790
      %v914 = vpop.f32.mrf.mxu0
      %v915 = vadd.f32 0.0, %v914
      %916 = vmatmul.f32.gmra.mxu0 %v793
      %v917 = vpop.f32.mrf.mxu0
      %v918 = vadd.f32 0.0, %v917
      %919 = vdwg.mxu0
      %v920 = vadd.f32 %v649, %v813
      %v921 = vadd.f32 %v650, %v816
      %v922 = vadd.f32 %v651, %v819
      %v923 = vadd.f32 %v652, %v822
      %v924 = vadd.f32 %v653, %v825
      %v925 = vadd.f32 %v654, %v828
      %v926 = vadd.f32 %v655, %v831
      %v927 = vadd.f32 %v656, %v834
      %v928 = vadd.f32 %v657, %v837
      %v929 = vadd.f32 %v658, %v840
      %v930 = vadd.f32 %v659, %v843
      %v931 = vadd.f32 %v660, %v846
      %v932 = vadd.f32 %v661, %v849
      %v933 = vadd.f32 %v662, %v852
      %v934 = vadd.f32 %v663, %v855
      %v935 = vadd.f32 %v664, %v858
      %v936 = vadd.f32 %v665, %v861
      %v937 = vadd.f32 %v666, %v864
      %v938 = vadd.f32 %v667, %v867
      %v939 = vadd.f32 %v668, %v870
      %v940 = vadd.f32 %v669, %v873
      %v941 = vadd.f32 %v670, %v876
      %v942 = vadd.f32 %v671, %v879
      %v943 = vadd.f32 %v672, %v882
      %v944 = vadd.f32 %v673, %v885
      %v945 = vadd.f32 %v674, %v888
      %v946 = vadd.f32 %v675, %v891
      %v947 = vadd.f32 %v676, %v894
      %v948 = vadd.f32 %v677, %v897
      %v949 = vadd.f32 %v678, %v900
      %v950 = vadd.f32 %v679, %v903
      %v951 = vadd.f32 %v680, %v906
      %v952 = vadd.f32 %v681, %v909
      %v953 = vadd.f32 %v682, %v912
      %v954 = vadd.f32 %v683, %v915
      %v955 = vadd.f32 %v684, %v918
      %956 = vst [vmem:[#allocation2] sm:$0xff] %v920
      %957 = vst [vmem:[#allocation2 + $0x8] sm:$0xff] %v921
      %958 = vst [vmem:[#allocation2 + $0x10] sm:$0xff] %v922
      %959 = vst [vmem:[#allocation2 + $0x18] sm:$0xff] %v923
      %960 = vst [vmem:[#allocation2 + $0x20] sm:$0xff] %v924
      %961 = vst [vmem:[#allocation2 + $0x28] sm:$0xff] %v925
      %962 = vst [vmem:[#allocation2 + $0x30] sm:$0xff] %v926
      %963 = vst [vmem:[#allocation2 + $0x38] sm:$0xff] %v927
      %964 = vst [vmem:[#allocation2 + $0x40] sm:$0xff] %v928
      %965 = vst [vmem:[#allocation2 + $0x48] sm:$0xff] %v929
      %966 = vst [vmem:[#allocation2 + $0x50] sm:$0xff] %v930
      %967 = vst [vmem:[#allocation2 + $0x58] sm:$0xff] %v931
      %968 = vst [vmem:[#allocation2 + $0x60] sm:$0xff] %v932
      %969 = vst [vmem:[#allocation2 + $0x68] sm:$0xff] %v933
      %970 = vst [vmem:[#allocation2 + $0x70] sm:$0xff] %v934
      %971 = vst [vmem:[#allocation2 + $0x78] sm:$0xff] %v935
      %972 = vst [vmem:[#allocation2 + $0x80] sm:$0xff] %v936
      %973 = vst [vmem:[#allocation2 + $0x88] sm:$0xff] %v937
      %974 = vst [vmem:[#allocation2 + $0x90] sm:$0xff] %v938
      %975 = vst [vmem:[#allocation2 + $0x98] sm:$0xff] %v939
      %976 = vst [vmem:[#allocation2 + $0xa0] sm:$0xff] %v940
      %977 = vst [vmem:[#allocation2 + $0xa8] sm:$0xff] %v941
      %978 = vst [vmem:[#allocation2 + $0xb0] sm:$0xff] %v942
      %979 = vst [vmem:[#allocation2 + $0xb8] sm:$0xff] %v943
      %980 = vst [vmem:[#allocation2 + $0xc0] sm:$0xff] %v944
      %981 = vst [vmem:[#allocation2 + $0xc8] sm:$0xff] %v945
      %982 = vst [vmem:[#allocation2 + $0xd0] sm:$0xff] %v946
      %983 = vst [vmem:[#allocation2 + $0xd8] sm:$0xff] %v947
      %984 = vst [vmem:[#allocation2 + $0xe0] sm:$0xff] %v948
      %985 = vst [vmem:[#allocation2 + $0xe8] sm:$0xff] %v949
      %986 = vst [vmem:[#allocation2 + $0xf0] sm:$0xff] %v950
      %987 = vst [vmem:[#allocation2 + $0xf8] sm:$0xff] %v951
      %988 = vst [vmem:[#allocation2 + $0x100] sm:$0xff] %v952
      %989 = vst [vmem:[#allocation2 + $0x108] sm:$0xff] %v953
      %990 = vst [vmem:[#allocation2 + $0x110] sm:$0xff] %v954
      %991 = vst [vmem:[#allocation2 + $0x118] sm:$0xff] %v955
      %s992 = sadd.s32 %s194, 2
      %s993 = scalar_lea.vmem %s183, %s992
      %v994 = vld [vmem:[%s993] sm:$0xff]
      %v995 = vld [vmem:[%s993 + $0x8] sm:$0xff]
      %v996 = vld [vmem:[%s993 + $0x10] sm:$0xff]
      %v997 = vld [vmem:[%s993 + $0x18] sm:$0xff]
      %v998 = vld [vmem:[%s993 + $0x20] sm:$0xff]
      %v999 = vld [vmem:[%s993 + $0x28] sm:$0xff]
      %v1000 = vld [vmem:[%s993 + $0x30] sm:$0xff]
      %v1001 = vld [vmem:[%s993 + $0x38] sm:$0xff]
      %v1002 = vld [vmem:[%s993 + $0x40] sm:$0xff]
      %v1003 = vld [vmem:[%s993 + $0x48] sm:$0xff]
      %v1004 = vld [vmem:[%s993 + $0x50] sm:$0xff]
      %v1005 = vld [vmem:[%s993 + $0x58] sm:$0xff]
      %v1006 = vld [vmem:[%s993 + $0x60] sm:$0xff]
      %v1007 = vld [vmem:[%s993 + $0x68] sm:$0xff]
      %v1008 = vld [vmem:[%s993 + $0x70] sm:$0xff]
      %v1009 = vld [vmem:[%s993 + $0x78] sm:$0xff]
      %v1010 = vld [vmem:[%s993 + $0x80] sm:$0xff]
      %v1011 = vld [vmem:[%s993 + $0x88] sm:$0xff]
      %v1012 = vld [vmem:[%s993 + $0x90] sm:$0xff]
      %v1013 = vld [vmem:[%s993 + $0x98] sm:$0xff]
      %v1014 = vld [vmem:[%s993 + $0xa0] sm:$0xff]
      %v1015 = vld [vmem:[%s993 + $0xa8] sm:$0xff]
      %v1016 = vld [vmem:[%s993 + $0xb0] sm:$0xff]
      %v1017 = vld [vmem:[%s993 + $0xb8] sm:$0xff]
      %v1018 = vld [vmem:[%s993 + $0xc0] sm:$0xff]
      %v1019 = vld [vmem:[%s993 + $0xc8] sm:$0xff]
      %v1020 = vld [vmem:[%s993 + $0xd0] sm:$0xff]
      %v1021 = vld [vmem:[%s993 + $0xd8] sm:$0xff]
      %v1022 = vld [vmem:[%s993 + $0xe0] sm:$0xff]
      %v1023 = vld [vmem:[%s993 + $0xe8] sm:$0xff]
      %v1024 = vld [vmem:[%s993 + $0xf0] sm:$0xff]
      %v1025 = vld [vmem:[%s993 + $0xf8] sm:$0xff]
      %v1026 = vld [vmem:[%s993 + $0x100] sm:$0xff]
      %v1027 = vld [vmem:[%s993 + $0x108] sm:$0xff]
      %v1028 = vld [vmem:[%s993 + $0x110] sm:$0xff]
      %v1029 = vld [vmem:[%s993 + $0x118] sm:$0xff]
      %v1030 = vld [vmem:[#allocation2] sm:$0xff]
      %v1031 = vld [vmem:[#allocation2 + $0x8] sm:$0xff]
      %v1032 = vld [vmem:[#allocation2 + $0x10] sm:$0xff]
      %v1033 = vld [vmem:[#allocation2 + $0x18] sm:$0xff]
      %v1034 = vld [vmem:[#allocation2 + $0x20] sm:$0xff]
      %v1035 = vld [vmem:[#allocation2 + $0x28] sm:$0xff]
      %v1036 = vld [vmem:[#allocation2 + $0x30] sm:$0xff]
      %v1037 = vld [vmem:[#allocation2 + $0x38] sm:$0xff]
      %v1038 = vld [vmem:[#allocation2 + $0x40] sm:$0xff]
      %v1039 = vld [vmem:[#allocation2 + $0x48] sm:$0xff]
      %v1040 = vld [vmem:[#allocation2 + $0x50] sm:$0xff]
      %v1041 = vld [vmem:[#allocation2 + $0x58] sm:$0xff]
      %v1042 = vld [vmem:[#allocation2 + $0x60] sm:$0xff]
      %v1043 = vld [vmem:[#allocation2 + $0x68] sm:$0xff]
      %v1044 = vld [vmem:[#allocation2 + $0x70] sm:$0xff]
      %v1045 = vld [vmem:[#allocation2 + $0x78] sm:$0xff]
      %v1046 = vld [vmem:[#allocation2 + $0x80] sm:$0xff]
      %v1047 = vld [vmem:[#allocation2 + $0x88] sm:$0xff]
      %v1048 = vld [vmem:[#allocation2 + $0x90] sm:$0xff]
      %v1049 = vld [vmem:[#allocation2 + $0x98] sm:$0xff]
      %v1050 = vld [vmem:[#allocation2 + $0xa0] sm:$0xff]
      %v1051 = vld [vmem:[#allocation2 + $0xa8] sm:$0xff]
      %v1052 = vld [vmem:[#allocation2 + $0xb0] sm:$0xff]
      %v1053 = vld [vmem:[#allocation2 + $0xb8] sm:$0xff]
      %v1054 = vld [vmem:[#allocation2 + $0xc0] sm:$0xff]
      %v1055 = vld [vmem:[#allocation2 + $0xc8] sm:$0xff]
      %v1056 = vld [vmem:[#allocation2 + $0xd0] sm:$0xff]
      %v1057 = vld [vmem:[#allocation2 + $0xd8] sm:$0xff]
      %v1058 = vld [vmem:[#allocation2 + $0xe0] sm:$0xff]
      %v1059 = vld [vmem:[#allocation2 + $0xe8] sm:$0xff]
      %v1060 = vld [vmem:[#allocation2 + $0xf0] sm:$0xff]
      %v1061 = vld [vmem:[#allocation2 + $0xf8] sm:$0xff]
      %v1062 = vld [vmem:[#allocation2 + $0x100] sm:$0xff]
      %v1063 = vld [vmem:[#allocation2 + $0x108] sm:$0xff]
      %v1064 = vld [vmem:[#allocation2 + $0x110] sm:$0xff]
      %v1065 = vld [vmem:[#allocation2 + $0x118] sm:$0xff]
      %s1066 = scalar_lea.vmem %s1, 16
      %v1067 = vld [vmem:[%s1066] sm:$0xff]
      %v1069 = vsel %vm305, %v994, 0
      %v1072 = vsel %vm305, %v995, 0
      %v1075 = vsel %vm305, %v996, 0
      %v1078 = vsel %vm305, %v997, 0
      %v1081 = vsel %vm305, %v998, 0
      %v1084 = vsel %vm305, %v999, 0
      %v1087 = vsel %vm305, %v1000, 0
      %v1090 = vsel %vm305, %v1001, 0
      %v1093 = vsel %vm305, %v1002, 0
      %v1096 = vsel %vm305, %v1003, 0
      %v1099 = vsel %vm305, %v1004, 0
      %v1102 = vsel %vm305, %v1005, 0
      %v1105 = vsel %vm305, %v1006, 0
      %v1108 = vsel %vm305, %v1007, 0
      %v1111 = vsel %vm305, %v1008, 0
      %v1114 = vsel %vm305, %v1009, 0
      %v1117 = vsel %vm305, %v1010, 0
      %v1120 = vsel %vm305, %v1011, 0
      %v1123 = vsel %vm305, %v1012, 0
      %v1126 = vsel %vm305, %v1013, 0
      %v1129 = vsel %vm305, %v1014, 0
      %v1132 = vsel %vm305, %v1015, 0
      %v1135 = vsel %vm305, %v1016, 0
      %v1138 = vsel %vm305, %v1017, 0
      %v1141 = vsel %vm305, %v1018, 0
      %v1144 = vsel %vm305, %v1019, 0
      %v1147 = vsel %vm305, %v1020, 0
      %v1150 = vsel %vm305, %v1021, 0
      %v1153 = vsel %vm305, %v1022, 0
      %v1156 = vsel %vm305, %v1023, 0
      %v1159 = vsel %vm305, %v1024, 0
      %v1162 = vsel %vm305, %v1025, 0
      %v1165 = vsel %vm305, %v1026, 0
      %v1168 = vsel %vm305, %v1027, 0
      %v1171 = vsel %vm305, %v1028, 0
      %v1174 = vsel %vm305, %v1029, 0
      %1176 = vmatpush.msra.mxu0 0.0
      %1177 = vmatpush.msra.mxu0 0.0
      %1178 = vmatpush.msra.mxu0 0.0
      %1179 = vmatpush.msra.mxu0 0.0
      %1180 = vmatpush.msra.mxu0 0.0
      %1181 = vmatpush.msra.mxu0 0.0
      %1182 = vmatpush.msra.mxu0 0.0
      %1183 = vmatpush.msra.mxu0 0.0
      %1184 = vmatpush.msra.mxu0 0.0
      %1185 = vmatpush.msra.mxu0 0.0
      %1186 = vmatpush.msra.mxu0 0.0
      %1187 = vmatpush.msra.mxu0 0.0
      %1188 = vmatpush.msra.mxu0 0.0
      %1189 = vmatpush.msra.mxu0 0.0
      %1190 = vmatpush.msra.mxu0 0.0
      %1191 = vmatpush.msra.mxu0 %v1067
      %1192 = vmatmul.f32.gmra.mxu0 %v1069
      %v1193 = vpop.f32.mrf.mxu0
      %v1194 = vadd.f32 0.0, %v1193
      %1195 = vmatmul.f32.gmra.mxu0 %v1072
      %v1196 = vpop.f32.mrf.mxu0
      %v1197 = vadd.f32 0.0, %v1196
      %1198 = vmatmul.f32.gmra.mxu0 %v1075
      %v1199 = vpop.f32.mrf.mxu0
      %v1200 = vadd.f32 0.0, %v1199
      %1201 = vmatmul.f32.gmra.mxu0 %v1078
      %v1202 = vpop.f32.mrf.mxu0
      %v1203 = vadd.f32 0.0, %v1202
      %1204 = vmatmul.f32.gmra.mxu0 %v1081
      %v1205 = vpop.f32.mrf.mxu0
      %v1206 = vadd.f32 0.0, %v1205
      %1207 = vmatmul.f32.gmra.mxu0 %v1084
      %v1208 = vpop.f32.mrf.mxu0
      %v1209 = vadd.f32 0.0, %v1208
      %1210 = vmatmul.f32.gmra.mxu0 %v1087
      %v1211 = vpop.f32.mrf.mxu0
      %v1212 = vadd.f32 0.0, %v1211
      %1213 = vmatmul.f32.gmra.mxu0 %v1090
      %v1214 = vpop.f32.mrf.mxu0
      %v1215 = vadd.f32 0.0, %v1214
      %1216 = vmatmul.f32.gmra.mxu0 %v1093
      %v1217 = vpop.f32.mrf.mxu0
      %v1218 = vadd.f32 0.0, %v1217
      %1219 = vmatmul.f32.gmra.mxu0 %v1096
      %v1220 = vpop.f32.mrf.mxu0
      %v1221 = vadd.f32 0.0, %v1220
      %1222 = vmatmul.f32.gmra.mxu0 %v1099
      %v1223 = vpop.f32.mrf.mxu0
      %v1224 = vadd.f32 0.0, %v1223
      %1225 = vmatmul.f32.gmra.mxu0 %v1102
      %v1226 = vpop.f32.mrf.mxu0
      %v1227 = vadd.f32 0.0, %v1226
      %1228 = vmatmul.f32.gmra.mxu0 %v1105
      %v1229 = vpop.f32.mrf.mxu0
      %v1230 = vadd.f32 0.0, %v1229
      %1231 = vmatmul.f32.gmra.mxu0 %v1108
      %v1232 = vpop.f32.mrf.mxu0
      %v1233 = vadd.f32 0.0, %v1232
      %1234 = vmatmul.f32.gmra.mxu0 %v1111
      %v1235 = vpop.f32.mrf.mxu0
      %v1236 = vadd.f32 0.0, %v1235
      %1237 = vmatmul.f32.gmra.mxu0 %v1114
      %v1238 = vpop.f32.mrf.mxu0
      %v1239 = vadd.f32 0.0, %v1238
      %1240 = vmatmul.f32.gmra.mxu0 %v1117
      %v1241 = vpop.f32.mrf.mxu0
      %v1242 = vadd.f32 0.0, %v1241
      %1243 = vmatmul.f32.gmra.mxu0 %v1120
      %v1244 = vpop.f32.mrf.mxu0
      %v1245 = vadd.f32 0.0, %v1244
      %1246 = vmatmul.f32.gmra.mxu0 %v1123
      %v1247 = vpop.f32.mrf.mxu0
      %v1248 = vadd.f32 0.0, %v1247
      %1249 = vmatmul.f32.gmra.mxu0 %v1126
      %v1250 = vpop.f32.mrf.mxu0
      %v1251 = vadd.f32 0.0, %v1250
      %1252 = vmatmul.f32.gmra.mxu0 %v1129
      %v1253 = vpop.f32.mrf.mxu0
      %v1254 = vadd.f32 0.0, %v1253
      %1255 = vmatmul.f32.gmra.mxu0 %v1132
      %v1256 = vpop.f32.mrf.mxu0
      %v1257 = vadd.f32 0.0, %v1256
      %1258 = vmatmul.f32.gmra.mxu0 %v1135
      %v1259 = vpop.f32.mrf.mxu0
      %v1260 = vadd.f32 0.0, %v1259
      %1261 = vmatmul.f32.gmra.mxu0 %v1138
      %v1262 = vpop.f32.mrf.mxu0
      %v1263 = vadd.f32 0.0, %v1262
      %1264 = vmatmul.f32.gmra.mxu0 %v1141
      %v1265 = vpop.f32.mrf.mxu0
      %v1266 = vadd.f32 0.0, %v1265
      %1267 = vmatmul.f32.gmra.mxu0 %v1144
      %v1268 = vpop.f32.mrf.mxu0
      %v1269 = vadd.f32 0.0, %v1268
      %1270 = vmatmul.f32.gmra.mxu0 %v1147
      %v1271 = vpop.f32.mrf.mxu0
      %v1272 = vadd.f32 0.0, %v1271
      %1273 = vmatmul.f32.gmra.mxu0 %v1150
      %v1274 = vpop.f32.mrf.mxu0
      %v1275 = vadd.f32 0.0, %v1274
      %1276 = vmatmul.f32.gmra.mxu0 %v1153
      %v1277 = vpop.f32.mrf.mxu0
      %v1278 = vadd.f32 0.0, %v1277
      %1279 = vmatmul.f32.gmra.mxu0 %v1156
      %v1280 = vpop.f32.mrf.mxu0
      %v1281 = vadd.f32 0.0, %v1280
      %1282 = vmatmul.f32.gmra.mxu0 %v1159
      %v1283 = vpop.f32.mrf.mxu0
      %v1284 = vadd.f32 0.0, %v1283
      %1285 = vmatmul.f32.gmra.mxu0 %v1162
      %v1286 = vpop.f32.mrf.mxu0
      %v1287 = vadd.f32 0.0, %v1286
      %1288 = vmatmul.f32.gmra.mxu0 %v1165
      %v1289 = vpop.f32.mrf.mxu0
      %v1290 = vadd.f32 0.0, %v1289
      %1291 = vmatmul.f32.gmra.mxu0 %v1168
      %v1292 = vpop.f32.mrf.mxu0
      %v1293 = vadd.f32 0.0, %v1292
      %1294 = vmatmul.f32.gmra.mxu0 %v1171
      %v1295 = vpop.f32.mrf.mxu0
      %v1296 = vadd.f32 0.0, %v1295
      %1297 = vmatmul.f32.gmra.mxu0 %v1174
      %v1298 = vpop.f32.mrf.mxu0
      %v1299 = vadd.f32 0.0, %v1298
      %1300 = vdwg.mxu0
      %v1301 = vadd.f32 %v1030, %v1194
      %v1302 = vadd.f32 %v1031, %v1197
      %v1303 = vadd.f32 %v1032, %v1200
      %v1304 = vadd.f32 %v1033, %v1203
      %v1305 = vadd.f32 %v1034, %v1206
      %v1306 = vadd.f32 %v1035, %v1209
      %v1307 = vadd.f32 %v1036, %v1212
      %v1308 = vadd.f32 %v1037, %v1215
      %v1309 = vadd.f32 %v1038, %v1218
      %v1310 = vadd.f32 %v1039, %v1221
      %v1311 = vadd.f32 %v1040, %v1224
      %v1312 = vadd.f32 %v1041, %v1227
      %v1313 = vadd.f32 %v1042, %v1230
      %v1314 = vadd.f32 %v1043, %v1233
      %v1315 = vadd.f32 %v1044, %v1236
      %v1316 = vadd.f32 %v1045, %v1239
      %v1317 = vadd.f32 %v1046, %v1242
      %v1318 = vadd.f32 %v1047, %v1245
      %v1319 = vadd.f32 %v1048, %v1248
      %v1320 = vadd.f32 %v1049, %v1251
      %v1321 = vadd.f32 %v1050, %v1254
      %v1322 = vadd.f32 %v1051, %v1257
      %v1323 = vadd.f32 %v1052, %v1260
      %v1324 = vadd.f32 %v1053, %v1263
      %v1325 = vadd.f32 %v1054, %v1266
      %v1326 = vadd.f32 %v1055, %v1269
      %v1327 = vadd.f32 %v1056, %v1272
      %v1328 = vadd.f32 %v1057, %v1275
      %v1329 = vadd.f32 %v1058, %v1278
      %v1330 = vadd.f32 %v1059, %v1281
      %v1331 = vadd.f32 %v1060, %v1284
      %v1332 = vadd.f32 %v1061, %v1287
      %v1333 = vadd.f32 %v1062, %v1290
      %v1334 = vadd.f32 %v1063, %v1293
      %v1335 = vadd.f32 %v1064, %v1296
      %v1336 = vadd.f32 %v1065, %v1299
      %1337 = vst [vmem:[#allocation2] sm:$0xff] %v1301
      %1338 = vst [vmem:[#allocation2 + $0x8] sm:$0xff] %v1302
      %1339 = vst [vmem:[#allocation2 + $0x10] sm:$0xff] %v1303
      %1340 = vst [vmem:[#allocation2 + $0x18] sm:$0xff] %v1304
      %1341 = vst [vmem:[#allocation2 + $0x20] sm:$0xff] %v1305
      %1342 = vst [vmem:[#allocation2 + $0x28] sm:$0xff] %v1306
      %1343 = vst [vmem:[#allocation2 + $0x30] sm:$0xff] %v1307
      %1344 = vst [vmem:[#allocation2 + $0x38] sm:$0xff] %v1308
      %1345 = vst [vmem:[#allocation2 + $0x40] sm:$0xff] %v1309
      %1346 = vst [vmem:[#allocation2 + $0x48] sm:$0xff] %v1310
      %1347 = vst [vmem:[#allocation2 + $0x50] sm:$0xff] %v1311
      %1348 = vst [vmem:[#allocation2 + $0x58] sm:$0xff] %v1312
      %1349 = vst [vmem:[#allocation2 + $0x60] sm:$0xff] %v1313
      %1350 = vst [vmem:[#allocation2 + $0x68] sm:$0xff] %v1314
      %1351 = vst [vmem:[#allocation2 + $0x70] sm:$0xff] %v1315
      %1352 = vst [vmem:[#allocation2 + $0x78] sm:$0xff] %v1316
      %1353 = vst [vmem:[#allocation2 + $0x80] sm:$0xff] %v1317
      %1354 = vst [vmem:[#allocation2 + $0x88] sm:$0xff] %v1318
      %1355 = vst [vmem:[#allocation2 + $0x90] sm:$0xff] %v1319
      %1356 = vst [vmem:[#allocation2 + $0x98] sm:$0xff] %v1320
      %1357 = vst [vmem:[#allocation2 + $0xa0] sm:$0xff] %v1321
      %1358 = vst [vmem:[#allocation2 + $0xa8] sm:$0xff] %v1322
      %1359 = vst [vmem:[#allocation2 + $0xb0] sm:$0xff] %v1323
      %1360 = vst [vmem:[#allocation2 + $0xb8] sm:$0xff] %v1324
      %1361 = vst [vmem:[#allocation2 + $0xc0] sm:$0xff] %v1325
      %1362 = vst [vmem:[#allocation2 + $0xc8] sm:$0xff] %v1326
      %1363 = vst [vmem:[#allocation2 + $0xd0] sm:$0xff] %v1327
      %1364 = vst [vmem:[#allocation2 + $0xd8] sm:$0xff] %v1328
      %1365 = vst [vmem:[#allocation2 + $0xe0] sm:$0xff] %v1329
      %1366 = vst [vmem:[#allocation2 + $0xe8] sm:$0xff] %v1330
      %1367 = vst [vmem:[#allocation2 + $0xf0] sm:$0xff] %v1331
      %1368 = vst [vmem:[#allocation2 + $0xf8] sm:$0xff] %v1332
      %1369 = vst [vmem:[#allocation2 + $0x100] sm:$0xff] %v1333
      %1370 = vst [vmem:[#allocation2 + $0x108] sm:$0xff] %v1334
      %1371 = vst [vmem:[#allocation2 + $0x110] sm:$0xff] %v1335
      %1372 = vst [vmem:[#allocation2 + $0x118] sm:$0xff] %v1336
      %s1373 = sadd.s32 %s194, 18
      %s1374 = scalar_lea.vmem %s183, %s1373
      %v1375 = vld [vmem:[%s1374] sm:$0xff]
      %v1376 = vld [vmem:[%s1374 + $0x8] sm:$0xff]
      %v1377 = vld [vmem:[%s1374 + $0x10] sm:$0xff]
      %v1378 = vld [vmem:[%s1374 + $0x18] sm:$0xff]
      %v1379 = vld [vmem:[%s1374 + $0x20] sm:$0xff]
      %v1380 = vld [vmem:[%s1374 + $0x28] sm:$0xff]
      %v1381 = vld [vmem:[%s1374 + $0x30] sm:$0xff]
      %v1382 = vld [vmem:[%s1374 + $0x38] sm:$0xff]
      %v1383 = vld [vmem:[%s1374 + $0x40] sm:$0xff]
      %v1384 = vld [vmem:[%s1374 + $0x48] sm:$0xff]
      %v1385 = vld [vmem:[%s1374 + $0x50] sm:$0xff]
      %v1386 = vld [vmem:[%s1374 + $0x58] sm:$0xff]
      %v1387 = vld [vmem:[%s1374 + $0x60] sm:$0xff]
      %v1388 = vld [vmem:[%s1374 + $0x68] sm:$0xff]
      %v1389 = vld [vmem:[%s1374 + $0x70] sm:$0xff]
      %v1390 = vld [vmem:[%s1374 + $0x78] sm:$0xff]
      %v1391 = vld [vmem:[%s1374 + $0x80] sm:$0xff]
      %v1392 = vld [vmem:[%s1374 + $0x88] sm:$0xff]
      %v1393 = vld [vmem:[%s1374 + $0x90] sm:$0xff]
      %v1394 = vld [vmem:[%s1374 + $0x98] sm:$0xff]
      %v1395 = vld [vmem:[%s1374 + $0xa0] sm:$0xff]
      %v1396 = vld [vmem:[%s1374 + $0xa8] sm:$0xff]
      %v1397 = vld [vmem:[%s1374 + $0xb0] sm:$0xff]
      %v1398 = vld [vmem:[%s1374 + $0xb8] sm:$0xff]
      %v1399 = vld [vmem:[%s1374 + $0xc0] sm:$0xff]
      %v1400 = vld [vmem:[%s1374 + $0xc8] sm:$0xff]
      %v1401 = vld [vmem:[%s1374 + $0xd0] sm:$0xff]
      %v1402 = vld [vmem:[%s1374 + $0xd8] sm:$0xff]
      %v1403 = vld [vmem:[%s1374 + $0xe0] sm:$0xff]
      %v1404 = vld [vmem:[%s1374 + $0xe8] sm:$0xff]
      %v1405 = vld [vmem:[%s1374 + $0xf0] sm:$0xff]
      %v1406 = vld [vmem:[%s1374 + $0xf8] sm:$0xff]
      %v1407 = vld [vmem:[%s1374 + $0x100] sm:$0xff]
      %v1408 = vld [vmem:[%s1374 + $0x108] sm:$0xff]
      %v1409 = vld [vmem:[%s1374 + $0x110] sm:$0xff]
      %v1410 = vld [vmem:[%s1374 + $0x118] sm:$0xff]
      %v1411 = vld [vmem:[#allocation2] sm:$0xff]
      %v1412 = vld [vmem:[#allocation2 + $0x8] sm:$0xff]
      %v1413 = vld [vmem:[#allocation2 + $0x10] sm:$0xff]
      %v1414 = vld [vmem:[#allocation2 + $0x18] sm:$0xff]
      %v1415 = vld [vmem:[#allocation2 + $0x20] sm:$0xff]
      %v1416 = vld [vmem:[#allocation2 + $0x28] sm:$0xff]
      %v1417 = vld [vmem:[#allocation2 + $0x30] sm:$0xff]
      %v1418 = vld [vmem:[#allocation2 + $0x38] sm:$0xff]
      %v1419 = vld [vmem:[#allocation2 + $0x40] sm:$0xff]
      %v1420 = vld [vmem:[#allocation2 + $0x48] sm:$0xff]
      %v1421 = vld [vmem:[#allocation2 + $0x50] sm:$0xff]
      %v1422 = vld [vmem:[#allocation2 + $0x58] sm:$0xff]
      %v1423 = vld [vmem:[#allocation2 + $0x60] sm:$0xff]
      %v1424 = vld [vmem:[#allocation2 + $0x68] sm:$0xff]
      %v1425 = vld [vmem:[#allocation2 + $0x70] sm:$0xff]
      %v1426 = vld [vmem:[#allocation2 + $0x78] sm:$0xff]
      %v1427 = vld [vmem:[#allocation2 + $0x80] sm:$0xff]
      %v1428 = vld [vmem:[#allocation2 + $0x88] sm:$0xff]
      %v1429 = vld [vmem:[#allocation2 + $0x90] sm:$0xff]
      %v1430 = vld [vmem:[#allocation2 + $0x98] sm:$0xff]
      %v1431 = vld [vmem:[#allocation2 + $0xa0] sm:$0xff]
      %v1432 = vld [vmem:[#allocation2 + $0xa8] sm:$0xff]
      %v1433 = vld [vmem:[#allocation2 + $0xb0] sm:$0xff]
      %v1434 = vld [vmem:[#allocation2 + $0xb8] sm:$0xff]
      %v1435 = vld [vmem:[#allocation2 + $0xc0] sm:$0xff]
      %v1436 = vld [vmem:[#allocation2 + $0xc8] sm:$0xff]
      %v1437 = vld [vmem:[#allocation2 + $0xd0] sm:$0xff]
      %v1438 = vld [vmem:[#allocation2 + $0xd8] sm:$0xff]
      %v1439 = vld [vmem:[#allocation2 + $0xe0] sm:$0xff]
      %v1440 = vld [vmem:[#allocation2 + $0xe8] sm:$0xff]
      %v1441 = vld [vmem:[#allocation2 + $0xf0] sm:$0xff]
      %v1442 = vld [vmem:[#allocation2 + $0xf8] sm:$0xff]
      %v1443 = vld [vmem:[#allocation2 + $0x100] sm:$0xff]
      %v1444 = vld [vmem:[#allocation2 + $0x108] sm:$0xff]
      %v1445 = vld [vmem:[#allocation2 + $0x110] sm:$0xff]
      %v1446 = vld [vmem:[#allocation2 + $0x118] sm:$0xff]
      %s1447 = scalar_lea.vmem %s1, 24
      %v1448 = vld [vmem:[%s1447] sm:$0xff]
      %v1450 = vsel %vm305, %v1375, 0
      %v1453 = vsel %vm305, %v1376, 0
      %v1456 = vsel %vm305, %v1377, 0
      %v1459 = vsel %vm305, %v1378, 0
      %v1462 = vsel %vm305, %v1379, 0
      %v1465 = vsel %vm305, %v1380, 0
      %v1468 = vsel %vm305, %v1381, 0
      %v1471 = vsel %vm305, %v1382, 0
      %v1474 = vsel %vm305, %v1383, 0
      %v1477 = vsel %vm305, %v1384, 0
      %v1480 = vsel %vm305, %v1385, 0
      %v1483 = vsel %vm305, %v1386, 0
      %v1486 = vsel %vm305, %v1387, 0
      %v1489 = vsel %vm305, %v1388, 0
      %v1492 = vsel %vm305, %v1389, 0
      %v1495 = vsel %vm305, %v1390, 0
      %v1498 = vsel %vm305, %v1391, 0
      %v1501 = vsel %vm305, %v1392, 0
      %v1504 = vsel %vm305, %v1393, 0
      %v1507 = vsel %vm305, %v1394, 0
      %v1510 = vsel %vm305, %v1395, 0
      %v1513 = vsel %vm305, %v1396, 0
      %v1516 = vsel %vm305, %v1397, 0
      %v1519 = vsel %vm305, %v1398, 0
      %v1522 = vsel %vm305, %v1399, 0
      %v1525 = vsel %vm305, %v1400, 0
      %v1528 = vsel %vm305, %v1401, 0
      %v1531 = vsel %vm305, %v1402, 0
      %v1534 = vsel %vm305, %v1403, 0
      %v1537 = vsel %vm305, %v1404, 0
      %v1540 = vsel %vm305, %v1405, 0
      %v1543 = vsel %vm305, %v1406, 0
      %v1546 = vsel %vm305, %v1407, 0
      %v1549 = vsel %vm305, %v1408, 0
      %v1552 = vsel %vm305, %v1409, 0
      %v1555 = vsel %vm305, %v1410, 0
      %1557 = vmatpush.msra.mxu0 0.0
      %1558 = vmatpush.msra.mxu0 0.0
      %1559 = vmatpush.msra.mxu0 0.0
      %1560 = vmatpush.msra.mxu0 0.0
      %1561 = vmatpush.msra.mxu0 0.0
      %1562 = vmatpush.msra.mxu0 0.0
      %1563 = vmatpush.msra.mxu0 0.0
      %1564 = vmatpush.msra.mxu0 0.0
      %1565 = vmatpush.msra.mxu0 0.0
      %1566 = vmatpush.msra.mxu0 0.0
      %1567 = vmatpush.msra.mxu0 0.0
      %1568 = vmatpush.msra.mxu0 0.0
      %1569 = vmatpush.msra.mxu0 0.0
      %1570 = vmatpush.msra.mxu0 0.0
      %1571 = vmatpush.msra.mxu0 0.0
      %1572 = vmatpush.msra.mxu0 %v1448
      %1573 = vmatmul.f32.gmra.mxu0 %v1450
      %v1574 = vpop.f32.mrf.mxu0
      %v1575 = vadd.f32 0.0, %v1574
      %1576 = vmatmul.f32.gmra.mxu0 %v1453
      %v1577 = vpop.f32.mrf.mxu0
      %v1578 = vadd.f32 0.0, %v1577
      %1579 = vmatmul.f32.gmra.mxu0 %v1456
      %v1580 = vpop.f32.mrf.mxu0
      %v1581 = vadd.f32 0.0, %v1580
      %1582 = vmatmul.f32.gmra.mxu0 %v1459
      %v1583 = vpop.f32.mrf.mxu0
      %v1584 = vadd.f32 0.0, %v1583
      %1585 = vmatmul.f32.gmra.mxu0 %v1462
      %v1586 = vpop.f32.mrf.mxu0
      %v1587 = vadd.f32 0.0, %v1586
      %1588 = vmatmul.f32.gmra.mxu0 %v1465
      %v1589 = vpop.f32.mrf.mxu0
      %v1590 = vadd.f32 0.0, %v1589
      %1591 = vmatmul.f32.gmra.mxu0 %v1468
      %v1592 = vpop.f32.mrf.mxu0
      %v1593 = vadd.f32 0.0, %v1592
      %1594 = vmatmul.f32.gmra.mxu0 %v1471
      %v1595 = vpop.f32.mrf.mxu0
      %v1596 = vadd.f32 0.0, %v1595
      %1597 = vmatmul.f32.gmra.mxu0 %v1474
      %v1598 = vpop.f32.mrf.mxu0
      %v1599 = vadd.f32 0.0, %v1598
      %1600 = vmatmul.f32.gmra.mxu0 %v1477
      %v1601 = vpop.f32.mrf.mxu0
      %v1602 = vadd.f32 0.0, %v1601
      %1603 = vmatmul.f32.gmra.mxu0 %v1480
      %v1604 = vpop.f32.mrf.mxu0
      %v1605 = vadd.f32 0.0, %v1604
      %1606 = vmatmul.f32.gmra.mxu0 %v1483
      %v1607 = vpop.f32.mrf.mxu0
      %v1608 = vadd.f32 0.0, %v1607
      %1609 = vmatmul.f32.gmra.mxu0 %v1486
      %v1610 = vpop.f32.mrf.mxu0
      %v1611 = vadd.f32 0.0, %v1610
      %1612 = vmatmul.f32.gmra.mxu0 %v1489
      %v1613 = vpop.f32.mrf.mxu0
      %v1614 = vadd.f32 0.0, %v1613
      %1615 = vmatmul.f32.gmra.mxu0 %v1492
      %v1616 = vpop.f32.mrf.mxu0
      %v1617 = vadd.f32 0.0, %v1616
      %1618 = vmatmul.f32.gmra.mxu0 %v1495
      %v1619 = vpop.f32.mrf.mxu0
      %v1620 = vadd.f32 0.0, %v1619
      %1621 = vmatmul.f32.gmra.mxu0 %v1498
      %v1622 = vpop.f32.mrf.mxu0
      %v1623 = vadd.f32 0.0, %v1622
      %1624 = vmatmul.f32.gmra.mxu0 %v1501
      %v1625 = vpop.f32.mrf.mxu0
      %v1626 = vadd.f32 0.0, %v1625
      %1627 = vmatmul.f32.gmra.mxu0 %v1504
      %v1628 = vpop.f32.mrf.mxu0
      %v1629 = vadd.f32 0.0, %v1628
      %1630 = vmatmul.f32.gmra.mxu0 %v1507
      %v1631 = vpop.f32.mrf.mxu0
      %v1632 = vadd.f32 0.0, %v1631
      %1633 = vmatmul.f32.gmra.mxu0 %v1510
      %v1634 = vpop.f32.mrf.mxu0
      %v1635 = vadd.f32 0.0, %v1634
      %1636 = vmatmul.f32.gmra.mxu0 %v1513
      %v1637 = vpop.f32.mrf.mxu0
      %v1638 = vadd.f32 0.0, %v1637
      %1639 = vmatmul.f32.gmra.mxu0 %v1516
      %v1640 = vpop.f32.mrf.mxu0
      %v1641 = vadd.f32 0.0, %v1640
      %1642 = vmatmul.f32.gmra.mxu0 %v1519
      %v1643 = vpop.f32.mrf.mxu0
      %v1644 = vadd.f32 0.0, %v1643
      %1645 = vmatmul.f32.gmra.mxu0 %v1522
      %v1646 = vpop.f32.mrf.mxu0
      %v1647 = vadd.f32 0.0, %v1646
      %1648 = vmatmul.f32.gmra.mxu0 %v1525
      %v1649 = vpop.f32.mrf.mxu0
      %v1650 = vadd.f32 0.0, %v1649
      %1651 = vmatmul.f32.gmra.mxu0 %v1528
      %v1652 = vpop.f32.mrf.mxu0
      %v1653 = vadd.f32 0.0, %v1652
      %1654 = vmatmul.f32.gmra.mxu0 %v1531
      %v1655 = vpop.f32.mrf.mxu0
      %v1656 = vadd.f32 0.0, %v1655
      %1657 = vmatmul.f32.gmra.mxu0 %v1534
      %v1658 = vpop.f32.mrf.mxu0
      %v1659 = vadd.f32 0.0, %v1658
      %1660 = vmatmul.f32.gmra.mxu0 %v1537
      %v1661 = vpop.f32.mrf.mxu0
      %v1662 = vadd.f32 0.0, %v1661
      %1663 = vmatmul.f32.gmra.mxu0 %v1540
      %v1664 = vpop.f32.mrf.mxu0
      %v1665 = vadd.f32 0.0, %v1664
      %1666 = vmatmul.f32.gmra.mxu0 %v1543
      %v1667 = vpop.f32.mrf.mxu0
      %v1668 = vadd.f32 0.0, %v1667
      %1669 = vmatmul.f32.gmra.mxu0 %v1546
      %v1670 = vpop.f32.mrf.mxu0
      %v1671 = vadd.f32 0.0, %v1670
      %1672 = vmatmul.f32.gmra.mxu0 %v1549
      %v1673 = vpop.f32.mrf.mxu0
      %v1674 = vadd.f32 0.0, %v1673
      %1675 = vmatmul.f32.gmra.mxu0 %v1552
      %v1676 = vpop.f32.mrf.mxu0
      %v1677 = vadd.f32 0.0, %v1676
      %1678 = vmatmul.f32.gmra.mxu0 %v1555
      %v1679 = vpop.f32.mrf.mxu0
      %v1680 = vadd.f32 0.0, %v1679
      %1681 = vdwg.mxu0
      %v1682 = vadd.f32 %v1411, %v1575
      %v1683 = vadd.f32 %v1412, %v1578
      %v1684 = vadd.f32 %v1413, %v1581
      %v1685 = vadd.f32 %v1414, %v1584
      %v1686 = vadd.f32 %v1415, %v1587
      %v1687 = vadd.f32 %v1416, %v1590
      %v1688 = vadd.f32 %v1417, %v1593
      %v1689 = vadd.f32 %v1418, %v1596
      %v1690 = vadd.f32 %v1419, %v1599
      %v1691 = vadd.f32 %v1420, %v1602
      %v1692 = vadd.f32 %v1421, %v1605
      %v1693 = vadd.f32 %v1422, %v1608
      %v1694 = vadd.f32 %v1423, %v1611
      %v1695 = vadd.f32 %v1424, %v1614
      %v1696 = vadd.f32 %v1425, %v1617
      %v1697 = vadd.f32 %v1426, %v1620
      %v1698 = vadd.f32 %v1427, %v1623
      %v1699 = vadd.f32 %v1428, %v1626
      %v1700 = vadd.f32 %v1429, %v1629
      %v1701 = vadd.f32 %v1430, %v1632
      %v1702 = vadd.f32 %v1431, %v1635
      %v1703 = vadd.f32 %v1432, %v1638
      %v1704 = vadd.f32 %v1433, %v1641
      %v1705 = vadd.f32 %v1434, %v1644
      %v1706 = vadd.f32 %v1435, %v1647
      %v1707 = vadd.f32 %v1436, %v1650
      %v1708 = vadd.f32 %v1437, %v1653
      %v1709 = vadd.f32 %v1438, %v1656
      %v1710 = vadd.f32 %v1439, %v1659
      %v1711 = vadd.f32 %v1440, %v1662
      %v1712 = vadd.f32 %v1441, %v1665
      %v1713 = vadd.f32 %v1442, %v1668
      %v1714 = vadd.f32 %v1443, %v1671
      %v1715 = vadd.f32 %v1444, %v1674
      %v1716 = vadd.f32 %v1445, %v1677
      %v1717 = vadd.f32 %v1446, %v1680
      %1718 = vst [vmem:[#allocation2] sm:$0xff] %v1682
      %1719 = vst [vmem:[#allocation2 + $0x8] sm:$0xff] %v1683
      %1720 = vst [vmem:[#allocation2 + $0x10] sm:$0xff] %v1684
      %1721 = vst [vmem:[#allocation2 + $0x18] sm:$0xff] %v1685
      %1722 = vst [vmem:[#allocation2 + $0x20] sm:$0xff] %v1686
      %1723 = vst [vmem:[#allocation2 + $0x28] sm:$0xff] %v1687
      %1724 = vst [vmem:[#allocation2 + $0x30] sm:$0xff] %v1688
      %1725 = vst [vmem:[#allocation2 + $0x38] sm:$0xff] %v1689
      %1726 = vst [vmem:[#allocation2 + $0x40] sm:$0xff] %v1690
      %1727 = vst [vmem:[#allocation2 + $0x48] sm:$0xff] %v1691
      %1728 = vst [vmem:[#allocation2 + $0x50] sm:$0xff] %v1692
      %1729 = vst [vmem:[#allocation2 + $0x58] sm:$0xff] %v1693
      %1730 = vst [vmem:[#allocation2 + $0x60] sm:$0xff] %v1694
      %1731 = vst [vmem:[#allocation2 + $0x68] sm:$0xff] %v1695
      %1732 = vst [vmem:[#allocation2 + $0x70] sm:$0xff] %v1696
      %1733 = vst [vmem:[#allocation2 + $0x78] sm:$0xff] %v1697
      %1734 = vst [vmem:[#allocation2 + $0x80] sm:$0xff] %v1698
      %1735 = vst [vmem:[#allocation2 + $0x88] sm:$0xff] %v1699
      %1736 = vst [vmem:[#allocation2 + $0x90] sm:$0xff] %v1700
      %1737 = vst [vmem:[#allocation2 + $0x98] sm:$0xff] %v1701
      %1738 = vst [vmem:[#allocation2 + $0xa0] sm:$0xff] %v1702
      %1739 = vst [vmem:[#allocation2 + $0xa8] sm:$0xff] %v1703
      %1740 = vst [vmem:[#allocation2 + $0xb0] sm:$0xff] %v1704
      %1741 = vst [vmem:[#allocation2 + $0xb8] sm:$0xff] %v1705
      %1742 = vst [vmem:[#allocation2 + $0xc0] sm:$0xff] %v1706
      %1743 = vst [vmem:[#allocation2 + $0xc8] sm:$0xff] %v1707
      %1744 = vst [vmem:[#allocation2 + $0xd0] sm:$0xff] %v1708
      %1745 = vst [vmem:[#allocation2 + $0xd8] sm:$0xff] %v1709
      %1746 = vst [vmem:[#allocation2 + $0xe0] sm:$0xff] %v1710
      %1747 = vst [vmem:[#allocation2 + $0xe8] sm:$0xff] %v1711
      %1748 = vst [vmem:[#allocation2 + $0xf0] sm:$0xff] %v1712
      %1749 = vst [vmem:[#allocation2 + $0xf8] sm:$0xff] %v1713
      %1750 = vst [vmem:[#allocation2 + $0x100] sm:$0xff] %v1714
      %1751 = vst [vmem:[#allocation2 + $0x108] sm:$0xff] %v1715
      %1752 = vst [vmem:[#allocation2 + $0x110] sm:$0xff] %v1716
      %1753 = vst [vmem:[#allocation2 + $0x118] sm:$0xff] %v1717
      %s1754 = sadd.s32 %s194, 19
      %s1755 = scalar_lea.vmem %s183, %s1754
      %v1756 = vld [vmem:[%s1755] sm:$0xff]
      %v1757 = vld [vmem:[%s1755 + $0x8] sm:$0xff]
      %v1758 = vld [vmem:[%s1755 + $0x10] sm:$0xff]
      %v1759 = vld [vmem:[%s1755 + $0x18] sm:$0xff]
      %v1760 = vld [vmem:[%s1755 + $0x20] sm:$0xff]
      %v1761 = vld [vmem:[%s1755 + $0x28] sm:$0xff]
      %v1762 = vld [vmem:[%s1755 + $0x30] sm:$0xff]
      %v1763 = vld [vmem:[%s1755 + $0x38] sm:$0xff]
      %v1764 = vld [vmem:[%s1755 + $0x40] sm:$0xff]
      %v1765 = vld [vmem:[%s1755 + $0x48] sm:$0xff]
      %v1766 = vld [vmem:[%s1755 + $0x50] sm:$0xff]
      %v1767 = vld [vmem:[%s1755 + $0x58] sm:$0xff]
      %v1768 = vld [vmem:[%s1755 + $0x60] sm:$0xff]
      %v1769 = vld [vmem:[%s1755 + $0x68] sm:$0xff]
      %v1770 = vld [vmem:[%s1755 + $0x70] sm:$0xff]
      %v1771 = vld [vmem:[%s1755 + $0x78] sm:$0xff]
      %v1772 = vld [vmem:[%s1755 + $0x80] sm:$0xff]
      %v1773 = vld [vmem:[%s1755 + $0x88] sm:$0xff]
      %v1774 = vld [vmem:[%s1755 + $0x90] sm:$0xff]
      %v1775 = vld [vmem:[%s1755 + $0x98] sm:$0xff]
      %v1776 = vld [vmem:[%s1755 + $0xa0] sm:$0xff]
      %v1777 = vld [vmem:[%s1755 + $0xa8] sm:$0xff]
      %v1778 = vld [vmem:[%s1755 + $0xb0] sm:$0xff]
      %v1779 = vld [vmem:[%s1755 + $0xb8] sm:$0xff]
      %v1780 = vld [vmem:[%s1755 + $0xc0] sm:$0xff]
      %v1781 = vld [vmem:[%s1755 + $0xc8] sm:$0xff]
      %v1782 = vld [vmem:[%s1755 + $0xd0] sm:$0xff]
      %v1783 = vld [vmem:[%s1755 + $0xd8] sm:$0xff]
      %v1784 = vld [vmem:[%s1755 + $0xe0] sm:$0xff]
      %v1785 = vld [vmem:[%s1755 + $0xe8] sm:$0xff]
      %v1786 = vld [vmem:[%s1755 + $0xf0] sm:$0xff]
      %v1787 = vld [vmem:[%s1755 + $0xf8] sm:$0xff]
      %v1788 = vld [vmem:[%s1755 + $0x100] sm:$0xff]
      %v1789 = vld [vmem:[%s1755 + $0x108] sm:$0xff]
      %v1790 = vld [vmem:[%s1755 + $0x110] sm:$0xff]
      %v1791 = vld [vmem:[%s1755 + $0x118] sm:$0xff]
      %v1792 = vld [vmem:[#allocation2] sm:$0xff]
      %v1793 = vld [vmem:[#allocation2 + $0x8] sm:$0xff]
      %v1794 = vld [vmem:[#allocation2 + $0x10] sm:$0xff]
      %v1795 = vld [vmem:[#allocation2 + $0x18] sm:$0xff]
      %v1796 = vld [vmem:[#allocation2 + $0x20] sm:$0xff]
      %v1797 = vld [vmem:[#allocation2 + $0x28] sm:$0xff]
      %v1798 = vld [vmem:[#allocation2 + $0x30] sm:$0xff]
      %v1799 = vld [vmem:[#allocation2 + $0x38] sm:$0xff]
      %v1800 = vld [vmem:[#allocation2 + $0x40] sm:$0xff]
      %v1801 = vld [vmem:[#allocation2 + $0x48] sm:$0xff]
      %v1802 = vld [vmem:[#allocation2 + $0x50] sm:$0xff]
      %v1803 = vld [vmem:[#allocation2 + $0x58] sm:$0xff]
      %v1804 = vld [vmem:[#allocation2 + $0x60] sm:$0xff]
      %v1805 = vld [vmem:[#allocation2 + $0x68] sm:$0xff]
      %v1806 = vld [vmem:[#allocation2 + $0x70] sm:$0xff]
      %v1807 = vld [vmem:[#allocation2 + $0x78] sm:$0xff]
      %v1808 = vld [vmem:[#allocation2 + $0x80] sm:$0xff]
      %v1809 = vld [vmem:[#allocation2 + $0x88] sm:$0xff]
      %v1810 = vld [vmem:[#allocation2 + $0x90] sm:$0xff]
      %v1811 = vld [vmem:[#allocation2 + $0x98] sm:$0xff]
      %v1812 = vld [vmem:[#allocation2 + $0xa0] sm:$0xff]
      %v1813 = vld [vmem:[#allocation2 + $0xa8] sm:$0xff]
      %v1814 = vld [vmem:[#allocation2 + $0xb0] sm:$0xff]
      %v1815 = vld [vmem:[#allocation2 + $0xb8] sm:$0xff]
      %v1816 = vld [vmem:[#allocation2 + $0xc0] sm:$0xff]
      %v1817 = vld [vmem:[#allocation2 + $0xc8] sm:$0xff]
      %v1818 = vld [vmem:[#allocation2 + $0xd0] sm:$0xff]
      %v1819 = vld [vmem:[#allocation2 + $0xd8] sm:$0xff]
      %v1820 = vld [vmem:[#allocation2 + $0xe0] sm:$0xff]
      %v1821 = vld [vmem:[#allocation2 + $0xe8] sm:$0xff]
      %v1822 = vld [vmem:[#allocation2 + $0xf0] sm:$0xff]
      %v1823 = vld [vmem:[#allocation2 + $0xf8] sm:$0xff]
      %v1824 = vld [vmem:[#allocation2 + $0x100] sm:$0xff]
      %v1825 = vld [vmem:[#allocation2 + $0x108] sm:$0xff]
      %v1826 = vld [vmem:[#allocation2 + $0x110] sm:$0xff]
      %v1827 = vld [vmem:[#allocation2 + $0x118] sm:$0xff]
      %s1828 = scalar_lea.vmem %s1, 32
      %v1829 = vld [vmem:[%s1828] sm:$0xff]
      %v1831 = vsel %vm305, %v1756, 0
      %v1834 = vsel %vm305, %v1757, 0
      %v1837 = vsel %vm305, %v1758, 0
      %v1840 = vsel %vm305, %v1759, 0
      %v1843 = vsel %vm305, %v1760, 0
      %v1846 = vsel %vm305, %v1761, 0
      %v1849 = vsel %vm305, %v1762, 0
      %v1852 = vsel %vm305, %v1763, 0
      %v1855 = vsel %vm305, %v1764, 0
      %v1858 = vsel %vm305, %v1765, 0
      %v1861 = vsel %vm305, %v1766, 0
      %v1864 = vsel %vm305, %v1767, 0
      %v1867 = vsel %vm305, %v1768, 0
      %v1870 = vsel %vm305, %v1769, 0
      %v1873 = vsel %vm305, %v1770, 0
      %v1876 = vsel %vm305, %v1771, 0
      %v1879 = vsel %vm305, %v1772, 0
      %v1882 = vsel %vm305, %v1773, 0
      %v1885 = vsel %vm305, %v1774, 0
      %v1888 = vsel %vm305, %v1775, 0
      %v1891 = vsel %vm305, %v1776, 0
      %v1894 = vsel %vm305, %v1777, 0
      %v1897 = vsel %vm305, %v1778, 0
      %v1900 = vsel %vm305, %v1779, 0
      %v1903 = vsel %vm305, %v1780, 0
      %v1906 = vsel %vm305, %v1781, 0
      %v1909 = vsel %vm305, %v1782, 0
      %v1912 = vsel %vm305, %v1783, 0
      %v1915 = vsel %vm305, %v1784, 0
      %v1918 = vsel %vm305, %v1785, 0
      %v1921 = vsel %vm305, %v1786, 0
      %v1924 = vsel %vm305, %v1787, 0
      %v1927 = vsel %vm305, %v1788, 0
      %v1930 = vsel %vm305, %v1789, 0
      %v1933 = vsel %vm305, %v1790, 0
      %v1936 = vsel %vm305, %v1791, 0
      %1938 = vmatpush.msra.mxu0 0.0
      %1939 = vmatpush.msra.mxu0 0.0
      %1940 = vmatpush.msra.mxu0 0.0
      %1941 = vmatpush.msra.mxu0 0.0
      %1942 = vmatpush.msra.mxu0 0.0
      %1943 = vmatpush.msra.mxu0 0.0
      %1944 = vmatpush.msra.mxu0 0.0
      %1945 = vmatpush.msra.mxu0 0.0
      %1946 = vmatpush.msra.mxu0 0.0
      %1947 = vmatpush.msra.mxu0 0.0
      %1948 = vmatpush.msra.mxu0 0.0
      %1949 = vmatpush.msra.mxu0 0.0
      %1950 = vmatpush.msra.mxu0 0.0
      %1951 = vmatpush.msra.mxu0 0.0
      %1952 = vmatpush.msra.mxu0 0.0
      %1953 = vmatpush.msra.mxu0 %v1829
      %1954 = vmatmul.f32.gmra.mxu0 %v1831
      %v1955 = vpop.f32.mrf.mxu0
      %v1956 = vadd.f32 0.0, %v1955
      %1957 = vmatmul.f32.gmra.mxu0 %v1834
      %v1958 = vpop.f32.mrf.mxu0
      %v1959 = vadd.f32 0.0, %v1958
      %1960 = vmatmul.f32.gmra.mxu0 %v1837
      %v1961 = vpop.f32.mrf.mxu0
      %v1962 = vadd.f32 0.0, %v1961
      %1963 = vmatmul.f32.gmra.mxu0 %v1840
      %v1964 = vpop.f32.mrf.mxu0
      %v1965 = vadd.f32 0.0, %v1964
      %1966 = vmatmul.f32.gmra.mxu0 %v1843
      %v1967 = vpop.f32.mrf.mxu0
      %v1968 = vadd.f32 0.0, %v1967
      %1969 = vmatmul.f32.gmra.mxu0 %v1846
      %v1970 = vpop.f32.mrf.mxu0
      %v1971 = vadd.f32 0.0, %v1970
      %1972 = vmatmul.f32.gmra.mxu0 %v1849
      %v1973 = vpop.f32.mrf.mxu0
      %v1974 = vadd.f32 0.0, %v1973
      %1975 = vmatmul.f32.gmra.mxu0 %v1852
      %v1976 = vpop.f32.mrf.mxu0
      %v1977 = vadd.f32 0.0, %v1976
      %1978 = vmatmul.f32.gmra.mxu0 %v1855
      %v1979 = vpop.f32.mrf.mxu0
      %v1980 = vadd.f32 0.0, %v1979
      %1981 = vmatmul.f32.gmra.mxu0 %v1858
      %v1982 = vpop.f32.mrf.mxu0
      %v1983 = vadd.f32 0.0, %v1982
      %1984 = vmatmul.f32.gmra.mxu0 %v1861
      %v1985 = vpop.f32.mrf.mxu0
      %v1986 = vadd.f32 0.0, %v1985
      %1987 = vmatmul.f32.gmra.mxu0 %v1864
      %v1988 = vpop.f32.mrf.mxu0
      %v1989 = vadd.f32 0.0, %v1988
      %1990 = vmatmul.f32.gmra.mxu0 %v1867
      %v1991 = vpop.f32.mrf.mxu0
      %v1992 = vadd.f32 0.0, %v1991
      %1993 = vmatmul.f32.gmra.mxu0 %v1870
      %v1994 = vpop.f32.mrf.mxu0
      %v1995 = vadd.f32 0.0, %v1994
      %1996 = vmatmul.f32.gmra.mxu0 %v1873
      %v1997 = vpop.f32.mrf.mxu0
      %v1998 = vadd.f32 0.0, %v1997
      %1999 = vmatmul.f32.gmra.mxu0 %v1876
      %v2000 = vpop.f32.mrf.mxu0
      %v2001 = vadd.f32 0.0, %v2000
      %2002 = vmatmul.f32.gmra.mxu0 %v1879
      %v2003 = vpop.f32.mrf.mxu0
      %v2004 = vadd.f32 0.0, %v2003
      %2005 = vmatmul.f32.gmra.mxu0 %v1882
      %v2006 = vpop.f32.mrf.mxu0
      %v2007 = vadd.f32 0.0, %v2006
      %2008 = vmatmul.f32.gmra.mxu0 %v1885
      %v2009 = vpop.f32.mrf.mxu0
      %v2010 = vadd.f32 0.0, %v2009
      %2011 = vmatmul.f32.gmra.mxu0 %v1888
      %v2012 = vpop.f32.mrf.mxu0
      %v2013 = vadd.f32 0.0, %v2012
      %2014 = vmatmul.f32.gmra.mxu0 %v1891
      %v2015 = vpop.f32.mrf.mxu0
      %v2016 = vadd.f32 0.0, %v2015
      %2017 = vmatmul.f32.gmra.mxu0 %v1894
      %v2018 = vpop.f32.mrf.mxu0
      %v2019 = vadd.f32 0.0, %v2018
      %2020 = vmatmul.f32.gmra.mxu0 %v1897
      %v2021 = vpop.f32.mrf.mxu0
      %v2022 = vadd.f32 0.0, %v2021
      %2023 = vmatmul.f32.gmra.mxu0 %v1900
      %v2024 = vpop.f32.mrf.mxu0
      %v2025 = vadd.f32 0.0, %v2024
      %2026 = vmatmul.f32.gmra.mxu0 %v1903
      %v2027 = vpop.f32.mrf.mxu0
      %v2028 = vadd.f32 0.0, %v2027
      %2029 = vmatmul.f32.gmra.mxu0 %v1906
      %v2030 = vpop.f32.mrf.mxu0
      %v2031 = vadd.f32 0.0, %v2030
      %2032 = vmatmul.f32.gmra.mxu0 %v1909
      %v2033 = vpop.f32.mrf.mxu0
      %v2034 = vadd.f32 0.0, %v2033
      %2035 = vmatmul.f32.gmra.mxu0 %v1912
      %v2036 = vpop.f32.mrf.mxu0
      %v2037 = vadd.f32 0.0, %v2036
      %2038 = vmatmul.f32.gmra.mxu0 %v1915
      %v2039 = vpop.f32.mrf.mxu0
      %v2040 = vadd.f32 0.0, %v2039
      %2041 = vmatmul.f32.gmra.mxu0 %v1918
      %v2042 = vpop.f32.mrf.mxu0
      %v2043 = vadd.f32 0.0, %v2042
      %2044 = vmatmul.f32.gmra.mxu0 %v1921
      %v2045 = vpop.f32.mrf.mxu0
      %v2046 = vadd.f32 0.0, %v2045
      %2047 = vmatmul.f32.gmra.mxu0 %v1924
      %v2048 = vpop.f32.mrf.mxu0
      %v2049 = vadd.f32 0.0, %v2048
      %2050 = vmatmul.f32.gmra.mxu0 %v1927
      %v2051 = vpop.f32.mrf.mxu0
      %v2052 = vadd.f32 0.0, %v2051
      %2053 = vmatmul.f32.gmra.mxu0 %v1930
      %v2054 = vpop.f32.mrf.mxu0
      %v2055 = vadd.f32 0.0, %v2054
      %2056 = vmatmul.f32.gmra.mxu0 %v1933
      %v2057 = vpop.f32.mrf.mxu0
      %v2058 = vadd.f32 0.0, %v2057
      %2059 = vmatmul.f32.gmra.mxu0 %v1936
      %v2060 = vpop.f32.mrf.mxu0
      %v2061 = vadd.f32 0.0, %v2060
      %2062 = vdwg.mxu0
      %v2063 = vadd.f32 %v1792, %v1956
      %v2064 = vadd.f32 %v1793, %v1959
      %v2065 = vadd.f32 %v1794, %v1962
      %v2066 = vadd.f32 %v1795, %v1965
      %v2067 = vadd.f32 %v1796, %v1968
      %v2068 = vadd.f32 %v1797, %v1971
      %v2069 = vadd.f32 %v1798, %v1974
      %v2070 = vadd.f32 %v1799, %v1977
      %v2071 = vadd.f32 %v1800, %v1980
      %v2072 = vadd.f32 %v1801, %v1983
      %v2073 = vadd.f32 %v1802, %v1986
      %v2074 = vadd.f32 %v1803, %v1989
      %v2075 = vadd.f32 %v1804, %v1992
      %v2076 = vadd.f32 %v1805, %v1995
      %v2077 = vadd.f32 %v1806, %v1998
      %v2078 = vadd.f32 %v1807, %v2001
      %v2079 = vadd.f32 %v1808, %v2004
      %v2080 = vadd.f32 %v1809, %v2007
      %v2081 = vadd.f32 %v1810, %v2010
      %v2082 = vadd.f32 %v1811, %v2013
      %v2083 = vadd.f32 %v1812, %v2016
      %v2084 = vadd.f32 %v1813, %v2019
      %v2085 = vadd.f32 %v1814, %v2022
      %v2086 = vadd.f32 %v1815, %v2025
      %v2087 = vadd.f32 %v1816, %v2028
      %v2088 = vadd.f32 %v1817, %v2031
      %v2089 = vadd.f32 %v1818, %v2034
      %v2090 = vadd.f32 %v1819, %v2037
      %v2091 = vadd.f32 %v1820, %v2040
      %v2092 = vadd.f32 %v1821, %v2043
      %v2093 = vadd.f32 %v1822, %v2046
      %v2094 = vadd.f32 %v1823, %v2049
      %v2095 = vadd.f32 %v1824, %v2052
      %v2096 = vadd.f32 %v1825, %v2055
      %v2097 = vadd.f32 %v1826, %v2058
      %v2098 = vadd.f32 %v1827, %v2061
      %2099 = vst [vmem:[#allocation2] sm:$0xff] %v2063
      %2100 = vst [vmem:[#allocation2 + $0x8] sm:$0xff] %v2064
      %2101 = vst [vmem:[#allocation2 + $0x10] sm:$0xff] %v2065
      %2102 = vst [vmem:[#allocation2 + $0x18] sm:$0xff] %v2066
      %2103 = vst [vmem:[#allocation2 + $0x20] sm:$0xff] %v2067
      %2104 = vst [vmem:[#allocation2 + $0x28] sm:$0xff] %v2068
      %2105 = vst [vmem:[#allocation2 + $0x30] sm:$0xff] %v2069
      %2106 = vst [vmem:[#allocation2 + $0x38] sm:$0xff] %v2070
      %2107 = vst [vmem:[#allocation2 + $0x40] sm:$0xff] %v2071
      %2108 = vst [vmem:[#allocation2 + $0x48] sm:$0xff] %v2072
      %2109 = vst [vmem:[#allocation2 + $0x50] sm:$0xff] %v2073
      %2110 = vst [vmem:[#allocation2 + $0x58] sm:$0xff] %v2074
      %2111 = vst [vmem:[#allocation2 + $0x60] sm:$0xff] %v2075
      %2112 = vst [vmem:[#allocation2 + $0x68] sm:$0xff] %v2076
      %2113 = vst [vmem:[#allocation2 + $0x70] sm:$0xff] %v2077
      %2114 = vst [vmem:[#allocation2 + $0x78] sm:$0xff] %v2078
      %2115 = vst [vmem:[#allocation2 + $0x80] sm:$0xff] %v2079
      %2116 = vst [vmem:[#allocation2 + $0x88] sm:$0xff] %v2080
      %2117 = vst [vmem:[#allocation2 + $0x90] sm:$0xff] %v2081
      %2118 = vst [vmem:[#allocation2 + $0x98] sm:$0xff] %v2082
      %2119 = vst [vmem:[#allocation2 + $0xa0] sm:$0xff] %v2083
      %2120 = vst [vmem:[#allocation2 + $0xa8] sm:$0xff] %v2084
      %2121 = vst [vmem:[#allocation2 + $0xb0] sm:$0xff] %v2085
      %2122 = vst [vmem:[#allocation2 + $0xb8] sm:$0xff] %v2086
      %2123 = vst [vmem:[#allocation2 + $0xc0] sm:$0xff] %v2087
      %2124 = vst [vmem:[#allocation2 + $0xc8] sm:$0xff] %v2088
      %2125 = vst [vmem:[#allocation2 + $0xd0] sm:$0xff] %v2089
      %2126 = vst [vmem:[#allocation2 + $0xd8] sm:$0xff] %v2090
      %2127 = vst [vmem:[#allocation2 + $0xe0] sm:$0xff] %v2091
      %2128 = vst [vmem:[#allocation2 + $0xe8] sm:$0xff] %v2092
      %2129 = vst [vmem:[#allocation2 + $0xf0] sm:$0xff] %v2093
      %2130 = vst [vmem:[#allocation2 + $0xf8] sm:$0xff] %v2094
      %2131 = vst [vmem:[#allocation2 + $0x100] sm:$0xff] %v2095
      %2132 = vst [vmem:[#allocation2 + $0x108] sm:$0xff] %v2096
      %2133 = vst [vmem:[#allocation2 + $0x110] sm:$0xff] %v2097
      %2134 = vst [vmem:[#allocation2 + $0x118] sm:$0xff] %v2098
      %s2135 = sadd.s32 %s194, 20
      %s2136 = scalar_lea.vmem %s183, %s2135
      %v2137 = vld [vmem:[%s2136] sm:$0xff]
      %v2138 = vld [vmem:[%s2136 + $0x8] sm:$0xff]
      %v2139 = vld [vmem:[%s2136 + $0x10] sm:$0xff]
      %v2140 = vld [vmem:[%s2136 + $0x18] sm:$0xff]
      %v2141 = vld [vmem:[%s2136 + $0x20] sm:$0xff]
      %v2142 = vld [vmem:[%s2136 + $0x28] sm:$0xff]
      %v2143 = vld [vmem:[%s2136 + $0x30] sm:$0xff]
      %v2144 = vld [vmem:[%s2136 + $0x38] sm:$0xff]
      %v2145 = vld [vmem:[%s2136 + $0x40] sm:$0xff]
      %v2146 = vld [vmem:[%s2136 + $0x48] sm:$0xff]
      %v2147 = vld [vmem:[%s2136 + $0x50] sm:$0xff]
      %v2148 = vld [vmem:[%s2136 + $0x58] sm:$0xff]
      %v2149 = vld [vmem:[%s2136 + $0x60] sm:$0xff]
      %v2150 = vld [vmem:[%s2136 + $0x68] sm:$0xff]
      %v2151 = vld [vmem:[%s2136 + $0x70] sm:$0xff]
      %v2152 = vld [vmem:[%s2136 + $0x78] sm:$0xff]
      %v2153 = vld [vmem:[%s2136 + $0x80] sm:$0xff]
      %v2154 = vld [vmem:[%s2136 + $0x88] sm:$0xff]
      %v2155 = vld [vmem:[%s2136 + $0x90] sm:$0xff]
      %v2156 = vld [vmem:[%s2136 + $0x98] sm:$0xff]
      %v2157 = vld [vmem:[%s2136 + $0xa0] sm:$0xff]
      %v2158 = vld [vmem:[%s2136 + $0xa8] sm:$0xff]
      %v2159 = vld [vmem:[%s2136 + $0xb0] sm:$0xff]
      %v2160 = vld [vmem:[%s2136 + $0xb8] sm:$0xff]
      %v2161 = vld [vmem:[%s2136 + $0xc0] sm:$0xff]
      %v2162 = vld [vmem:[%s2136 + $0xc8] sm:$0xff]
      %v2163 = vld [vmem:[%s2136 + $0xd0] sm:$0xff]
      %v2164 = vld [vmem:[%s2136 + $0xd8] sm:$0xff]
      %v2165 = vld [vmem:[%s2136 + $0xe0] sm:$0xff]
      %v2166 = vld [vmem:[%s2136 + $0xe8] sm:$0xff]
      %v2167 = vld [vmem:[%s2136 + $0xf0] sm:$0xff]
      %v2168 = vld [vmem:[%s2136 + $0xf8] sm:$0xff]
      %v2169 = vld [vmem:[%s2136 + $0x100] sm:$0xff]
      %v2170 = vld [vmem:[%s2136 + $0x108] sm:$0xff]
      %v2171 = vld [vmem:[%s2136 + $0x110] sm:$0xff]
      %v2172 = vld [vmem:[%s2136 + $0x118] sm:$0xff]
      %v2173 = vld [vmem:[#allocation2] sm:$0xff]
      %v2174 = vld [vmem:[#allocation2 + $0x8] sm:$0xff]
      %v2175 = vld [vmem:[#allocation2 + $0x10] sm:$0xff]
      %v2176 = vld [vmem:[#allocation2 + $0x18] sm:$0xff]
      %v2177 = vld [vmem:[#allocation2 + $0x20] sm:$0xff]
      %v2178 = vld [vmem:[#allocation2 + $0x28] sm:$0xff]
      %v2179 = vld [vmem:[#allocation2 + $0x30] sm:$0xff]
      %v2180 = vld [vmem:[#allocation2 + $0x38] sm:$0xff]
      %v2181 = vld [vmem:[#allocation2 + $0x40] sm:$0xff]
      %v2182 = vld [vmem:[#allocation2 + $0x48] sm:$0xff]
      %v2183 = vld [vmem:[#allocation2 + $0x50] sm:$0xff]
      %v2184 = vld [vmem:[#allocation2 + $0x58] sm:$0xff]
      %v2185 = vld [vmem:[#allocation2 + $0x60] sm:$0xff]
      %v2186 = vld [vmem:[#allocation2 + $0x68] sm:$0xff]
      %v2187 = vld [vmem:[#allocation2 + $0x70] sm:$0xff]
      %v2188 = vld [vmem:[#allocation2 + $0x78] sm:$0xff]
      %v2189 = vld [vmem:[#allocation2 + $0x80] sm:$0xff]
      %v2190 = vld [vmem:[#allocation2 + $0x88] sm:$0xff]
      %v2191 = vld [vmem:[#allocation2 + $0x90] sm:$0xff]
      %v2192 = vld [vmem:[#allocation2 + $0x98] sm:$0xff]
      %v2193 = vld [vmem:[#allocation2 + $0xa0] sm:$0xff]
      %v2194 = vld [vmem:[#allocation2 + $0xa8] sm:$0xff]
      %v2195 = vld [vmem:[#allocation2 + $0xb0] sm:$0xff]
      %v2196 = vld [vmem:[#allocation2 + $0xb8] sm:$0xff]
      %v2197 = vld [vmem:[#allocation2 + $0xc0] sm:$0xff]
      %v2198 = vld [vmem:[#allocation2 + $0xc8] sm:$0xff]
      %v2199 = vld [vmem:[#allocation2 + $0xd0] sm:$0xff]
      %v2200 = vld [vmem:[#allocation2 + $0xd8] sm:$0xff]
      %v2201 = vld [vmem:[#allocation2 + $0xe0] sm:$0xff]
      %v2202 = vld [vmem:[#allocation2 + $0xe8] sm:$0xff]
      %v2203 = vld [vmem:[#allocation2 + $0xf0] sm:$0xff]
      %v2204 = vld [vmem:[#allocation2 + $0xf8] sm:$0xff]
      %v2205 = vld [vmem:[#allocation2 + $0x100] sm:$0xff]
      %v2206 = vld [vmem:[#allocation2 + $0x108] sm:$0xff]
      %v2207 = vld [vmem:[#allocation2 + $0x110] sm:$0xff]
      %v2208 = vld [vmem:[#allocation2 + $0x118] sm:$0xff]
      %s2209 = scalar_lea.vmem %s1, 40
      %v2210 = vld [vmem:[%s2209] sm:$0xff]
      %v2212 = vsel %vm305, %v2137, 0
      %v2215 = vsel %vm305, %v2138, 0
      %v2218 = vsel %vm305, %v2139, 0
      %v2221 = vsel %vm305, %v2140, 0
      %v2224 = vsel %vm305, %v2141, 0
      %v2227 = vsel %vm305, %v2142, 0
      %v2230 = vsel %vm305, %v2143, 0
      %v2233 = vsel %vm305, %v2144, 0
      %v2236 = vsel %vm305, %v2145, 0
      %v2239 = vsel %vm305, %v2146, 0
      %v2242 = vsel %vm305, %v2147, 0
      %v2245 = vsel %vm305, %v2148, 0
      %v2248 = vsel %vm305, %v2149, 0
      %v2251 = vsel %vm305, %v2150, 0
      %v2254 = vsel %vm305, %v2151, 0
      %v2257 = vsel %vm305, %v2152, 0
      %v2260 = vsel %vm305, %v2153, 0
      %v2263 = vsel %vm305, %v2154, 0
      %v2266 = vsel %vm305, %v2155, 0
      %v2269 = vsel %vm305, %v2156, 0
      %v2272 = vsel %vm305, %v2157, 0
      %v2275 = vsel %vm305, %v2158, 0
      %v2278 = vsel %vm305, %v2159, 0
      %v2281 = vsel %vm305, %v2160, 0
      %v2284 = vsel %vm305, %v2161, 0
      %v2287 = vsel %vm305, %v2162, 0
      %v2290 = vsel %vm305, %v2163, 0
      %v2293 = vsel %vm305, %v2164, 0
      %v2296 = vsel %vm305, %v2165, 0
      %v2299 = vsel %vm305, %v2166, 0
      %v2302 = vsel %vm305, %v2167, 0
      %v2305 = vsel %vm305, %v2168, 0
      %v2308 = vsel %vm305, %v2169, 0
      %v2311 = vsel %vm305, %v2170, 0
      %v2314 = vsel %vm305, %v2171, 0
      %v2317 = vsel %vm305, %v2172, 0
      %2319 = vmatpush.msra.mxu0 0.0
      %2320 = vmatpush.msra.mxu0 0.0
      %2321 = vmatpush.msra.mxu0 0.0
      %2322 = vmatpush.msra.mxu0 0.0
      %2323 = vmatpush.msra.mxu0 0.0
      %2324 = vmatpush.msra.mxu0 0.0
      %2325 = vmatpush.msra.mxu0 0.0
      %2326 = vmatpush.msra.mxu0 0.0
      %2327 = vmatpush.msra.mxu0 0.0
      %2328 = vmatpush.msra.mxu0 0.0
      %2329 = vmatpush.msra.mxu0 0.0
      %2330 = vmatpush.msra.mxu0 0.0
      %2331 = vmatpush.msra.mxu0 0.0
      %2332 = vmatpush.msra.mxu0 0.0
      %2333 = vmatpush.msra.mxu0 0.0
      %2334 = vmatpush.msra.mxu0 %v2210
      %2335 = vmatmul.f32.gmra.mxu0 %v2212
      %v2336 = vpop.f32.mrf.mxu0
      %v2337 = vadd.f32 0.0, %v2336
      %2338 = vmatmul.f32.gmra.mxu0 %v2215
      %v2339 = vpop.f32.mrf.mxu0
      %v2340 = vadd.f32 0.0, %v2339
      %2341 = vmatmul.f32.gmra.mxu0 %v2218
      %v2342 = vpop.f32.mrf.mxu0
      %v2343 = vadd.f32 0.0, %v2342
      %2344 = vmatmul.f32.gmra.mxu0 %v2221
      %v2345 = vpop.f32.mrf.mxu0
      %v2346 = vadd.f32 0.0, %v2345
      %2347 = vmatmul.f32.gmra.mxu0 %v2224
      %v2348 = vpop.f32.mrf.mxu0
      %v2349 = vadd.f32 0.0, %v2348
      %2350 = vmatmul.f32.gmra.mxu0 %v2227
      %v2351 = vpop.f32.mrf.mxu0
      %v2352 = vadd.f32 0.0, %v2351
      %2353 = vmatmul.f32.gmra.mxu0 %v2230
      %v2354 = vpop.f32.mrf.mxu0
      %v2355 = vadd.f32 0.0, %v2354
      %2356 = vmatmul.f32.gmra.mxu0 %v2233
      %v2357 = vpop.f32.mrf.mxu0
      %v2358 = vadd.f32 0.0, %v2357
      %2359 = vmatmul.f32.gmra.mxu0 %v2236
      %v2360 = vpop.f32.mrf.mxu0
      %v2361 = vadd.f32 0.0, %v2360
      %2362 = vmatmul.f32.gmra.mxu0 %v2239
      %v2363 = vpop.f32.mrf.mxu0
      %v2364 = vadd.f32 0.0, %v2363
      %2365 = vmatmul.f32.gmra.mxu0 %v2242
      %v2366 = vpop.f32.mrf.mxu0
      %v2367 = vadd.f32 0.0, %v2366
      %2368 = vmatmul.f32.gmra.mxu0 %v2245
      %v2369 = vpop.f32.mrf.mxu0
      %v2370 = vadd.f32 0.0, %v2369
      %2371 = vmatmul.f32.gmra.mxu0 %v2248
      %v2372 = vpop.f32.mrf.mxu0
      %v2373 = vadd.f32 0.0, %v2372
      %2374 = vmatmul.f32.gmra.mxu0 %v2251
      %v2375 = vpop.f32.mrf.mxu0
      %v2376 = vadd.f32 0.0, %v2375
      %2377 = vmatmul.f32.gmra.mxu0 %v2254
      %v2378 = vpop.f32.mrf.mxu0
      %v2379 = vadd.f32 0.0, %v2378
      %2380 = vmatmul.f32.gmra.mxu0 %v2257
      %v2381 = vpop.f32.mrf.mxu0
      %v2382 = vadd.f32 0.0, %v2381
      %2383 = vmatmul.f32.gmra.mxu0 %v2260
      %v2384 = vpop.f32.mrf.mxu0
      %v2385 = vadd.f32 0.0, %v2384
      %2386 = vmatmul.f32.gmra.mxu0 %v2263
      %v2387 = vpop.f32.mrf.mxu0
      %v2388 = vadd.f32 0.0, %v2387
      %2389 = vmatmul.f32.gmra.mxu0 %v2266
      %v2390 = vpop.f32.mrf.mxu0
      %v2391 = vadd.f32 0.0, %v2390
      %2392 = vmatmul.f32.gmra.mxu0 %v2269
      %v2393 = vpop.f32.mrf.mxu0
      %v2394 = vadd.f32 0.0, %v2393
      %2395 = vmatmul.f32.gmra.mxu0 %v2272
      %v2396 = vpop.f32.mrf.mxu0
      %v2397 = vadd.f32 0.0, %v2396
      %2398 = vmatmul.f32.gmra.mxu0 %v2275
      %v2399 = vpop.f32.mrf.mxu0
      %v2400 = vadd.f32 0.0, %v2399
      %2401 = vmatmul.f32.gmra.mxu0 %v2278
      %v2402 = vpop.f32.mrf.mxu0
      %v2403 = vadd.f32 0.0, %v2402
      %2404 = vmatmul.f32.gmra.mxu0 %v2281
      %v2405 = vpop.f32.mrf.mxu0
      %v2406 = vadd.f32 0.0, %v2405
      %2407 = vmatmul.f32.gmra.mxu0 %v2284
      %v2408 = vpop.f32.mrf.mxu0
      %v2409 = vadd.f32 0.0, %v2408
      %2410 = vmatmul.f32.gmra.mxu0 %v2287
      %v2411 = vpop.f32.mrf.mxu0
      %v2412 = vadd.f32 0.0, %v2411
      %2413 = vmatmul.f32.gmra.mxu0 %v2290
      %v2414 = vpop.f32.mrf.mxu0
      %v2415 = vadd.f32 0.0, %v2414
      %2416 = vmatmul.f32.gmra.mxu0 %v2293
      %v2417 = vpop.f32.mrf.mxu0
      %v2418 = vadd.f32 0.0, %v2417
      %2419 = vmatmul.f32.gmra.mxu0 %v2296
      %v2420 = vpop.f32.mrf.mxu0
      %v2421 = vadd.f32 0.0, %v2420
      %2422 = vmatmul.f32.gmra.mxu0 %v2299
      %v2423 = vpop.f32.mrf.mxu0
      %v2424 = vadd.f32 0.0, %v2423
      %2425 = vmatmul.f32.gmra.mxu0 %v2302
      %v2426 = vpop.f32.mrf.mxu0
      %v2427 = vadd.f32 0.0, %v2426
      %2428 = vmatmul.f32.gmra.mxu0 %v2305
      %v2429 = vpop.f32.mrf.mxu0
      %v2430 = vadd.f32 0.0, %v2429
      %2431 = vmatmul.f32.gmra.mxu0 %v2308
      %v2432 = vpop.f32.mrf.mxu0
      %v2433 = vadd.f32 0.0, %v2432
      %2434 = vmatmul.f32.gmra.mxu0 %v2311
      %v2435 = vpop.f32.mrf.mxu0
      %v2436 = vadd.f32 0.0, %v2435
      %2437 = vmatmul.f32.gmra.mxu0 %v2314
      %v2438 = vpop.f32.mrf.mxu0
      %v2439 = vadd.f32 0.0, %v2438
      %2440 = vmatmul.f32.gmra.mxu0 %v2317
      %v2441 = vpop.f32.mrf.mxu0
      %v2442 = vadd.f32 0.0, %v2441
      %2443 = vdwg.mxu0
      %v2444 = vadd.f32 %v2173, %v2337
      %v2445 = vadd.f32 %v2174, %v2340
      %v2446 = vadd.f32 %v2175, %v2343
      %v2447 = vadd.f32 %v2176, %v2346
      %v2448 = vadd.f32 %v2177, %v2349
      %v2449 = vadd.f32 %v2178, %v2352
      %v2450 = vadd.f32 %v2179, %v2355
      %v2451 = vadd.f32 %v2180, %v2358
      %v2452 = vadd.f32 %v2181, %v2361
      %v2453 = vadd.f32 %v2182, %v2364
      %v2454 = vadd.f32 %v2183, %v2367
      %v2455 = vadd.f32 %v2184, %v2370
      %v2456 = vadd.f32 %v2185, %v2373
      %v2457 = vadd.f32 %v2186, %v2376
      %v2458 = vadd.f32 %v2187, %v2379
      %v2459 = vadd.f32 %v2188, %v2382
      %v2460 = vadd.f32 %v2189, %v2385
      %v2461 = vadd.f32 %v2190, %v2388
      %v2462 = vadd.f32 %v2191, %v2391
      %v2463 = vadd.f32 %v2192, %v2394
      %v2464 = vadd.f32 %v2193, %v2397
      %v2465 = vadd.f32 %v2194, %v2400
      %v2466 = vadd.f32 %v2195, %v2403
      %v2467 = vadd.f32 %v2196, %v2406
      %v2468 = vadd.f32 %v2197, %v2409
      %v2469 = vadd.f32 %v2198, %v2412
      %v2470 = vadd.f32 %v2199, %v2415
      %v2471 = vadd.f32 %v2200, %v2418
      %v2472 = vadd.f32 %v2201, %v2421
      %v2473 = vadd.f32 %v2202, %v2424
      %v2474 = vadd.f32 %v2203, %v2427
      %v2475 = vadd.f32 %v2204, %v2430
      %v2476 = vadd.f32 %v2205, %v2433
      %v2477 = vadd.f32 %v2206, %v2436
      %v2478 = vadd.f32 %v2207, %v2439
      %v2479 = vadd.f32 %v2208, %v2442
      %2480 = vst [vmem:[#allocation2] sm:$0xff] %v2444
      %2481 = vst [vmem:[#allocation2 + $0x8] sm:$0xff] %v2445
      %2482 = vst [vmem:[#allocation2 + $0x10] sm:$0xff] %v2446
      %2483 = vst [vmem:[#allocation2 + $0x18] sm:$0xff] %v2447
      %2484 = vst [vmem:[#allocation2 + $0x20] sm:$0xff] %v2448
      %2485 = vst [vmem:[#allocation2 + $0x28] sm:$0xff] %v2449
      %2486 = vst [vmem:[#allocation2 + $0x30] sm:$0xff] %v2450
      %2487 = vst [vmem:[#allocation2 + $0x38] sm:$0xff] %v2451
      %2488 = vst [vmem:[#allocation2 + $0x40] sm:$0xff] %v2452
      %2489 = vst [vmem:[#allocation2 + $0x48] sm:$0xff] %v2453
      %2490 = vst [vmem:[#allocation2 + $0x50] sm:$0xff] %v2454
      %2491 = vst [vmem:[#allocation2 + $0x58] sm:$0xff] %v2455
      %2492 = vst [vmem:[#allocation2 + $0x60] sm:$0xff] %v2456
      %2493 = vst [vmem:[#allocation2 + $0x68] sm:$0xff] %v2457
      %2494 = vst [vmem:[#allocation2 + $0x70] sm:$0xff] %v2458
      %2495 = vst [vmem:[#allocation2 + $0x78] sm:$0xff] %v2459
      %2496 = vst [vmem:[#allocation2 + $0x80] sm:$0xff] %v2460
      %2497 = vst [vmem:[#allocation2 + $0x88] sm:$0xff] %v2461
      %2498 = vst [vmem:[#allocation2 + $0x90] sm:$0xff] %v2462
      %2499 = vst [vmem:[#allocation2 + $0x98] sm:$0xff] %v2463
      %2500 = vst [vmem:[#allocation2 + $0xa0] sm:$0xff] %v2464
      %2501 = vst [vmem:[#allocation2 + $0xa8] sm:$0xff] %v2465
      %2502 = vst [vmem:[#allocation2 + $0xb0] sm:$0xff] %v2466
      %2503 = vst [vmem:[#allocation2 + $0xb8] sm:$0xff] %v2467
      %2504 = vst [vmem:[#allocation2 + $0xc0] sm:$0xff] %v2468
      %2505 = vst [vmem:[#allocation2 + $0xc8] sm:$0xff] %v2469
      %2506 = vst [vmem:[#allocation2 + $0xd0] sm:$0xff] %v2470
      %2507 = vst [vmem:[#allocation2 + $0xd8] sm:$0xff] %v2471
      %2508 = vst [vmem:[#allocation2 + $0xe0] sm:$0xff] %v2472
      %2509 = vst [vmem:[#allocation2 + $0xe8] sm:$0xff] %v2473
      %2510 = vst [vmem:[#allocation2 + $0xf0] sm:$0xff] %v2474
      %2511 = vst [vmem:[#allocation2 + $0xf8] sm:$0xff] %v2475
      %2512 = vst [vmem:[#allocation2 + $0x100] sm:$0xff] %v2476
      %2513 = vst [vmem:[#allocation2 + $0x108] sm:$0xff] %v2477
      %2514 = vst [vmem:[#allocation2 + $0x110] sm:$0xff] %v2478
      %2515 = vst [vmem:[#allocation2 + $0x118] sm:$0xff] %v2479
      %s2516 = sadd.s32 %s194, 36
      %s2517 = scalar_lea.vmem %s183, %s2516
      %v2518 = vld [vmem:[%s2517] sm:$0xff]
      %v2519 = vld [vmem:[%s2517 + $0x8] sm:$0xff]
      %v2520 = vld [vmem:[%s2517 + $0x10] sm:$0xff]
      %v2521 = vld [vmem:[%s2517 + $0x18] sm:$0xff]
      %v2522 = vld [vmem:[%s2517 + $0x20] sm:$0xff]
      %v2523 = vld [vmem:[%s2517 + $0x28] sm:$0xff]
      %v2524 = vld [vmem:[%s2517 + $0x30] sm:$0xff]
      %v2525 = vld [vmem:[%s2517 + $0x38] sm:$0xff]
      %v2526 = vld [vmem:[%s2517 + $0x40] sm:$0xff]
      %v2527 = vld [vmem:[%s2517 + $0x48] sm:$0xff]
      %v2528 = vld [vmem:[%s2517 + $0x50] sm:$0xff]
      %v2529 = vld [vmem:[%s2517 + $0x58] sm:$0xff]
      %v2530 = vld [vmem:[%s2517 + $0x60] sm:$0xff]
      %v2531 = vld [vmem:[%s2517 + $0x68] sm:$0xff]
      %v2532 = vld [vmem:[%s2517 + $0x70] sm:$0xff]
      %v2533 = vld [vmem:[%s2517 + $0x78] sm:$0xff]
      %v2534 = vld [vmem:[%s2517 + $0x80] sm:$0xff]
      %v2535 = vld [vmem:[%s2517 + $0x88] sm:$0xff]
      %v2536 = vld [vmem:[%s2517 + $0x90] sm:$0xff]
      %v2537 = vld [vmem:[%s2517 + $0x98] sm:$0xff]
      %v2538 = vld [vmem:[%s2517 + $0xa0] sm:$0xff]
      %v2539 = vld [vmem:[%s2517 + $0xa8] sm:$0xff]
      %v2540 = vld [vmem:[%s2517 + $0xb0] sm:$0xff]
      %v2541 = vld [vmem:[%s2517 + $0xb8] sm:$0xff]
      %v2542 = vld [vmem:[%s2517 + $0xc0] sm:$0xff]
      %v2543 = vld [vmem:[%s2517 + $0xc8] sm:$0xff]
      %v2544 = vld [vmem:[%s2517 + $0xd0] sm:$0xff]
      %v2545 = vld [vmem:[%s2517 + $0xd8] sm:$0xff]
      %v2546 = vld [vmem:[%s2517 + $0xe0] sm:$0xff]
      %v2547 = vld [vmem:[%s2517 + $0xe8] sm:$0xff]
      %v2548 = vld [vmem:[%s2517 + $0xf0] sm:$0xff]
      %v2549 = vld [vmem:[%s2517 + $0xf8] sm:$0xff]
      %v2550 = vld [vmem:[%s2517 + $0x100] sm:$0xff]
      %v2551 = vld [vmem:[%s2517 + $0x108] sm:$0xff]
      %v2552 = vld [vmem:[%s2517 + $0x110] sm:$0xff]
      %v2553 = vld [vmem:[%s2517 + $0x118] sm:$0xff]
      %v2554 = vld [vmem:[#allocation2] sm:$0xff]
      %v2555 = vld [vmem:[#allocation2 + $0x8] sm:$0xff]
      %v2556 = vld [vmem:[#allocation2 + $0x10] sm:$0xff]
      %v2557 = vld [vmem:[#allocation2 + $0x18] sm:$0xff]
      %v2558 = vld [vmem:[#allocation2 + $0x20] sm:$0xff]
      %v2559 = vld [vmem:[#allocation2 + $0x28] sm:$0xff]
      %v2560 = vld [vmem:[#allocation2 + $0x30] sm:$0xff]
      %v2561 = vld [vmem:[#allocation2 + $0x38] sm:$0xff]
      %v2562 = vld [vmem:[#allocation2 + $0x40] sm:$0xff]
      %v2563 = vld [vmem:[#allocation2 + $0x48] sm:$0xff]
      %v2564 = vld [vmem:[#allocation2 + $0x50] sm:$0xff]
      %v2565 = vld [vmem:[#allocation2 + $0x58] sm:$0xff]
      %v2566 = vld [vmem:[#allocation2 + $0x60] sm:$0xff]
      %v2567 = vld [vmem:[#allocation2 + $0x68] sm:$0xff]
      %v2568 = vld [vmem:[#allocation2 + $0x70] sm:$0xff]
      %v2569 = vld [vmem:[#allocation2 + $0x78] sm:$0xff]
      %v2570 = vld [vmem:[#allocation2 + $0x80] sm:$0xff]
      %v2571 = vld [vmem:[#allocation2 + $0x88] sm:$0xff]
      %v2572 = vld [vmem:[#allocation2 + $0x90] sm:$0xff]
      %v2573 = vld [vmem:[#allocation2 + $0x98] sm:$0xff]
      %v2574 = vld [vmem:[#allocation2 + $0xa0] sm:$0xff]
      %v2575 = vld [vmem:[#allocation2 + $0xa8] sm:$0xff]
      %v2576 = vld [vmem:[#allocation2 + $0xb0] sm:$0xff]
      %v2577 = vld [vmem:[#allocation2 + $0xb8] sm:$0xff]
      %v2578 = vld [vmem:[#allocation2 + $0xc0] sm:$0xff]
      %v2579 = vld [vmem:[#allocation2 + $0xc8] sm:$0xff]
      %v2580 = vld [vmem:[#allocation2 + $0xd0] sm:$0xff]
      %v2581 = vld [vmem:[#allocation2 + $0xd8] sm:$0xff]
      %v2582 = vld [vmem:[#allocation2 + $0xe0] sm:$0xff]
      %v2583 = vld [vmem:[#allocation2 + $0xe8] sm:$0xff]
      %v2584 = vld [vmem:[#allocation2 + $0xf0] sm:$0xff]
      %v2585 = vld [vmem:[#allocation2 + $0xf8] sm:$0xff]
      %v2586 = vld [vmem:[#allocation2 + $0x100] sm:$0xff]
      %v2587 = vld [vmem:[#allocation2 + $0x108] sm:$0xff]
      %v2588 = vld [vmem:[#allocation2 + $0x110] sm:$0xff]
      %v2589 = vld [vmem:[#allocation2 + $0x118] sm:$0xff]
      %s2590 = scalar_lea.vmem %s1, 48
      %v2591 = vld [vmem:[%s2590] sm:$0xff]
      %v2593 = vsel %vm305, %v2518, 0
      %v2596 = vsel %vm305, %v2519, 0
      %v2599 = vsel %vm305, %v2520, 0
      %v2602 = vsel %vm305, %v2521, 0
      %v2605 = vsel %vm305, %v2522, 0
      %v2608 = vsel %vm305, %v2523, 0
      %v2611 = vsel %vm305, %v2524, 0
      %v2614 = vsel %vm305, %v2525, 0
      %v2617 = vsel %vm305, %v2526, 0
      %v2620 = vsel %vm305, %v2527, 0
      %v2623 = vsel %vm305, %v2528, 0
      %v2626 = vsel %vm305, %v2529, 0
      %v2629 = vsel %vm305, %v2530, 0
      %v2632 = vsel %vm305, %v2531, 0
      %v2635 = vsel %vm305, %v2532, 0
      %v2638 = vsel %vm305, %v2533, 0
      %v2641 = vsel %vm305, %v2534, 0
      %v2644 = vsel %vm305, %v2535, 0
      %v2647 = vsel %vm305, %v2536, 0
      %v2650 = vsel %vm305, %v2537, 0
      %v2653 = vsel %vm305, %v2538, 0
      %v2656 = vsel %vm305, %v2539, 0
      %v2659 = vsel %vm305, %v2540, 0
      %v2662 = vsel %vm305, %v2541, 0
      %v2665 = vsel %vm305, %v2542, 0
      %v2668 = vsel %vm305, %v2543, 0
      %v2671 = vsel %vm305, %v2544, 0
      %v2674 = vsel %vm305, %v2545, 0
      %v2677 = vsel %vm305, %v2546, 0
      %v2680 = vsel %vm305, %v2547, 0
      %v2683 = vsel %vm305, %v2548, 0
      %v2686 = vsel %vm305, %v2549, 0
      %v2689 = vsel %vm305, %v2550, 0
      %v2692 = vsel %vm305, %v2551, 0
      %v2695 = vsel %vm305, %v2552, 0
      %v2698 = vsel %vm305, %v2553, 0
      %2700 = vmatpush.msra.mxu0 0.0
      %2701 = vmatpush.msra.mxu0 0.0
      %2702 = vmatpush.msra.mxu0 0.0
      %2703 = vmatpush.msra.mxu0 0.0
      %2704 = vmatpush.msra.mxu0 0.0
      %2705 = vmatpush.msra.mxu0 0.0
      %2706 = vmatpush.msra.mxu0 0.0
      %2707 = vmatpush.msra.mxu0 0.0
      %2708 = vmatpush.msra.mxu0 0.0
      %2709 = vmatpush.msra.mxu0 0.0
      %2710 = vmatpush.msra.mxu0 0.0
      %2711 = vmatpush.msra.mxu0 0.0
      %2712 = vmatpush.msra.mxu0 0.0
      %2713 = vmatpush.msra.mxu0 0.0
      %2714 = vmatpush.msra.mxu0 0.0
      %2715 = vmatpush.msra.mxu0 %v2591
      %2716 = vmatmul.f32.gmra.mxu0 %v2593
      %v2717 = vpop.f32.mrf.mxu0
      %v2718 = vadd.f32 0.0, %v2717
      %2719 = vmatmul.f32.gmra.mxu0 %v2596
      %v2720 = vpop.f32.mrf.mxu0
      %v2721 = vadd.f32 0.0, %v2720
      %2722 = vmatmul.f32.gmra.mxu0 %v2599
      %v2723 = vpop.f32.mrf.mxu0
      %v2724 = vadd.f32 0.0, %v2723
      %2725 = vmatmul.f32.gmra.mxu0 %v2602
      %v2726 = vpop.f32.mrf.mxu0
      %v2727 = vadd.f32 0.0, %v2726
      %2728 = vmatmul.f32.gmra.mxu0 %v2605
      %v2729 = vpop.f32.mrf.mxu0
      %v2730 = vadd.f32 0.0, %v2729
      %2731 = vmatmul.f32.gmra.mxu0 %v2608
      %v2732 = vpop.f32.mrf.mxu0
      %v2733 = vadd.f32 0.0, %v2732
      %2734 = vmatmul.f32.gmra.mxu0 %v2611
      %v2735 = vpop.f32.mrf.mxu0
      %v2736 = vadd.f32 0.0, %v2735
      %2737 = vmatmul.f32.gmra.mxu0 %v2614
      %v2738 = vpop.f32.mrf.mxu0
      %v2739 = vadd.f32 0.0, %v2738
      %2740 = vmatmul.f32.gmra.mxu0 %v2617
      %v2741 = vpop.f32.mrf.mxu0
      %v2742 = vadd.f32 0.0, %v2741
      %2743 = vmatmul.f32.gmra.mxu0 %v2620
      %v2744 = vpop.f32.mrf.mxu0
      %v2745 = vadd.f32 0.0, %v2744
      %2746 = vmatmul.f32.gmra.mxu0 %v2623
      %v2747 = vpop.f32.mrf.mxu0
      %v2748 = vadd.f32 0.0, %v2747
      %2749 = vmatmul.f32.gmra.mxu0 %v2626
      %v2750 = vpop.f32.mrf.mxu0
      %v2751 = vadd.f32 0.0, %v2750
      %2752 = vmatmul.f32.gmra.mxu0 %v2629
      %v2753 = vpop.f32.mrf.mxu0
      %v2754 = vadd.f32 0.0, %v2753
      %2755 = vmatmul.f32.gmra.mxu0 %v2632
      %v2756 = vpop.f32.mrf.mxu0
      %v2757 = vadd.f32 0.0, %v2756
      %2758 = vmatmul.f32.gmra.mxu0 %v2635
      %v2759 = vpop.f32.mrf.mxu0
      %v2760 = vadd.f32 0.0, %v2759
      %2761 = vmatmul.f32.gmra.mxu0 %v2638
      %v2762 = vpop.f32.mrf.mxu0
      %v2763 = vadd.f32 0.0, %v2762
      %2764 = vmatmul.f32.gmra.mxu0 %v2641
      %v2765 = vpop.f32.mrf.mxu0
      %v2766 = vadd.f32 0.0, %v2765
      %2767 = vmatmul.f32.gmra.mxu0 %v2644
      %v2768 = vpop.f32.mrf.mxu0
      %v2769 = vadd.f32 0.0, %v2768
      %2770 = vmatmul.f32.gmra.mxu0 %v2647
      %v2771 = vpop.f32.mrf.mxu0
      %v2772 = vadd.f32 0.0, %v2771
      %2773 = vmatmul.f32.gmra.mxu0 %v2650
      %v2774 = vpop.f32.mrf.mxu0
      %v2775 = vadd.f32 0.0, %v2774
      %2776 = vmatmul.f32.gmra.mxu0 %v2653
      %v2777 = vpop.f32.mrf.mxu0
      %v2778 = vadd.f32 0.0, %v2777
      %2779 = vmatmul.f32.gmra.mxu0 %v2656
      %v2780 = vpop.f32.mrf.mxu0
      %v2781 = vadd.f32 0.0, %v2780
      %2782 = vmatmul.f32.gmra.mxu0 %v2659
      %v2783 = vpop.f32.mrf.mxu0
      %v2784 = vadd.f32 0.0, %v2783
      %2785 = vmatmul.f32.gmra.mxu0 %v2662
      %v2786 = vpop.f32.mrf.mxu0
      %v2787 = vadd.f32 0.0, %v2786
      %2788 = vmatmul.f32.gmra.mxu0 %v2665
      %v2789 = vpop.f32.mrf.mxu0
      %v2790 = vadd.f32 0.0, %v2789
      %2791 = vmatmul.f32.gmra.mxu0 %v2668
      %v2792 = vpop.f32.mrf.mxu0
      %v2793 = vadd.f32 0.0, %v2792
      %2794 = vmatmul.f32.gmra.mxu0 %v2671
      %v2795 = vpop.f32.mrf.mxu0
      %v2796 = vadd.f32 0.0, %v2795
      %2797 = vmatmul.f32.gmra.mxu0 %v2674
      %v2798 = vpop.f32.mrf.mxu0
      %v2799 = vadd.f32 0.0, %v2798
      %2800 = vmatmul.f32.gmra.mxu0 %v2677
      %v2801 = vpop.f32.mrf.mxu0
      %v2802 = vadd.f32 0.0, %v2801
      %2803 = vmatmul.f32.gmra.mxu0 %v2680
      %v2804 = vpop.f32.mrf.mxu0
      %v2805 = vadd.f32 0.0, %v2804
      %2806 = vmatmul.f32.gmra.mxu0 %v2683
      %v2807 = vpop.f32.mrf.mxu0
      %v2808 = vadd.f32 0.0, %v2807
      %2809 = vmatmul.f32.gmra.mxu0 %v2686
      %v2810 = vpop.f32.mrf.mxu0
      %v2811 = vadd.f32 0.0, %v2810
      %2812 = vmatmul.f32.gmra.mxu0 %v2689
      %v2813 = vpop.f32.mrf.mxu0
      %v2814 = vadd.f32 0.0, %v2813
      %2815 = vmatmul.f32.gmra.mxu0 %v2692
      %v2816 = vpop.f32.mrf.mxu0
      %v2817 = vadd.f32 0.0, %v2816
      %2818 = vmatmul.f32.gmra.mxu0 %v2695
      %v2819 = vpop.f32.mrf.mxu0
      %v2820 = vadd.f32 0.0, %v2819
      %2821 = vmatmul.f32.gmra.mxu0 %v2698
      %v2822 = vpop.f32.mrf.mxu0
      %v2823 = vadd.f32 0.0, %v2822
      %2824 = vdwg.mxu0
      %v2825 = vadd.f32 %v2554, %v2718
      %v2826 = vadd.f32 %v2555, %v2721
      %v2827 = vadd.f32 %v2556, %v2724
      %v2828 = vadd.f32 %v2557, %v2727
      %v2829 = vadd.f32 %v2558, %v2730
      %v2830 = vadd.f32 %v2559, %v2733
      %v2831 = vadd.f32 %v2560, %v2736
      %v2832 = vadd.f32 %v2561, %v2739
      %v2833 = vadd.f32 %v2562, %v2742
      %v2834 = vadd.f32 %v2563, %v2745
      %v2835 = vadd.f32 %v2564, %v2748
      %v2836 = vadd.f32 %v2565, %v2751
      %v2837 = vadd.f32 %v2566, %v2754
      %v2838 = vadd.f32 %v2567, %v2757
      %v2839 = vadd.f32 %v2568, %v2760
      %v2840 = vadd.f32 %v2569, %v2763
      %v2841 = vadd.f32 %v2570, %v2766
      %v2842 = vadd.f32 %v2571, %v2769
      %v2843 = vadd.f32 %v2572, %v2772
      %v2844 = vadd.f32 %v2573, %v2775
      %v2845 = vadd.f32 %v2574, %v2778
      %v2846 = vadd.f32 %v2575, %v2781
      %v2847 = vadd.f32 %v2576, %v2784
      %v2848 = vadd.f32 %v2577, %v2787
      %v2849 = vadd.f32 %v2578, %v2790
      %v2850 = vadd.f32 %v2579, %v2793
      %v2851 = vadd.f32 %v2580, %v2796
      %v2852 = vadd.f32 %v2581, %v2799
      %v2853 = vadd.f32 %v2582, %v2802
      %v2854 = vadd.f32 %v2583, %v2805
      %v2855 = vadd.f32 %v2584, %v2808
      %v2856 = vadd.f32 %v2585, %v2811
      %v2857 = vadd.f32 %v2586, %v2814
      %v2858 = vadd.f32 %v2587, %v2817
      %v2859 = vadd.f32 %v2588, %v2820
      %v2860 = vadd.f32 %v2589, %v2823
      %2861 = vst [vmem:[#allocation2] sm:$0xff] %v2825
      %2862 = vst [vmem:[#allocation2 + $0x8] sm:$0xff] %v2826
      %2863 = vst [vmem:[#allocation2 + $0x10] sm:$0xff] %v2827
      %2864 = vst [vmem:[#allocation2 + $0x18] sm:$0xff] %v2828
      %2865 = vst [vmem:[#allocation2 + $0x20] sm:$0xff] %v2829
      %2866 = vst [vmem:[#allocation2 + $0x28] sm:$0xff] %v2830
      %2867 = vst [vmem:[#allocation2 + $0x30] sm:$0xff] %v2831
      %2868 = vst [vmem:[#allocation2 + $0x38] sm:$0xff] %v2832
      %2869 = vst [vmem:[#allocation2 + $0x40] sm:$0xff] %v2833
      %2870 = vst [vmem:[#allocation2 + $0x48] sm:$0xff] %v2834
      %2871 = vst [vmem:[#allocation2 + $0x50] sm:$0xff] %v2835
      %2872 = vst [vmem:[#allocation2 + $0x58] sm:$0xff] %v2836
      %2873 = vst [vmem:[#allocation2 + $0x60] sm:$0xff] %v2837
      %2874 = vst [vmem:[#allocation2 + $0x68] sm:$0xff] %v2838
      %2875 = vst [vmem:[#allocation2 + $0x70] sm:$0xff] %v2839
      %2876 = vst [vmem:[#allocation2 + $0x78] sm:$0xff] %v2840
      %2877 = vst [vmem:[#allocation2 + $0x80] sm:$0xff] %v2841
      %2878 = vst [vmem:[#allocation2 + $0x88] sm:$0xff] %v2842
      %2879 = vst [vmem:[#allocation2 + $0x90] sm:$0xff] %v2843
      %2880 = vst [vmem:[#allocation2 + $0x98] sm:$0xff] %v2844
      %2881 = vst [vmem:[#allocation2 + $0xa0] sm:$0xff] %v2845
      %2882 = vst [vmem:[#allocation2 + $0xa8] sm:$0xff] %v2846
      %2883 = vst [vmem:[#allocation2 + $0xb0] sm:$0xff] %v2847
      %2884 = vst [vmem:[#allocation2 + $0xb8] sm:$0xff] %v2848
      %2885 = vst [vmem:[#allocation2 + $0xc0] sm:$0xff] %v2849
      %2886 = vst [vmem:[#allocation2 + $0xc8] sm:$0xff] %v2850
      %2887 = vst [vmem:[#allocation2 + $0xd0] sm:$0xff] %v2851
      %2888 = vst [vmem:[#allocation2 + $0xd8] sm:$0xff] %v2852
      %2889 = vst [vmem:[#allocation2 + $0xe0] sm:$0xff] %v2853
      %2890 = vst [vmem:[#allocation2 + $0xe8] sm:$0xff] %v2854
      %2891 = vst [vmem:[#allocation2 + $0xf0] sm:$0xff] %v2855
      %2892 = vst [vmem:[#allocation2 + $0xf8] sm:$0xff] %v2856
      %2893 = vst [vmem:[#allocation2 + $0x100] sm:$0xff] %v2857
      %2894 = vst [vmem:[#allocation2 + $0x108] sm:$0xff] %v2858
      %2895 = vst [vmem:[#allocation2 + $0x110] sm:$0xff] %v2859
      %2896 = vst [vmem:[#allocation2 + $0x118] sm:$0xff] %v2860
      %s2897 = sadd.s32 %s194, 37
      %s2898 = scalar_lea.vmem %s183, %s2897
      %v2899 = vld [vmem:[%s2898] sm:$0xff]
      %v2900 = vld [vmem:[%s2898 + $0x8] sm:$0xff]
      %v2901 = vld [vmem:[%s2898 + $0x10] sm:$0xff]
      %v2902 = vld [vmem:[%s2898 + $0x18] sm:$0xff]
      %v2903 = vld [vmem:[%s2898 + $0x20] sm:$0xff]
      %v2904 = vld [vmem:[%s2898 + $0x28] sm:$0xff]
      %v2905 = vld [vmem:[%s2898 + $0x30] sm:$0xff]
      %v2906 = vld [vmem:[%s2898 + $0x38] sm:$0xff]
      %v2907 = vld [vmem:[%s2898 + $0x40] sm:$0xff]
      %v2908 = vld [vmem:[%s2898 + $0x48] sm:$0xff]
      %v2909 = vld [vmem:[%s2898 + $0x50] sm:$0xff]
      %v2910 = vld [vmem:[%s2898 + $0x58] sm:$0xff]
      %v2911 = vld [vmem:[%s2898 + $0x60] sm:$0xff]
      %v2912 = vld [vmem:[%s2898 + $0x68] sm:$0xff]
      %v2913 = vld [vmem:[%s2898 + $0x70] sm:$0xff]
      %v2914 = vld [vmem:[%s2898 + $0x78] sm:$0xff]
      %v2915 = vld [vmem:[%s2898 + $0x80] sm:$0xff]
      %v2916 = vld [vmem:[%s2898 + $0x88] sm:$0xff]
      %v2917 = vld [vmem:[%s2898 + $0x90] sm:$0xff]
      %v2918 = vld [vmem:[%s2898 + $0x98] sm:$0xff]
      %v2919 = vld [vmem:[%s2898 + $0xa0] sm:$0xff]
      %v2920 = vld [vmem:[%s2898 + $0xa8] sm:$0xff]
      %v2921 = vld [vmem:[%s2898 + $0xb0] sm:$0xff]
      %v2922 = vld [vmem:[%s2898 + $0xb8] sm:$0xff]
      %v2923 = vld [vmem:[%s2898 + $0xc0] sm:$0xff]
      %v2924 = vld [vmem:[%s2898 + $0xc8] sm:$0xff]
      %v2925 = vld [vmem:[%s2898 + $0xd0] sm:$0xff]
      %v2926 = vld [vmem:[%s2898 + $0xd8] sm:$0xff]
      %v2927 = vld [vmem:[%s2898 + $0xe0] sm:$0xff]
      %v2928 = vld [vmem:[%s2898 + $0xe8] sm:$0xff]
      %v2929 = vld [vmem:[%s2898 + $0xf0] sm:$0xff]
      %v2930 = vld [vmem:[%s2898 + $0xf8] sm:$0xff]
      %v2931 = vld [vmem:[%s2898 + $0x100] sm:$0xff]
      %v2932 = vld [vmem:[%s2898 + $0x108] sm:$0xff]
      %v2933 = vld [vmem:[%s2898 + $0x110] sm:$0xff]
      %v2934 = vld [vmem:[%s2898 + $0x118] sm:$0xff]
      %v2935 = vld [vmem:[#allocation2] sm:$0xff]
      %v2936 = vld [vmem:[#allocation2 + $0x8] sm:$0xff]
      %v2937 = vld [vmem:[#allocation2 + $0x10] sm:$0xff]
      %v2938 = vld [vmem:[#allocation2 + $0x18] sm:$0xff]
      %v2939 = vld [vmem:[#allocation2 + $0x20] sm:$0xff]
      %v2940 = vld [vmem:[#allocation2 + $0x28] sm:$0xff]
      %v2941 = vld [vmem:[#allocation2 + $0x30] sm:$0xff]
      %v2942 = vld [vmem:[#allocation2 + $0x38] sm:$0xff]
      %v2943 = vld [vmem:[#allocation2 + $0x40] sm:$0xff]
      %v2944 = vld [vmem:[#allocation2 + $0x48] sm:$0xff]
      %v2945 = vld [vmem:[#allocation2 + $0x50] sm:$0xff]
      %v2946 = vld [vmem:[#allocation2 + $0x58] sm:$0xff]
      %v2947 = vld [vmem:[#allocation2 + $0x60] sm:$0xff]
      %v2948 = vld [vmem:[#allocation2 + $0x68] sm:$0xff]
      %v2949 = vld [vmem:[#allocation2 + $0x70] sm:$0xff]
      %v2950 = vld [vmem:[#allocation2 + $0x78] sm:$0xff]
      %v2951 = vld [vmem:[#allocation2 + $0x80] sm:$0xff]
      %v2952 = vld [vmem:[#allocation2 + $0x88] sm:$0xff]
      %v2953 = vld [vmem:[#allocation2 + $0x90] sm:$0xff]
      %v2954 = vld [vmem:[#allocation2 + $0x98] sm:$0xff]
      %v2955 = vld [vmem:[#allocation2 + $0xa0] sm:$0xff]
      %v2956 = vld [vmem:[#allocation2 + $0xa8] sm:$0xff]
      %v2957 = vld [vmem:[#allocation2 + $0xb0] sm:$0xff]
      %v2958 = vld [vmem:[#allocation2 + $0xb8] sm:$0xff]
      %v2959 = vld [vmem:[#allocation2 + $0xc0] sm:$0xff]
      %v2960 = vld [vmem:[#allocation2 + $0xc8] sm:$0xff]
      %v2961 = vld [vmem:[#allocation2 + $0xd0] sm:$0xff]
      %v2962 = vld [vmem:[#allocation2 + $0xd8] sm:$0xff]
      %v2963 = vld [vmem:[#allocation2 + $0xe0] sm:$0xff]
      %v2964 = vld [vmem:[#allocation2 + $0xe8] sm:$0xff]
      %v2965 = vld [vmem:[#allocation2 + $0xf0] sm:$0xff]
      %v2966 = vld [vmem:[#allocation2 + $0xf8] sm:$0xff]
      %v2967 = vld [vmem:[#allocation2 + $0x100] sm:$0xff]
      %v2968 = vld [vmem:[#allocation2 + $0x108] sm:$0xff]
      %v2969 = vld [vmem:[#allocation2 + $0x110] sm:$0xff]
      %v2970 = vld [vmem:[#allocation2 + $0x118] sm:$0xff]
      %s2971 = scalar_lea.vmem %s1, 56
      %v2972 = vld [vmem:[%s2971] sm:$0xff]
      %v2974 = vsel %vm305, %v2899, 0
      %v2977 = vsel %vm305, %v2900, 0
      %v2980 = vsel %vm305, %v2901, 0
      %v2983 = vsel %vm305, %v2902, 0
      %v2986 = vsel %vm305, %v2903, 0
      %v2989 = vsel %vm305, %v2904, 0
      %v2992 = vsel %vm305, %v2905, 0
      %v2995 = vsel %vm305, %v2906, 0
      %v2998 = vsel %vm305, %v2907, 0
      %v3001 = vsel %vm305, %v2908, 0
      %v3004 = vsel %vm305, %v2909, 0
      %v3007 = vsel %vm305, %v2910, 0
      %v3010 = vsel %vm305, %v2911, 0
      %v3013 = vsel %vm305, %v2912, 0
      %v3016 = vsel %vm305, %v2913, 0
      %v3019 = vsel %vm305, %v2914, 0
      %v3022 = vsel %vm305, %v2915, 0
      %v3025 = vsel %vm305, %v2916, 0
      %v3028 = vsel %vm305, %v2917, 0
      %v3031 = vsel %vm305, %v2918, 0
      %v3034 = vsel %vm305, %v2919, 0
      %v3037 = vsel %vm305, %v2920, 0
      %v3040 = vsel %vm305, %v2921, 0
      %v3043 = vsel %vm305, %v2922, 0
      %v3046 = vsel %vm305, %v2923, 0
      %v3049 = vsel %vm305, %v2924, 0
      %v3052 = vsel %vm305, %v2925, 0
      %v3055 = vsel %vm305, %v2926, 0
      %v3058 = vsel %vm305, %v2927, 0
      %v3061 = vsel %vm305, %v2928, 0
      %v3064 = vsel %vm305, %v2929, 0
      %v3067 = vsel %vm305, %v2930, 0
      %v3070 = vsel %vm305, %v2931, 0
      %v3073 = vsel %vm305, %v2932, 0
      %v3076 = vsel %vm305, %v2933, 0
      %v3079 = vsel %vm305, %v2934, 0
      %3081 = vmatpush.msra.mxu0 0.0
      %3082 = vmatpush.msra.mxu0 0.0
      %3083 = vmatpush.msra.mxu0 0.0
      %3084 = vmatpush.msra.mxu0 0.0
      %3085 = vmatpush.msra.mxu0 0.0
      %3086 = vmatpush.msra.mxu0 0.0
      %3087 = vmatpush.msra.mxu0 0.0
      %3088 = vmatpush.msra.mxu0 0.0
      %3089 = vmatpush.msra.mxu0 0.0
      %3090 = vmatpush.msra.mxu0 0.0
      %3091 = vmatpush.msra.mxu0 0.0
      %3092 = vmatpush.msra.mxu0 0.0
      %3093 = vmatpush.msra.mxu0 0.0
      %3094 = vmatpush.msra.mxu0 0.0
      %3095 = vmatpush.msra.mxu0 0.0
      %3096 = vmatpush.msra.mxu0 %v2972
      %3097 = vmatmul.f32.gmra.mxu0 %v2974
      %v3098 = vpop.f32.mrf.mxu0
      %v3099 = vadd.f32 0.0, %v3098
      %3100 = vmatmul.f32.gmra.mxu0 %v2977
      %v3101 = vpop.f32.mrf.mxu0
      %v3102 = vadd.f32 0.0, %v3101
      %3103 = vmatmul.f32.gmra.mxu0 %v2980
      %v3104 = vpop.f32.mrf.mxu0
      %v3105 = vadd.f32 0.0, %v3104
      %3106 = vmatmul.f32.gmra.mxu0 %v2983
      %v3107 = vpop.f32.mrf.mxu0
      %v3108 = vadd.f32 0.0, %v3107
      %3109 = vmatmul.f32.gmra.mxu0 %v2986
      %v3110 = vpop.f32.mrf.mxu0
      %v3111 = vadd.f32 0.0, %v3110
      %3112 = vmatmul.f32.gmra.mxu0 %v2989
      %v3113 = vpop.f32.mrf.mxu0
      %v3114 = vadd.f32 0.0, %v3113
      %3115 = vmatmul.f32.gmra.mxu0 %v2992
      %v3116 = vpop.f32.mrf.mxu0
      %v3117 = vadd.f32 0.0, %v3116
      %3118 = vmatmul.f32.gmra.mxu0 %v2995
      %v3119 = vpop.f32.mrf.mxu0
      %v3120 = vadd.f32 0.0, %v3119
      %3121 = vmatmul.f32.gmra.mxu0 %v2998
      %v3122 = vpop.f32.mrf.mxu0
      %v3123 = vadd.f32 0.0, %v3122
      %3124 = vmatmul.f32.gmra.mxu0 %v3001
      %v3125 = vpop.f32.mrf.mxu0
      %v3126 = vadd.f32 0.0, %v3125
      %3127 = vmatmul.f32.gmra.mxu0 %v3004
      %v3128 = vpop.f32.mrf.mxu0
      %v3129 = vadd.f32 0.0, %v3128
      %3130 = vmatmul.f32.gmra.mxu0 %v3007
      %v3131 = vpop.f32.mrf.mxu0
      %v3132 = vadd.f32 0.0, %v3131
      %3133 = vmatmul.f32.gmra.mxu0 %v3010
      %v3134 = vpop.f32.mrf.mxu0
      %v3135 = vadd.f32 0.0, %v3134
      %3136 = vmatmul.f32.gmra.mxu0 %v3013
      %v3137 = vpop.f32.mrf.mxu0
      %v3138 = vadd.f32 0.0, %v3137
      %3139 = vmatmul.f32.gmra.mxu0 %v3016
      %v3140 = vpop.f32.mrf.mxu0
      %v3141 = vadd.f32 0.0, %v3140
      %3142 = vmatmul.f32.gmra.mxu0 %v3019
      %v3143 = vpop.f32.mrf.mxu0
      %v3144 = vadd.f32 0.0, %v3143
      %3145 = vmatmul.f32.gmra.mxu0 %v3022
      %v3146 = vpop.f32.mrf.mxu0
      %v3147 = vadd.f32 0.0, %v3146
      %3148 = vmatmul.f32.gmra.mxu0 %v3025
      %v3149 = vpop.f32.mrf.mxu0
      %v3150 = vadd.f32 0.0, %v3149
      %3151 = vmatmul.f32.gmra.mxu0 %v3028
      %v3152 = vpop.f32.mrf.mxu0
      %v3153 = vadd.f32 0.0, %v3152
      %3154 = vmatmul.f32.gmra.mxu0 %v3031
      %v3155 = vpop.f32.mrf.mxu0
      %v3156 = vadd.f32 0.0, %v3155
      %3157 = vmatmul.f32.gmra.mxu0 %v3034
      %v3158 = vpop.f32.mrf.mxu0
      %v3159 = vadd.f32 0.0, %v3158
      %3160 = vmatmul.f32.gmra.mxu0 %v3037
      %v3161 = vpop.f32.mrf.mxu0
      %v3162 = vadd.f32 0.0, %v3161
      %3163 = vmatmul.f32.gmra.mxu0 %v3040
      %v3164 = vpop.f32.mrf.mxu0
      %v3165 = vadd.f32 0.0, %v3164
      %3166 = vmatmul.f32.gmra.mxu0 %v3043
      %v3167 = vpop.f32.mrf.mxu0
      %v3168 = vadd.f32 0.0, %v3167
      %3169 = vmatmul.f32.gmra.mxu0 %v3046
      %v3170 = vpop.f32.mrf.mxu0
      %v3171 = vadd.f32 0.0, %v3170
      %3172 = vmatmul.f32.gmra.mxu0 %v3049
      %v3173 = vpop.f32.mrf.mxu0
      %v3174 = vadd.f32 0.0, %v3173
      %3175 = vmatmul.f32.gmra.mxu0 %v3052
      %v3176 = vpop.f32.mrf.mxu0
      %v3177 = vadd.f32 0.0, %v3176
      %3178 = vmatmul.f32.gmra.mxu0 %v3055
      %v3179 = vpop.f32.mrf.mxu0
      %v3180 = vadd.f32 0.0, %v3179
      %3181 = vmatmul.f32.gmra.mxu0 %v3058
      %v3182 = vpop.f32.mrf.mxu0
      %v3183 = vadd.f32 0.0, %v3182
      %3184 = vmatmul.f32.gmra.mxu0 %v3061
      %v3185 = vpop.f32.mrf.mxu0
      %v3186 = vadd.f32 0.0, %v3185
      %3187 = vmatmul.f32.gmra.mxu0 %v3064
      %v3188 = vpop.f32.mrf.mxu0
      %v3189 = vadd.f32 0.0, %v3188
      %3190 = vmatmul.f32.gmra.mxu0 %v3067
      %v3191 = vpop.f32.mrf.mxu0
      %v3192 = vadd.f32 0.0, %v3191
      %3193 = vmatmul.f32.gmra.mxu0 %v3070
      %v3194 = vpop.f32.mrf.mxu0
      %v3195 = vadd.f32 0.0, %v3194
      %3196 = vmatmul.f32.gmra.mxu0 %v3073
      %v3197 = vpop.f32.mrf.mxu0
      %v3198 = vadd.f32 0.0, %v3197
      %3199 = vmatmul.f32.gmra.mxu0 %v3076
      %v3200 = vpop.f32.mrf.mxu0
      %v3201 = vadd.f32 0.0, %v3200
      %3202 = vmatmul.f32.gmra.mxu0 %v3079
      %v3203 = vpop.f32.mrf.mxu0
      %v3204 = vadd.f32 0.0, %v3203
      %3205 = vdwg.mxu0
      %v3206 = vadd.f32 %v2935, %v3099
      %v3207 = vadd.f32 %v2936, %v3102
      %v3208 = vadd.f32 %v2937, %v3105
      %v3209 = vadd.f32 %v2938, %v3108
      %v3210 = vadd.f32 %v2939, %v3111
      %v3211 = vadd.f32 %v2940, %v3114
      %v3212 = vadd.f32 %v2941, %v3117
      %v3213 = vadd.f32 %v2942, %v3120
      %v3214 = vadd.f32 %v2943, %v3123
      %v3215 = vadd.f32 %v2944, %v3126
      %v3216 = vadd.f32 %v2945, %v3129
      %v3217 = vadd.f32 %v2946, %v3132
      %v3218 = vadd.f32 %v2947, %v3135
      %v3219 = vadd.f32 %v2948, %v3138
      %v3220 = vadd.f32 %v2949, %v3141
      %v3221 = vadd.f32 %v2950, %v3144
      %v3222 = vadd.f32 %v2951, %v3147
      %v3223 = vadd.f32 %v2952, %v3150
      %v3224 = vadd.f32 %v2953, %v3153
      %v3225 = vadd.f32 %v2954, %v3156
      %v3226 = vadd.f32 %v2955, %v3159
      %v3227 = vadd.f32 %v2956, %v3162
      %v3228 = vadd.f32 %v2957, %v3165
      %v3229 = vadd.f32 %v2958, %v3168
      %v3230 = vadd.f32 %v2959, %v3171
      %v3231 = vadd.f32 %v2960, %v3174
      %v3232 = vadd.f32 %v2961, %v3177
      %v3233 = vadd.f32 %v2962, %v3180
      %v3234 = vadd.f32 %v2963, %v3183
      %v3235 = vadd.f32 %v2964, %v3186
      %v3236 = vadd.f32 %v2965, %v3189
      %v3237 = vadd.f32 %v2966, %v3192
      %v3238 = vadd.f32 %v2967, %v3195
      %v3239 = vadd.f32 %v2968, %v3198
      %v3240 = vadd.f32 %v2969, %v3201
      %v3241 = vadd.f32 %v2970, %v3204
      %3242 = vst [vmem:[#allocation2] sm:$0xff] %v3206
      %3243 = vst [vmem:[#allocation2 + $0x8] sm:$0xff] %v3207
      %3244 = vst [vmem:[#allocation2 + $0x10] sm:$0xff] %v3208
      %3245 = vst [vmem:[#allocation2 + $0x18] sm:$0xff] %v3209
      %3246 = vst [vmem:[#allocation2 + $0x20] sm:$0xff] %v3210
      %3247 = vst [vmem:[#allocation2 + $0x28] sm:$0xff] %v3211
      %3248 = vst [vmem:[#allocation2 + $0x30] sm:$0xff] %v3212
      %3249 = vst [vmem:[#allocation2 + $0x38] sm:$0xff] %v3213
      %3250 = vst [vmem:[#allocation2 + $0x40] sm:$0xff] %v3214
      %3251 = vst [vmem:[#allocation2 + $0x48] sm:$0xff] %v3215
      %3252 = vst [vmem:[#allocation2 + $0x50] sm:$0xff] %v3216
      %3253 = vst [vmem:[#allocation2 + $0x58] sm:$0xff] %v3217
      %3254 = vst [vmem:[#allocation2 + $0x60] sm:$0xff] %v3218
      %3255 = vst [vmem:[#allocation2 + $0x68] sm:$0xff] %v3219
      %3256 = vst [vmem:[#allocation2 + $0x70] sm:$0xff] %v3220
      %3257 = vst [vmem:[#allocation2 + $0x78] sm:$0xff] %v3221
      %3258 = vst [vmem:[#allocation2 + $0x80] sm:$0xff] %v3222
      %3259 = vst [vmem:[#allocation2 + $0x88] sm:$0xff] %v3223
      %3260 = vst [vmem:[#allocation2 + $0x90] sm:$0xff] %v3224
      %3261 = vst [vmem:[#allocation2 + $0x98] sm:$0xff] %v3225
      %3262 = vst [vmem:[#allocation2 + $0xa0] sm:$0xff] %v3226
      %3263 = vst [vmem:[#allocation2 + $0xa8] sm:$0xff] %v3227
      %3264 = vst [vmem:[#allocation2 + $0xb0] sm:$0xff] %v3228
      %3265 = vst [vmem:[#allocation2 + $0xb8] sm:$0xff] %v3229
      %3266 = vst [vmem:[#allocation2 + $0xc0] sm:$0xff] %v3230
      %3267 = vst [vmem:[#allocation2 + $0xc8] sm:$0xff] %v3231
      %3268 = vst [vmem:[#allocation2 + $0xd0] sm:$0xff] %v3232
      %3269 = vst [vmem:[#allocation2 + $0xd8] sm:$0xff] %v3233
      %3270 = vst [vmem:[#allocation2 + $0xe0] sm:$0xff] %v3234
      %3271 = vst [vmem:[#allocation2 + $0xe8] sm:$0xff] %v3235
      %3272 = vst [vmem:[#allocation2 + $0xf0] sm:$0xff] %v3236
      %3273 = vst [vmem:[#allocation2 + $0xf8] sm:$0xff] %v3237
      %3274 = vst [vmem:[#allocation2 + $0x100] sm:$0xff] %v3238
      %3275 = vst [vmem:[#allocation2 + $0x108] sm:$0xff] %v3239
      %3276 = vst [vmem:[#allocation2 + $0x110] sm:$0xff] %v3240
      %3277 = vst [vmem:[#allocation2 + $0x118] sm:$0xff] %v3241
      %s3278 = sadd.s32 %s194, 38
      %s3279 = scalar_lea.vmem %s183, %s3278
      %v3280 = vld [vmem:[%s3279] sm:$0xff]
      %v3281 = vld [vmem:[%s3279 + $0x8] sm:$0xff]
      %v3282 = vld [vmem:[%s3279 + $0x10] sm:$0xff]
      %v3283 = vld [vmem:[%s3279 + $0x18] sm:$0xff]
      %v3284 = vld [vmem:[%s3279 + $0x20] sm:$0xff]
      %v3285 = vld [vmem:[%s3279 + $0x28] sm:$0xff]
      %v3286 = vld [vmem:[%s3279 + $0x30] sm:$0xff]
      %v3287 = vld [vmem:[%s3279 + $0x38] sm:$0xff]
      %v3288 = vld [vmem:[%s3279 + $0x40] sm:$0xff]
      %v3289 = vld [vmem:[%s3279 + $0x48] sm:$0xff]
      %v3290 = vld [vmem:[%s3279 + $0x50] sm:$0xff]
      %v3291 = vld [vmem:[%s3279 + $0x58] sm:$0xff]
      %v3292 = vld [vmem:[%s3279 + $0x60] sm:$0xff]
      %v3293 = vld [vmem:[%s3279 + $0x68] sm:$0xff]
      %v3294 = vld [vmem:[%s3279 + $0x70] sm:$0xff]
      %v3295 = vld [vmem:[%s3279 + $0x78] sm:$0xff]
      %v3296 = vld [vmem:[%s3279 + $0x80] sm:$0xff]
      %v3297 = vld [vmem:[%s3279 + $0x88] sm:$0xff]
      %v3298 = vld [vmem:[%s3279 + $0x90] sm:$0xff]
      %v3299 = vld [vmem:[%s3279 + $0x98] sm:$0xff]
      %v3300 = vld [vmem:[%s3279 + $0xa0] sm:$0xff]
      %v3301 = vld [vmem:[%s3279 + $0xa8] sm:$0xff]
      %v3302 = vld [vmem:[%s3279 + $0xb0] sm:$0xff]
      %v3303 = vld [vmem:[%s3279 + $0xb8] sm:$0xff]
      %v3304 = vld [vmem:[%s3279 + $0xc0] sm:$0xff]
      %v3305 = vld [vmem:[%s3279 + $0xc8] sm:$0xff]
      %v3306 = vld [vmem:[%s3279 + $0xd0] sm:$0xff]
      %v3307 = vld [vmem:[%s3279 + $0xd8] sm:$0xff]
      %v3308 = vld [vmem:[%s3279 + $0xe0] sm:$0xff]
      %v3309 = vld [vmem:[%s3279 + $0xe8] sm:$0xff]
      %v3310 = vld [vmem:[%s3279 + $0xf0] sm:$0xff]
      %v3311 = vld [vmem:[%s3279 + $0xf8] sm:$0xff]
      %v3312 = vld [vmem:[%s3279 + $0x100] sm:$0xff]
      %v3313 = vld [vmem:[%s3279 + $0x108] sm:$0xff]
      %v3314 = vld [vmem:[%s3279 + $0x110] sm:$0xff]
      %v3315 = vld [vmem:[%s3279 + $0x118] sm:$0xff]
      %v3316 = vld [vmem:[#allocation2] sm:$0xff]
      %v3317 = vld [vmem:[#allocation2 + $0x8] sm:$0xff]
      %v3318 = vld [vmem:[#allocation2 + $0x10] sm:$0xff]
      %v3319 = vld [vmem:[#allocation2 + $0x18] sm:$0xff]
      %v3320 = vld [vmem:[#allocation2 + $0x20] sm:$0xff]
      %v3321 = vld [vmem:[#allocation2 + $0x28] sm:$0xff]
      %v3322 = vld [vmem:[#allocation2 + $0x30] sm:$0xff]
      %v3323 = vld [vmem:[#allocation2 + $0x38] sm:$0xff]
      %v3324 = vld [vmem:[#allocation2 + $0x40] sm:$0xff]
      %v3325 = vld [vmem:[#allocation2 + $0x48] sm:$0xff]
      %v3326 = vld [vmem:[#allocation2 + $0x50] sm:$0xff]
      %v3327 = vld [vmem:[#allocation2 + $0x58] sm:$0xff]
      %v3328 = vld [vmem:[#allocation2 + $0x60] sm:$0xff]
      %v3329 = vld [vmem:[#allocation2 + $0x68] sm:$0xff]
      %v3330 = vld [vmem:[#allocation2 + $0x70] sm:$0xff]
      %v3331 = vld [vmem:[#allocation2 + $0x78] sm:$0xff]
      %v3332 = vld [vmem:[#allocation2 + $0x80] sm:$0xff]
      %v3333 = vld [vmem:[#allocation2 + $0x88] sm:$0xff]
      %v3334 = vld [vmem:[#allocation2 + $0x90] sm:$0xff]
      %v3335 = vld [vmem:[#allocation2 + $0x98] sm:$0xff]
      %v3336 = vld [vmem:[#allocation2 + $0xa0] sm:$0xff]
      %v3337 = vld [vmem:[#allocation2 + $0xa8] sm:$0xff]
      %v3338 = vld [vmem:[#allocation2 + $0xb0] sm:$0xff]
      %v3339 = vld [vmem:[#allocation2 + $0xb8] sm:$0xff]
      %v3340 = vld [vmem:[#allocation2 + $0xc0] sm:$0xff]
      %v3341 = vld [vmem:[#allocation2 + $0xc8] sm:$0xff]
      %v3342 = vld [vmem:[#allocation2 + $0xd0] sm:$0xff]
      %v3343 = vld [vmem:[#allocation2 + $0xd8] sm:$0xff]
      %v3344 = vld [vmem:[#allocation2 + $0xe0] sm:$0xff]
      %v3345 = vld [vmem:[#allocation2 + $0xe8] sm:$0xff]
      %v3346 = vld [vmem:[#allocation2 + $0xf0] sm:$0xff]
      %v3347 = vld [vmem:[#allocation2 + $0xf8] sm:$0xff]
      %v3348 = vld [vmem:[#allocation2 + $0x100] sm:$0xff]
      %v3349 = vld [vmem:[#allocation2 + $0x108] sm:$0xff]
      %v3350 = vld [vmem:[#allocation2 + $0x110] sm:$0xff]
      %v3351 = vld [vmem:[#allocation2 + $0x118] sm:$0xff]
      %s3352 = scalar_lea.vmem %s1, 64
      %v3353 = vld [vmem:[%s3352] sm:$0xff]
      %v3355 = vsel %vm305, %v3280, 0
      %v3358 = vsel %vm305, %v3281, 0
      %v3361 = vsel %vm305, %v3282, 0
      %v3364 = vsel %vm305, %v3283, 0
      %v3367 = vsel %vm305, %v3284, 0
      %v3370 = vsel %vm305, %v3285, 0
      %v3373 = vsel %vm305, %v3286, 0
      %v3376 = vsel %vm305, %v3287, 0
      %v3379 = vsel %vm305, %v3288, 0
      %v3382 = vsel %vm305, %v3289, 0
      %v3385 = vsel %vm305, %v3290, 0
      %v3388 = vsel %vm305, %v3291, 0
      %v3391 = vsel %vm305, %v3292, 0
      %v3394 = vsel %vm305, %v3293, 0
      %v3397 = vsel %vm305, %v3294, 0
      %v3400 = vsel %vm305, %v3295, 0
      %v3403 = vsel %vm305, %v3296, 0
      %v3406 = vsel %vm305, %v3297, 0
      %v3409 = vsel %vm305, %v3298, 0
      %v3412 = vsel %vm305, %v3299, 0
      %v3415 = vsel %vm305, %v3300, 0
      %v3418 = vsel %vm305, %v3301, 0
      %v3421 = vsel %vm305, %v3302, 0
      %v3424 = vsel %vm305, %v3303, 0
      %v3427 = vsel %vm305, %v3304, 0
      %v3430 = vsel %vm305, %v3305, 0
      %v3433 = vsel %vm305, %v3306, 0
      %v3436 = vsel %vm305, %v3307, 0
      %v3439 = vsel %vm305, %v3308, 0
      %v3442 = vsel %vm305, %v3309, 0
      %v3445 = vsel %vm305, %v3310, 0
      %v3448 = vsel %vm305, %v3311, 0
      %v3451 = vsel %vm305, %v3312, 0
      %v3454 = vsel %vm305, %v3313, 0
      %v3457 = vsel %vm305, %v3314, 0
      %v3460 = vsel %vm305, %v3315, 0
      %3462 = vmatpush.msra.mxu0 0.0
      %3463 = vmatpush.msra.mxu0 0.0
      %3464 = vmatpush.msra.mxu0 0.0
      %3465 = vmatpush.msra.mxu0 0.0
      %3466 = vmatpush.msra.mxu0 0.0
      %3467 = vmatpush.msra.mxu0 0.0
      %3468 = vmatpush.msra.mxu0 0.0
      %3469 = vmatpush.msra.mxu0 0.0
      %3470 = vmatpush.msra.mxu0 0.0
      %3471 = vmatpush.msra.mxu0 0.0
      %3472 = vmatpush.msra.mxu0 0.0
      %3473 = vmatpush.msra.mxu0 0.0
      %3474 = vmatpush.msra.mxu0 0.0
      %3475 = vmatpush.msra.mxu0 0.0
      %3476 = vmatpush.msra.mxu0 0.0
      %3477 = vmatpush.msra.mxu0 %v3353
      %3478 = vmatmul.f32.gmra.mxu0 %v3355
      %v3479 = vpop.f32.mrf.mxu0
      %v3480 = vadd.f32 0.0, %v3479
      %3481 = vmatmul.f32.gmra.mxu0 %v3358
      %v3482 = vpop.f32.mrf.mxu0
      %v3483 = vadd.f32 0.0, %v3482
      %3484 = vmatmul.f32.gmra.mxu0 %v3361
      %v3485 = vpop.f32.mrf.mxu0
      %v3486 = vadd.f32 0.0, %v3485
      %3487 = vmatmul.f32.gmra.mxu0 %v3364
      %v3488 = vpop.f32.mrf.mxu0
      %v3489 = vadd.f32 0.0, %v3488
      %3490 = vmatmul.f32.gmra.mxu0 %v3367
      %v3491 = vpop.f32.mrf.mxu0
      %v3492 = vadd.f32 0.0, %v3491
      %3493 = vmatmul.f32.gmra.mxu0 %v3370
      %v3494 = vpop.f32.mrf.mxu0
      %v3495 = vadd.f32 0.0, %v3494
      %3496 = vmatmul.f32.gmra.mxu0 %v3373
      %v3497 = vpop.f32.mrf.mxu0
      %v3498 = vadd.f32 0.0, %v3497
      %3499 = vmatmul.f32.gmra.mxu0 %v3376
      %v3500 = vpop.f32.mrf.mxu0
      %v3501 = vadd.f32 0.0, %v3500
      %3502 = vmatmul.f32.gmra.mxu0 %v3379
      %v3503 = vpop.f32.mrf.mxu0
      %v3504 = vadd.f32 0.0, %v3503
      %3505 = vmatmul.f32.gmra.mxu0 %v3382
      %v3506 = vpop.f32.mrf.mxu0
      %v3507 = vadd.f32 0.0, %v3506
      %3508 = vmatmul.f32.gmra.mxu0 %v3385
      %v3509 = vpop.f32.mrf.mxu0
      %v3510 = vadd.f32 0.0, %v3509
      %3511 = vmatmul.f32.gmra.mxu0 %v3388
      %v3512 = vpop.f32.mrf.mxu0
      %v3513 = vadd.f32 0.0, %v3512
      %3514 = vmatmul.f32.gmra.mxu0 %v3391
      %v3515 = vpop.f32.mrf.mxu0
      %v3516 = vadd.f32 0.0, %v3515
      %3517 = vmatmul.f32.gmra.mxu0 %v3394
      %v3518 = vpop.f32.mrf.mxu0
      %v3519 = vadd.f32 0.0, %v3518
      %3520 = vmatmul.f32.gmra.mxu0 %v3397
      %v3521 = vpop.f32.mrf.mxu0
      %v3522 = vadd.f32 0.0, %v3521
      %3523 = vmatmul.f32.gmra.mxu0 %v3400
      %v3524 = vpop.f32.mrf.mxu0
      %v3525 = vadd.f32 0.0, %v3524
      %3526 = vmatmul.f32.gmra.mxu0 %v3403
      %v3527 = vpop.f32.mrf.mxu0
      %v3528 = vadd.f32 0.0, %v3527
      %3529 = vmatmul.f32.gmra.mxu0 %v3406
      %v3530 = vpop.f32.mrf.mxu0
      %v3531 = vadd.f32 0.0, %v3530
      %3532 = vmatmul.f32.gmra.mxu0 %v3409
      %v3533 = vpop.f32.mrf.mxu0
      %v3534 = vadd.f32 0.0, %v3533
      %3535 = vmatmul.f32.gmra.mxu0 %v3412
      %v3536 = vpop.f32.mrf.mxu0
      %v3537 = vadd.f32 0.0, %v3536
      %3538 = vmatmul.f32.gmra.mxu0 %v3415
      %v3539 = vpop.f32.mrf.mxu0
      %v3540 = vadd.f32 0.0, %v3539
      %3541 = vmatmul.f32.gmra.mxu0 %v3418
      %v3542 = vpop.f32.mrf.mxu0
      %v3543 = vadd.f32 0.0, %v3542
      %3544 = vmatmul.f32.gmra.mxu0 %v3421
      %v3545 = vpop.f32.mrf.mxu0
      %v3546 = vadd.f32 0.0, %v3545
      %3547 = vmatmul.f32.gmra.mxu0 %v3424
      %v3548 = vpop.f32.mrf.mxu0
      %v3549 = vadd.f32 0.0, %v3548
      %3550 = vmatmul.f32.gmra.mxu0 %v3427
      %v3551 = vpop.f32.mrf.mxu0
      %v3552 = vadd.f32 0.0, %v3551
      %3553 = vmatmul.f32.gmra.mxu0 %v3430
      %v3554 = vpop.f32.mrf.mxu0
      %v3555 = vadd.f32 0.0, %v3554
      %3556 = vmatmul.f32.gmra.mxu0 %v3433
      %v3557 = vpop.f32.mrf.mxu0
      %v3558 = vadd.f32 0.0, %v3557
      %3559 = vmatmul.f32.gmra.mxu0 %v3436
      %v3560 = vpop.f32.mrf.mxu0
      %v3561 = vadd.f32 0.0, %v3560
      %3562 = vmatmul.f32.gmra.mxu0 %v3439
      %v3563 = vpop.f32.mrf.mxu0
      %v3564 = vadd.f32 0.0, %v3563
      %3565 = vmatmul.f32.gmra.mxu0 %v3442
      %v3566 = vpop.f32.mrf.mxu0
      %v3567 = vadd.f32 0.0, %v3566
      %3568 = vmatmul.f32.gmra.mxu0 %v3445
      %v3569 = vpop.f32.mrf.mxu0
      %v3570 = vadd.f32 0.0, %v3569
      %3571 = vmatmul.f32.gmra.mxu0 %v3448
      %v3572 = vpop.f32.mrf.mxu0
      %v3573 = vadd.f32 0.0, %v3572
      %3574 = vmatmul.f32.gmra.mxu0 %v3451
      %v3575 = vpop.f32.mrf.mxu0
      %v3576 = vadd.f32 0.0, %v3575
      %3577 = vmatmul.f32.gmra.mxu0 %v3454
      %v3578 = vpop.f32.mrf.mxu0
      %v3579 = vadd.f32 0.0, %v3578
      %3580 = vmatmul.f32.gmra.mxu0 %v3457
      %v3581 = vpop.f32.mrf.mxu0
      %v3582 = vadd.f32 0.0, %v3581
      %3583 = vmatmul.f32.gmra.mxu0 %v3460
      %v3584 = vpop.f32.mrf.mxu0
      %v3585 = vadd.f32 0.0, %v3584
      %3586 = vdwg.mxu0
      %v3587 = vadd.f32 %v3316, %v3480
      %v3588 = vadd.f32 %v3317, %v3483
      %v3589 = vadd.f32 %v3318, %v3486
      %v3590 = vadd.f32 %v3319, %v3489
      %v3591 = vadd.f32 %v3320, %v3492
      %v3592 = vadd.f32 %v3321, %v3495
      %v3593 = vadd.f32 %v3322, %v3498
      %v3594 = vadd.f32 %v3323, %v3501
      %v3595 = vadd.f32 %v3324, %v3504
      %v3596 = vadd.f32 %v3325, %v3507
      %v3597 = vadd.f32 %v3326, %v3510
      %v3598 = vadd.f32 %v3327, %v3513
      %v3599 = vadd.f32 %v3328, %v3516
      %v3600 = vadd.f32 %v3329, %v3519
      %v3601 = vadd.f32 %v3330, %v3522
      %v3602 = vadd.f32 %v3331, %v3525
      %v3603 = vadd.f32 %v3332, %v3528
      %v3604 = vadd.f32 %v3333, %v3531
      %v3605 = vadd.f32 %v3334, %v3534
      %v3606 = vadd.f32 %v3335, %v3537
      %v3607 = vadd.f32 %v3336, %v3540
      %v3608 = vadd.f32 %v3337, %v3543
      %v3609 = vadd.f32 %v3338, %v3546
      %v3610 = vadd.f32 %v3339, %v3549
      %v3611 = vadd.f32 %v3340, %v3552
      %v3612 = vadd.f32 %v3341, %v3555
      %v3613 = vadd.f32 %v3342, %v3558
      %v3614 = vadd.f32 %v3343, %v3561
      %v3615 = vadd.f32 %v3344, %v3564
      %v3616 = vadd.f32 %v3345, %v3567
      %v3617 = vadd.f32 %v3346, %v3570
      %v3618 = vadd.f32 %v3347, %v3573
      %v3619 = vadd.f32 %v3348, %v3576
      %v3620 = vadd.f32 %v3349, %v3579
      %v3621 = vadd.f32 %v3350, %v3582
      %v3622 = vadd.f32 %v3351, %v3585
      %3623 = vst [vmem:[#allocation2] sm:$0xff] %v3587
      %3624 = vst [vmem:[#allocation2 + $0x8] sm:$0xff] %v3588
      %3625 = vst [vmem:[#allocation2 + $0x10] sm:$0xff] %v3589
      %3626 = vst [vmem:[#allocation2 + $0x18] sm:$0xff] %v3590
      %3627 = vst [vmem:[#allocation2 + $0x20] sm:$0xff] %v3591
      %3628 = vst [vmem:[#allocation2 + $0x28] sm:$0xff] %v3592
      %3629 = vst [vmem:[#allocation2 + $0x30] sm:$0xff] %v3593
      %3630 = vst [vmem:[#allocation2 + $0x38] sm:$0xff] %v3594
      %3631 = vst [vmem:[#allocation2 + $0x40] sm:$0xff] %v3595
      %3632 = vst [vmem:[#allocation2 + $0x48] sm:$0xff] %v3596
      %3633 = vst [vmem:[#allocation2 + $0x50] sm:$0xff] %v3597
      %3634 = vst [vmem:[#allocation2 + $0x58] sm:$0xff] %v3598
      %3635 = vst [vmem:[#allocation2 + $0x60] sm:$0xff] %v3599
      %3636 = vst [vmem:[#allocation2 + $0x68] sm:$0xff] %v3600
      %3637 = vst [vmem:[#allocation2 + $0x70] sm:$0xff] %v3601
      %3638 = vst [vmem:[#allocation2 + $0x78] sm:$0xff] %v3602
      %3639 = vst [vmem:[#allocation2 + $0x80] sm:$0xff] %v3603
      %3640 = vst [vmem:[#allocation2 + $0x88] sm:$0xff] %v3604
      %3641 = vst [vmem:[#allocation2 + $0x90] sm:$0xff] %v3605
      %3642 = vst [vmem:[#allocation2 + $0x98] sm:$0xff] %v3606
      %3643 = vst [vmem:[#allocation2 + $0xa0] sm:$0xff] %v3607
      %3644 = vst [vmem:[#allocation2 + $0xa8] sm:$0xff] %v3608
      %3645 = vst [vmem:[#allocation2 + $0xb0] sm:$0xff] %v3609
      %3646 = vst [vmem:[#allocation2 + $0xb8] sm:$0xff] %v3610
      %3647 = vst [vmem:[#allocation2 + $0xc0] sm:$0xff] %v3611
      %3648 = vst [vmem:[#allocation2 + $0xc8] sm:$0xff] %v3612
      %3649 = vst [vmem:[#allocation2 + $0xd0] sm:$0xff] %v3613
      %3650 = vst [vmem:[#allocation2 + $0xd8] sm:$0xff] %v3614
      %3651 = vst [vmem:[#allocation2 + $0xe0] sm:$0xff] %v3615
      %3652 = vst [vmem:[#allocation2 + $0xe8] sm:$0xff] %v3616
      %3653 = vst [vmem:[#allocation2 + $0xf0] sm:$0xff] %v3617
      %3654 = vst [vmem:[#allocation2 + $0xf8] sm:$0xff] %v3618
      %3655 = vst [vmem:[#allocation2 + $0x100] sm:$0xff] %v3619
      %3656 = vst [vmem:[#allocation2 + $0x108] sm:$0xff] %v3620
      %3657 = vst [vmem:[#allocation2 + $0x110] sm:$0xff] %v3621
      %3658 = vst [vmem:[#allocation2 + $0x118] sm:$0xff] %v3622
      %v3659 = vld [vmem:[#allocation2] sm:$0xff]
      %v3660 = vld [vmem:[#allocation2 + $0x8] sm:$0xff]
      %v3661 = vld [vmem:[#allocation2 + $0x10] sm:$0xff]
      %v3662 = vld [vmem:[#allocation2 + $0x18] sm:$0xff]
      %v3663 = vld [vmem:[#allocation2 + $0x20] sm:$0xff]
      %v3664 = vld [vmem:[#allocation2 + $0x28] sm:$0xff]
      %v3665 = vld [vmem:[#allocation2 + $0x30] sm:$0xff]
      %v3666 = vld [vmem:[#allocation2 + $0x38] sm:$0xff]
      %v3667 = vld [vmem:[#allocation2 + $0x40] sm:$0xff]
      %v3668 = vld [vmem:[#allocation2 + $0x48] sm:$0xff]
      %v3669 = vld [vmem:[#allocation2 + $0x50] sm:$0xff]
      %v3670 = vld [vmem:[#allocation2 + $0x58] sm:$0xff]
      %v3671 = vld [vmem:[#allocation2 + $0x60] sm:$0xff]
      %v3672 = vld [vmem:[#allocation2 + $0x68] sm:$0xff]
      %v3673 = vld [vmem:[#allocation2 + $0x70] sm:$0xff]
      %v3674 = vld [vmem:[#allocation2 + $0x78] sm:$0xff]
      %v3675 = vld [vmem:[#allocation2 + $0x80] sm:$0xff]
      %v3676 = vld [vmem:[#allocation2 + $0x88] sm:$0xff]
      %v3677 = vld [vmem:[#allocation2 + $0x90] sm:$0xff]
      %v3678 = vld [vmem:[#allocation2 + $0x98] sm:$0xff]
      %v3679 = vld [vmem:[#allocation2 + $0xa0] sm:$0xff]
      %v3680 = vld [vmem:[#allocation2 + $0xa8] sm:$0xff]
      %v3681 = vld [vmem:[#allocation2 + $0xb0] sm:$0xff]
      %v3682 = vld [vmem:[#allocation2 + $0xb8] sm:$0xff]
      %v3683 = vld [vmem:[#allocation2 + $0xc0] sm:$0xff]
      %v3684 = vld [vmem:[#allocation2 + $0xc8] sm:$0xff]
      %v3685 = vld [vmem:[#allocation2 + $0xd0] sm:$0xff]
      %v3686 = vld [vmem:[#allocation2 + $0xd8] sm:$0xff]
      %v3687 = vld [vmem:[#allocation2 + $0xe0] sm:$0xff]
      %v3688 = vld [vmem:[#allocation2 + $0xe8] sm:$0xff]
      %v3689 = vld [vmem:[#allocation2 + $0xf0] sm:$0xff]
      %v3690 = vld [vmem:[#allocation2 + $0xf8] sm:$0xff]
      %v3691 = vld [vmem:[#allocation2 + $0x100] sm:$0xff]
      %v3692 = vld [vmem:[#allocation2 + $0x108] sm:$0xff]
      %v3693 = vld [vmem:[#allocation2 + $0x110] sm:$0xff]
      %v3694 = vld [vmem:[#allocation2 + $0x118] sm:$0xff]
      %v3695 = vld [vmem:[%s2] sm:$0x1]
      %v3697 = vperm.slane %v3695, 0
      %v3699 = vadd.f32 %v3659, %v3697
      %v3700 = vadd.f32 %v3660, %v3697
      %v3701 = vadd.f32 %v3661, %v3697
      %v3702 = vadd.f32 %v3662, %v3697
      %v3703 = vadd.f32 %v3663, %v3697
      %v3704 = vadd.f32 %v3664, %v3697
      %v3705 = vadd.f32 %v3665, %v3697
      %v3706 = vadd.f32 %v3666, %v3697
      %v3707 = vadd.f32 %v3667, %v3697
      %v3708 = vadd.f32 %v3668, %v3697
      %v3709 = vadd.f32 %v3669, %v3697
      %v3710 = vadd.f32 %v3670, %v3697
      %v3711 = vadd.f32 %v3671, %v3697
      %v3712 = vadd.f32 %v3672, %v3697
      %v3713 = vadd.f32 %v3673, %v3697
      %v3714 = vadd.f32 %v3674, %v3697
      %v3715 = vadd.f32 %v3675, %v3697
      %v3716 = vadd.f32 %v3676, %v3697
      %v3717 = vadd.f32 %v3677, %v3697
      %v3718 = vadd.f32 %v3678, %v3697
      %v3719 = vadd.f32 %v3679, %v3697
      %v3720 = vadd.f32 %v3680, %v3697
      %v3721 = vadd.f32 %v3681, %v3697
      %v3722 = vadd.f32 %v3682, %v3697
      %v3723 = vadd.f32 %v3683, %v3697
      %v3724 = vadd.f32 %v3684, %v3697
      %v3725 = vadd.f32 %v3685, %v3697
      %v3726 = vadd.f32 %v3686, %v3697
      %v3727 = vadd.f32 %v3687, %v3697
      %v3728 = vadd.f32 %v3688, %v3697
      %v3729 = vadd.f32 %v3689, %v3697
      %v3730 = vadd.f32 %v3690, %v3697
      %v3731 = vadd.f32 %v3691, %v3697
      %v3732 = vadd.f32 %v3692, %v3697
      %v3733 = vadd.f32 %v3693, %v3697
      %v3734 = vadd.f32 %v3694, %v3697
      %v3735 = vmax.f32 %v3699, 0.0
      %v3736 = vmax.f32 %v3700, 0.0
      %v3737 = vmax.f32 %v3701, 0.0
      %v3738 = vmax.f32 %v3702, 0.0
      %v3739 = vmax.f32 %v3703, 0.0
      %v3740 = vmax.f32 %v3704, 0.0
      %v3741 = vmax.f32 %v3705, 0.0
      %v3742 = vmax.f32 %v3706, 0.0
      %v3743 = vmax.f32 %v3707, 0.0
      %v3744 = vmax.f32 %v3708, 0.0
      %v3745 = vmax.f32 %v3709, 0.0
      %v3746 = vmax.f32 %v3710, 0.0
      %v3747 = vmax.f32 %v3711, 0.0
      %v3748 = vmax.f32 %v3712, 0.0
      %v3749 = vmax.f32 %v3713, 0.0
      %v3750 = vmax.f32 %v3714, 0.0
      %v3751 = vmax.f32 %v3715, 0.0
      %v3752 = vmax.f32 %v3716, 0.0
      %v3753 = vmax.f32 %v3717, 0.0
      %v3754 = vmax.f32 %v3718, 0.0
      %v3755 = vmax.f32 %v3719, 0.0
      %v3756 = vmax.f32 %v3720, 0.0
      %v3757 = vmax.f32 %v3721, 0.0
      %v3758 = vmax.f32 %v3722, 0.0
      %v3759 = vmax.f32 %v3723, 0.0
      %v3760 = vmax.f32 %v3724, 0.0
      %v3761 = vmax.f32 %v3725, 0.0
      %v3762 = vmax.f32 %v3726, 0.0
      %v3763 = vmax.f32 %v3727, 0.0
      %v3764 = vmax.f32 %v3728, 0.0
      %v3765 = vmax.f32 %v3729, 0.0
      %v3766 = vmax.f32 %v3730, 0.0
      %v3767 = vmax.f32 %v3731, 0.0
      %v3768 = vmax.f32 %v3732, 0.0
      %v3769 = vmax.f32 %v3733, 0.0
      %v3770 = vmax.f32 %v3734, 0.0
      %3771 = vst [vmem:[%s192] sm:$0xff] %v3735
      %3772 = vst [vmem:[%s192 + $0x8] sm:$0xff] %v3736
      %3773 = vst [vmem:[%s192 + $0x10] sm:$0xff] %v3737
      %3774 = vst [vmem:[%s192 + $0x18] sm:$0xff] %v3738
      %3775 = vst [vmem:[%s192 + $0x20] sm:$0xff] %v3739
      %3776 = vst [vmem:[%s192 + $0x28] sm:$0xff] %v3740
      %3777 = vst [vmem:[%s192 + $0x30] sm:$0xff] %v3741
      %3778 = vst [vmem:[%s192 + $0x38] sm:$0xff] %v3742
      %3779 = vst [vmem:[%s192 + $0x40] sm:$0xff] %v3743
      %3780 = vst [vmem:[%s192 + $0x48] sm:$0xff] %v3744
      %3781 = vst [vmem:[%s192 + $0x50] sm:$0xff] %v3745
      %3782 = vst [vmem:[%s192 + $0x58] sm:$0xff] %v3746
      %3783 = vst [vmem:[%s192 + $0x60] sm:$0xff] %v3747
      %3784 = vst [vmem:[%s192 + $0x68] sm:$0xff] %v3748
      %3785 = vst [vmem:[%s192 + $0x70] sm:$0xff] %v3749
      %3786 = vst [vmem:[%s192 + $0x78] sm:$0xff] %v3750
      %3787 = vst [vmem:[%s192 + $0x80] sm:$0xff] %v3751
      %3788 = vst [vmem:[%s192 + $0x88] sm:$0xff] %v3752
      %3789 = vst [vmem:[%s192 + $0x90] sm:$0xff] %v3753
      %3790 = vst [vmem:[%s192 + $0x98] sm:$0xff] %v3754
      %3791 = vst [vmem:[%s192 + $0xa0] sm:$0xff] %v3755
      %3792 = vst [vmem:[%s192 + $0xa8] sm:$0xff] %v3756
      %3793 = vst [vmem:[%s192 + $0xb0] sm:$0xff] %v3757
      %3794 = vst [vmem:[%s192 + $0xb8] sm:$0xff] %v3758
      %3795 = vst [vmem:[%s192 + $0xc0] sm:$0xff] %v3759
      %3796 = vst [vmem:[%s192 + $0xc8] sm:$0xff] %v3760
      %3797 = vst [vmem:[%s192 + $0xd0] sm:$0xff] %v3761
      %3798 = vst [vmem:[%s192 + $0xd8] sm:$0xff] %v3762
      %3799 = vst [vmem:[%s192 + $0xe0] sm:$0xff] %v3763
      %3800 = vst [vmem:[%s192 + $0xe8] sm:$0xff] %v3764
      %3801 = vst [vmem:[%s192 + $0xf0] sm:$0xff] %v3765
      %3802 = vst [vmem:[%s192 + $0xf8] sm:$0xff] %v3766
      %3803 = vst [vmem:[%s192 + $0x100] sm:$0xff] %v3767
      %3804 = vst [vmem:[%s192 + $0x108] sm:$0xff] %v3768
      %3805 = vst [vmem:[%s192 + $0x110] sm:$0xff] %v3769
      %3806 = vst [vmem:[%s192 + $0x118] sm:$0xff] %v3770
      %s3807 = smul.u32 36, %s19
      %p3808 = scmp.lt.s32.totalorder %s18, 1
      %s3809 = scalar_select %p3808, %s18, 1
      %p3810 = scmp.lt.s32.totalorder %s3807, 35
      %s3811 = scalar_select %p3810, %s3807, 35
      %s3812 = smul.addr %s3809, 36
      %s3813 = sadd.s32 %s3811, %s3812
      %s3814 = smul.addr %s3813, 8
      %s3815 = scalar_lea.vmem %s3, %s3814
      // Predicated region
      $region33: #{analysis_prior_net.3} parent=31 // pred_check
        %p3816 = pneg %p114
      $region34: #{analysis_prior_net.3} parent=31 // pred_check_branch
        %3818 = sbr.rel (%p3816) target = $region36
      $region35: #{analysis_prior_net.3} parent=31 // pred_region
        %s3819 = smul.u32 36, %s19
      $region36: #{analysis_prior_net.3} parent=31 // pred_fallthru
        _
    $region32: #{analysis_prior_net.3} parent=5 // pred_fallthru
      _
    %p3820 = scmp.le.s32.totalorder 2, %s9
    // Predicated region
    $region37: #{analysis_prior_net.3} parent=5 // pred_check
      %p3821 = pneg %p3820
    $region38: #{analysis_prior_net.3} parent=5 // pred_check_branch
      %3823 = sbr.rel (%p3821) target = $region40
    $region39: #{analysis_prior_net.3} parent=5 // pred_region
      %s3824 = ssub.s32 %s9, 2
      // Predicated region
      $region41: #{analysis_prior_net.3} parent=39 // pred_check
        %p3825 = pneg %p120
      $region42: #{analysis_prior_net.3} parent=39 // pred_check_branch
        %3827 = sbr.rel (%p3825) target = $region44
      $region43: #{analysis_prior_net.3} parent=39 // pred_region
        %s3828 = smul.u32 36, %s21
        %p3829 = scmp.lt.s32.totalorder %s20, 1
        %s3830 = scalar_select %p3829, %s20, 1
        %p3831 = scmp.lt.s32.totalorder %s3828, 35
        %s3832 = scalar_select %p3831, %s3828, 35
        %s3833 = smul.addr %s3830, 36
        %s3834 = sadd.s32 %s3832, %s3833
        %s3835 = smul.addr %s3834, 8
        %s3836 = scalar_lea.vmem %s3, %s3835
      $region44: #{analysis_prior_net.3} parent=39 // pred_fallthru
        _
    $region40: #{analysis_prior_net.3} parent=5 // pred_fallthru
      _
  $region6: #{analysis_prior_net.3} parent=0 // loop_footer
    %s13 = sadd.s32 1, %s9
  $region7: #{analysis_prior_net.3} parent=0 // loop_footer_branch
    %8 = sbr.rel target = $region3
  $region8: #{analysis_prior_net.3} parent=0 // loop_exit
    _

// kernel: analysis_prior_net.5
$region0: #{analysis_prior_net.5}
  #allocation0 [shape = 'u32[]', space=smem, size = 0x4, offset = 0x4, fixed_abs, tag = 'smem constant byte address 0x4 - core index']
  #allocation1 [shape = 'u32[72,128]{1,0:T(1,128)}', space=vmem, size = 0x9000, scoped, tag = 'internal scratch']
  #allocation2 [shape = 'f32[24,128]{1,0:T(8,128)}', space=vmem, size = 0x3000, scoped, tag = 'scratch operand']
  %s0 = inlined_call_operand.vmem [shape: f32[2,4,40,128], index: 0, kind: input, shape index: {}]
  %s1 = inlined_call_operand.vmem [shape: f32[25,128,128], index: 1, kind: input, shape index: {}]
  %s2 = inlined_call_operand.vmem [shape: f32[1,128], index: 2, kind: input, shape index: {}]
  %s3 = inlined_call_operand.vmem [shape: f32[2,24,128], index: 3, kind: output, shape index: {}]
  %s4 = sld [smem:[#allocation0]]
  $region45: #{analysis_prior_net.5} parent=0
    _
  %s6 = ssub.s32 1, %s4
  %s7 = scalar_select 0, %s6, %s4
  loop: start=0, step=1, limit=4
  $region2: #{analysis_prior_net.5} parent=0 // loop_pre_header
    _
  $region3: #{analysis_prior_net.5} parent=0 // loop_header
    %s9 = sphi 0, %s13
    %p10 = scmp.ge.s32.totalorder %s9, 4
    %s16 = sphi 0, %s28
    %s17 = sphi 0, %s24
    %s18 = sphi 0, %s16
    %s19 = sphi 0, %s17
    %s20 = sphi 0, %s18
    %s21 = sphi 0, %s19
    %s31 = sphi 0, %s33
    %s34 = sphi 0, %s31
    %s35 = sphi 0, %s34
    %s51 = sphi 0, %s35
    %s55 = sphi 0, %s55
    %s57 = sphi 0, %s55
    %s58 = sphi 0, %s57
    %s72 = sphi 0, %s58
    %s76 = sphi 0, %s76
    %s78 = sphi 0, %s76
    %s79 = sphi 0, %s78
    %s93 = sphi 0, %s79
    %s101 = sphi 0, %s103
    %s104 = sphi 0, %s101
    %s105 = sphi 0, %s104
    %s121 = sphi 0, %s105
  $region4: #{analysis_prior_net.5} parent=0 // loop_header_branch
    %12 = sbr.rel (%p10) target = $region8
  $region5: #{analysis_prior_net.5} parent=0 // loop_body
    %s14 = ssub.s32 %s9, 1
    %s15 = ssub.s32 %s9, 2
    %s22 = sadd.s32 1, %s17
    %p23 = scmp.ge.s32.totalorder %s22, 1
    %s24 = scalar_select %p23, 0, %s22
    %s25 = sadd.s32 1, %s16
    %s26 = scalar_select %p23, %s25, %s16
    %p27 = scmp.ge.s32.totalorder %s26, 2
    %s28 = scalar_select %p27, 0, %s26
    %s29 = ssub.s32 %s16, %s28
    %p30 = scmp.eq.s32.totalorder %s29, 0
    %s32 = sadd.s32 %s31, 1
    %s33 = scalar_select %p30, %s31, %s32
    %p36 = pneg %p30
    %p37 = scmp.eq.s32.totalorder %s9, 1
    %p38 = por %p36, %p37
    %p39 = scmp.ne.s32.totalorder %s31, %s34
    %p40 = scmp.eq.s32.totalorder %s9, 0
    %p41 = por %p39, %p40
    %p42 = scmp.ne.s32.totalorder %s31, %s34
    %p43 = scmp.eq.s32.totalorder %s14, 1
    %p44 = por %p42, %p43
    %p45 = scmp.ne.s32.totalorder %s34, %s35
    %p46 = scmp.eq.s32.totalorder %s14, 0
    %p47 = por %p45, %p46
    %p48 = scmp.ne.s32.totalorder %s34, %s35
    %p49 = scmp.eq.s32.totalorder %s15, 1
    %p50 = por %p48, %p49
    %p52 = scmp.ne.s32.totalorder %s35, %s51
    %p53 = scmp.eq.s32.totalorder %s15, 0
    %p54 = por %p52, %p53
    %s56 = sadd.s32 %s55, 1
    %p59 = scmp.eq.s32.totalorder %s9, 1
    %p60 = scmp.ne.s32.totalorder %s55, %s57
    %p61 = scmp.eq.s32.totalorder %s9, 0
    %p62 = por %p60, %p61
    %p63 = scmp.ne.s32.totalorder %s55, %s57
    %p64 = scmp.eq.s32.totalorder %s14, 1
    %p65 = por %p63, %p64
    %p66 = scmp.ne.s32.totalorder %s57, %s58
    %p67 = scmp.eq.s32.totalorder %s14, 0
    %p68 = por %p66, %p67
    %p69 = scmp.ne.s32.totalorder %s57, %s58
    %p70 = scmp.eq.s32.totalorder %s15, 1
    %p71 = por %p69, %p70
    %p73 = scmp.ne.s32.totalorder %s58, %s72
    %p74 = scmp.eq.s32.totalorder %s15, 0
    %p75 = por %p73, %p74
    %s77 = sadd.s32 %s76, 1
    %p80 = scmp.eq.s32.totalorder %s9, 1
    %p81 = scmp.ne.s32.totalorder %s76, %s78
    %p82 = scmp.eq.s32.totalorder %s9, 0
    %p83 = por %p81, %p82
    %p84 = scmp.ne.s32.totalorder %s76, %s78
    %p85 = scmp.eq.s32.totalorder %s14, 1
    %p86 = por %p84, %p85
    %p87 = scmp.ne.s32.totalorder %s78, %s79
    %p88 = scmp.eq.s32.totalorder %s14, 0
    %p89 = por %p87, %p88
    %p90 = scmp.ne.s32.totalorder %s78, %s79
    %p91 = scmp.eq.s32.totalorder %s15, 1
    %p92 = por %p90, %p91
    %p94 = scmp.ne.s32.totalorder %s79, %s93
    %p95 = scmp.eq.s32.totalorder %s15, 0
    %p96 = por %p94, %p95
    %s97 = ssub.s32 %s16, %s28
    %s98 = ssub.s32 %s17, %s24
    %s99 = sor.u32 %s97, %s98
    %p100 = scmp.eq.s32.totalorder %s99, 0
    %s102 = sadd.s32 %s101, 1
    %s103 = scalar_select %p100, %s101, %s102
    %p106 = pneg %p100
    %p107 = scmp.eq.s32.totalorder %s9, 1
    %p108 = por %p106, %p107
    %p109 = scmp.ne.s32.totalorder %s101, %s104
    %p110 = scmp.eq.s32.totalorder %s9, 0
    %p111 = por %p109, %p110
    %p112 = scmp.ne.s32.totalorder %s101, %s104
    %p113 = scmp.eq.s32.totalorder %s14, 1
    %p114 = por %p112, %p113
    %p115 = scmp.ne.s32.totalorder %s104, %s105
    %p116 = scmp.eq.s32.totalorder %s14, 0
    %p117 = por %p115, %p116
    %p118 = scmp.ne.s32.totalorder %s104, %s105
    %p119 = scmp.eq.s32.totalorder %s15, 1
    %p120 = por %p118, %p119
    %p122 = scmp.ne.s32.totalorder %s105, %s121
    %p123 = scmp.eq.s32.totalorder %s15, 0
    %p124 = por %p122, %p123
    %p125 = scmp.le.s32.totalorder 1, %s9
    %p126 = scmp.lt.s32.totalorder %s9, 3
    %p127 = pnand %p125, %p126
    %p128 = pneg %p127
    // Predicated region
    $region9: #{analysis_prior_net.5} parent=5 // pred_check
      _
    $region10: #{analysis_prior_net.5} parent=5 // pred_check_branch
      %130 = sbr.rel (%p127) target = $region12
    $region11: #{analysis_prior_net.5} parent=5 // pred_region
      %s131 = ssub.s32 %s9, 1
      // Predicated region
      $region13: #{analysis_prior_net.5} parent=11 // pred_check
        %p132 = pneg %p68
      $region14: #{analysis_prior_net.5} parent=11 // pred_check_branch
        %134 = sbr.rel (%p132) target = $region16
      $region15: #{analysis_prior_net.5} parent=11 // pred_region
        _
      $region16: #{analysis_prior_net.5} parent=11 // pred_fallthru
        _
      // Predicated region
      $region17: #{analysis_prior_net.5} parent=11 // pred_check
        %p135 = pneg %p89
      $region18: #{analysis_prior_net.5} parent=11 // pred_check_branch
        %137 = sbr.rel (%p135) target = $region20
      $region19: #{analysis_prior_net.5} parent=11 // pred_region
        _
      $region20: #{analysis_prior_net.5} parent=11 // pred_fallthru
        _
    $region12: #{analysis_prior_net.5} parent=5 // pred_fallthru
      _
    %p138 = scmp.lt.s32.totalorder %s9, 2
    // Predicated region
    $region21: #{analysis_prior_net.5} parent=5 // pred_check
      %p139 = pneg %p138
    $region22: #{analysis_prior_net.5} parent=5 // pred_check_branch
      %141 = sbr.rel (%p139) target = $region24
    $region23: #{analysis_prior_net.5} parent=5 // pred_region
      // Predicated region
      $region25: #{analysis_prior_net.5} parent=23 // pred_check
        %p142 = pneg %p41
      $region26: #{analysis_prior_net.5} parent=23 // pred_check_branch
        %144 = sbr.rel (%p142) target = $region28
      $region27: #{analysis_prior_net.5} parent=23 // pred_region
        %p145 = scmp.lt.s32.totalorder %s16, 1
        %s146 = scalar_select %p145, %s16, 1
        %s147 = smul.addr %s146, 20
        %s148 = smul.addr %s147, 8
        %s149 = scalar_lea.vmem %s0, %s148
      $region28: #{analysis_prior_net.5} parent=23 // pred_fallthru
        _
    $region24: #{analysis_prior_net.5} parent=5 // pred_fallthru
      _
    %p150 = scmp.le.s32.totalorder 1, %s9
    %p151 = scmp.lt.s32.totalorder %s9, 3
    %p152 = pnand %p150, %p151
    %p153 = pneg %p152
    // Predicated region
    $region29: #{analysis_prior_net.5} parent=5 // pred_check
      _
    $region30: #{analysis_prior_net.5} parent=5 // pred_check_branch
      %155 = sbr.rel (%p152) target = $region32
    $region31: #{analysis_prior_net.5} parent=5 // pred_region
      %s156 = ssub.s32 %s9, 1
      %p157 = scmp.lt.s32.totalorder %s18, 1
      %s158 = scalar_select %p157, %s18, 1
      %s159 = smul.addr %s158, 20
      %s160 = smul.addr %s159, 8
      %s161 = scalar_lea.vmem %s0, %s160
      %p162 = pneg %p47
      %p163 = pneg %p44
      %p164 = pneg %p68
      %p165 = pneg %p65
      %p166 = pneg %p89
      %p167 = pneg %p86
      %p168 = pneg %p117
      %p169 = pneg %p114
      %s170 = smul.u32 3, %s19
      %p171 = scmp.lt.s32.totalorder %s18, 1
      %s172 = scalar_select %p171, %s18, 1
      %p173 = scmp.lt.s32.totalorder %s170, 2
      %s174 = scalar_select %p173, %s170, 2
      %s175 = smul.addr %s172, 3
      %s176 = sadd.s32 %s174, %s175
      %s177 = smul.addr %s176, 8
      %s178 = scalar_lea.vmem %s3, %s177
      %p179 = scmp.lt.s32.totalorder %s18, 1
      %s180 = scalar_select %p179, %s18, 1
      %s181 = smul.addr %s180, 20
      %s182 = smul.addr %s181, 8
      %s183 = scalar_lea.vmem %s0, %s182
      %s184 = smul.u32 3, %s19
      %p185 = scmp.lt.s32.totalorder %s18, 1
      %s186 = scalar_select %p185, %s18, 1
      %p187 = scmp.lt.s32.totalorder %s184, 2
      %s188 = scalar_select %p187, %s184, 2
      %s189 = smul.addr %s186, 3
      %s190 = sadd.s32 %s188, %s189
      %s191 = smul.addr %s190, 8
      %s192 = scalar_lea.vmem %s3, %s191
      %s193 = smul.u32 3, %s19
      %s194 = smul.u32 %s19, 24
      %195 = vst [vmem:[#allocation2] sm:$0xff] 0.0
      %196 = vst [vmem:[#allocation2 + $0x8] sm:$0xff] 0.0
      %197 = vst [vmem:[#allocation2 + $0x10] sm:$0xff] 0.0
      %s198 = scalar_lea.vmem %s183, %s194
      %v199 = vld [vmem:[%s198] sm:$0xff]
      %v200 = vld [vmem:[%s198 + $0x8] sm:$0xff]
      %v201 = vld [vmem:[%s198 + $0x10] sm:$0xff]
      %v202 = vld [vmem:[#allocation2] sm:$0xff]
      %v203 = vld [vmem:[#allocation2 + $0x8] sm:$0xff]
      %v204 = vld [vmem:[#allocation2 + $0x10] sm:$0xff]
      %v205 = vld [vmem:[%s1] sm:$0xff]
      %v206 = vld [vmem:[%s1 + $0x8] sm:$0xff]
      %v207 = vld [vmem:[%s1 + $0x10] sm:$0xff]
      %v208 = vld [vmem:[%s1 + $0x18] sm:$0xff]
      %v209 = vld [vmem:[%s1 + $0x20] sm:$0xff]
      %v210 = vld [vmem:[%s1 + $0x28] sm:$0xff]
      %v211 = vld [vmem:[%s1 + $0x30] sm:$0xff]
      %v212 = vld [vmem:[%s1 + $0x38] sm:$0xff]
      %v213 = vld [vmem:[%s1 + $0x40] sm:$0xff]
      %v214 = vld [vmem:[%s1 + $0x48] sm:$0xff]
      %v215 = vld [vmem:[%s1 + $0x50] sm:$0xff]
      %v216 = vld [vmem:[%s1 + $0x58] sm:$0xff]
      %v217 = vld [vmem:[%s1 + $0x60] sm:$0xff]
      %v218 = vld [vmem:[%s1 + $0x68] sm:$0xff]
      %v219 = vld [vmem:[%s1 + $0x70] sm:$0xff]
      %v220 = vld [vmem:[%s1 + $0x78] sm:$0xff]
      %221 = vmatpush.msra.mxu0 %v220
      %222 = vmatpush.msra.mxu0 %v219
      %223 = vmatpush.msra.mxu0 %v218
      %224 = vmatpush.msra.mxu0 %v217
      %225 = vmatpush.msra.mxu0 %v216
      %226 = vmatpush.msra.mxu0 %v215
      %227 = vmatpush.msra.mxu0 %v214
      %228 = vmatpush.msra.mxu0 %v213
      %229 = vmatpush.msra.mxu0 %v212
      %230 = vmatpush.msra.mxu0 %v211
      %231 = vmatpush.msra.mxu0 %v210
      %232 = vmatpush.msra.mxu0 %v209
      %233 = vmatpush.msra.mxu0 %v208
      %234 = vmatpush.msra.mxu0 %v207
      %235 = vmatpush.msra.mxu0 %v206
      %236 = vmatpush.msra.mxu0 %v205
      %237 = vmatmul.f32.gmra.mxu0 %v199
      %v238 = vpop.f32.mrf.mxu0
      %v239 = vadd.f32 0.0, %v238
      %240 = vmatmul.f32.gmra.mxu0 %v200
      %v241 = vpop.f32.mrf.mxu0
      %v242 = vadd.f32 0.0, %v241
      %243 = vmatmul.f32.gmra.mxu0 %v201
      %v244 = vpop.f32.mrf.mxu0
      %v245 = vadd.f32 0.0, %v244
      %246 = vdwg.mxu0
      %v247 = vadd.f32 %v202, %v239
      %v248 = vadd.f32 %v203, %v242
      %v249 = vadd.f32 %v204, %v245
      %250 = vst [vmem:[#allocation2] sm:$0xff] %v247
      %251 = vst [vmem:[#allocation2 + $0x8] sm:$0xff] %v248
      %252 = vst [vmem:[#allocation2 + $0x10] sm:$0xff] %v249
      %s253 = sadd.s32 %s194, 40
      %s254 = scalar_lea.vmem %s183, %s253
      %v255 = vld [vmem:[%s254] sm:$0xff]
      %v256 = vld [vmem:[%s254 + $0x8] sm:$0xff]
      %v257 = vld [vmem:[%s254 + $0x10] sm:$0xff]
      %v258 = vld [vmem:[#allocation2] sm:$0xff]
      %v259 = vld [vmem:[#allocation2 + $0x8] sm:$0xff]
      %v260 = vld [vmem:[#allocation2 + $0x10] sm:$0xff]
      %s261 = scalar_lea.vmem %s1, 128
      %v262 = vld [vmem:[%s261] sm:$0xff]
      %v263 = vld [vmem:[%s261 + $0x8] sm:$0xff]
      %v264 = vld [vmem:[%s261 + $0x10] sm:$0xff]
      %v265 = vld [vmem:[%s261 + $0x18] sm:$0xff]
      %v266 = vld [vmem:[%s261 + $0x20] sm:$0xff]
      %v267 = vld [vmem:[%s261 + $0x28] sm:$0xff]
      %v268 = vld [vmem:[%s261 + $0x30] sm:$0xff]
      %v269 = vld [vmem:[%s261 + $0x38] sm:$0xff]
      %v270 = vld [vmem:[%s261 + $0x40] sm:$0xff]
      %v271 = vld [vmem:[%s261 + $0x48] sm:$0xff]
      %v272 = vld [vmem:[%s261 + $0x50] sm:$0xff]
      %v273 = vld [vmem:[%s261 + $0x58] sm:$0xff]
      %v274 = vld [vmem:[%s261 + $0x60] sm:$0xff]
      %v275 = vld [vmem:[%s261 + $0x68] sm:$0xff]
      %v276 = vld [vmem:[%s261 + $0x70] sm:$0xff]
      %v277 = vld [vmem:[%s261 + $0x78] sm:$0xff]
      %278 = vmatpush.msra.mxu0 %v277
      %279 = vmatpush.msra.mxu0 %v276
      %280 = vmatpush.msra.mxu0 %v275
      %281 = vmatpush.msra.mxu0 %v274
      %282 = vmatpush.msra.mxu0 %v273
      %283 = vmatpush.msra.mxu0 %v272
      %284 = vmatpush.msra.mxu0 %v271
      %285 = vmatpush.msra.mxu0 %v270
      %286 = vmatpush.msra.mxu0 %v269
      %287 = vmatpush.msra.mxu0 %v268
      %288 = vmatpush.msra.mxu0 %v267
      %289 = vmatpush.msra.mxu0 %v266
      %290 = vmatpush.msra.mxu0 %v265
      %291 = vmatpush.msra.mxu0 %v264
      %292 = vmatpush.msra.mxu0 %v263
      %293 = vmatpush.msra.mxu0 %v262
      %294 = vmatmul.f32.gmra.mxu0 %v255
      %v295 = vpop.f32.mrf.mxu0
      %v296 = vadd.f32 0.0, %v295
      %297 = vmatmul.f32.gmra.mxu0 %v256
      %v298 = vpop.f32.mrf.mxu0
      %v299 = vadd.f32 0.0, %v298
      %300 = vmatmul.f32.gmra.mxu0 %v257
      %v301 = vpop.f32.mrf.mxu0
      %v302 = vadd.f32 0.0, %v301
      %303 = vdwg.mxu0
      %v304 = vadd.f32 %v258, %v296
      %v305 = vadd.f32 %v259, %v299
      %v306 = vadd.f32 %v260, %v302
      %307 = vst [vmem:[#allocation2] sm:$0xff] %v304
      %308 = vst [vmem:[#allocation2 + $0x8] sm:$0xff] %v305
      %309 = vst [vmem:[#allocation2 + $0x10] sm:$0xff] %v306
      %s310 = sadd.s32 %s194, 1
      %s311 = scalar_lea.vmem %s183, %s310
      %v312 = vld [vmem:[%s311] sm:$0xff]
      %v313 = vld [vmem:[%s311 + $0x8] sm:$0xff]
      %v314 = vld [vmem:[%s311 + $0x10] sm:$0xff]
      %v315 = vld [vmem:[#allocation2] sm:$0xff]
      %v316 = vld [vmem:[#allocation2 + $0x8] sm:$0xff]
      %v317 = vld [vmem:[#allocation2 + $0x10] sm:$0xff]
      %s318 = scalar_lea.vmem %s1, 256
      %v319 = vld [vmem:[%s318] sm:$0xff]
      %v320 = vld [vmem:[%s318 + $0x8] sm:$0xff]
      %v321 = vld [vmem:[%s318 + $0x10] sm:$0xff]
      %v322 = vld [vmem:[%s318 + $0x18] sm:$0xff]
      %v323 = vld [vmem:[%s318 + $0x20] sm:$0xff]
      %v324 = vld [vmem:[%s318 + $0x28] sm:$0xff]
      %v325 = vld [vmem:[%s318 + $0x30] sm:$0xff]
      %v326 = vld [vmem:[%s318 + $0x38] sm:$0xff]
      %v327 = vld [vmem:[%s318 + $0x40] sm:$0xff]
      %v328 = vld [vmem:[%s318 + $0x48] sm:$0xff]
      %v329 = vld [vmem:[%s318 + $0x50] sm:$0xff]
      %v330 = vld [vmem:[%s318 + $0x58] sm:$0xff]
      %v331 = vld [vmem:[%s318 + $0x60] sm:$0xff]
      %v332 = vld [vmem:[%s318 + $0x68] sm:$0xff]
      %v333 = vld [vmem:[%s318 + $0x70] sm:$0xff]
      %v334 = vld [vmem:[%s318 + $0x78] sm:$0xff]
      %335 = vmatpush.msra.mxu0 %v334
      %336 = vmatpush.msra.mxu0 %v333
      %337 = vmatpush.msra.mxu0 %v332
      %338 = vmatpush.msra.mxu0 %v331
      %339 = vmatpush.msra.mxu0 %v330
      %340 = vmatpush.msra.mxu0 %v329
      %341 = vmatpush.msra.mxu0 %v328
      %342 = vmatpush.msra.mxu0 %v327
      %343 = vmatpush.msra.mxu0 %v326
      %344 = vmatpush.msra.mxu0 %v325
      %345 = vmatpush.msra.mxu0 %v324
      %346 = vmatpush.msra.mxu0 %v323
      %347 = vmatpush.msra.mxu0 %v322
      %348 = vmatpush.msra.mxu0 %v321
      %349 = vmatpush.msra.mxu0 %v320
      %350 = vmatpush.msra.mxu0 %v319
      %351 = vmatmul.f32.gmra.mxu0 %v312
      %v352 = vpop.f32.mrf.mxu0
      %v353 = vadd.f32 0.0, %v352
      %354 = vmatmul.f32.gmra.mxu0 %v313
      %v355 = vpop.f32.mrf.mxu0
      %v356 = vadd.f32 0.0, %v355
      %357 = vmatmul.f32.gmra.mxu0 %v314
      %v358 = vpop.f32.mrf.mxu0
      %v359 = vadd.f32 0.0, %v358
      %360 = vdwg.mxu0
      %v361 = vadd.f32 %v315, %v353
      %v362 = vadd.f32 %v316, %v356
      %v363 = vadd.f32 %v317, %v359
      %364 = vst [vmem:[#allocation2] sm:$0xff] %v361
      %365 = vst [vmem:[#allocation2 + $0x8] sm:$0xff] %v362
      %366 = vst [vmem:[#allocation2 + $0x10] sm:$0xff] %v363
      %s367 = sadd.s32 %s310, 40
      %s368 = scalar_lea.vmem %s183, %s367
      %v369 = vld [vmem:[%s368] sm:$0xff]
      %v370 = vld [vmem:[%s368 + $0x8] sm:$0xff]
      %v371 = vld [vmem:[%s368 + $0x10] sm:$0xff]
      %v372 = vld [vmem:[#allocation2] sm:$0xff]
      %v373 = vld [vmem:[#allocation2 + $0x8] sm:$0xff]
      %v374 = vld [vmem:[#allocation2 + $0x10] sm:$0xff]
      %s375 = scalar_lea.vmem %s1, 384
      %v376 = vld [vmem:[%s375] sm:$0xff]
      %v377 = vld [vmem:[%s375 + $0x8] sm:$0xff]
      %v378 = vld [vmem:[%s375 + $0x10] sm:$0xff]
      %v379 = vld [vmem:[%s375 + $0x18] sm:$0xff]
      %v380 = vld [vmem:[%s375 + $0x20] sm:$0xff]
      %v381 = vld [vmem:[%s375 + $0x28] sm:$0xff]
      %v382 = vld [vmem:[%s375 + $0x30] sm:$0xff]
      %v383 = vld [vmem:[%s375 + $0x38] sm:$0xff]
      %v384 = vld [vmem:[%s375 + $0x40] sm:$0xff]
      %v385 = vld [vmem:[%s375 + $0x48] sm:$0xff]
      %v386 = vld [vmem:[%s375 + $0x50] sm:$0xff]
      %v387 = vld [vmem:[%s375 + $0x58] sm:$0xff]
      %v388 = vld [vmem:[%s375 + $0x60] sm:$0xff]
      %v389 = vld [vmem:[%s375 + $0x68] sm:$0xff]
      %v390 = vld [vmem:[%s375 + $0x70] sm:$0xff]
      %v391 = vld [vmem:[%s375 + $0x78] sm:$0xff]
      %392 = vmatpush.msra.mxu0 %v391
      %393 = vmatpush.msra.mxu0 %v390
      %394 = vmatpush.msra.mxu0 %v389
      %395 = vmatpush.msra.mxu0 %v388
      %396 = vmatpush.msra.mxu0 %v387
      %397 = vmatpush.msra.mxu0 %v386
      %398 = vmatpush.msra.mxu0 %v385
      %399 = vmatpush.msra.mxu0 %v384
      %400 = vmatpush.msra.mxu0 %v383
      %401 = vmatpush.msra.mxu0 %v382
      %402 = vmatpush.msra.mxu0 %v381
      %403 = vmatpush.msra.mxu0 %v380
      %404 = vmatpush.msra.mxu0 %v379
      %405 = vmatpush.msra.mxu0 %v378
      %406 = vmatpush.msra.mxu0 %v377
      %407 = vmatpush.msra.mxu0 %v376
      %408 = vmatmul.f32.gmra.mxu0 %v369
      %v409 = vpop.f32.mrf.mxu0
      %v410 = vadd.f32 0.0, %v409
      %411 = vmatmul.f32.gmra.mxu0 %v370
      %v412 = vpop.f32.mrf.mxu0
      %v413 = vadd.f32 0.0, %v412
      %414 = vmatmul.f32.gmra.mxu0 %v371
      %v415 = vpop.f32.mrf.mxu0
      %v416 = vadd.f32 0.0, %v415
      %417 = vdwg.mxu0
      %v418 = vadd.f32 %v372, %v410
      %v419 = vadd.f32 %v373, %v413
      %v420 = vadd.f32 %v374, %v416
      %421 = vst [vmem:[#allocation2] sm:$0xff] %v418
      %422 = vst [vmem:[#allocation2 + $0x8] sm:$0xff] %v419
      %423 = vst [vmem:[#allocation2 + $0x10] sm:$0xff] %v420
      %s424 = sadd.s32 %s194, 2
      %s425 = scalar_lea.vmem %s183, %s424
      %v426 = vld [vmem:[%s425] sm:$0xff]
      %v427 = vld [vmem:[%s425 + $0x8] sm:$0xff]
      %v428 = vld [vmem:[%s425 + $0x10] sm:$0xff]
      %v429 = vld [vmem:[#allocation2] sm:$0xff]
      %v430 = vld [vmem:[#allocation2 + $0x8] sm:$0xff]
      %v431 = vld [vmem:[#allocation2 + $0x10] sm:$0xff]
      %s432 = scalar_lea.vmem %s1, 512
      %v433 = vld [vmem:[%s432] sm:$0xff]
      %v434 = vld [vmem:[%s432 + $0x8] sm:$0xff]
      %v435 = vld [vmem:[%s432 + $0x10] sm:$0xff]
      %v436 = vld [vmem:[%s432 + $0x18] sm:$0xff]
      %v437 = vld [vmem:[%s432 + $0x20] sm:$0xff]
      %v438 = vld [vmem:[%s432 + $0x28] sm:$0xff]
      %v439 = vld [vmem:[%s432 + $0x30] sm:$0xff]
      %v440 = vld [vmem:[%s432 + $0x38] sm:$0xff]
      %v441 = vld [vmem:[%s432 + $0x40] sm:$0xff]
      %v442 = vld [vmem:[%s432 + $0x48] sm:$0xff]
      %v443 = vld [vmem:[%s432 + $0x50] sm:$0xff]
      %v444 = vld [vmem:[%s432 + $0x58] sm:$0xff]
      %v445 = vld [vmem:[%s432 + $0x60] sm:$0xff]
      %v446 = vld [vmem:[%s432 + $0x68] sm:$0xff]
      %v447 = vld [vmem:[%s432 + $0x70] sm:$0xff]
      %v448 = vld [vmem:[%s432 + $0x78] sm:$0xff]
      %449 = vmatpush.msra.mxu0 %v448
      %450 = vmatpush.msra.mxu0 %v447
      %451 = vmatpush.msra.mxu0 %v446
      %452 = vmatpush.msra.mxu0 %v445
      %453 = vmatpush.msra.mxu0 %v444
      %454 = vmatpush.msra.mxu0 %v443
      %455 = vmatpush.msra.mxu0 %v442
      %456 = vmatpush.msra.mxu0 %v441
      %457 = vmatpush.msra.mxu0 %v440
      %458 = vmatpush.msra.mxu0 %v439
      %459 = vmatpush.msra.mxu0 %v438
      %460 = vmatpush.msra.mxu0 %v437
      %461 = vmatpush.msra.mxu0 %v436
      %462 = vmatpush.msra.mxu0 %v435
      %463 = vmatpush.msra.mxu0 %v434
      %464 = vmatpush.msra.mxu0 %v433
      %465 = vmatmul.f32.gmra.mxu0 %v426
      %v466 = vpop.f32.mrf.mxu0
      %v467 = vadd.f32 0.0, %v466
      %468 = vmatmul.f32.gmra.mxu0 %v427
      %v469 = vpop.f32.mrf.mxu0
      %v470 = vadd.f32 0.0, %v469
      %471 = vmatmul.f32.gmra.mxu0 %v428
      %v472 = vpop.f32.mrf.mxu0
      %v473 = vadd.f32 0.0, %v472
      %474 = vdwg.mxu0
      %v475 = vadd.f32 %v429, %v467
      %v476 = vadd.f32 %v430, %v470
      %v477 = vadd.f32 %v431, %v473
      %478 = vst [vmem:[#allocation2] sm:$0xff] %v475
      %479 = vst [vmem:[#allocation2 + $0x8] sm:$0xff] %v476
      %480 = vst [vmem:[#allocation2 + $0x10] sm:$0xff] %v477
      %s481 = sadd.s32 %s194, 80
      %s482 = scalar_lea.vmem %s183, %s481
      %v483 = vld [vmem:[%s482] sm:$0xff]
      %v484 = vld [vmem:[%s482 + $0x8] sm:$0xff]
      %v485 = vld [vmem:[%s482 + $0x10] sm:$0xff]
      %v486 = vld [vmem:[#allocation2] sm:$0xff]
      %v487 = vld [vmem:[#allocation2 + $0x8] sm:$0xff]
      %v488 = vld [vmem:[#allocation2 + $0x10] sm:$0xff]
      %s489 = scalar_lea.vmem %s1, 640
      %v490 = vld [vmem:[%s489] sm:$0xff]
      %v491 = vld [vmem:[%s489 + $0x8] sm:$0xff]
      %v492 = vld [vmem:[%s489 + $0x10] sm:$0xff]
      %v493 = vld [vmem:[%s489 + $0x18] sm:$0xff]
      %v494 = vld [vmem:[%s489 + $0x20] sm:$0xff]
      %v495 = vld [vmem:[%s489 + $0x28] sm:$0xff]
      %v496 = vld [vmem:[%s489 + $0x30] sm:$0xff]
      %v497 = vld [vmem:[%s489 + $0x38] sm:$0xff]
      %v498 = vld [vmem:[%s489 + $0x40] sm:$0xff]
      %v499 = vld [vmem:[%s489 + $0x48] sm:$0xff]
      %v500 = vld [vmem:[%s489 + $0x50] sm:$0xff]
      %v501 = vld [vmem:[%s489 + $0x58] sm:$0xff]
      %v502 = vld [vmem:[%s489 + $0x60] sm:$0xff]
      %v503 = vld [vmem:[%s489 + $0x68] sm:$0xff]
      %v504 = vld [vmem:[%s489 + $0x70] sm:$0xff]
      %v505 = vld [vmem:[%s489 + $0x78] sm:$0xff]
      %506 = vmatpush.msra.mxu0 %v505
      %507 = vmatpush.msra.mxu0 %v504
      %508 = vmatpush.msra.mxu0 %v503
      %509 = vmatpush.msra.mxu0 %v502
      %510 = vmatpush.msra.mxu0 %v501
      %511 = vmatpush.msra.mxu0 %v500
      %512 = vmatpush.msra.mxu0 %v499
      %513 = vmatpush.msra.mxu0 %v498
      %514 = vmatpush.msra.mxu0 %v497
      %515 = vmatpush.msra.mxu0 %v496
      %516 = vmatpush.msra.mxu0 %v495
      %517 = vmatpush.msra.mxu0 %v494
      %518 = vmatpush.msra.mxu0 %v493
      %519 = vmatpush.msra.mxu0 %v492
      %520 = vmatpush.msra.mxu0 %v491
      %521 = vmatpush.msra.mxu0 %v490
      %522 = vmatmul.f32.gmra.mxu0 %v483
      %v523 = vpop.f32.mrf.mxu0
      %v524 = vadd.f32 0.0, %v523
      %525 = vmatmul.f32.gmra.mxu0 %v484
      %v526 = vpop.f32.mrf.mxu0
      %v527 = vadd.f32 0.0, %v526
      %528 = vmatmul.f32.gmra.mxu0 %v485
      %v529 = vpop.f32.mrf.mxu0
      %v530 = vadd.f32 0.0, %v529
      %531 = vdwg.mxu0
      %v532 = vadd.f32 %v486, %v524
      %v533 = vadd.f32 %v487, %v527
      %v534 = vadd.f32 %v488, %v530
      %535 = vst [vmem:[#allocation2] sm:$0xff] %v532
      %536 = vst [vmem:[#allocation2 + $0x8] sm:$0xff] %v533
      %537 = vst [vmem:[#allocation2 + $0x10] sm:$0xff] %v534
      %s538 = sadd.s32 %s194, 120
      %s539 = scalar_lea.vmem %s183, %s538
      %v540 = vld [vmem:[%s539] sm:$0xff]
      %v541 = vld [vmem:[%s539 + $0x8] sm:$0xff]
      %v542 = vld [vmem:[%s539 + $0x10] sm:$0xff]
      %v543 = vld [vmem:[#allocation2] sm:$0xff]
      %v544 = vld [vmem:[#allocation2 + $0x8] sm:$0xff]
      %v545 = vld [vmem:[#allocation2 + $0x10] sm:$0xff]
      %s546 = scalar_lea.vmem %s1, 768
      %v547 = vld [vmem:[%s546] sm:$0xff]
      %v548 = vld [vmem:[%s546 + $0x8] sm:$0xff]
      %v549 = vld [vmem:[%s546 + $0x10] sm:$0xff]
      %v550 = vld [vmem:[%s546 + $0x18] sm:$0xff]
      %v551 = vld [vmem:[%s546 + $0x20] sm:$0xff]
      %v552 = vld [vmem:[%s546 + $0x28] sm:$0xff]
      %v553 = vld [vmem:[%s546 + $0x30] sm:$0xff]
      %v554 = vld [vmem:[%s546 + $0x38] sm:$0xff]
      %v555 = vld [vmem:[%s546 + $0x40] sm:$0xff]
      %v556 = vld [vmem:[%s546 + $0x48] sm:$0xff]
      %v557 = vld [vmem:[%s546 + $0x50] sm:$0xff]
      %v558 = vld [vmem:[%s546 + $0x58] sm:$0xff]
      %v559 = vld [vmem:[%s546 + $0x60] sm:$0xff]
      %v560 = vld [vmem:[%s546 + $0x68] sm:$0xff]
      %v561 = vld [vmem:[%s546 + $0x70] sm:$0xff]
      %v562 = vld [vmem:[%s546 + $0x78] sm:$0xff]
      %563 = vmatpush.msra.mxu0 %v562
      %564 = vmatpush.msra.mxu0 %v561
      %565 = vmatpush.msra.mxu0 %v560
      %566 = vmatpush.msra.mxu0 %v559
      %567 = vmatpush.msra.mxu0 %v558
      %568 = vmatpush.msra.mxu0 %v557
      %569 = vmatpush.msra.mxu0 %v556
      %570 = vmatpush.msra.mxu0 %v555
      %571 = vmatpush.msra.mxu0 %v554
      %572 = vmatpush.msra.mxu0 %v553
      %573 = vmatpush.msra.mxu0 %v552
      %574 = vmatpush.msra.mxu0 %v551
      %575 = vmatpush.msra.mxu0 %v550
      %576 = vmatpush.msra.mxu0 %v549
      %577 = vmatpush.msra.mxu0 %v548
      %578 = vmatpush.msra.mxu0 %v547
      %579 = vmatmul.f32.gmra.mxu0 %v540
      %v580 = vpop.f32.mrf.mxu0
      %v581 = vadd.f32 0.0, %v580
      %582 = vmatmul.f32.gmra.mxu0 %v541
      %v583 = vpop.f32.mrf.mxu0
      %v584 = vadd.f32 0.0, %v583
      %585 = vmatmul.f32.gmra.mxu0 %v542
      %v586 = vpop.f32.mrf.mxu0
      %v587 = vadd.f32 0.0, %v586
      %588 = vdwg.mxu0
      %v589 = vadd.f32 %v543, %v581
      %v590 = vadd.f32 %v544, %v584
      %v591 = vadd.f32 %v545, %v587
      %592 = vst [vmem:[#allocation2] sm:$0xff] %v589
      %593 = vst [vmem:[#allocation2 + $0x8] sm:$0xff] %v590
      %594 = vst [vmem:[#allocation2 + $0x10] sm:$0xff] %v591
      %s595 = sadd.s32 %s310, 80
      %s596 = scalar_lea.vmem %s183, %s595
      %v597 = vld [vmem:[%s596] sm:$0xff]
      %v598 = vld [vmem:[%s596 + $0x8] sm:$0xff]
      %v599 = vld [vmem:[%s596 + $0x10] sm:$0xff]
      %v600 = vld [vmem:[#allocation2] sm:$0xff]
      %v601 = vld [vmem:[#allocation2 + $0x8] sm:$0xff]
      %v602 = vld [vmem:[#allocation2 + $0x10] sm:$0xff]
      %s603 = scalar_lea.vmem %s1, 896
      %v604 = vld [vmem:[%s603] sm:$0xff]
      %v605 = vld [vmem:[%s603 + $0x8] sm:$0xff]
      %v606 = vld [vmem:[%s603 + $0x10] sm:$0xff]
      %v607 = vld [vmem:[%s603 + $0x18] sm:$0xff]
      %v608 = vld [vmem:[%s603 + $0x20] sm:$0xff]
      %v609 = vld [vmem:[%s603 + $0x28] sm:$0xff]
      %v610 = vld [vmem:[%s603 + $0x30] sm:$0xff]
      %v611 = vld [vmem:[%s603 + $0x38] sm:$0xff]
      %v612 = vld [vmem:[%s603 + $0x40] sm:$0xff]
      %v613 = vld [vmem:[%s603 + $0x48] sm:$0xff]
      %v614 = vld [vmem:[%s603 + $0x50] sm:$0xff]
      %v615 = vld [vmem:[%s603 + $0x58] sm:$0xff]
      %v616 = vld [vmem:[%s603 + $0x60] sm:$0xff]
      %v617 = vld [vmem:[%s603 + $0x68] sm:$0xff]
      %v618 = vld [vmem:[%s603 + $0x70] sm:$0xff]
      %v619 = vld [vmem:[%s603 + $0x78] sm:$0xff]
      %620 = vmatpush.msra.mxu0 %v619
      %621 = vmatpush.msra.mxu0 %v618
      %622 = vmatpush.msra.mxu0 %v617
      %623 = vmatpush.msra.mxu0 %v616
      %624 = vmatpush.msra.mxu0 %v615
      %625 = vmatpush.msra.mxu0 %v614
      %626 = vmatpush.msra.mxu0 %v613
      %627 = vmatpush.msra.mxu0 %v612
      %628 = vmatpush.msra.mxu0 %v611
      %629 = vmatpush.msra.mxu0 %v610
      %630 = vmatpush.msra.mxu0 %v609
      %631 = vmatpush.msra.mxu0 %v608
      %632 = vmatpush.msra.mxu0 %v607
      %633 = vmatpush.msra.mxu0 %v606
      %634 = vmatpush.msra.mxu0 %v605
      %635 = vmatpush.msra.mxu0 %v604
      %636 = vmatmul.f32.gmra.mxu0 %v597
      %v637 = vpop.f32.mrf.mxu0
      %v638 = vadd.f32 0.0, %v637
      %639 = vmatmul.f32.gmra.mxu0 %v598
      %v640 = vpop.f32.mrf.mxu0
      %v641 = vadd.f32 0.0, %v640
      %642 = vmatmul.f32.gmra.mxu0 %v599
      %v643 = vpop.f32.mrf.mxu0
      %v644 = vadd.f32 0.0, %v643
      %645 = vdwg.mxu0
      %v646 = vadd.f32 %v600, %v638
      %v647 = vadd.f32 %v601, %v641
      %v648 = vadd.f32 %v602, %v644
      %649 = vst [vmem:[#allocation2] sm:$0xff] %v646
      %650 = vst [vmem:[#allocation2 + $0x8] sm:$0xff] %v647
      %651 = vst [vmem:[#allocation2 + $0x10] sm:$0xff] %v648
      %s652 = sadd.s32 %s310, 120
      %s653 = scalar_lea.vmem %s183, %s652
      %v654 = vld [vmem:[%s653] sm:$0xff]
      %v655 = vld [vmem:[%s653 + $0x8] sm:$0xff]
      %v656 = vld [vmem:[%s653 + $0x10] sm:$0xff]
      %v657 = vld [vmem:[#allocation2] sm:$0xff]
      %v658 = vld [vmem:[#allocation2 + $0x8] sm:$0xff]
      %v659 = vld [vmem:[#allocation2 + $0x10] sm:$0xff]
      %s660 = scalar_lea.vmem %s1, 1024
      %v661 = vld [vmem:[%s660] sm:$0xff]
      %v662 = vld [vmem:[%s660 + $0x8] sm:$0xff]
      %v663 = vld [vmem:[%s660 + $0x10] sm:$0xff]
      %v664 = vld [vmem:[%s660 + $0x18] sm:$0xff]
      %v665 = vld [vmem:[%s660 + $0x20] sm:$0xff]
      %v666 = vld [vmem:[%s660 + $0x28] sm:$0xff]
      %v667 = vld [vmem:[%s660 + $0x30] sm:$0xff]
      %v668 = vld [vmem:[%s660 + $0x38] sm:$0xff]
      %v669 = vld [vmem:[%s660 + $0x40] sm:$0xff]
      %v670 = vld [vmem:[%s660 + $0x48] sm:$0xff]
      %v671 = vld [vmem:[%s660 + $0x50] sm:$0xff]
      %v672 = vld [vmem:[%s660 + $0x58] sm:$0xff]
      %v673 = vld [vmem:[%s660 + $0x60] sm:$0xff]
      %v674 = vld [vmem:[%s660 + $0x68] sm:$0xff]
      %v675 = vld [vmem:[%s660 + $0x70] sm:$0xff]
      %v676 = vld [vmem:[%s660 + $0x78] sm:$0xff]
      %677 = vmatpush.msra.mxu0 %v676
      %678 = vmatpush.msra.mxu0 %v675
      %679 = vmatpush.msra.mxu0 %v674
      %680 = vmatpush.msra.mxu0 %v673
      %681 = vmatpush.msra.mxu0 %v672
      %682 = vmatpush.msra.mxu0 %v671
      %683 = vmatpush.msra.mxu0 %v670
      %684 = vmatpush.msra.mxu0 %v669
      %685 = vmatpush.msra.mxu0 %v668
      %686 = vmatpush.msra.mxu0 %v667
      %687 = vmatpush.msra.mxu0 %v666
      %688 = vmatpush.msra.mxu0 %v665
      %689 = vmatpush.msra.mxu0 %v664
      %690 = vmatpush.msra.mxu0 %v663
      %691 = vmatpush.msra.mxu0 %v662
      %692 = vmatpush.msra.mxu0 %v661
      %693 = vmatmul.f32.gmra.mxu0 %v654
      %v694 = vpop.f32.mrf.mxu0
      %v695 = vadd.f32 0.0, %v694
      %696 = vmatmul.f32.gmra.mxu0 %v655
      %v697 = vpop.f32.mrf.mxu0
      %v698 = vadd.f32 0.0, %v697
      %699 = vmatmul.f32.gmra.mxu0 %v656
      %v700 = vpop.f32.mrf.mxu0
      %v701 = vadd.f32 0.0, %v700
      %702 = vdwg.mxu0
      %v703 = vadd.f32 %v657, %v695
      %v704 = vadd.f32 %v658, %v698
      %v705 = vadd.f32 %v659, %v701
      %706 = vst [vmem:[#allocation2] sm:$0xff] %v703
      %707 = vst [vmem:[#allocation2 + $0x8] sm:$0xff] %v704
      %708 = vst [vmem:[#allocation2 + $0x10] sm:$0xff] %v705
      %s709 = sadd.s32 %s424, 80
      %s710 = scalar_lea.vmem %s183, %s709
      %v711 = vld [vmem:[%s710] sm:$0xff]
      %v712 = vld [vmem:[%s710 + $0x8] sm:$0xff]
      %v713 = vld [vmem:[%s710 + $0x10] sm:$0xff]
      %v714 = vld [vmem:[#allocation2] sm:$0xff]
      %v715 = vld [vmem:[#allocation2 + $0x8] sm:$0xff]
      %v716 = vld [vmem:[#allocation2 + $0x10] sm:$0xff]
      %s717 = scalar_lea.vmem %s1, 1152
      %v718 = vld [vmem:[%s717] sm:$0xff]
      %v719 = vld [vmem:[%s717 + $0x8] sm:$0xff]
      %v720 = vld [vmem:[%s717 + $0x10] sm:$0xff]
      %v721 = vld [vmem:[%s717 + $0x18] sm:$0xff]
      %v722 = vld [vmem:[%s717 + $0x20] sm:$0xff]
      %v723 = vld [vmem:[%s717 + $0x28] sm:$0xff]
      %v724 = vld [vmem:[%s717 + $0x30] sm:$0xff]
      %v725 = vld [vmem:[%s717 + $0x38] sm:$0xff]
      %v726 = vld [vmem:[%s717 + $0x40] sm:$0xff]
      %v727 = vld [vmem:[%s717 + $0x48] sm:$0xff]
      %v728 = vld [vmem:[%s717 + $0x50] sm:$0xff]
      %v729 = vld [vmem:[%s717 + $0x58] sm:$0xff]
      %v730 = vld [vmem:[%s717 + $0x60] sm:$0xff]
      %v731 = vld [vmem:[%s717 + $0x68] sm:$0xff]
      %v732 = vld [vmem:[%s717 + $0x70] sm:$0xff]
      %v733 = vld [vmem:[%s717 + $0x78] sm:$0xff]
      %734 = vmatpush.msra.mxu0 %v733
      %735 = vmatpush.msra.mxu0 %v732
      %736 = vmatpush.msra.mxu0 %v731
      %737 = vmatpush.msra.mxu0 %v730
      %738 = vmatpush.msra.mxu0 %v729
      %739 = vmatpush.msra.mxu0 %v728
      %740 = vmatpush.msra.mxu0 %v727
      %741 = vmatpush.msra.mxu0 %v726
      %742 = vmatpush.msra.mxu0 %v725
      %743 = vmatpush.msra.mxu0 %v724
      %744 = vmatpush.msra.mxu0 %v723
      %745 = vmatpush.msra.mxu0 %v722
      %746 = vmatpush.msra.mxu0 %v721
      %747 = vmatpush.msra.mxu0 %v720
      %748 = vmatpush.msra.mxu0 %v719
      %749 = vmatpush.msra.mxu0 %v718
      %750 = vmatmul.f32.gmra.mxu0 %v711
      %v751 = vpop.f32.mrf.mxu0
      %v752 = vadd.f32 0.0, %v751
      %753 = vmatmul.f32.gmra.mxu0 %v712
      %v754 = vpop.f32.mrf.mxu0
      %v755 = vadd.f32 0.0, %v754
      %756 = vmatmul.f32.gmra.mxu0 %v713
      %v757 = vpop.f32.mrf.mxu0
      %v758 = vadd.f32 0.0, %v757
      %759 = vdwg.mxu0
      %v760 = vadd.f32 %v714, %v752
      %v761 = vadd.f32 %v715, %v755
      %v762 = vadd.f32 %v716, %v758
      %763 = vst [vmem:[#allocation2] sm:$0xff] %v760
      %764 = vst [vmem:[#allocation2 + $0x8] sm:$0xff] %v761
      %765 = vst [vmem:[#allocation2 + $0x10] sm:$0xff] %v762
      %s766 = sadd.s32 %s194, 6
      %s767 = scalar_lea.vmem %s183, %s766
      %v768 = vld [vmem:[%s767] sm:$0xff]
      %v769 = vld [vmem:[%s767 + $0x8] sm:$0xff]
      %v770 = vld [vmem:[%s767 + $0x10] sm:$0xff]
      %v771 = vld [vmem:[#allocation2] sm:$0xff]
      %v772 = vld [vmem:[#allocation2 + $0x8] sm:$0xff]
      %v773 = vld [vmem:[#allocation2 + $0x10] sm:$0xff]
      %s774 = scalar_lea.vmem %s1, 1280
      %v775 = vld [vmem:[%s774] sm:$0xff]
      %v776 = vld [vmem:[%s774 + $0x8] sm:$0xff]
      %v777 = vld [vmem:[%s774 + $0x10] sm:$0xff]
      %v778 = vld [vmem:[%s774 + $0x18] sm:$0xff]
      %v779 = vld [vmem:[%s774 + $0x20] sm:$0xff]
      %v780 = vld [vmem:[%s774 + $0x28] sm:$0xff]
      %v781 = vld [vmem:[%s774 + $0x30] sm:$0xff]
      %v782 = vld [vmem:[%s774 + $0x38] sm:$0xff]
      %v783 = vld [vmem:[%s774 + $0x40] sm:$0xff]
      %v784 = vld [vmem:[%s774 + $0x48] sm:$0xff]
      %v785 = vld [vmem:[%s774 + $0x50] sm:$0xff]
      %v786 = vld [vmem:[%s774 + $0x58] sm:$0xff]
      %v787 = vld [vmem:[%s774 + $0x60] sm:$0xff]
      %v788 = vld [vmem:[%s774 + $0x68] sm:$0xff]
      %v789 = vld [vmem:[%s774 + $0x70] sm:$0xff]
      %v790 = vld [vmem:[%s774 + $0x78] sm:$0xff]
      %791 = vmatpush.msra.mxu0 %v790
      %792 = vmatpush.msra.mxu0 %v789
      %793 = vmatpush.msra.mxu0 %v788
      %794 = vmatpush.msra.mxu0 %v787
      %795 = vmatpush.msra.mxu0 %v786
      %796 = vmatpush.msra.mxu0 %v785
      %797 = vmatpush.msra.mxu0 %v784
      %798 = vmatpush.msra.mxu0 %v783
      %799 = vmatpush.msra.mxu0 %v782
      %800 = vmatpush.msra.mxu0 %v781
      %801 = vmatpush.msra.mxu0 %v780
      %802 = vmatpush.msra.mxu0 %v779
      %803 = vmatpush.msra.mxu0 %v778
      %804 = vmatpush.msra.mxu0 %v777
      %805 = vmatpush.msra.mxu0 %v776
      %806 = vmatpush.msra.mxu0 %v775
      %807 = vmatmul.f32.gmra.mxu0 %v768
      %v808 = vpop.f32.mrf.mxu0
      %v809 = vadd.f32 0.0, %v808
      %810 = vmatmul.f32.gmra.mxu0 %v769
      %v811 = vpop.f32.mrf.mxu0
      %v812 = vadd.f32 0.0, %v811
      %813 = vmatmul.f32.gmra.mxu0 %v770
      %v814 = vpop.f32.mrf.mxu0
      %v815 = vadd.f32 0.0, %v814
      %816 = vdwg.mxu0
      %v817 = vadd.f32 %v771, %v809
      %v818 = vadd.f32 %v772, %v812
      %v819 = vadd.f32 %v773, %v815
      %820 = vst [vmem:[#allocation2] sm:$0xff] %v817
      %821 = vst [vmem:[#allocation2 + $0x8] sm:$0xff] %v818
      %822 = vst [vmem:[#allocation2 + $0x10] sm:$0xff] %v819
      %s823 = sadd.s32 %s766, 40
      %s824 = scalar_lea.vmem %s183, %s823
      %v825 = vld [vmem:[%s824] sm:$0xff]
      %v826 = vld [vmem:[%s824 + $0x8] sm:$0xff]
      %v827 = vld [vmem:[%s824 + $0x10] sm:$0xff]
      %v828 = vld [vmem:[#allocation2] sm:$0xff]
      %v829 = vld [vmem:[#allocation2 + $0x8] sm:$0xff]
      %v830 = vld [vmem:[#allocation2 + $0x10] sm:$0xff]
      %s831 = scalar_lea.vmem %s1, 1408
      %v832 = vld [vmem:[%s831] sm:$0xff]
      %v833 = vld [vmem:[%s831 + $0x8] sm:$0xff]
      %v834 = vld [vmem:[%s831 + $0x10] sm:$0xff]
      %v835 = vld [vmem:[%s831 + $0x18] sm:$0xff]
      %v836 = vld [vmem:[%s831 + $0x20] sm:$0xff]
      %v837 = vld [vmem:[%s831 + $0x28] sm:$0xff]
      %v838 = vld [vmem:[%s831 + $0x30] sm:$0xff]
      %v839 = vld [vmem:[%s831 + $0x38] sm:$0xff]
      %v840 = vld [vmem:[%s831 + $0x40] sm:$0xff]
      %v841 = vld [vmem:[%s831 + $0x48] sm:$0xff]
      %v842 = vld [vmem:[%s831 + $0x50] sm:$0xff]
      %v843 = vld [vmem:[%s831 + $0x58] sm:$0xff]
      %v844 = vld [vmem:[%s831 + $0x60] sm:$0xff]
      %v845 = vld [vmem:[%s831 + $0x68] sm:$0xff]
      %v846 = vld [vmem:[%s831 + $0x70] sm:$0xff]
      %v847 = vld [vmem:[%s831 + $0x78] sm:$0xff]
      %848 = vmatpush.msra.mxu0 %v847
      %849 = vmatpush.msra.mxu0 %v846
      %850 = vmatpush.msra.mxu0 %v845
      %851 = vmatpush.msra.mxu0 %v844
      %852 = vmatpush.msra.mxu0 %v843
      %853 = vmatpush.msra.mxu0 %v842
      %854 = vmatpush.msra.mxu0 %v841
      %855 = vmatpush.msra.mxu0 %v840
      %856 = vmatpush.msra.mxu0 %v839
      %857 = vmatpush.msra.mxu0 %v838
      %858 = vmatpush.msra.mxu0 %v837
      %859 = vmatpush.msra.mxu0 %v836
      %860 = vmatpush.msra.mxu0 %v835
      %861 = vmatpush.msra.mxu0 %v834
      %862 = vmatpush.msra.mxu0 %v833
      %863 = vmatpush.msra.mxu0 %v832
      %864 = vmatmul.f32.gmra.mxu0 %v825
      %v865 = vpop.f32.mrf.mxu0
      %v866 = vadd.f32 0.0, %v865
      %867 = vmatmul.f32.gmra.mxu0 %v826
      %v868 = vpop.f32.mrf.mxu0
      %v869 = vadd.f32 0.0, %v868
      %870 = vmatmul.f32.gmra.mxu0 %v827
      %v871 = vpop.f32.mrf.mxu0
      %v872 = vadd.f32 0.0, %v871
      %873 = vdwg.mxu0
      %v874 = vadd.f32 %v828, %v866
      %v875 = vadd.f32 %v829, %v869
      %v876 = vadd.f32 %v830, %v872
      %877 = vst [vmem:[#allocation2] sm:$0xff] %v874
      %878 = vst [vmem:[#allocation2 + $0x8] sm:$0xff] %v875
      %879 = vst [vmem:[#allocation2 + $0x10] sm:$0xff] %v876
      %s880 = sadd.s32 %s194, 7
      %s881 = scalar_lea.vmem %s183, %s880
      %v882 = vld [vmem:[%s881] sm:$0xff]
      %v883 = vld [vmem:[%s881 + $0x8] sm:$0xff]
      %v884 = vld [vmem:[%s881 + $0x10] sm:$0xff]
      %v885 = vld [vmem:[#allocation2] sm:$0xff]
      %v886 = vld [vmem:[#allocation2 + $0x8] sm:$0xff]
      %v887 = vld [vmem:[#allocation2 + $0x10] sm:$0xff]
      %s888 = scalar_lea.vmem %s1, 1536
      %v889 = vld [vmem:[%s888] sm:$0xff]
      %v890 = vld [vmem:[%s888 + $0x8] sm:$0xff]
      %v891 = vld [vmem:[%s888 + $0x10] sm:$0xff]
      %v892 = vld [vmem:[%s888 + $0x18] sm:$0xff]
      %v893 = vld [vmem:[%s888 + $0x20] sm:$0xff]
      %v894 = vld [vmem:[%s888 + $0x28] sm:$0xff]
      %v895 = vld [vmem:[%s888 + $0x30] sm:$0xff]
      %v896 = vld [vmem:[%s888 + $0x38] sm:$0xff]
      %v897 = vld [vmem:[%s888 + $0x40] sm:$0xff]
      %v898 = vld [vmem:[%s888 + $0x48] sm:$0xff]
      %v899 = vld [vmem:[%s888 + $0x50] sm:$0xff]
      %v900 = vld [vmem:[%s888 + $0x58] sm:$0xff]
      %v901 = vld [vmem:[%s888 + $0x60] sm:$0xff]
      %v902 = vld [vmem:[%s888 + $0x68] sm:$0xff]
      %v903 = vld [vmem:[%s888 + $0x70] sm:$0xff]
      %v904 = vld [vmem:[%s888 + $0x78] sm:$0xff]
      %905 = vmatpush.msra.mxu0 %v904
      %906 = vmatpush.msra.mxu0 %v903
      %907 = vmatpush.msra.mxu0 %v902
      %908 = vmatpush.msra.mxu0 %v901
      %909 = vmatpush.msra.mxu0 %v900
      %910 = vmatpush.msra.mxu0 %v899
      %911 = vmatpush.msra.mxu0 %v898
      %912 = vmatpush.msra.mxu0 %v897
      %913 = vmatpush.msra.mxu0 %v896
      %914 = vmatpush.msra.mxu0 %v895
      %915 = vmatpush.msra.mxu0 %v894
      %916 = vmatpush.msra.mxu0 %v893
      %917 = vmatpush.msra.mxu0 %v892
      %918 = vmatpush.msra.mxu0 %v891
      %919 = vmatpush.msra.mxu0 %v890
      %920 = vmatpush.msra.mxu0 %v889
      %921 = vmatmul.f32.gmra.mxu0 %v882
      %v922 = vpop.f32.mrf.mxu0
      %v923 = vadd.f32 0.0, %v922
      %924 = vmatmul.f32.gmra.mxu0 %v883
      %v925 = vpop.f32.mrf.mxu0
      %v926 = vadd.f32 0.0, %v925
      %927 = vmatmul.f32.gmra.mxu0 %v884
      %v928 = vpop.f32.mrf.mxu0
      %v929 = vadd.f32 0.0, %v928
      %930 = vdwg.mxu0
      %v931 = vadd.f32 %v885, %v923
      %v932 = vadd.f32 %v886, %v926
      %v933 = vadd.f32 %v887, %v929
      %934 = vst [vmem:[#allocation2] sm:$0xff] %v931
      %935 = vst [vmem:[#allocation2 + $0x8] sm:$0xff] %v932
      %936 = vst [vmem:[#allocation2 + $0x10] sm:$0xff] %v933
      %s937 = sadd.s32 %s880, 40
      %s938 = scalar_lea.vmem %s183, %s937
      %v939 = vld [vmem:[%s938] sm:$0xff]
      %v940 = vld [vmem:[%s938 + $0x8] sm:$0xff]
      %v941 = vld [vmem:[%s938 + $0x10] sm:$0xff]
      %v942 = vld [vmem:[#allocation2] sm:$0xff]
      %v943 = vld [vmem:[#allocation2 + $0x8] sm:$0xff]
      %v944 = vld [vmem:[#allocation2 + $0x10] sm:$0xff]
      %s945 = scalar_lea.vmem %s1, 1664
      %v946 = vld [vmem:[%s945] sm:$0xff]
      %v947 = vld [vmem:[%s945 + $0x8] sm:$0xff]
      %v948 = vld [vmem:[%s945 + $0x10] sm:$0xff]
      %v949 = vld [vmem:[%s945 + $0x18] sm:$0xff]
      %v950 = vld [vmem:[%s945 + $0x20] sm:$0xff]
      %v951 = vld [vmem:[%s945 + $0x28] sm:$0xff]
      %v952 = vld [vmem:[%s945 + $0x30] sm:$0xff]
      %v953 = vld [vmem:[%s945 + $0x38] sm:$0xff]
      %v954 = vld [vmem:[%s945 + $0x40] sm:$0xff]
      %v955 = vld [vmem:[%s945 + $0x48] sm:$0xff]
      %v956 = vld [vmem:[%s945 + $0x50] sm:$0xff]
      %v957 = vld [vmem:[%s945 + $0x58] sm:$0xff]
      %v958 = vld [vmem:[%s945 + $0x60] sm:$0xff]
      %v959 = vld [vmem:[%s945 + $0x68] sm:$0xff]
      %v960 = vld [vmem:[%s945 + $0x70] sm:$0xff]
      %v961 = vld [vmem:[%s945 + $0x78] sm:$0xff]
      %962 = vmatpush.msra.mxu0 %v961
      %963 = vmatpush.msra.mxu0 %v960
      %964 = vmatpush.msra.mxu0 %v959
      %965 = vmatpush.msra.mxu0 %v958
      %966 = vmatpush.msra.mxu0 %v957
      %967 = vmatpush.msra.mxu0 %v956
      %968 = vmatpush.msra.mxu0 %v955
      %969 = vmatpush.msra.mxu0 %v954
      %970 = vmatpush.msra.mxu0 %v953
      %971 = vmatpush.msra.mxu0 %v952
      %972 = vmatpush.msra.mxu0 %v951
      %973 = vmatpush.msra.mxu0 %v950
      %974 = vmatpush.msra.mxu0 %v949
      %975 = vmatpush.msra.mxu0 %v948
      %976 = vmatpush.msra.mxu0 %v947
      %977 = vmatpush.msra.mxu0 %v946
      %978 = vmatmul.f32.gmra.mxu0 %v939
      %v979 = vpop.f32.mrf.mxu0
      %v980 = vadd.f32 0.0, %v979
      %981 = vmatmul.f32.gmra.mxu0 %v940
      %v982 = vpop.f32.mrf.mxu0
      %v983 = vadd.f32 0.0, %v982
      %984 = vmatmul.f32.gmra.mxu0 %v941
      %v985 = vpop.f32.mrf.mxu0
      %v986 = vadd.f32 0.0, %v985
      %987 = vdwg.mxu0
      %v988 = vadd.f32 %v942, %v980
      %v989 = vadd.f32 %v943, %v983
      %v990 = vadd.f32 %v944, %v986
      %991 = vst [vmem:[#allocation2] sm:$0xff] %v988
      %992 = vst [vmem:[#allocation2 + $0x8] sm:$0xff] %v989
      %993 = vst [vmem:[#allocation2 + $0x10] sm:$0xff] %v990
      %s994 = sadd.s32 %s194, 8
      %s995 = scalar_lea.vmem %s183, %s994
      %v996 = vld [vmem:[%s995] sm:$0xff]
      %v997 = vld [vmem:[%s995 + $0x8] sm:$0xff]
      %v998 = vld [vmem:[%s995 + $0x10] sm:$0xff]
      %v999 = vld [vmem:[#allocation2] sm:$0xff]
      %v1000 = vld [vmem:[#allocation2 + $0x8] sm:$0xff]
      %v1001 = vld [vmem:[#allocation2 + $0x10] sm:$0xff]
      %s1002 = scalar_lea.vmem %s1, 1792
      %v1003 = vld [vmem:[%s1002] sm:$0xff]
      %v1004 = vld [vmem:[%s1002 + $0x8] sm:$0xff]
      %v1005 = vld [vmem:[%s1002 + $0x10] sm:$0xff]
      %v1006 = vld [vmem:[%s1002 + $0x18] sm:$0xff]
      %v1007 = vld [vmem:[%s1002 + $0x20] sm:$0xff]
      %v1008 = vld [vmem:[%s1002 + $0x28] sm:$0xff]
      %v1009 = vld [vmem:[%s1002 + $0x30] sm:$0xff]
      %v1010 = vld [vmem:[%s1002 + $0x38] sm:$0xff]
      %v1011 = vld [vmem:[%s1002 + $0x40] sm:$0xff]
      %v1012 = vld [vmem:[%s1002 + $0x48] sm:$0xff]
      %v1013 = vld [vmem:[%s1002 + $0x50] sm:$0xff]
      %v1014 = vld [vmem:[%s1002 + $0x58] sm:$0xff]
      %v1015 = vld [vmem:[%s1002 + $0x60] sm:$0xff]
      %v1016 = vld [vmem:[%s1002 + $0x68] sm:$0xff]
      %v1017 = vld [vmem:[%s1002 + $0x70] sm:$0xff]
      %v1018 = vld [vmem:[%s1002 + $0x78] sm:$0xff]
      %1019 = vmatpush.msra.mxu0 %v1018
      %1020 = vmatpush.msra.mxu0 %v1017
      %1021 = vmatpush.msra.mxu0 %v1016
      %1022 = vmatpush.msra.mxu0 %v1015
      %1023 = vmatpush.msra.mxu0 %v1014
      %1024 = vmatpush.msra.mxu0 %v1013
      %1025 = vmatpush.msra.mxu0 %v1012
      %1026 = vmatpush.msra.mxu0 %v1011
      %1027 = vmatpush.msra.mxu0 %v1010
      %1028 = vmatpush.msra.mxu0 %v1009
      %1029 = vmatpush.msra.mxu0 %v1008
      %1030 = vmatpush.msra.mxu0 %v1007
      %1031 = vmatpush.msra.mxu0 %v1006
      %1032 = vmatpush.msra.mxu0 %v1005
      %1033 = vmatpush.msra.mxu0 %v1004
      %1034 = vmatpush.msra.mxu0 %v1003
      %1035 = vmatmul.f32.gmra.mxu0 %v996
      %v1036 = vpop.f32.mrf.mxu0
      %v1037 = vadd.f32 0.0, %v1036
      %1038 = vmatmul.f32.gmra.mxu0 %v997
      %v1039 = vpop.f32.mrf.mxu0
      %v1040 = vadd.f32 0.0, %v1039
      %1041 = vmatmul.f32.gmra.mxu0 %v998
      %v1042 = vpop.f32.mrf.mxu0
      %v1043 = vadd.f32 0.0, %v1042
      %1044 = vdwg.mxu0
      %v1045 = vadd.f32 %v999, %v1037
      %v1046 = vadd.f32 %v1000, %v1040
      %v1047 = vadd.f32 %v1001, %v1043
      %1048 = vst [vmem:[#allocation2] sm:$0xff] %v1045
      %1049 = vst [vmem:[#allocation2 + $0x8] sm:$0xff] %v1046
      %1050 = vst [vmem:[#allocation2 + $0x10] sm:$0xff] %v1047
      %s1051 = sadd.s32 %s766, 80
      %s1052 = scalar_lea.vmem %s183, %s1051
      %v1053 = vld [vmem:[%s1052] sm:$0xff]
      %v1054 = vld [vmem:[%s1052 + $0x8] sm:$0xff]
      %v1055 = vld [vmem:[%s1052 + $0x10] sm:$0xff]
      %v1056 = vld [vmem:[#allocation2] sm:$0xff]
      %v1057 = vld [vmem:[#allocation2 + $0x8] sm:$0xff]
      %v1058 = vld [vmem:[#allocation2 + $0x10] sm:$0xff]
      %s1059 = scalar_lea.vmem %s1, 1920
      %v1060 = vld [vmem:[%s1059] sm:$0xff]
      %v1061 = vld [vmem:[%s1059 + $0x8] sm:$0xff]
      %v1062 = vld [vmem:[%s1059 + $0x10] sm:$0xff]
      %v1063 = vld [vmem:[%s1059 + $0x18] sm:$0xff]
      %v1064 = vld [vmem:[%s1059 + $0x20] sm:$0xff]
      %v1065 = vld [vmem:[%s1059 + $0x28] sm:$0xff]
      %v1066 = vld [vmem:[%s1059 + $0x30] sm:$0xff]
      %v1067 = vld [vmem:[%s1059 + $0x38] sm:$0xff]
      %v1068 = vld [vmem:[%s1059 + $0x40] sm:$0xff]
      %v1069 = vld [vmem:[%s1059 + $0x48] sm:$0xff]
      %v1070 = vld [vmem:[%s1059 + $0x50] sm:$0xff]
      %v1071 = vld [vmem:[%s1059 + $0x58] sm:$0xff]
      %v1072 = vld [vmem:[%s1059 + $0x60] sm:$0xff]
      %v1073 = vld [vmem:[%s1059 + $0x68] sm:$0xff]
      %v1074 = vld [vmem:[%s1059 + $0x70] sm:$0xff]
      %v1075 = vld [vmem:[%s1059 + $0x78] sm:$0xff]
      %1076 = vmatpush.msra.mxu0 %v1075
      %1077 = vmatpush.msra.mxu0 %v1074
      %1078 = vmatpush.msra.mxu0 %v1073
      %1079 = vmatpush.msra.mxu0 %v1072
      %1080 = vmatpush.msra.mxu0 %v1071
      %1081 = vmatpush.msra.mxu0 %v1070
      %1082 = vmatpush.msra.mxu0 %v1069
      %1083 = vmatpush.msra.mxu0 %v1068
      %1084 = vmatpush.msra.mxu0 %v1067
      %1085 = vmatpush.msra.mxu0 %v1066
      %1086 = vmatpush.msra.mxu0 %v1065
      %1087 = vmatpush.msra.mxu0 %v1064
      %1088 = vmatpush.msra.mxu0 %v1063
      %1089 = vmatpush.msra.mxu0 %v1062
      %1090 = vmatpush.msra.mxu0 %v1061
      %1091 = vmatpush.msra.mxu0 %v1060
      %1092 = vmatmul.f32.gmra.mxu0 %v1053
      %v1093 = vpop.f32.mrf.mxu0
      %v1094 = vadd.f32 0.0, %v1093
      %1095 = vmatmul.f32.gmra.mxu0 %v1054
      %v1096 = vpop.f32.mrf.mxu0
      %v1097 = vadd.f32 0.0, %v1096
      %1098 = vmatmul.f32.gmra.mxu0 %v1055
      %v1099 = vpop.f32.mrf.mxu0
      %v1100 = vadd.f32 0.0, %v1099
      %1101 = vdwg.mxu0
      %v1102 = vadd.f32 %v1056, %v1094
      %v1103 = vadd.f32 %v1057, %v1097
      %v1104 = vadd.f32 %v1058, %v1100
      %1105 = vst [vmem:[#allocation2] sm:$0xff] %v1102
      %1106 = vst [vmem:[#allocation2 + $0x8] sm:$0xff] %v1103
      %1107 = vst [vmem:[#allocation2 + $0x10] sm:$0xff] %v1104
      %s1108 = sadd.s32 %s766, 120
      %s1109 = scalar_lea.vmem %s183, %s1108
      %v1110 = vld [vmem:[%s1109] sm:$0xff]
      %v1111 = vld [vmem:[%s1109 + $0x8] sm:$0xff]
      %v1112 = vld [vmem:[%s1109 + $0x10] sm:$0xff]
      %v1113 = vld [vmem:[#allocation2] sm:$0xff]
      %v1114 = vld [vmem:[#allocation2 + $0x8] sm:$0xff]
      %v1115 = vld [vmem:[#allocation2 + $0x10] sm:$0xff]
      %s1116 = scalar_lea.vmem %s1, 2048
      %v1117 = vld [vmem:[%s1116] sm:$0xff]
      %v1118 = vld [vmem:[%s1116 + $0x8] sm:$0xff]
      %v1119 = vld [vmem:[%s1116 + $0x10] sm:$0xff]
      %v1120 = vld [vmem:[%s1116 + $0x18] sm:$0xff]
      %v1121 = vld [vmem:[%s1116 + $0x20] sm:$0xff]
      %v1122 = vld [vmem:[%s1116 + $0x28] sm:$0xff]
      %v1123 = vld [vmem:[%s1116 + $0x30] sm:$0xff]
      %v1124 = vld [vmem:[%s1116 + $0x38] sm:$0xff]
      %v1125 = vld [vmem:[%s1116 + $0x40] sm:$0xff]
      %v1126 = vld [vmem:[%s1116 + $0x48] sm:$0xff]
      %v1127 = vld [vmem:[%s1116 + $0x50] sm:$0xff]
      %v1128 = vld [vmem:[%s1116 + $0x58] sm:$0xff]
      %v1129 = vld [vmem:[%s1116 + $0x60] sm:$0xff]
      %v1130 = vld [vmem:[%s1116 + $0x68] sm:$0xff]
      %v1131 = vld [vmem:[%s1116 + $0x70] sm:$0xff]
      %v1132 = vld [vmem:[%s1116 + $0x78] sm:$0xff]
      %1133 = vmatpush.msra.mxu0 %v1132
      %1134 = vmatpush.msra.mxu0 %v1131
      %1135 = vmatpush.msra.mxu0 %v1130
      %1136 = vmatpush.msra.mxu0 %v1129
      %1137 = vmatpush.msra.mxu0 %v1128
      %1138 = vmatpush.msra.mxu0 %v1127
      %1139 = vmatpush.msra.mxu0 %v1126
      %1140 = vmatpush.msra.mxu0 %v1125
      %1141 = vmatpush.msra.mxu0 %v1124
      %1142 = vmatpush.msra.mxu0 %v1123
      %1143 = vmatpush.msra.mxu0 %v1122
      %1144 = vmatpush.msra.mxu0 %v1121
      %1145 = vmatpush.msra.mxu0 %v1120
      %1146 = vmatpush.msra.mxu0 %v1119
      %1147 = vmatpush.msra.mxu0 %v1118
      %1148 = vmatpush.msra.mxu0 %v1117
      %1149 = vmatmul.f32.gmra.mxu0 %v1110
      %v1150 = vpop.f32.mrf.mxu0
      %v1151 = vadd.f32 0.0, %v1150
      %1152 = vmatmul.f32.gmra.mxu0 %v1111
      %v1153 = vpop.f32.mrf.mxu0
      %v1154 = vadd.f32 0.0, %v1153
      %1155 = vmatmul.f32.gmra.mxu0 %v1112
      %v1156 = vpop.f32.mrf.mxu0
      %v1157 = vadd.f32 0.0, %v1156
      %1158 = vdwg.mxu0
      %v1159 = vadd.f32 %v1113, %v1151
      %v1160 = vadd.f32 %v1114, %v1154
      %v1161 = vadd.f32 %v1115, %v1157
      %1162 = vst [vmem:[#allocation2] sm:$0xff] %v1159
      %1163 = vst [vmem:[#allocation2 + $0x8] sm:$0xff] %v1160
      %1164 = vst [vmem:[#allocation2 + $0x10] sm:$0xff] %v1161
      %s1165 = sadd.s32 %s880, 80
      %s1166 = scalar_lea.vmem %s183, %s1165
      %v1167 = vld [vmem:[%s1166] sm:$0xff]
      %v1168 = vld [vmem:[%s1166 + $0x8] sm:$0xff]
      %v1169 = vld [vmem:[%s1166 + $0x10] sm:$0xff]
      %v1170 = vld [vmem:[#allocation2] sm:$0xff]
      %v1171 = vld [vmem:[#allocation2 + $0x8] sm:$0xff]
      %v1172 = vld [vmem:[#allocation2 + $0x10] sm:$0xff]
      %s1173 = scalar_lea.vmem %s1, 2176
      %v1174 = vld [vmem:[%s1173] sm:$0xff]
      %v1175 = vld [vmem:[%s1173 + $0x8] sm:$0xff]
      %v1176 = vld [vmem:[%s1173 + $0x10] sm:$0xff]
      %v1177 = vld [vmem:[%s1173 + $0x18] sm:$0xff]
      %v1178 = vld [vmem:[%s1173 + $0x20] sm:$0xff]
      %v1179 = vld [vmem:[%s1173 + $0x28] sm:$0xff]
      %v1180 = vld [vmem:[%s1173 + $0x30] sm:$0xff]
      %v1181 = vld [vmem:[%s1173 + $0x38] sm:$0xff]
      %v1182 = vld [vmem:[%s1173 + $0x40] sm:$0xff]
      %v1183 = vld [vmem:[%s1173 + $0x48] sm:$0xff]
      %v1184 = vld [vmem:[%s1173 + $0x50] sm:$0xff]
      %v1185 = vld [vmem:[%s1173 + $0x58] sm:$0xff]
      %v1186 = vld [vmem:[%s1173 + $0x60] sm:$0xff]
      %v1187 = vld [vmem:[%s1173 + $0x68] sm:$0xff]
      %v1188 = vld [vmem:[%s1173 + $0x70] sm:$0xff]
      %v1189 = vld [vmem:[%s1173 + $0x78] sm:$0xff]
      %1190 = vmatpush.msra.mxu0 %v1189
      %1191 = vmatpush.msra.mxu0 %v1188
      %1192 = vmatpush.msra.mxu0 %v1187
      %1193 = vmatpush.msra.mxu0 %v1186
      %1194 = vmatpush.msra.mxu0 %v1185
      %1195 = vmatpush.msra.mxu0 %v1184
      %1196 = vmatpush.msra.mxu0 %v1183
      %1197 = vmatpush.msra.mxu0 %v1182
      %1198 = vmatpush.msra.mxu0 %v1181
      %1199 = vmatpush.msra.mxu0 %v1180
      %1200 = vmatpush.msra.mxu0 %v1179
      %1201 = vmatpush.msra.mxu0 %v1178
      %1202 = vmatpush.msra.mxu0 %v1177
      %1203 = vmatpush.msra.mxu0 %v1176
      %1204 = vmatpush.msra.mxu0 %v1175
      %1205 = vmatpush.msra.mxu0 %v1174
      %1206 = vmatmul.f32.gmra.mxu0 %v1167
      %v1207 = vpop.f32.mrf.mxu0
      %v1208 = vadd.f32 0.0, %v1207
      %1209 = vmatmul.f32.gmra.mxu0 %v1168
      %v1210 = vpop.f32.mrf.mxu0
      %v1211 = vadd.f32 0.0, %v1210
      %1212 = vmatmul.f32.gmra.mxu0 %v1169
      %v1213 = vpop.f32.mrf.mxu0
      %v1214 = vadd.f32 0.0, %v1213
      %1215 = vdwg.mxu0
      %v1216 = vadd.f32 %v1170, %v1208
      %v1217 = vadd.f32 %v1171, %v1211
      %v1218 = vadd.f32 %v1172, %v1214
      %1219 = vst [vmem:[#allocation2] sm:$0xff] %v1216
      %1220 = vst [vmem:[#allocation2 + $0x8] sm:$0xff] %v1217
      %1221 = vst [vmem:[#allocation2 + $0x10] sm:$0xff] %v1218
      %s1222 = sadd.s32 %s880, 120
      %s1223 = scalar_lea.vmem %s183, %s1222
      %v1224 = vld [vmem:[%s1223] sm:$0xff]
      %v1225 = vld [vmem:[%s1223 + $0x8] sm:$0xff]
      %v1226 = vld [vmem:[%s1223 + $0x10] sm:$0xff]
      %v1227 = vld [vmem:[#allocation2] sm:$0xff]
      %v1228 = vld [vmem:[#allocation2 + $0x8] sm:$0xff]
      %v1229 = vld [vmem:[#allocation2 + $0x10] sm:$0xff]
      %s1230 = scalar_lea.vmem %s1, 2304
      %v1231 = vld [vmem:[%s1230] sm:$0xff]
      %v1232 = vld [vmem:[%s1230 + $0x8] sm:$0xff]
      %v1233 = vld [vmem:[%s1230 + $0x10] sm:$0xff]
      %v1234 = vld [vmem:[%s1230 + $0x18] sm:$0xff]
      %v1235 = vld [vmem:[%s1230 + $0x20] sm:$0xff]
      %v1236 = vld [vmem:[%s1230 + $0x28] sm:$0xff]
      %v1237 = vld [vmem:[%s1230 + $0x30] sm:$0xff]
      %v1238 = vld [vmem:[%s1230 + $0x38] sm:$0xff]
      %v1239 = vld [vmem:[%s1230 + $0x40] sm:$0xff]
      %v1240 = vld [vmem:[%s1230 + $0x48] sm:$0xff]
      %v1241 = vld [vmem:[%s1230 + $0x50] sm:$0xff]
      %v1242 = vld [vmem:[%s1230 + $0x58] sm:$0xff]
      %v1243 = vld [vmem:[%s1230 + $0x60] sm:$0xff]
      %v1244 = vld [vmem:[%s1230 + $0x68] sm:$0xff]
      %v1245 = vld [vmem:[%s1230 + $0x70] sm:$0xff]
      %v1246 = vld [vmem:[%s1230 + $0x78] sm:$0xff]
      %1247 = vmatpush.msra.mxu0 %v1246
      %1248 = vmatpush.msra.mxu0 %v1245
      %1249 = vmatpush.msra.mxu0 %v1244
      %1250 = vmatpush.msra.mxu0 %v1243
      %1251 = vmatpush.msra.mxu0 %v1242
      %1252 = vmatpush.msra.mxu0 %v1241
      %1253 = vmatpush.msra.mxu0 %v1240
      %1254 = vmatpush.msra.mxu0 %v1239
      %1255 = vmatpush.msra.mxu0 %v1238
      %1256 = vmatpush.msra.mxu0 %v1237
      %1257 = vmatpush.msra.mxu0 %v1236
      %1258 = vmatpush.msra.mxu0 %v1235
      %1259 = vmatpush.msra.mxu0 %v1234
      %1260 = vmatpush.msra.mxu0 %v1233
      %1261 = vmatpush.msra.mxu0 %v1232
      %1262 = vmatpush.msra.mxu0 %v1231
      %1263 = vmatmul.f32.gmra.mxu0 %v1224
      %v1264 = vpop.f32.mrf.mxu0
      %v1265 = vadd.f32 0.0, %v1264
      %1266 = vmatmul.f32.gmra.mxu0 %v1225
      %v1267 = vpop.f32.mrf.mxu0
      %v1268 = vadd.f32 0.0, %v1267
      %1269 = vmatmul.f32.gmra.mxu0 %v1226
      %v1270 = vpop.f32.mrf.mxu0
      %v1271 = vadd.f32 0.0, %v1270
      %1272 = vdwg.mxu0
      %v1273 = vadd.f32 %v1227, %v1265
      %v1274 = vadd.f32 %v1228, %v1268
      %v1275 = vadd.f32 %v1229, %v1271
      %1276 = vst [vmem:[#allocation2] sm:$0xff] %v1273
      %1277 = vst [vmem:[#allocation2 + $0x8] sm:$0xff] %v1274
      %1278 = vst [vmem:[#allocation2 + $0x10] sm:$0xff] %v1275
      %s1279 = sadd.s32 %s994, 80
      %s1280 = scalar_lea.vmem %s183, %s1279
      %v1281 = vld [vmem:[%s1280] sm:$0xff]
      %v1282 = vld [vmem:[%s1280 + $0x8] sm:$0xff]
      %v1283 = vld [vmem:[%s1280 + $0x10] sm:$0xff]
      %v1284 = vld [vmem:[#allocation2] sm:$0xff]
      %v1285 = vld [vmem:[#allocation2 + $0x8] sm:$0xff]
      %v1286 = vld [vmem:[#allocation2 + $0x10] sm:$0xff]
      %s1287 = scalar_lea.vmem %s1, 2432
      %v1288 = vld [vmem:[%s1287] sm:$0xff]
      %v1289 = vld [vmem:[%s1287 + $0x8] sm:$0xff]
      %v1290 = vld [vmem:[%s1287 + $0x10] sm:$0xff]
      %v1291 = vld [vmem:[%s1287 + $0x18] sm:$0xff]
      %v1292 = vld [vmem:[%s1287 + $0x20] sm:$0xff]
      %v1293 = vld [vmem:[%s1287 + $0x28] sm:$0xff]
      %v1294 = vld [vmem:[%s1287 + $0x30] sm:$0xff]
      %v1295 = vld [vmem:[%s1287 + $0x38] sm:$0xff]
      %v1296 = vld [vmem:[%s1287 + $0x40] sm:$0xff]
      %v1297 = vld [vmem:[%s1287 + $0x48] sm:$0xff]
      %v1298 = vld [vmem:[%s1287 + $0x50] sm:$0xff]
      %v1299 = vld [vmem:[%s1287 + $0x58] sm:$0xff]
      %v1300 = vld [vmem:[%s1287 + $0x60] sm:$0xff]
      %v1301 = vld [vmem:[%s1287 + $0x68] sm:$0xff]
      %v1302 = vld [vmem:[%s1287 + $0x70] sm:$0xff]
      %v1303 = vld [vmem:[%s1287 + $0x78] sm:$0xff]
      %1304 = vmatpush.msra.mxu0 %v1303
      %1305 = vmatpush.msra.mxu0 %v1302
      %1306 = vmatpush.msra.mxu0 %v1301
      %1307 = vmatpush.msra.mxu0 %v1300
      %1308 = vmatpush.msra.mxu0 %v1299
      %1309 = vmatpush.msra.mxu0 %v1298
      %1310 = vmatpush.msra.mxu0 %v1297
      %1311 = vmatpush.msra.mxu0 %v1296
      %1312 = vmatpush.msra.mxu0 %v1295
      %1313 = vmatpush.msra.mxu0 %v1294
      %1314 = vmatpush.msra.mxu0 %v1293
      %1315 = vmatpush.msra.mxu0 %v1292
      %1316 = vmatpush.msra.mxu0 %v1291
      %1317 = vmatpush.msra.mxu0 %v1290
      %1318 = vmatpush.msra.mxu0 %v1289
      %1319 = vmatpush.msra.mxu0 %v1288
      %1320 = vmatmul.f32.gmra.mxu0 %v1281
      %v1321 = vpop.f32.mrf.mxu0
      %v1322 = vadd.f32 0.0, %v1321
      %1323 = vmatmul.f32.gmra.mxu0 %v1282
      %v1324 = vpop.f32.mrf.mxu0
      %v1325 = vadd.f32 0.0, %v1324
      %1326 = vmatmul.f32.gmra.mxu0 %v1283
      %v1327 = vpop.f32.mrf.mxu0
      %v1328 = vadd.f32 0.0, %v1327
      %1329 = vdwg.mxu0
      %v1330 = vadd.f32 %v1284, %v1322
      %v1331 = vadd.f32 %v1285, %v1325
      %v1332 = vadd.f32 %v1286, %v1328
      %1333 = vst [vmem:[#allocation2] sm:$0xff] %v1330
      %1334 = vst [vmem:[#allocation2 + $0x8] sm:$0xff] %v1331
      %1335 = vst [vmem:[#allocation2 + $0x10] sm:$0xff] %v1332
      %s1336 = sadd.s32 %s194, 12
      %s1337 = scalar_lea.vmem %s183, %s1336
      %v1338 = vld [vmem:[%s1337] sm:$0xff]
      %v1339 = vld [vmem:[%s1337 + $0x8] sm:$0xff]
      %v1340 = vld [vmem:[%s1337 + $0x10] sm:$0xff]
      %v1341 = vld [vmem:[#allocation2] sm:$0xff]
      %v1342 = vld [vmem:[#allocation2 + $0x8] sm:$0xff]
      %v1343 = vld [vmem:[#allocation2 + $0x10] sm:$0xff]
      %s1344 = scalar_lea.vmem %s1, 2560
      %v1345 = vld [vmem:[%s1344] sm:$0xff]
      %v1346 = vld [vmem:[%s1344 + $0x8] sm:$0xff]
      %v1347 = vld [vmem:[%s1344 + $0x10] sm:$0xff]
      %v1348 = vld [vmem:[%s1344 + $0x18] sm:$0xff]
      %v1349 = vld [vmem:[%s1344 + $0x20] sm:$0xff]
      %v1350 = vld [vmem:[%s1344 + $0x28] sm:$0xff]
      %v1351 = vld [vmem:[%s1344 + $0x30] sm:$0xff]
      %v1352 = vld [vmem:[%s1344 + $0x38] sm:$0xff]
      %v1353 = vld [vmem:[%s1344 + $0x40] sm:$0xff]
      %v1354 = vld [vmem:[%s1344 + $0x48] sm:$0xff]
      %v1355 = vld [vmem:[%s1344 + $0x50] sm:$0xff]
      %v1356 = vld [vmem:[%s1344 + $0x58] sm:$0xff]
      %v1357 = vld [vmem:[%s1344 + $0x60] sm:$0xff]
      %v1358 = vld [vmem:[%s1344 + $0x68] sm:$0xff]
      %v1359 = vld [vmem:[%s1344 + $0x70] sm:$0xff]
      %v1360 = vld [vmem:[%s1344 + $0x78] sm:$0xff]
      %1361 = vmatpush.msra.mxu0 %v1360
      %1362 = vmatpush.msra.mxu0 %v1359
      %1363 = vmatpush.msra.mxu0 %v1358
      %1364 = vmatpush.msra.mxu0 %v1357
      %1365 = vmatpush.msra.mxu0 %v1356
      %1366 = vmatpush.msra.mxu0 %v1355
      %1367 = vmatpush.msra.mxu0 %v1354
      %1368 = vmatpush.msra.mxu0 %v1353
      %1369 = vmatpush.msra.mxu0 %v1352
      %1370 = vmatpush.msra.mxu0 %v1351
      %1371 = vmatpush.msra.mxu0 %v1350
      %1372 = vmatpush.msra.mxu0 %v1349
      %1373 = vmatpush.msra.mxu0 %v1348
      %1374 = vmatpush.msra.mxu0 %v1347
      %1375 = vmatpush.msra.mxu0 %v1346
      %1376 = vmatpush.msra.mxu0 %v1345
      %1377 = vmatmul.f32.gmra.mxu0 %v1338
      %v1378 = vpop.f32.mrf.mxu0
      %v1379 = vadd.f32 0.0, %v1378
      %1380 = vmatmul.f32.gmra.mxu0 %v1339
      %v1381 = vpop.f32.mrf.mxu0
      %v1382 = vadd.f32 0.0, %v1381
      %1383 = vmatmul.f32.gmra.mxu0 %v1340
      %v1384 = vpop.f32.mrf.mxu0
      %v1385 = vadd.f32 0.0, %v1384
      %1386 = vdwg.mxu0
      %v1387 = vadd.f32 %v1341, %v1379
      %v1388 = vadd.f32 %v1342, %v1382
      %v1389 = vadd.f32 %v1343, %v1385
      %1390 = vst [vmem:[#allocation2] sm:$0xff] %v1387
      %1391 = vst [vmem:[#allocation2 + $0x8] sm:$0xff] %v1388
      %1392 = vst [vmem:[#allocation2 + $0x10] sm:$0xff] %v1389
      %s1393 = sadd.s32 %s1336, 40
      %s1394 = scalar_lea.vmem %s183, %s1393
      %v1395 = vld [vmem:[%s1394] sm:$0xff]
      %v1396 = vld [vmem:[%s1394 + $0x8] sm:$0xff]
      %v1397 = vld [vmem:[%s1394 + $0x10] sm:$0xff]
      %v1398 = vld [vmem:[#allocation2] sm:$0xff]
      %v1399 = vld [vmem:[#allocation2 + $0x8] sm:$0xff]
      %v1400 = vld [vmem:[#allocation2 + $0x10] sm:$0xff]
      %s1401 = scalar_lea.vmem %s1, 2688
      %v1402 = vld [vmem:[%s1401] sm:$0xff]
      %v1403 = vld [vmem:[%s1401 + $0x8] sm:$0xff]
      %v1404 = vld [vmem:[%s1401 + $0x10] sm:$0xff]
      %v1405 = vld [vmem:[%s1401 + $0x18] sm:$0xff]
      %v1406 = vld [vmem:[%s1401 + $0x20] sm:$0xff]
      %v1407 = vld [vmem:[%s1401 + $0x28] sm:$0xff]
      %v1408 = vld [vmem:[%s1401 + $0x30] sm:$0xff]
      %v1409 = vld [vmem:[%s1401 + $0x38] sm:$0xff]
      %v1410 = vld [vmem:[%s1401 + $0x40] sm:$0xff]
      %v1411 = vld [vmem:[%s1401 + $0x48] sm:$0xff]
      %v1412 = vld [vmem:[%s1401 + $0x50] sm:$0xff]
      %v1413 = vld [vmem:[%s1401 + $0x58] sm:$0xff]
      %v1414 = vld [vmem:[%s1401 + $0x60] sm:$0xff]
      %v1415 = vld [vmem:[%s1401 + $0x68] sm:$0xff]
      %v1416 = vld [vmem:[%s1401 + $0x70] sm:$0xff]
      %v1417 = vld [vmem:[%s1401 + $0x78] sm:$0xff]
      %1418 = vmatpush.msra.mxu0 %v1417
      %1419 = vmatpush.msra.mxu0 %v1416
      %1420 = vmatpush.msra.mxu0 %v1415
      %1421 = vmatpush.msra.mxu0 %v1414
      %1422 = vmatpush.msra.mxu0 %v1413
      %1423 = vmatpush.msra.mxu0 %v1412
      %1424 = vmatpush.msra.mxu0 %v1411
      %1425 = vmatpush.msra.mxu0 %v1410
      %1426 = vmatpush.msra.mxu0 %v1409
      %1427 = vmatpush.msra.mxu0 %v1408
      %1428 = vmatpush.msra.mxu0 %v1407
      %1429 = vmatpush.msra.mxu0 %v1406
      %1430 = vmatpush.msra.mxu0 %v1405
      %1431 = vmatpush.msra.mxu0 %v1404
      %1432 = vmatpush.msra.mxu0 %v1403
      %1433 = vmatpush.msra.mxu0 %v1402
      %1434 = vmatmul.f32.gmra.mxu0 %v1395
      %v1435 = vpop.f32.mrf.mxu0
      %v1436 = vadd.f32 0.0, %v1435
      %1437 = vmatmul.f32.gmra.mxu0 %v1396
      %v1438 = vpop.f32.mrf.mxu0
      %v1439 = vadd.f32 0.0, %v1438
      %1440 = vmatmul.f32.gmra.mxu0 %v1397
      %v1441 = vpop.f32.mrf.mxu0
      %v1442 = vadd.f32 0.0, %v1441
      %1443 = vdwg.mxu0
      %v1444 = vadd.f32 %v1398, %v1436
      %v1445 = vadd.f32 %v1399, %v1439
      %v1446 = vadd.f32 %v1400, %v1442
      %1447 = vst [vmem:[#allocation2] sm:$0xff] %v1444
      %1448 = vst [vmem:[#allocation2 + $0x8] sm:$0xff] %v1445
      %1449 = vst [vmem:[#allocation2 + $0x10] sm:$0xff] %v1446
      %s1450 = sadd.s32 %s194, 13
      %s1451 = scalar_lea.vmem %s183, %s1450
      %v1452 = vld [vmem:[%s1451] sm:$0xff]
      %v1453 = vld [vmem:[%s1451 + $0x8] sm:$0xff]
      %v1454 = vld [vmem:[%s1451 + $0x10] sm:$0xff]
      %v1455 = vld [vmem:[#allocation2] sm:$0xff]
      %v1456 = vld [vmem:[#allocation2 + $0x8] sm:$0xff]
      %v1457 = vld [vmem:[#allocation2 + $0x10] sm:$0xff]
      %s1458 = scalar_lea.vmem %s1, 2816
      %v1459 = vld [vmem:[%s1458] sm:$0xff]
      %v1460 = vld [vmem:[%s1458 + $0x8] sm:$0xff]
      %v1461 = vld [vmem:[%s1458 + $0x10] sm:$0xff]
      %v1462 = vld [vmem:[%s1458 + $0x18] sm:$0xff]
      %v1463 = vld [vmem:[%s1458 + $0x20] sm:$0xff]
      %v1464 = vld [vmem:[%s1458 + $0x28] sm:$0xff]
      %v1465 = vld [vmem:[%s1458 + $0x30] sm:$0xff]
      %v1466 = vld [vmem:[%s1458 + $0x38] sm:$0xff]
      %v1467 = vld [vmem:[%s1458 + $0x40] sm:$0xff]
      %v1468 = vld [vmem:[%s1458 + $0x48] sm:$0xff]
      %v1469 = vld [vmem:[%s1458 + $0x50] sm:$0xff]
      %v1470 = vld [vmem:[%s1458 + $0x58] sm:$0xff]
      %v1471 = vld [vmem:[%s1458 + $0x60] sm:$0xff]
      %v1472 = vld [vmem:[%s1458 + $0x68] sm:$0xff]
      %v1473 = vld [vmem:[%s1458 + $0x70] sm:$0xff]
      %v1474 = vld [vmem:[%s1458 + $0x78] sm:$0xff]
      %1475 = vmatpush.msra.mxu0 %v1474
      %1476 = vmatpush.msra.mxu0 %v1473
      %1477 = vmatpush.msra.mxu0 %v1472
      %1478 = vmatpush.msra.mxu0 %v1471
      %1479 = vmatpush.msra.mxu0 %v1470
      %1480 = vmatpush.msra.mxu0 %v1469
      %1481 = vmatpush.msra.mxu0 %v1468
      %1482 = vmatpush.msra.mxu0 %v1467
      %1483 = vmatpush.msra.mxu0 %v1466
      %1484 = vmatpush.msra.mxu0 %v1465
      %1485 = vmatpush.msra.mxu0 %v1464
      %1486 = vmatpush.msra.mxu0 %v1463
      %1487 = vmatpush.msra.mxu0 %v1462
      %1488 = vmatpush.msra.mxu0 %v1461
      %1489 = vmatpush.msra.mxu0 %v1460
      %1490 = vmatpush.msra.mxu0 %v1459
      %1491 = vmatmul.f32.gmra.mxu0 %v1452
      %v1492 = vpop.f32.mrf.mxu0
      %v1493 = vadd.f32 0.0, %v1492
      %1494 = vmatmul.f32.gmra.mxu0 %v1453
      %v1495 = vpop.f32.mrf.mxu0
      %v1496 = vadd.f32 0.0, %v1495
      %1497 = vmatmul.f32.gmra.mxu0 %v1454
      %v1498 = vpop.f32.mrf.mxu0
      %v1499 = vadd.f32 0.0, %v1498
      %1500 = vdwg.mxu0
      %v1501 = vadd.f32 %v1455, %v1493
      %v1502 = vadd.f32 %v1456, %v1496
      %v1503 = vadd.f32 %v1457, %v1499
      %1504 = vst [vmem:[#allocation2] sm:$0xff] %v1501
      %1505 = vst [vmem:[#allocation2 + $0x8] sm:$0xff] %v1502
      %1506 = vst [vmem:[#allocation2 + $0x10] sm:$0xff] %v1503
      %s1507 = sadd.s32 %s1450, 40
      %s1508 = scalar_lea.vmem %s183, %s1507
      %v1509 = vld [vmem:[%s1508] sm:$0xff]
      %v1510 = vld [vmem:[%s1508 + $0x8] sm:$0xff]
      %v1511 = vld [vmem:[%s1508 + $0x10] sm:$0xff]
      %v1512 = vld [vmem:[#allocation2] sm:$0xff]
      %v1513 = vld [vmem:[#allocation2 + $0x8] sm:$0xff]
      %v1514 = vld [vmem:[#allocation2 + $0x10] sm:$0xff]
      %s1515 = scalar_lea.vmem %s1, 2944
      %v1516 = vld [vmem:[%s1515] sm:$0xff]
      %v1517 = vld [vmem:[%s1515 + $0x8] sm:$0xff]
      %v1518 = vld [vmem:[%s1515 + $0x10] sm:$0xff]
      %v1519 = vld [vmem:[%s1515 + $0x18] sm:$0xff]
      %v1520 = vld [vmem:[%s1515 + $0x20] sm:$0xff]
      %v1521 = vld [vmem:[%s1515 + $0x28] sm:$0xff]
      %v1522 = vld [vmem:[%s1515 + $0x30] sm:$0xff]
      %v1523 = vld [vmem:[%s1515 + $0x38] sm:$0xff]
      %v1524 = vld [vmem:[%s1515 + $0x40] sm:$0xff]
      %v1525 = vld [vmem:[%s1515 + $0x48] sm:$0xff]
      %v1526 = vld [vmem:[%s1515 + $0x50] sm:$0xff]
      %v1527 = vld [vmem:[%s1515 + $0x58] sm:$0xff]
      %v1528 = vld [vmem:[%s1515 + $0x60] sm:$0xff]
      %v1529 = vld [vmem:[%s1515 + $0x68] sm:$0xff]
      %v1530 = vld [vmem:[%s1515 + $0x70] sm:$0xff]
      %v1531 = vld [vmem:[%s1515 + $0x78] sm:$0xff]
      %1532 = vmatpush.msra.mxu0 %v1531
      %1533 = vmatpush.msra.mxu0 %v1530
      %1534 = vmatpush.msra.mxu0 %v1529
      %1535 = vmatpush.msra.mxu0 %v1528
      %1536 = vmatpush.msra.mxu0 %v1527
      %1537 = vmatpush.msra.mxu0 %v1526
      %1538 = vmatpush.msra.mxu0 %v1525
      %1539 = vmatpush.msra.mxu0 %v1524
      %1540 = vmatpush.msra.mxu0 %v1523
      %1541 = vmatpush.msra.mxu0 %v1522
      %1542 = vmatpush.msra.mxu0 %v1521
      %1543 = vmatpush.msra.mxu0 %v1520
      %1544 = vmatpush.msra.mxu0 %v1519
      %1545 = vmatpush.msra.mxu0 %v1518
      %1546 = vmatpush.msra.mxu0 %v1517
      %1547 = vmatpush.msra.mxu0 %v1516
      %1548 = vmatmul.f32.gmra.mxu0 %v1509
      %v1549 = vpop.f32.mrf.mxu0
      %v1550 = vadd.f32 0.0, %v1549
      %1551 = vmatmul.f32.gmra.mxu0 %v1510
      %v1552 = vpop.f32.mrf.mxu0
      %v1553 = vadd.f32 0.0, %v1552
      %1554 = vmatmul.f32.gmra.mxu0 %v1511
      %v1555 = vpop.f32.mrf.mxu0
      %v1556 = vadd.f32 0.0, %v1555
      %1557 = vdwg.mxu0
      %v1558 = vadd.f32 %v1512, %v1550
      %v1559 = vadd.f32 %v1513, %v1553
      %v1560 = vadd.f32 %v1514, %v1556
      %1561 = vst [vmem:[#allocation2] sm:$0xff] %v1558
      %1562 = vst [vmem:[#allocation2 + $0x8] sm:$0xff] %v1559
      %1563 = vst [vmem:[#allocation2 + $0x10] sm:$0xff] %v1560
      %s1564 = sadd.s32 %s194, 14
      %s1565 = scalar_lea.vmem %s183, %s1564
      %v1566 = vld [vmem:[%s1565] sm:$0xff]
      %v1567 = vld [vmem:[%s1565 + $0x8] sm:$0xff]
      %v1568 = vld [vmem:[%s1565 + $0x10] sm:$0xff]
      %v1569 = vld [vmem:[#allocation2] sm:$0xff]
      %v1570 = vld [vmem:[#allocation2 + $0x8] sm:$0xff]
      %v1571 = vld [vmem:[#allocation2 + $0x10] sm:$0xff]
      %s1572 = scalar_lea.vmem %s1, 3072
      %v1573 = vld [vmem:[%s1572] sm:$0xff]
      %v1574 = vld [vmem:[%s1572 + $0x8] sm:$0xff]
      %v1575 = vld [vmem:[%s1572 + $0x10] sm:$0xff]
      %v1576 = vld [vmem:[%s1572 + $0x18] sm:$0xff]
      %v1577 = vld [vmem:[%s1572 + $0x20] sm:$0xff]
      %v1578 = vld [vmem:[%s1572 + $0x28] sm:$0xff]
      %v1579 = vld [vmem:[%s1572 + $0x30] sm:$0xff]
      %v1580 = vld [vmem:[%s1572 + $0x38] sm:$0xff]
      %v1581 = vld [vmem:[%s1572 + $0x40] sm:$0xff]
      %v1582 = vld [vmem:[%s1572 + $0x48] sm:$0xff]
      %v1583 = vld [vmem:[%s1572 + $0x50] sm:$0xff]
      %v1584 = vld [vmem:[%s1572 + $0x58] sm:$0xff]
      %v1585 = vld [vmem:[%s1572 + $0x60] sm:$0xff]
      %v1586 = vld [vmem:[%s1572 + $0x68] sm:$0xff]
      %v1587 = vld [vmem:[%s1572 + $0x70] sm:$0xff]
      %v1588 = vld [vmem:[%s1572 + $0x78] sm:$0xff]
      %1589 = vmatpush.msra.mxu0 %v1588
      %1590 = vmatpush.msra.mxu0 %v1587
      %1591 = vmatpush.msra.mxu0 %v1586
      %1592 = vmatpush.msra.mxu0 %v1585
      %1593 = vmatpush.msra.mxu0 %v1584
      %1594 = vmatpush.msra.mxu0 %v1583
      %1595 = vmatpush.msra.mxu0 %v1582
      %1596 = vmatpush.msra.mxu0 %v1581
      %1597 = vmatpush.msra.mxu0 %v1580
      %1598 = vmatpush.msra.mxu0 %v1579
      %1599 = vmatpush.msra.mxu0 %v1578
      %1600 = vmatpush.msra.mxu0 %v1577
      %1601 = vmatpush.msra.mxu0 %v1576
      %1602 = vmatpush.msra.mxu0 %v1575
      %1603 = vmatpush.msra.mxu0 %v1574
      %1604 = vmatpush.msra.mxu0 %v1573
      %1605 = vmatmul.f32.gmra.mxu0 %v1566
      %v1606 = vpop.f32.mrf.mxu0
      %v1607 = vadd.f32 0.0, %v1606
      %1608 = vmatmul.f32.gmra.mxu0 %v1567
      %v1609 = vpop.f32.mrf.mxu0
      %v1610 = vadd.f32 0.0, %v1609
      %1611 = vmatmul.f32.gmra.mxu0 %v1568
      %v1612 = vpop.f32.mrf.mxu0
      %v1613 = vadd.f32 0.0, %v1612
      %1614 = vdwg.mxu0
      %v1615 = vadd.f32 %v1569, %v1607
      %v1616 = vadd.f32 %v1570, %v1610
      %v1617 = vadd.f32 %v1571, %v1613
      %1618 = vst [vmem:[#allocation2] sm:$0xff] %v1615
      %1619 = vst [vmem:[#allocation2 + $0x8] sm:$0xff] %v1616
      %1620 = vst [vmem:[#allocation2 + $0x10] sm:$0xff] %v1617
      %v1621 = vld [vmem:[#allocation2] sm:$0xff]
      %v1622 = vld [vmem:[#allocation2 + $0x8] sm:$0xff]
      %v1623 = vld [vmem:[#allocation2 + $0x10] sm:$0xff]
      %v1624 = vld [vmem:[%s2] sm:$0x1]
      %v1626 = vperm.slane %v1624, 0
      %v1628 = vadd.f32 %v1621, %v1626
      %v1629 = vadd.f32 %v1622, %v1626
      %v1630 = vadd.f32 %v1623, %v1626
      %1631 = vst [vmem:[%s192] sm:$0xff] %v1628
      %1632 = vst [vmem:[%s192 + $0x8] sm:$0xff] %v1629
      %1633 = vst [vmem:[%s192 + $0x10] sm:$0xff] %v1630
      %s1634 = smul.u32 3, %s19
      %p1635 = scmp.lt.s32.totalorder %s18, 1
      %s1636 = scalar_select %p1635, %s18, 1
      %p1637 = scmp.lt.s32.totalorder %s1634, 2
      %s1638 = scalar_select %p1637, %s1634, 2
      %s1639 = smul.addr %s1636, 3
      %s1640 = sadd.s32 %s1638, %s1639
      %s1641 = smul.addr %s1640, 8
      %s1642 = scalar_lea.vmem %s3, %s1641
      // Predicated region
      $region33: #{analysis_prior_net.5} parent=31 // pred_check
        %p1643 = pneg %p114
      $region34: #{analysis_prior_net.5} parent=31 // pred_check_branch
        %1645 = sbr.rel (%p1643) target = $region36
      $region35: #{analysis_prior_net.5} parent=31 // pred_region
        %s1646 = smul.u32 3, %s19
      $region36: #{analysis_prior_net.5} parent=31 // pred_fallthru
        _
    $region32: #{analysis_prior_net.5} parent=5 // pred_fallthru
      _
    %p1647 = scmp.le.s32.totalorder 2, %s9
    // Predicated region
    $region37: #{analysis_prior_net.5} parent=5 // pred_check
      %p1648 = pneg %p1647
    $region38: #{analysis_prior_net.5} parent=5 // pred_check_branch
      %1650 = sbr.rel (%p1648) target = $region40
    $region39: #{analysis_prior_net.5} parent=5 // pred_region
      %s1651 = ssub.s32 %s9, 2
      // Predicated region
      $region41: #{analysis_prior_net.5} parent=39 // pred_check
        %p1652 = pneg %p120
      $region42: #{analysis_prior_net.5} parent=39 // pred_check_branch
        %1654 = sbr.rel (%p1652) target = $region44
      $region43: #{analysis_prior_net.5} parent=39 // pred_region
        %s1655 = smul.u32 3, %s21
        %p1656 = scmp.lt.s32.totalorder %s20, 1
        %s1657 = scalar_select %p1656, %s20, 1
        %p1658 = scmp.lt.s32.totalorder %s1655, 2
        %s1659 = scalar_select %p1658, %s1655, 2
        %s1660 = smul.addr %s1657, 3
        %s1661 = sadd.s32 %s1659, %s1660
        %s1662 = smul.addr %s1661, 8
        %s1663 = scalar_lea.vmem %s3, %s1662
      $region44: #{analysis_prior_net.5} parent=39 // pred_fallthru
        _
    $region40: #{analysis_prior_net.5} parent=5 // pred_fallthru
      _
  $region6: #{analysis_prior_net.5} parent=0 // loop_footer
    %s13 = sadd.s32 1, %s9
  $region7: #{analysis_prior_net.5} parent=0 // loop_footer_branch
    %8 = sbr.rel target = $region3
  $region8: #{analysis_prior_net.5} parent=0 // loop_exit
    _

// kernel: analysis_prior_net.4
$region0: #{analysis_prior_net.4}
  #allocation0 [shape = 'u32[]', space=smem, size = 0x4, offset = 0x4, fixed_abs, tag = 'smem constant byte address 0x4 - core index']
  #allocation1 [shape = 'u32[72,128]{1,0:T(1,128)}', space=vmem, size = 0x9000, scoped, tag = 'internal scratch']
  #allocation2 [shape = 'f32[80,128]{1,0:T(8,128)}', space=vmem, size = 0xa000, scoped, tag = 'scratch operand']
  %s0 = inlined_call_operand.vmem [shape: f32[2,4,104,128], index: 0, kind: input, shape index: {}]
  %s1 = inlined_call_operand.vmem [shape: f32[25,128,128], index: 1, kind: input, shape index: {}]
  %s2 = inlined_call_operand.vmem [shape: f32[1,128], index: 2, kind: input, shape index: {}]
  %s3 = inlined_call_operand.vmem [shape: f32[2,80,128], index: 3, kind: output, shape index: {}]
  %s4 = sld [smem:[#allocation0]]
  $region45: #{analysis_prior_net.4} parent=0
    _
  %s6 = ssub.s32 1, %s4
  %s7 = scalar_select 0, %s6, %s4
  loop: start=0, step=1, limit=4
  $region2: #{analysis_prior_net.4} parent=0 // loop_pre_header
    _
  $region3: #{analysis_prior_net.4} parent=0 // loop_header
    %s9 = sphi 0, %s13
    %p10 = scmp.ge.s32.totalorder %s9, 4
    %s16 = sphi 0, %s28
    %s17 = sphi 0, %s24
    %s18 = sphi 0, %s16
    %s19 = sphi 0, %s17
    %s20 = sphi 0, %s18
    %s21 = sphi 0, %s19
    %s31 = sphi 0, %s33
    %s34 = sphi 0, %s31
    %s35 = sphi 0, %s34
    %s51 = sphi 0, %s35
    %s55 = sphi 0, %s55
    %s57 = sphi 0, %s55
    %s58 = sphi 0, %s57
    %s72 = sphi 0, %s58
    %s76 = sphi 0, %s76
    %s78 = sphi 0, %s76
    %s79 = sphi 0, %s78
    %s93 = sphi 0, %s79
    %s101 = sphi 0, %s103
    %s104 = sphi 0, %s101
    %s105 = sphi 0, %s104
    %s121 = sphi 0, %s105
  $region4: #{analysis_prior_net.4} parent=0 // loop_header_branch
    %12 = sbr.rel (%p10) target = $region8
  $region5: #{analysis_prior_net.4} parent=0 // loop_body
    %s14 = ssub.s32 %s9, 1
    %s15 = ssub.s32 %s9, 2
    %s22 = sadd.s32 1, %s17
    %p23 = scmp.ge.s32.totalorder %s22, 1
    %s24 = scalar_select %p23, 0, %s22
    %s25 = sadd.s32 1, %s16
    %s26 = scalar_select %p23, %s25, %s16
    %p27 = scmp.ge.s32.totalorder %s26, 2
    %s28 = scalar_select %p27, 0, %s26
    %s29 = ssub.s32 %s16, %s28
    %p30 = scmp.eq.s32.totalorder %s29, 0
    %s32 = sadd.s32 %s31, 1
    %s33 = scalar_select %p30, %s31, %s32
    %p36 = pneg %p30
    %p37 = scmp.eq.s32.totalorder %s9, 1
    %p38 = por %p36, %p37
    %p39 = scmp.ne.s32.totalorder %s31, %s34
    %p40 = scmp.eq.s32.totalorder %s9, 0
    %p41 = por %p39, %p40
    %p42 = scmp.ne.s32.totalorder %s31, %s34
    %p43 = scmp.eq.s32.totalorder %s14, 1
    %p44 = por %p42, %p43
    %p45 = scmp.ne.s32.totalorder %s34, %s35
    %p46 = scmp.eq.s32.totalorder %s14, 0
    %p47 = por %p45, %p46
    %p48 = scmp.ne.s32.totalorder %s34, %s35
    %p49 = scmp.eq.s32.totalorder %s15, 1
    %p50 = por %p48, %p49
    %p52 = scmp.ne.s32.totalorder %s35, %s51
    %p53 = scmp.eq.s32.totalorder %s15, 0
    %p54 = por %p52, %p53
    %s56 = sadd.s32 %s55, 1
    %p59 = scmp.eq.s32.totalorder %s9, 1
    %p60 = scmp.ne.s32.totalorder %s55, %s57
    %p61 = scmp.eq.s32.totalorder %s9, 0
    %p62 = por %p60, %p61
    %p63 = scmp.ne.s32.totalorder %s55, %s57
    %p64 = scmp.eq.s32.totalorder %s14, 1
    %p65 = por %p63, %p64
    %p66 = scmp.ne.s32.totalorder %s57, %s58
    %p67 = scmp.eq.s32.totalorder %s14, 0
    %p68 = por %p66, %p67
    %p69 = scmp.ne.s32.totalorder %s57, %s58
    %p70 = scmp.eq.s32.totalorder %s15, 1
    %p71 = por %p69, %p70
    %p73 = scmp.ne.s32.totalorder %s58, %s72
    %p74 = scmp.eq.s32.totalorder %s15, 0
    %p75 = por %p73, %p74
    %s77 = sadd.s32 %s76, 1
    %p80 = scmp.eq.s32.totalorder %s9, 1
    %p81 = scmp.ne.s32.totalorder %s76, %s78
    %p82 = scmp.eq.s32.totalorder %s9, 0
    %p83 = por %p81, %p82
    %p84 = scmp.ne.s32.totalorder %s76, %s78
    %p85 = scmp.eq.s32.totalorder %s14, 1
    %p86 = por %p84, %p85
    %p87 = scmp.ne.s32.totalorder %s78, %s79
    %p88 = scmp.eq.s32.totalorder %s14, 0
    %p89 = por %p87, %p88
    %p90 = scmp.ne.s32.totalorder %s78, %s79
    %p91 = scmp.eq.s32.totalorder %s15, 1
    %p92 = por %p90, %p91
    %p94 = scmp.ne.s32.totalorder %s79, %s93
    %p95 = scmp.eq.s32.totalorder %s15, 0
    %p96 = por %p94, %p95
    %s97 = ssub.s32 %s16, %s28
    %s98 = ssub.s32 %s17, %s24
    %s99 = sor.u32 %s97, %s98
    %p100 = scmp.eq.s32.totalorder %s99, 0
    %s102 = sadd.s32 %s101, 1
    %s103 = scalar_select %p100, %s101, %s102
    %p106 = pneg %p100
    %p107 = scmp.eq.s32.totalorder %s9, 1
    %p108 = por %p106, %p107
    %p109 = scmp.ne.s32.totalorder %s101, %s104
    %p110 = scmp.eq.s32.totalorder %s9, 0
    %p111 = por %p109, %p110
    %p112 = scmp.ne.s32.totalorder %s101, %s104
    %p113 = scmp.eq.s32.totalorder %s14, 1
    %p114 = por %p112, %p113
    %p115 = scmp.ne.s32.totalorder %s104, %s105
    %p116 = scmp.eq.s32.totalorder %s14, 0
    %p117 = por %p115, %p116
    %p118 = scmp.ne.s32.totalorder %s104, %s105
    %p119 = scmp.eq.s32.totalorder %s15, 1
    %p120 = por %p118, %p119
    %p122 = scmp.ne.s32.totalorder %s105, %s121
    %p123 = scmp.eq.s32.totalorder %s15, 0
    %p124 = por %p122, %p123
    %p125 = scmp.le.s32.totalorder 1, %s9
    %p126 = scmp.lt.s32.totalorder %s9, 3
    %p127 = pnand %p125, %p126
    %p128 = pneg %p127
    // Predicated region
    $region9: #{analysis_prior_net.4} parent=5 // pred_check
      _
    $region10: #{analysis_prior_net.4} parent=5 // pred_check_branch
      %130 = sbr.rel (%p127) target = $region12
    $region11: #{analysis_prior_net.4} parent=5 // pred_region
      %s131 = ssub.s32 %s9, 1
      // Predicated region
      $region13: #{analysis_prior_net.4} parent=11 // pred_check
        %p132 = pneg %p68
      $region14: #{analysis_prior_net.4} parent=11 // pred_check_branch
        %134 = sbr.rel (%p132) target = $region16
      $region15: #{analysis_prior_net.4} parent=11 // pred_region
        _
      $region16: #{analysis_prior_net.4} parent=11 // pred_fallthru
        _
      // Predicated region
      $region17: #{analysis_prior_net.4} parent=11 // pred_check
        %p135 = pneg %p89
      $region18: #{analysis_prior_net.4} parent=11 // pred_check_branch
        %137 = sbr.rel (%p135) target = $region20
      $region19: #{analysis_prior_net.4} parent=11 // pred_region
        _
      $region20: #{analysis_prior_net.4} parent=11 // pred_fallthru
        _
    $region12: #{analysis_prior_net.4} parent=5 // pred_fallthru
      _
    %p138 = scmp.lt.s32.totalorder %s9, 2
    // Predicated region
    $region21: #{analysis_prior_net.4} parent=5 // pred_check
      %p139 = pneg %p138
    $region22: #{analysis_prior_net.4} parent=5 // pred_check_branch
      %141 = sbr.rel (%p139) target = $region24
    $region23: #{analysis_prior_net.4} parent=5 // pred_region
      // Predicated region
      $region25: #{analysis_prior_net.4} parent=23 // pred_check
        %p142 = pneg %p41
      $region26: #{analysis_prior_net.4} parent=23 // pred_check_branch
        %144 = sbr.rel (%p142) target = $region28
      $region27: #{analysis_prior_net.4} parent=23 // pred_region
        %p145 = scmp.lt.s32.totalorder %s16, 1
        %s146 = scalar_select %p145, %s16, 1
        %s147 = smul.addr %s146, 52
        %s148 = smul.addr %s147, 8
        %s149 = scalar_lea.vmem %s0, %s148
      $region28: #{analysis_prior_net.4} parent=23 // pred_fallthru
        _
    $region24: #{analysis_prior_net.4} parent=5 // pred_fallthru
      _
    %p150 = scmp.le.s32.totalorder 1, %s9
    %p151 = scmp.lt.s32.totalorder %s9, 3
    %p152 = pnand %p150, %p151
    %p153 = pneg %p152
    // Predicated region
    $region29: #{analysis_prior_net.4} parent=5 // pred_check
      _
    $region30: #{analysis_prior_net.4} parent=5 // pred_check_branch
      %155 = sbr.rel (%p152) target = $region32
    $region31: #{analysis_prior_net.4} parent=5 // pred_region
      %s156 = ssub.s32 %s9, 1
      %p157 = scmp.lt.s32.totalorder %s18, 1
      %s158 = scalar_select %p157, %s18, 1
      %s159 = smul.addr %s158, 52
      %s160 = smul.addr %s159, 8
      %s161 = scalar_lea.vmem %s0, %s160
      %p162 = pneg %p47
      %p163 = pneg %p44
      %p164 = pneg %p68
      %p165 = pneg %p65
      %p166 = pneg %p89
      %p167 = pneg %p86
      %p168 = pneg %p117
      %p169 = pneg %p114
      %s170 = smul.u32 10, %s19
      %p171 = scmp.lt.s32.totalorder %s18, 1
      %s172 = scalar_select %p171, %s18, 1
      %p173 = scmp.lt.s32.totalorder %s170, 9
      %s174 = scalar_select %p173, %s170, 9
      %s175 = smul.addr %s172, 10
      %s176 = sadd.s32 %s174, %s175
      %s177 = smul.addr %s176, 8
      %s178 = scalar_lea.vmem %s3, %s177
      %p179 = scmp.lt.s32.totalorder %s18, 1
      %s180 = scalar_select %p179, %s18, 1
      %s181 = smul.addr %s180, 52
      %s182 = smul.addr %s181, 8
      %s183 = scalar_lea.vmem %s0, %s182
      %s184 = smul.u32 10, %s19
      %p185 = scmp.lt.s32.totalorder %s18, 1
      %s186 = scalar_select %p185, %s18, 1
      %p187 = scmp.lt.s32.totalorder %s184, 9
      %s188 = scalar_select %p187, %s184, 9
      %s189 = smul.addr %s186, 10
      %s190 = sadd.s32 %s188, %s189
      %s191 = smul.addr %s190, 8
      %s192 = scalar_lea.vmem %s3, %s191
      %s193 = smul.u32 10, %s19
      %s194 = smul.u32 %s19, 80
      %195 = vst [vmem:[#allocation2] sm:$0xff] 0.0
      %196 = vst [vmem:[#allocation2 + $0x8] sm:$0xff] 0.0
      %197 = vst [vmem:[#allocation2 + $0x10] sm:$0xff] 0.0
      %198 = vst [vmem:[#allocation2 + $0x18] sm:$0xff] 0.0
      %199 = vst [vmem:[#allocation2 + $0x20] sm:$0xff] 0.0
      %200 = vst [vmem:[#allocation2 + $0x28] sm:$0xff] 0.0
      %201 = vst [vmem:[#allocation2 + $0x30] sm:$0xff] 0.0
      %202 = vst [vmem:[#allocation2 + $0x38] sm:$0xff] 0.0
      %203 = vst [vmem:[#allocation2 + $0x40] sm:$0xff] 0.0
      %204 = vst [vmem:[#allocation2 + $0x48] sm:$0xff] 0.0
      %s205 = scalar_lea.vmem %s183, %s194
      %v206 = vld [vmem:[%s205] sm:$0xff]
      %v207 = vld [vmem:[%s205 + $0x8] sm:$0xff]
      %v208 = vld [vmem:[%s205 + $0x10] sm:$0xff]
      %v209 = vld [vmem:[%s205 + $0x18] sm:$0xff]
      %v210 = vld [vmem:[%s205 + $0x20] sm:$0xff]
      %v211 = vld [vmem:[%s205 + $0x28] sm:$0xff]
      %v212 = vld [vmem:[%s205 + $0x30] sm:$0xff]
      %v213 = vld [vmem:[%s205 + $0x38] sm:$0xff]
      %v214 = vld [vmem:[%s205 + $0x40] sm:$0xff]
      %v215 = vld [vmem:[%s205 + $0x48] sm:$0xff]
      %v216 = vld [vmem:[#allocation2] sm:$0xff]
      %v217 = vld [vmem:[#allocation2 + $0x8] sm:$0xff]
      %v218 = vld [vmem:[#allocation2 + $0x10] sm:$0xff]
      %v219 = vld [vmem:[#allocation2 + $0x18] sm:$0xff]
      %v220 = vld [vmem:[#allocation2 + $0x20] sm:$0xff]
      %v221 = vld [vmem:[#allocation2 + $0x28] sm:$0xff]
      %v222 = vld [vmem:[#allocation2 + $0x30] sm:$0xff]
      %v223 = vld [vmem:[#allocation2 + $0x38] sm:$0xff]
      %v224 = vld [vmem:[#allocation2 + $0x40] sm:$0xff]
      %v225 = vld [vmem:[#allocation2 + $0x48] sm:$0xff]
      %v226 = vld [vmem:[%s1] sm:$0xff]
      %v227 = vld [vmem:[%s1 + $0x8] sm:$0xff]
      %v228 = vld [vmem:[%s1 + $0x10] sm:$0xff]
      %v229 = vld [vmem:[%s1 + $0x18] sm:$0xff]
      %v230 = vld [vmem:[%s1 + $0x20] sm:$0xff]
      %v231 = vld [vmem:[%s1 + $0x28] sm:$0xff]
      %v232 = vld [vmem:[%s1 + $0x30] sm:$0xff]
      %v233 = vld [vmem:[%s1 + $0x38] sm:$0xff]
      %v234 = vld [vmem:[%s1 + $0x40] sm:$0xff]
      %v235 = vld [vmem:[%s1 + $0x48] sm:$0xff]
      %v236 = vld [vmem:[%s1 + $0x50] sm:$0xff]
      %v237 = vld [vmem:[%s1 + $0x58] sm:$0xff]
      %v238 = vld [vmem:[%s1 + $0x60] sm:$0xff]
      %v239 = vld [vmem:[%s1 + $0x68] sm:$0xff]
      %v240 = vld [vmem:[%s1 + $0x70] sm:$0xff]
      %v241 = vld [vmem:[%s1 + $0x78] sm:$0xff]
      %242 = vmatpush.msra.mxu0 %v241
      %243 = vmatpush.msra.mxu0 %v240
      %244 = vmatpush.msra.mxu0 %v239
      %245 = vmatpush.msra.mxu0 %v238
      %246 = vmatpush.msra.mxu0 %v237
      %247 = vmatpush.msra.mxu0 %v236
      %248 = vmatpush.msra.mxu0 %v235
      %249 = vmatpush.msra.mxu0 %v234
      %250 = vmatpush.msra.mxu0 %v233
      %251 = vmatpush.msra.mxu0 %v232
      %252 = vmatpush.msra.mxu0 %v231
      %253 = vmatpush.msra.mxu0 %v230
      %254 = vmatpush.msra.mxu0 %v229
      %255 = vmatpush.msra.mxu0 %v228
      %256 = vmatpush.msra.mxu0 %v227
      %257 = vmatpush.msra.mxu0 %v226
      %258 = vmatmul.f32.gmra.mxu0 %v206
      %v259 = vpop.f32.mrf.mxu0
      %v260 = vadd.f32 0.0, %v259
      %261 = vmatmul.f32.gmra.mxu0 %v207
      %v262 = vpop.f32.mrf.mxu0
      %v263 = vadd.f32 0.0, %v262
      %264 = vmatmul.f32.gmra.mxu0 %v208
      %v265 = vpop.f32.mrf.mxu0
      %v266 = vadd.f32 0.0, %v265
      %267 = vmatmul.f32.gmra.mxu0 %v209
      %v268 = vpop.f32.mrf.mxu0
      %v269 = vadd.f32 0.0, %v268
      %270 = vmatmul.f32.gmra.mxu0 %v210
      %v271 = vpop.f32.mrf.mxu0
      %v272 = vadd.f32 0.0, %v271
      %273 = vmatmul.f32.gmra.mxu0 %v211
      %v274 = vpop.f32.mrf.mxu0
      %v275 = vadd.f32 0.0, %v274
      %276 = vmatmul.f32.gmra.mxu0 %v212
      %v277 = vpop.f32.mrf.mxu0
      %v278 = vadd.f32 0.0, %v277
      %279 = vmatmul.f32.gmra.mxu0 %v213
      %v280 = vpop.f32.mrf.mxu0
      %v281 = vadd.f32 0.0, %v280
      %282 = vmatmul.f32.gmra.mxu0 %v214
      %v283 = vpop.f32.mrf.mxu0
      %v284 = vadd.f32 0.0, %v283
      %285 = vmatmul.f32.gmra.mxu0 %v215
      %v286 = vpop.f32.mrf.mxu0
      %v287 = vadd.f32 0.0, %v286
      %288 = vdwg.mxu0
      %v289 = vadd.f32 %v216, %v260
      %v290 = vadd.f32 %v217, %v263
      %v291 = vadd.f32 %v218, %v266
      %v292 = vadd.f32 %v219, %v269
      %v293 = vadd.f32 %v220, %v272
      %v294 = vadd.f32 %v221, %v275
      %v295 = vadd.f32 %v222, %v278
      %v296 = vadd.f32 %v223, %v281
      %v297 = vadd.f32 %v224, %v284
      %v298 = vadd.f32 %v225, %v287
      %299 = vst [vmem:[#allocation2] sm:$0xff] %v289
      %300 = vst [vmem:[#allocation2 + $0x8] sm:$0xff] %v290
      %301 = vst [vmem:[#allocation2 + $0x10] sm:$0xff] %v291
      %302 = vst [vmem:[#allocation2 + $0x18] sm:$0xff] %v292
      %303 = vst [vmem:[#allocation2 + $0x20] sm:$0xff] %v293
      %304 = vst [vmem:[#allocation2 + $0x28] sm:$0xff] %v294
      %305 = vst [vmem:[#allocation2 + $0x30] sm:$0xff] %v295
      %306 = vst [vmem:[#allocation2 + $0x38] sm:$0xff] %v296
      %307 = vst [vmem:[#allocation2 + $0x40] sm:$0xff] %v297
      %308 = vst [vmem:[#allocation2 + $0x48] sm:$0xff] %v298
      %s309 = sadd.s32 %s194, 104
      %s310 = scalar_lea.vmem %s183, %s309
      %v311 = vld [vmem:[%s310] sm:$0xff]
      %v312 = vld [vmem:[%s310 + $0x8] sm:$0xff]
      %v313 = vld [vmem:[%s310 + $0x10] sm:$0xff]
      %v314 = vld [vmem:[%s310 + $0x18] sm:$0xff]
      %v315 = vld [vmem:[%s310 + $0x20] sm:$0xff]
      %v316 = vld [vmem:[%s310 + $0x28] sm:$0xff]
      %v317 = vld [vmem:[%s310 + $0x30] sm:$0xff]
      %v318 = vld [vmem:[%s310 + $0x38] sm:$0xff]
      %v319 = vld [vmem:[%s310 + $0x40] sm:$0xff]
      %v320 = vld [vmem:[%s310 + $0x48] sm:$0xff]
      %v321 = vld [vmem:[#allocation2] sm:$0xff]
      %v322 = vld [vmem:[#allocation2 + $0x8] sm:$0xff]
      %v323 = vld [vmem:[#allocation2 + $0x10] sm:$0xff]
      %v324 = vld [vmem:[#allocation2 + $0x18] sm:$0xff]
      %v325 = vld [vmem:[#allocation2 + $0x20] sm:$0xff]
      %v326 = vld [vmem:[#allocation2 + $0x28] sm:$0xff]
      %v327 = vld [vmem:[#allocation2 + $0x30] sm:$0xff]
      %v328 = vld [vmem:[#allocation2 + $0x38] sm:$0xff]
      %v329 = vld [vmem:[#allocation2 + $0x40] sm:$0xff]
      %v330 = vld [vmem:[#allocation2 + $0x48] sm:$0xff]
      %s331 = scalar_lea.vmem %s1, 128
      %v332 = vld [vmem:[%s331] sm:$0xff]
      %v333 = vld [vmem:[%s331 + $0x8] sm:$0xff]
      %v334 = vld [vmem:[%s331 + $0x10] sm:$0xff]
      %v335 = vld [vmem:[%s331 + $0x18] sm:$0xff]
      %v336 = vld [vmem:[%s331 + $0x20] sm:$0xff]
      %v337 = vld [vmem:[%s331 + $0x28] sm:$0xff]
      %v338 = vld [vmem:[%s331 + $0x30] sm:$0xff]
      %v339 = vld [vmem:[%s331 + $0x38] sm:$0xff]
      %v340 = vld [vmem:[%s331 + $0x40] sm:$0xff]
      %v341 = vld [vmem:[%s331 + $0x48] sm:$0xff]
      %v342 = vld [vmem:[%s331 + $0x50] sm:$0xff]
      %v343 = vld [vmem:[%s331 + $0x58] sm:$0xff]
      %v344 = vld [vmem:[%s331 + $0x60] sm:$0xff]
      %v345 = vld [vmem:[%s331 + $0x68] sm:$0xff]
      %v346 = vld [vmem:[%s331 + $0x70] sm:$0xff]
      %v347 = vld [vmem:[%s331 + $0x78] sm:$0xff]
      %348 = vmatpush.msra.mxu0 %v347
      %349 = vmatpush.msra.mxu0 %v346
      %350 = vmatpush.msra.mxu0 %v345
      %351 = vmatpush.msra.mxu0 %v344
      %352 = vmatpush.msra.mxu0 %v343
      %353 = vmatpush.msra.mxu0 %v342
      %354 = vmatpush.msra.mxu0 %v341
      %355 = vmatpush.msra.mxu0 %v340
      %356 = vmatpush.msra.mxu0 %v339
      %357 = vmatpush.msra.mxu0 %v338
      %358 = vmatpush.msra.mxu0 %v337
      %359 = vmatpush.msra.mxu0 %v336
      %360 = vmatpush.msra.mxu0 %v335
      %361 = vmatpush.msra.mxu0 %v334
      %362 = vmatpush.msra.mxu0 %v333
      %363 = vmatpush.msra.mxu0 %v332
      %364 = vmatmul.f32.gmra.mxu0 %v311
      %v365 = vpop.f32.mrf.mxu0
      %v366 = vadd.f32 0.0, %v365
      %367 = vmatmul.f32.gmra.mxu0 %v312
      %v368 = vpop.f32.mrf.mxu0
      %v369 = vadd.f32 0.0, %v368
      %370 = vmatmul.f32.gmra.mxu0 %v313
      %v371 = vpop.f32.mrf.mxu0
      %v372 = vadd.f32 0.0, %v371
      %373 = vmatmul.f32.gmra.mxu0 %v314
      %v374 = vpop.f32.mrf.mxu0
      %v375 = vadd.f32 0.0, %v374
      %376 = vmatmul.f32.gmra.mxu0 %v315
      %v377 = vpop.f32.mrf.mxu0
      %v378 = vadd.f32 0.0, %v377
      %379 = vmatmul.f32.gmra.mxu0 %v316
      %v380 = vpop.f32.mrf.mxu0
      %v381 = vadd.f32 0.0, %v380
      %382 = vmatmul.f32.gmra.mxu0 %v317
      %v383 = vpop.f32.mrf.mxu0
      %v384 = vadd.f32 0.0, %v383
      %385 = vmatmul.f32.gmra.mxu0 %v318
      %v386 = vpop.f32.mrf.mxu0
      %v387 = vadd.f32 0.0, %v386
      %388 = vmatmul.f32.gmra.mxu0 %v319
      %v389 = vpop.f32.mrf.mxu0
      %v390 = vadd.f32 0.0, %v389
      %391 = vmatmul.f32.gmra.mxu0 %v320
      %v392 = vpop.f32.mrf.mxu0
      %v393 = vadd.f32 0.0, %v392
      %394 = vdwg.mxu0
      %v395 = vadd.f32 %v321, %v366
      %v396 = vadd.f32 %v322, %v369
      %v397 = vadd.f32 %v323, %v372
      %v398 = vadd.f32 %v324, %v375
      %v399 = vadd.f32 %v325, %v378
      %v400 = vadd.f32 %v326, %v381
      %v401 = vadd.f32 %v327, %v384
      %v402 = vadd.f32 %v328, %v387
      %v403 = vadd.f32 %v329, %v390
      %v404 = vadd.f32 %v330, %v393
      %405 = vst [vmem:[#allocation2] sm:$0xff] %v395
      %406 = vst [vmem:[#allocation2 + $0x8] sm:$0xff] %v396
      %407 = vst [vmem:[#allocation2 + $0x10] sm:$0xff] %v397
      %408 = vst [vmem:[#allocation2 + $0x18] sm:$0xff] %v398
      %409 = vst [vmem:[#allocation2 + $0x20] sm:$0xff] %v399
      %410 = vst [vmem:[#allocation2 + $0x28] sm:$0xff] %v400
      %411 = vst [vmem:[#allocation2 + $0x30] sm:$0xff] %v401
      %412 = vst [vmem:[#allocation2 + $0x38] sm:$0xff] %v402
      %413 = vst [vmem:[#allocation2 + $0x40] sm:$0xff] %v403
      %414 = vst [vmem:[#allocation2 + $0x48] sm:$0xff] %v404
      %s415 = sadd.s32 %s194, 1
      %s416 = scalar_lea.vmem %s183, %s415
      %v417 = vld [vmem:[%s416] sm:$0xff]
      %v418 = vld [vmem:[%s416 + $0x8] sm:$0xff]
      %v419 = vld [vmem:[%s416 + $0x10] sm:$0xff]
      %v420 = vld [vmem:[%s416 + $0x18] sm:$0xff]
      %v421 = vld [vmem:[%s416 + $0x20] sm:$0xff]
      %v422 = vld [vmem:[%s416 + $0x28] sm:$0xff]
      %v423 = vld [vmem:[%s416 + $0x30] sm:$0xff]
      %v424 = vld [vmem:[%s416 + $0x38] sm:$0xff]
      %v425 = vld [vmem:[%s416 + $0x40] sm:$0xff]
      %v426 = vld [vmem:[%s416 + $0x48] sm:$0xff]
      %v427 = vld [vmem:[#allocation2] sm:$0xff]
      %v428 = vld [vmem:[#allocation2 + $0x8] sm:$0xff]
      %v429 = vld [vmem:[#allocation2 + $0x10] sm:$0xff]
      %v430 = vld [vmem:[#allocation2 + $0x18] sm:$0xff]
      %v431 = vld [vmem:[#allocation2 + $0x20] sm:$0xff]
      %v432 = vld [vmem:[#allocation2 + $0x28] sm:$0xff]
      %v433 = vld [vmem:[#allocation2 + $0x30] sm:$0xff]
      %v434 = vld [vmem:[#allocation2 + $0x38] sm:$0xff]
      %v435 = vld [vmem:[#allocation2 + $0x40] sm:$0xff]
      %v436 = vld [vmem:[#allocation2 + $0x48] sm:$0xff]
      %s437 = scalar_lea.vmem %s1, 256
      %v438 = vld [vmem:[%s437] sm:$0xff]
      %v439 = vld [vmem:[%s437 + $0x8] sm:$0xff]
      %v440 = vld [vmem:[%s437 + $0x10] sm:$0xff]
      %v441 = vld [vmem:[%s437 + $0x18] sm:$0xff]
      %v442 = vld [vmem:[%s437 + $0x20] sm:$0xff]
      %v443 = vld [vmem:[%s437 + $0x28] sm:$0xff]
      %v444 = vld [vmem:[%s437 + $0x30] sm:$0xff]
      %v445 = vld [vmem:[%s437 + $0x38] sm:$0xff]
      %v446 = vld [vmem:[%s437 + $0x40] sm:$0xff]
      %v447 = vld [vmem:[%s437 + $0x48] sm:$0xff]
      %v448 = vld [vmem:[%s437 + $0x50] sm:$0xff]
      %v449 = vld [vmem:[%s437 + $0x58] sm:$0xff]
      %v450 = vld [vmem:[%s437 + $0x60] sm:$0xff]
      %v451 = vld [vmem:[%s437 + $0x68] sm:$0xff]
      %v452 = vld [vmem:[%s437 + $0x70] sm:$0xff]
      %v453 = vld [vmem:[%s437 + $0x78] sm:$0xff]
      %454 = vmatpush.msra.mxu0 %v453
      %455 = vmatpush.msra.mxu0 %v452
      %456 = vmatpush.msra.mxu0 %v451
      %457 = vmatpush.msra.mxu0 %v450
      %458 = vmatpush.msra.mxu0 %v449
      %459 = vmatpush.msra.mxu0 %v448
      %460 = vmatpush.msra.mxu0 %v447
      %461 = vmatpush.msra.mxu0 %v446
      %462 = vmatpush.msra.mxu0 %v445
      %463 = vmatpush.msra.mxu0 %v444
      %464 = vmatpush.msra.mxu0 %v443
      %465 = vmatpush.msra.mxu0 %v442
      %466 = vmatpush.msra.mxu0 %v441
      %467 = vmatpush.msra.mxu0 %v440
      %468 = vmatpush.msra.mxu0 %v439
      %469 = vmatpush.msra.mxu0 %v438
      %470 = vmatmul.f32.gmra.mxu0 %v417
      %v471 = vpop.f32.mrf.mxu0
      %v472 = vadd.f32 0.0, %v471
      %473 = vmatmul.f32.gmra.mxu0 %v418
      %v474 = vpop.f32.mrf.mxu0
      %v475 = vadd.f32 0.0, %v474
      %476 = vmatmul.f32.gmra.mxu0 %v419
      %v477 = vpop.f32.mrf.mxu0
      %v478 = vadd.f32 0.0, %v477
      %479 = vmatmul.f32.gmra.mxu0 %v420
      %v480 = vpop.f32.mrf.mxu0
      %v481 = vadd.f32 0.0, %v480
      %482 = vmatmul.f32.gmra.mxu0 %v421
      %v483 = vpop.f32.mrf.mxu0
      %v484 = vadd.f32 0.0, %v483
      %485 = vmatmul.f32.gmra.mxu0 %v422
      %v486 = vpop.f32.mrf.mxu0
      %v487 = vadd.f32 0.0, %v486
      %488 = vmatmul.f32.gmra.mxu0 %v423
      %v489 = vpop.f32.mrf.mxu0
      %v490 = vadd.f32 0.0, %v489
      %491 = vmatmul.f32.gmra.mxu0 %v424
      %v492 = vpop.f32.mrf.mxu0
      %v493 = vadd.f32 0.0, %v492
      %494 = vmatmul.f32.gmra.mxu0 %v425
      %v495 = vpop.f32.mrf.mxu0
      %v496 = vadd.f32 0.0, %v495
      %497 = vmatmul.f32.gmra.mxu0 %v426
      %v498 = vpop.f32.mrf.mxu0
      %v499 = vadd.f32 0.0, %v498
      %500 = vdwg.mxu0
      %v501 = vadd.f32 %v427, %v472
      %v502 = vadd.f32 %v428, %v475
      %v503 = vadd.f32 %v429, %v478
      %v504 = vadd.f32 %v430, %v481
      %v505 = vadd.f32 %v431, %v484
      %v506 = vadd.f32 %v432, %v487
      %v507 = vadd.f32 %v433, %v490
      %v508 = vadd.f32 %v434, %v493
      %v509 = vadd.f32 %v435, %v496
      %v510 = vadd.f32 %v436, %v499
      %511 = vst [vmem:[#allocation2] sm:$0xff] %v501
      %512 = vst [vmem:[#allocation2 + $0x8] sm:$0xff] %v502
      %513 = vst [vmem:[#allocation2 + $0x10] sm:$0xff] %v503
      %514 = vst [vmem:[#allocation2 + $0x18] sm:$0xff] %v504
      %515 = vst [vmem:[#allocation2 + $0x20] sm:$0xff] %v505
      %516 = vst [vmem:[#allocation2 + $0x28] sm:$0xff] %v506
      %517 = vst [vmem:[#allocation2 + $0x30] sm:$0xff] %v507
      %518 = vst [vmem:[#allocation2 + $0x38] sm:$0xff] %v508
      %519 = vst [vmem:[#allocation2 + $0x40] sm:$0xff] %v509
      %520 = vst [vmem:[#allocation2 + $0x48] sm:$0xff] %v510
      %s521 = sadd.s32 %s415, 104
      %s522 = scalar_lea.vmem %s183, %s521
      %v523 = vld [vmem:[%s522] sm:$0xff]
      %v524 = vld [vmem:[%s522 + $0x8] sm:$0xff]
      %v525 = vld [vmem:[%s522 + $0x10] sm:$0xff]
      %v526 = vld [vmem:[%s522 + $0x18] sm:$0xff]
      %v527 = vld [vmem:[%s522 + $0x20] sm:$0xff]
      %v528 = vld [vmem:[%s522 + $0x28] sm:$0xff]
      %v529 = vld [vmem:[%s522 + $0x30] sm:$0xff]
      %v530 = vld [vmem:[%s522 + $0x38] sm:$0xff]
      %v531 = vld [vmem:[%s522 + $0x40] sm:$0xff]
      %v532 = vld [vmem:[%s522 + $0x48] sm:$0xff]
      %v533 = vld [vmem:[#allocation2] sm:$0xff]
      %v534 = vld [vmem:[#allocation2 + $0x8] sm:$0xff]
      %v535 = vld [vmem:[#allocation2 + $0x10] sm:$0xff]
      %v536 = vld [vmem:[#allocation2 + $0x18] sm:$0xff]
      %v537 = vld [vmem:[#allocation2 + $0x20] sm:$0xff]
      %v538 = vld [vmem:[#allocation2 + $0x28] sm:$0xff]
      %v539 = vld [vmem:[#allocation2 + $0x30] sm:$0xff]
      %v540 = vld [vmem:[#allocation2 + $0x38] sm:$0xff]
      %v541 = vld [vmem:[#allocation2 + $0x40] sm:$0xff]
      %v542 = vld [vmem:[#allocation2 + $0x48] sm:$0xff]
      %s543 = scalar_lea.vmem %s1, 384
      %v544 = vld [vmem:[%s543] sm:$0xff]
      %v545 = vld [vmem:[%s543 + $0x8] sm:$0xff]
      %v546 = vld [vmem:[%s543 + $0x10] sm:$0xff]
      %v547 = vld [vmem:[%s543 + $0x18] sm:$0xff]
      %v548 = vld [vmem:[%s543 + $0x20] sm:$0xff]
      %v549 = vld [vmem:[%s543 + $0x28] sm:$0xff]
      %v550 = vld [vmem:[%s543 + $0x30] sm:$0xff]
      %v551 = vld [vmem:[%s543 + $0x38] sm:$0xff]
      %v552 = vld [vmem:[%s543 + $0x40] sm:$0xff]
      %v553 = vld [vmem:[%s543 + $0x48] sm:$0xff]
      %v554 = vld [vmem:[%s543 + $0x50] sm:$0xff]
      %v555 = vld [vmem:[%s543 + $0x58] sm:$0xff]
      %v556 = vld [vmem:[%s543 + $0x60] sm:$0xff]
      %v557 = vld [vmem:[%s543 + $0x68] sm:$0xff]
      %v558 = vld [vmem:[%s543 + $0x70] sm:$0xff]
      %v559 = vld [vmem:[%s543 + $0x78] sm:$0xff]
      %560 = vmatpush.msra.mxu0 %v559
      %561 = vmatpush.msra.mxu0 %v558
      %562 = vmatpush.msra.mxu0 %v557
      %563 = vmatpush.msra.mxu0 %v556
      %564 = vmatpush.msra.mxu0 %v555
      %565 = vmatpush.msra.mxu0 %v554
      %566 = vmatpush.msra.mxu0 %v553
      %567 = vmatpush.msra.mxu0 %v552
      %568 = vmatpush.msra.mxu0 %v551
      %569 = vmatpush.msra.mxu0 %v550
      %570 = vmatpush.msra.mxu0 %v549
      %571 = vmatpush.msra.mxu0 %v548
      %572 = vmatpush.msra.mxu0 %v547
      %573 = vmatpush.msra.mxu0 %v546
      %574 = vmatpush.msra.mxu0 %v545
      %575 = vmatpush.msra.mxu0 %v544
      %576 = vmatmul.f32.gmra.mxu0 %v523
      %v577 = vpop.f32.mrf.mxu0
      %v578 = vadd.f32 0.0, %v577
      %579 = vmatmul.f32.gmra.mxu0 %v524
      %v580 = vpop.f32.mrf.mxu0
      %v581 = vadd.f32 0.0, %v580
      %582 = vmatmul.f32.gmra.mxu0 %v525
      %v583 = vpop.f32.mrf.mxu0
      %v584 = vadd.f32 0.0, %v583
      %585 = vmatmul.f32.gmra.mxu0 %v526
      %v586 = vpop.f32.mrf.mxu0
      %v587 = vadd.f32 0.0, %v586
      %588 = vmatmul.f32.gmra.mxu0 %v527
      %v589 = vpop.f32.mrf.mxu0
      %v590 = vadd.f32 0.0, %v589
      %591 = vmatmul.f32.gmra.mxu0 %v528
      %v592 = vpop.f32.mrf.mxu0
      %v593 = vadd.f32 0.0, %v592
      %594 = vmatmul.f32.gmra.mxu0 %v529
      %v595 = vpop.f32.mrf.mxu0
      %v596 = vadd.f32 0.0, %v595
      %597 = vmatmul.f32.gmra.mxu0 %v530
      %v598 = vpop.f32.mrf.mxu0
      %v599 = vadd.f32 0.0, %v598
      %600 = vmatmul.f32.gmra.mxu0 %v531
      %v601 = vpop.f32.mrf.mxu0
      %v602 = vadd.f32 0.0, %v601
      %603 = vmatmul.f32.gmra.mxu0 %v532
      %v604 = vpop.f32.mrf.mxu0
      %v605 = vadd.f32 0.0, %v604
      %606 = vdwg.mxu0
      %v607 = vadd.f32 %v533, %v578
      %v608 = vadd.f32 %v534, %v581
      %v609 = vadd.f32 %v535, %v584
      %v610 = vadd.f32 %v536, %v587
      %v611 = vadd.f32 %v537, %v590
      %v612 = vadd.f32 %v538, %v593
      %v613 = vadd.f32 %v539, %v596
      %v614 = vadd.f32 %v540, %v599
      %v615 = vadd.f32 %v541, %v602
      %v616 = vadd.f32 %v542, %v605
      %617 = vst [vmem:[#allocation2] sm:$0xff] %v607
      %618 = vst [vmem:[#allocation2 + $0x8] sm:$0xff] %v608
      %619 = vst [vmem:[#allocation2 + $0x10] sm:$0xff] %v609
      %620 = vst [vmem:[#allocation2 + $0x18] sm:$0xff] %v610
      %621 = vst [vmem:[#allocation2 + $0x20] sm:$0xff] %v611
      %622 = vst [vmem:[#allocation2 + $0x28] sm:$0xff] %v612
      %623 = vst [vmem:[#allocation2 + $0x30] sm:$0xff] %v613
      %624 = vst [vmem:[#allocation2 + $0x38] sm:$0xff] %v614
      %625 = vst [vmem:[#allocation2 + $0x40] sm:$0xff] %v615
      %626 = vst [vmem:[#allocation2 + $0x48] sm:$0xff] %v616
      %s627 = sadd.s32 %s194, 2
      %s628 = scalar_lea.vmem %s183, %s627
      %v629 = vld [vmem:[%s628] sm:$0xff]
      %v630 = vld [vmem:[%s628 + $0x8] sm:$0xff]
      %v631 = vld [vmem:[%s628 + $0x10] sm:$0xff]
      %v632 = vld [vmem:[%s628 + $0x18] sm:$0xff]
      %v633 = vld [vmem:[%s628 + $0x20] sm:$0xff]
      %v634 = vld [vmem:[%s628 + $0x28] sm:$0xff]
      %v635 = vld [vmem:[%s628 + $0x30] sm:$0xff]
      %v636 = vld [vmem:[%s628 + $0x38] sm:$0xff]
      %v637 = vld [vmem:[%s628 + $0x40] sm:$0xff]
      %v638 = vld [vmem:[%s628 + $0x48] sm:$0xff]
      %v639 = vld [vmem:[#allocation2] sm:$0xff]
      %v640 = vld [vmem:[#allocation2 + $0x8] sm:$0xff]
      %v641 = vld [vmem:[#allocation2 + $0x10] sm:$0xff]
      %v642 = vld [vmem:[#allocation2 + $0x18] sm:$0xff]
      %v643 = vld [vmem:[#allocation2 + $0x20] sm:$0xff]
      %v644 = vld [vmem:[#allocation2 + $0x28] sm:$0xff]
      %v645 = vld [vmem:[#allocation2 + $0x30] sm:$0xff]
      %v646 = vld [vmem:[#allocation2 + $0x38] sm:$0xff]
      %v647 = vld [vmem:[#allocation2 + $0x40] sm:$0xff]
      %v648 = vld [vmem:[#allocation2 + $0x48] sm:$0xff]
      %s649 = scalar_lea.vmem %s1, 512
      %v650 = vld [vmem:[%s649] sm:$0xff]
      %v651 = vld [vmem:[%s649 + $0x8] sm:$0xff]
      %v652 = vld [vmem:[%s649 + $0x10] sm:$0xff]
      %v653 = vld [vmem:[%s649 + $0x18] sm:$0xff]
      %v654 = vld [vmem:[%s649 + $0x20] sm:$0xff]
      %v655 = vld [vmem:[%s649 + $0x28] sm:$0xff]
      %v656 = vld [vmem:[%s649 + $0x30] sm:$0xff]
      %v657 = vld [vmem:[%s649 + $0x38] sm:$0xff]
      %v658 = vld [vmem:[%s649 + $0x40] sm:$0xff]
      %v659 = vld [vmem:[%s649 + $0x48] sm:$0xff]
      %v660 = vld [vmem:[%s649 + $0x50] sm:$0xff]
      %v661 = vld [vmem:[%s649 + $0x58] sm:$0xff]
      %v662 = vld [vmem:[%s649 + $0x60] sm:$0xff]
      %v663 = vld [vmem:[%s649 + $0x68] sm:$0xff]
      %v664 = vld [vmem:[%s649 + $0x70] sm:$0xff]
      %v665 = vld [vmem:[%s649 + $0x78] sm:$0xff]
      %666 = vmatpush.msra.mxu0 %v665
      %667 = vmatpush.msra.mxu0 %v664
      %668 = vmatpush.msra.mxu0 %v663
      %669 = vmatpush.msra.mxu0 %v662
      %670 = vmatpush.msra.mxu0 %v661
      %671 = vmatpush.msra.mxu0 %v660
      %672 = vmatpush.msra.mxu0 %v659
      %673 = vmatpush.msra.mxu0 %v658
      %674 = vmatpush.msra.mxu0 %v657
      %675 = vmatpush.msra.mxu0 %v656
      %676 = vmatpush.msra.mxu0 %v655
      %677 = vmatpush.msra.mxu0 %v654
      %678 = vmatpush.msra.mxu0 %v653
      %679 = vmatpush.msra.mxu0 %v652
      %680 = vmatpush.msra.mxu0 %v651
      %681 = vmatpush.msra.mxu0 %v650
      %682 = vmatmul.f32.gmra.mxu0 %v629
      %v683 = vpop.f32.mrf.mxu0
      %v684 = vadd.f32 0.0, %v683
      %685 = vmatmul.f32.gmra.mxu0 %v630
      %v686 = vpop.f32.mrf.mxu0
      %v687 = vadd.f32 0.0, %v686
      %688 = vmatmul.f32.gmra.mxu0 %v631
      %v689 = vpop.f32.mrf.mxu0
      %v690 = vadd.f32 0.0, %v689
      %691 = vmatmul.f32.gmra.mxu0 %v632
      %v692 = vpop.f32.mrf.mxu0
      %v693 = vadd.f32 0.0, %v692
      %694 = vmatmul.f32.gmra.mxu0 %v633
      %v695 = vpop.f32.mrf.mxu0
      %v696 = vadd.f32 0.0, %v695
      %697 = vmatmul.f32.gmra.mxu0 %v634
      %v698 = vpop.f32.mrf.mxu0
      %v699 = vadd.f32 0.0, %v698
      %700 = vmatmul.f32.gmra.mxu0 %v635
      %v701 = vpop.f32.mrf.mxu0
      %v702 = vadd.f32 0.0, %v701
      %703 = vmatmul.f32.gmra.mxu0 %v636
      %v704 = vpop.f32.mrf.mxu0
      %v705 = vadd.f32 0.0, %v704
      %706 = vmatmul.f32.gmra.mxu0 %v637
      %v707 = vpop.f32.mrf.mxu0
      %v708 = vadd.f32 0.0, %v707
      %709 = vmatmul.f32.gmra.mxu0 %v638
      %v710 = vpop.f32.mrf.mxu0
      %v711 = vadd.f32 0.0, %v710
      %712 = vdwg.mxu0
      %v713 = vadd.f32 %v639, %v684
      %v714 = vadd.f32 %v640, %v687
      %v715 = vadd.f32 %v641, %v690
      %v716 = vadd.f32 %v642, %v693
      %v717 = vadd.f32 %v643, %v696
      %v718 = vadd.f32 %v644, %v699
      %v719 = vadd.f32 %v645, %v702
      %v720 = vadd.f32 %v646, %v705
      %v721 = vadd.f32 %v647, %v708
      %v722 = vadd.f32 %v648, %v711
      %723 = vst [vmem:[#allocation2] sm:$0xff] %v713
      %724 = vst [vmem:[#allocation2 + $0x8] sm:$0xff] %v714
      %725 = vst [vmem:[#allocation2 + $0x10] sm:$0xff] %v715
      %726 = vst [vmem:[#allocation2 + $0x18] sm:$0xff] %v716
      %727 = vst [vmem:[#allocation2 + $0x20] sm:$0xff] %v717
      %728 = vst [vmem:[#allocation2 + $0x28] sm:$0xff] %v718
      %729 = vst [vmem:[#allocation2 + $0x30] sm:$0xff] %v719
      %730 = vst [vmem:[#allocation2 + $0x38] sm:$0xff] %v720
      %731 = vst [vmem:[#allocation2 + $0x40] sm:$0xff] %v721
      %732 = vst [vmem:[#allocation2 + $0x48] sm:$0xff] %v722
      %s733 = sadd.s32 %s194, 208
      %s734 = scalar_lea.vmem %s183, %s733
      %v735 = vld [vmem:[%s734] sm:$0xff]
      %v736 = vld [vmem:[%s734 + $0x8] sm:$0xff]
      %v737 = vld [vmem:[%s734 + $0x10] sm:$0xff]
      %v738 = vld [vmem:[%s734 + $0x18] sm:$0xff]
      %v739 = vld [vmem:[%s734 + $0x20] sm:$0xff]
      %v740 = vld [vmem:[%s734 + $0x28] sm:$0xff]
      %v741 = vld [vmem:[%s734 + $0x30] sm:$0xff]
      %v742 = vld [vmem:[%s734 + $0x38] sm:$0xff]
      %v743 = vld [vmem:[%s734 + $0x40] sm:$0xff]
      %v744 = vld [vmem:[%s734 + $0x48] sm:$0xff]
      %v745 = vld [vmem:[#allocation2] sm:$0xff]
      %v746 = vld [vmem:[#allocation2 + $0x8] sm:$0xff]
      %v747 = vld [vmem:[#allocation2 + $0x10] sm:$0xff]
      %v748 = vld [vmem:[#allocation2 + $0x18] sm:$0xff]
      %v749 = vld [vmem:[#allocation2 + $0x20] sm:$0xff]
      %v750 = vld [vmem:[#allocation2 + $0x28] sm:$0xff]
      %v751 = vld [vmem:[#allocation2 + $0x30] sm:$0xff]
      %v752 = vld [vmem:[#allocation2 + $0x38] sm:$0xff]
      %v753 = vld [vmem:[#allocation2 + $0x40] sm:$0xff]
      %v754 = vld [vmem:[#allocation2 + $0x48] sm:$0xff]
      %s755 = scalar_lea.vmem %s1, 640
      %v756 = vld [vmem:[%s755] sm:$0xff]
      %v757 = vld [vmem:[%s755 + $0x8] sm:$0xff]
      %v758 = vld [vmem:[%s755 + $0x10] sm:$0xff]
      %v759 = vld [vmem:[%s755 + $0x18] sm:$0xff]
      %v760 = vld [vmem:[%s755 + $0x20] sm:$0xff]
      %v761 = vld [vmem:[%s755 + $0x28] sm:$0xff]
      %v762 = vld [vmem:[%s755 + $0x30] sm:$0xff]
      %v763 = vld [vmem:[%s755 + $0x38] sm:$0xff]
      %v764 = vld [vmem:[%s755 + $0x40] sm:$0xff]
      %v765 = vld [vmem:[%s755 + $0x48] sm:$0xff]
      %v766 = vld [vmem:[%s755 + $0x50] sm:$0xff]
      %v767 = vld [vmem:[%s755 + $0x58] sm:$0xff]
      %v768 = vld [vmem:[%s755 + $0x60] sm:$0xff]
      %v769 = vld [vmem:[%s755 + $0x68] sm:$0xff]
      %v770 = vld [vmem:[%s755 + $0x70] sm:$0xff]
      %v771 = vld [vmem:[%s755 + $0x78] sm:$0xff]
      %772 = vmatpush.msra.mxu0 %v771
      %773 = vmatpush.msra.mxu0 %v770
      %774 = vmatpush.msra.mxu0 %v769
      %775 = vmatpush.msra.mxu0 %v768
      %776 = vmatpush.msra.mxu0 %v767
      %777 = vmatpush.msra.mxu0 %v766
      %778 = vmatpush.msra.mxu0 %v765
      %779 = vmatpush.msra.mxu0 %v764
      %780 = vmatpush.msra.mxu0 %v763
      %781 = vmatpush.msra.mxu0 %v762
      %782 = vmatpush.msra.mxu0 %v761
      %783 = vmatpush.msra.mxu0 %v760
      %784 = vmatpush.msra.mxu0 %v759
      %785 = vmatpush.msra.mxu0 %v758
      %786 = vmatpush.msra.mxu0 %v757
      %787 = vmatpush.msra.mxu0 %v756
      %788 = vmatmul.f32.gmra.mxu0 %v735
      %v789 = vpop.f32.mrf.mxu0
      %v790 = vadd.f32 0.0, %v789
      %791 = vmatmul.f32.gmra.mxu0 %v736
      %v792 = vpop.f32.mrf.mxu0
      %v793 = vadd.f32 0.0, %v792
      %794 = vmatmul.f32.gmra.mxu0 %v737
      %v795 = vpop.f32.mrf.mxu0
      %v796 = vadd.f32 0.0, %v795
      %797 = vmatmul.f32.gmra.mxu0 %v738
      %v798 = vpop.f32.mrf.mxu0
      %v799 = vadd.f32 0.0, %v798
      %800 = vmatmul.f32.gmra.mxu0 %v739
      %v801 = vpop.f32.mrf.mxu0
      %v802 = vadd.f32 0.0, %v801
      %803 = vmatmul.f32.gmra.mxu0 %v740
      %v804 = vpop.f32.mrf.mxu0
      %v805 = vadd.f32 0.0, %v804
      %806 = vmatmul.f32.gmra.mxu0 %v741
      %v807 = vpop.f32.mrf.mxu0
      %v808 = vadd.f32 0.0, %v807
      %809 = vmatmul.f32.gmra.mxu0 %v742
      %v810 = vpop.f32.mrf.mxu0
      %v811 = vadd.f32 0.0, %v810
      %812 = vmatmul.f32.gmra.mxu0 %v743
      %v813 = vpop.f32.mrf.mxu0
      %v814 = vadd.f32 0.0, %v813
      %815 = vmatmul.f32.gmra.mxu0 %v744
      %v816 = vpop.f32.mrf.mxu0
      %v817 = vadd.f32 0.0, %v816
      %818 = vdwg.mxu0
      %v819 = vadd.f32 %v745, %v790
      %v820 = vadd.f32 %v746, %v793
      %v821 = vadd.f32 %v747, %v796
      %v822 = vadd.f32 %v748, %v799
      %v823 = vadd.f32 %v749, %v802
      %v824 = vadd.f32 %v750, %v805
      %v825 = vadd.f32 %v751, %v808
      %v826 = vadd.f32 %v752, %v811
      %v827 = vadd.f32 %v753, %v814
      %v828 = vadd.f32 %v754, %v817
      %829 = vst [vmem:[#allocation2] sm:$0xff] %v819
      %830 = vst [vmem:[#allocation2 + $0x8] sm:$0xff] %v820
      %831 = vst [vmem:[#allocation2 + $0x10] sm:$0xff] %v821
      %832 = vst [vmem:[#allocation2 + $0x18] sm:$0xff] %v822
      %833 = vst [vmem:[#allocation2 + $0x20] sm:$0xff] %v823
      %834 = vst [vmem:[#allocation2 + $0x28] sm:$0xff] %v824
      %835 = vst [vmem:[#allocation2 + $0x30] sm:$0xff] %v825
      %836 = vst [vmem:[#allocation2 + $0x38] sm:$0xff] %v826
      %837 = vst [vmem:[#allocation2 + $0x40] sm:$0xff] %v827
      %838 = vst [vmem:[#allocation2 + $0x48] sm:$0xff] %v828
      %s839 = sadd.s32 %s194, 312
      %s840 = scalar_lea.vmem %s183, %s839
      %v841 = vld [vmem:[%s840] sm:$0xff]
      %v842 = vld [vmem:[%s840 + $0x8] sm:$0xff]
      %v843 = vld [vmem:[%s840 + $0x10] sm:$0xff]
      %v844 = vld [vmem:[%s840 + $0x18] sm:$0xff]
      %v845 = vld [vmem:[%s840 + $0x20] sm:$0xff]
      %v846 = vld [vmem:[%s840 + $0x28] sm:$0xff]
      %v847 = vld [vmem:[%s840 + $0x30] sm:$0xff]
      %v848 = vld [vmem:[%s840 + $0x38] sm:$0xff]
      %v849 = vld [vmem:[%s840 + $0x40] sm:$0xff]
      %v850 = vld [vmem:[%s840 + $0x48] sm:$0xff]
      %v851 = vld [vmem:[#allocation2] sm:$0xff]
      %v852 = vld [vmem:[#allocation2 + $0x8] sm:$0xff]
      %v853 = vld [vmem:[#allocation2 + $0x10] sm:$0xff]
      %v854 = vld [vmem:[#allocation2 + $0x18] sm:$0xff]
      %v855 = vld [vmem:[#allocation2 + $0x20] sm:$0xff]
      %v856 = vld [vmem:[#allocation2 + $0x28] sm:$0xff]
      %v857 = vld [vmem:[#allocation2 + $0x30] sm:$0xff]
      %v858 = vld [vmem:[#allocation2 + $0x38] sm:$0xff]
      %v859 = vld [vmem:[#allocation2 + $0x40] sm:$0xff]
      %v860 = vld [vmem:[#allocation2 + $0x48] sm:$0xff]
      %s861 = scalar_lea.vmem %s1, 768
      %v862 = vld [vmem:[%s861] sm:$0xff]
      %v863 = vld [vmem:[%s861 + $0x8] sm:$0xff]
      %v864 = vld [vmem:[%s861 + $0x10] sm:$0xff]
      %v865 = vld [vmem:[%s861 + $0x18] sm:$0xff]
      %v866 = vld [vmem:[%s861 + $0x20] sm:$0xff]
      %v867 = vld [vmem:[%s861 + $0x28] sm:$0xff]
      %v868 = vld [vmem:[%s861 + $0x30] sm:$0xff]
      %v869 = vld [vmem:[%s861 + $0x38] sm:$0xff]
      %v870 = vld [vmem:[%s861 + $0x40] sm:$0xff]
      %v871 = vld [vmem:[%s861 + $0x48] sm:$0xff]
      %v872 = vld [vmem:[%s861 + $0x50] sm:$0xff]
      %v873 = vld [vmem:[%s861 + $0x58] sm:$0xff]
      %v874 = vld [vmem:[%s861 + $0x60] sm:$0xff]
      %v875 = vld [vmem:[%s861 + $0x68] sm:$0xff]
      %v876 = vld [vmem:[%s861 + $0x70] sm:$0xff]
      %v877 = vld [vmem:[%s861 + $0x78] sm:$0xff]
      %878 = vmatpush.msra.mxu0 %v877
      %879 = vmatpush.msra.mxu0 %v876
      %880 = vmatpush.msra.mxu0 %v875
      %881 = vmatpush.msra.mxu0 %v874
      %882 = vmatpush.msra.mxu0 %v873
      %883 = vmatpush.msra.mxu0 %v872
      %884 = vmatpush.msra.mxu0 %v871
      %885 = vmatpush.msra.mxu0 %v870
      %886 = vmatpush.msra.mxu0 %v869
      %887 = vmatpush.msra.mxu0 %v868
      %888 = vmatpush.msra.mxu0 %v867
      %889 = vmatpush.msra.mxu0 %v866
      %890 = vmatpush.msra.mxu0 %v865
      %891 = vmatpush.msra.mxu0 %v864
      %892 = vmatpush.msra.mxu0 %v863
      %893 = vmatpush.msra.mxu0 %v862
      %894 = vmatmul.f32.gmra.mxu0 %v841
      %v895 = vpop.f32.mrf.mxu0
      %v896 = vadd.f32 0.0, %v895
      %897 = vmatmul.f32.gmra.mxu0 %v842
      %v898 = vpop.f32.mrf.mxu0
      %v899 = vadd.f32 0.0, %v898
      %900 = vmatmul.f32.gmra.mxu0 %v843
      %v901 = vpop.f32.mrf.mxu0
      %v902 = vadd.f32 0.0, %v901
      %903 = vmatmul.f32.gmra.mxu0 %v844
      %v904 = vpop.f32.mrf.mxu0
      %v905 = vadd.f32 0.0, %v904
      %906 = vmatmul.f32.gmra.mxu0 %v845
      %v907 = vpop.f32.mrf.mxu0
      %v908 = vadd.f32 0.0, %v907
      %909 = vmatmul.f32.gmra.mxu0 %v846
      %v910 = vpop.f32.mrf.mxu0
      %v911 = vadd.f32 0.0, %v910
      %912 = vmatmul.f32.gmra.mxu0 %v847
      %v913 = vpop.f32.mrf.mxu0
      %v914 = vadd.f32 0.0, %v913
      %915 = vmatmul.f32.gmra.mxu0 %v848
      %v916 = vpop.f32.mrf.mxu0
      %v917 = vadd.f32 0.0, %v916
      %918 = vmatmul.f32.gmra.mxu0 %v849
      %v919 = vpop.f32.mrf.mxu0
      %v920 = vadd.f32 0.0, %v919
      %921 = vmatmul.f32.gmra.mxu0 %v850
      %v922 = vpop.f32.mrf.mxu0
      %v923 = vadd.f32 0.0, %v922
      %924 = vdwg.mxu0
      %v925 = vadd.f32 %v851, %v896
      %v926 = vadd.f32 %v852, %v899
      %v927 = vadd.f32 %v853, %v902
      %v928 = vadd.f32 %v854, %v905
      %v929 = vadd.f32 %v855, %v908
      %v930 = vadd.f32 %v856, %v911
      %v931 = vadd.f32 %v857, %v914
      %v932 = vadd.f32 %v858, %v917
      %v933 = vadd.f32 %v859, %v920
      %v934 = vadd.f32 %v860, %v923
      %935 = vst [vmem:[#allocation2] sm:$0xff] %v925
      %936 = vst [vmem:[#allocation2 + $0x8] sm:$0xff] %v926
      %937 = vst [vmem:[#allocation2 + $0x10] sm:$0xff] %v927
      %938 = vst [vmem:[#allocation2 + $0x18] sm:$0xff] %v928
      %939 = vst [vmem:[#allocation2 + $0x20] sm:$0xff] %v929
      %940 = vst [vmem:[#allocation2 + $0x28] sm:$0xff] %v930
      %941 = vst [vmem:[#allocation2 + $0x30] sm:$0xff] %v931
      %942 = vst [vmem:[#allocation2 + $0x38] sm:$0xff] %v932
      %943 = vst [vmem:[#allocation2 + $0x40] sm:$0xff] %v933
      %944 = vst [vmem:[#allocation2 + $0x48] sm:$0xff] %v934
      %s945 = sadd.s32 %s415, 208
      %s946 = scalar_lea.vmem %s183, %s945
      %v947 = vld [vmem:[%s946] sm:$0xff]
      %v948 = vld [vmem:[%s946 + $0x8] sm:$0xff]
      %v949 = vld [vmem:[%s946 + $0x10] sm:$0xff]
      %v950 = vld [vmem:[%s946 + $0x18] sm:$0xff]
      %v951 = vld [vmem:[%s946 + $0x20] sm:$0xff]
      %v952 = vld [vmem:[%s946 + $0x28] sm:$0xff]
      %v953 = vld [vmem:[%s946 + $0x30] sm:$0xff]
      %v954 = vld [vmem:[%s946 + $0x38] sm:$0xff]
      %v955 = vld [vmem:[%s946 + $0x40] sm:$0xff]
      %v956 = vld [vmem:[%s946 + $0x48] sm:$0xff]
      %v957 = vld [vmem:[#allocation2] sm:$0xff]
      %v958 = vld [vmem:[#allocation2 + $0x8] sm:$0xff]
      %v959 = vld [vmem:[#allocation2 + $0x10] sm:$0xff]
      %v960 = vld [vmem:[#allocation2 + $0x18] sm:$0xff]
      %v961 = vld [vmem:[#allocation2 + $0x20] sm:$0xff]
      %v962 = vld [vmem:[#allocation2 + $0x28] sm:$0xff]
      %v963 = vld [vmem:[#allocation2 + $0x30] sm:$0xff]
      %v964 = vld [vmem:[#allocation2 + $0x38] sm:$0xff]
      %v965 = vld [vmem:[#allocation2 + $0x40] sm:$0xff]
      %v966 = vld [vmem:[#allocation2 + $0x48] sm:$0xff]
      %s967 = scalar_lea.vmem %s1, 896
      %v968 = vld [vmem:[%s967] sm:$0xff]
      %v969 = vld [vmem:[%s967 + $0x8] sm:$0xff]
      %v970 = vld [vmem:[%s967 + $0x10] sm:$0xff]
      %v971 = vld [vmem:[%s967 + $0x18] sm:$0xff]
      %v972 = vld [vmem:[%s967 + $0x20] sm:$0xff]
      %v973 = vld [vmem:[%s967 + $0x28] sm:$0xff]
      %v974 = vld [vmem:[%s967 + $0x30] sm:$0xff]
      %v975 = vld [vmem:[%s967 + $0x38] sm:$0xff]
      %v976 = vld [vmem:[%s967 + $0x40] sm:$0xff]
      %v977 = vld [vmem:[%s967 + $0x48] sm:$0xff]
      %v978 = vld [vmem:[%s967 + $0x50] sm:$0xff]
      %v979 = vld [vmem:[%s967 + $0x58] sm:$0xff]
      %v980 = vld [vmem:[%s967 + $0x60] sm:$0xff]
      %v981 = vld [vmem:[%s967 + $0x68] sm:$0xff]
      %v982 = vld [vmem:[%s967 + $0x70] sm:$0xff]
      %v983 = vld [vmem:[%s967 + $0x78] sm:$0xff]
      %984 = vmatpush.msra.mxu0 %v983
      %985 = vmatpush.msra.mxu0 %v982
      %986 = vmatpush.msra.mxu0 %v981
      %987 = vmatpush.msra.mxu0 %v980
      %988 = vmatpush.msra.mxu0 %v979
      %989 = vmatpush.msra.mxu0 %v978
      %990 = vmatpush.msra.mxu0 %v977
      %991 = vmatpush.msra.mxu0 %v976
      %992 = vmatpush.msra.mxu0 %v975
      %993 = vmatpush.msra.mxu0 %v974
      %994 = vmatpush.msra.mxu0 %v973
      %995 = vmatpush.msra.mxu0 %v972
      %996 = vmatpush.msra.mxu0 %v971
      %997 = vmatpush.msra.mxu0 %v970
      %998 = vmatpush.msra.mxu0 %v969
      %999 = vmatpush.msra.mxu0 %v968
      %1000 = vmatmul.f32.gmra.mxu0 %v947
      %v1001 = vpop.f32.mrf.mxu0
      %v1002 = vadd.f32 0.0, %v1001
      %1003 = vmatmul.f32.gmra.mxu0 %v948
      %v1004 = vpop.f32.mrf.mxu0
      %v1005 = vadd.f32 0.0, %v1004
      %1006 = vmatmul.f32.gmra.mxu0 %v949
      %v1007 = vpop.f32.mrf.mxu0
      %v1008 = vadd.f32 0.0, %v1007
      %1009 = vmatmul.f32.gmra.mxu0 %v950
      %v1010 = vpop.f32.mrf.mxu0
      %v1011 = vadd.f32 0.0, %v1010
      %1012 = vmatmul.f32.gmra.mxu0 %v951
      %v1013 = vpop.f32.mrf.mxu0
      %v1014 = vadd.f32 0.0, %v1013
      %1015 = vmatmul.f32.gmra.mxu0 %v952
      %v1016 = vpop.f32.mrf.mxu0
      %v1017 = vadd.f32 0.0, %v1016
      %1018 = vmatmul.f32.gmra.mxu0 %v953
      %v1019 = vpop.f32.mrf.mxu0
      %v1020 = vadd.f32 0.0, %v1019
      %1021 = vmatmul.f32.gmra.mxu0 %v954
      %v1022 = vpop.f32.mrf.mxu0
      %v1023 = vadd.f32 0.0, %v1022
      %1024 = vmatmul.f32.gmra.mxu0 %v955
      %v1025 = vpop.f32.mrf.mxu0
      %v1026 = vadd.f32 0.0, %v1025
      %1027 = vmatmul.f32.gmra.mxu0 %v956
      %v1028 = vpop.f32.mrf.mxu0
      %v1029 = vadd.f32 0.0, %v1028
      %1030 = vdwg.mxu0
      %v1031 = vadd.f32 %v957, %v1002
      %v1032 = vadd.f32 %v958, %v1005
      %v1033 = vadd.f32 %v959, %v1008
      %v1034 = vadd.f32 %v960, %v1011
      %v1035 = vadd.f32 %v961, %v1014
      %v1036 = vadd.f32 %v962, %v1017
      %v1037 = vadd.f32 %v963, %v1020
      %v1038 = vadd.f32 %v964, %v1023
      %v1039 = vadd.f32 %v965, %v1026
      %v1040 = vadd.f32 %v966, %v1029
      %1041 = vst [vmem:[#allocation2] sm:$0xff] %v1031
      %1042 = vst [vmem:[#allocation2 + $0x8] sm:$0xff] %v1032
      %1043 = vst [vmem:[#allocation2 + $0x10] sm:$0xff] %v1033
      %1044 = vst [vmem:[#allocation2 + $0x18] sm:$0xff] %v1034
      %1045 = vst [vmem:[#allocation2 + $0x20] sm:$0xff] %v1035
      %1046 = vst [vmem:[#allocation2 + $0x28] sm:$0xff] %v1036
      %1047 = vst [vmem:[#allocation2 + $0x30] sm:$0xff] %v1037
      %1048 = vst [vmem:[#allocation2 + $0x38] sm:$0xff] %v1038
      %1049 = vst [vmem:[#allocation2 + $0x40] sm:$0xff] %v1039
      %1050 = vst [vmem:[#allocation2 + $0x48] sm:$0xff] %v1040
      %s1051 = sadd.s32 %s415, 312
      %s1052 = scalar_lea.vmem %s183, %s1051
      %v1053 = vld [vmem:[%s1052] sm:$0xff]
      %v1054 = vld [vmem:[%s1052 + $0x8] sm:$0xff]
      %v1055 = vld [vmem:[%s1052 + $0x10] sm:$0xff]
      %v1056 = vld [vmem:[%s1052 + $0x18] sm:$0xff]
      %v1057 = vld [vmem:[%s1052 + $0x20] sm:$0xff]
      %v1058 = vld [vmem:[%s1052 + $0x28] sm:$0xff]
      %v1059 = vld [vmem:[%s1052 + $0x30] sm:$0xff]
      %v1060 = vld [vmem:[%s1052 + $0x38] sm:$0xff]
      %v1061 = vld [vmem:[%s1052 + $0x40] sm:$0xff]
      %v1062 = vld [vmem:[%s1052 + $0x48] sm:$0xff]
      %v1063 = vld [vmem:[#allocation2] sm:$0xff]
      %v1064 = vld [vmem:[#allocation2 + $0x8] sm:$0xff]
      %v1065 = vld [vmem:[#allocation2 + $0x10] sm:$0xff]
      %v1066 = vld [vmem:[#allocation2 + $0x18] sm:$0xff]
      %v1067 = vld [vmem:[#allocation2 + $0x20] sm:$0xff]
      %v1068 = vld [vmem:[#allocation2 + $0x28] sm:$0xff]
      %v1069 = vld [vmem:[#allocation2 + $0x30] sm:$0xff]
      %v1070 = vld [vmem:[#allocation2 + $0x38] sm:$0xff]
      %v1071 = vld [vmem:[#allocation2 + $0x40] sm:$0xff]
      %v1072 = vld [vmem:[#allocation2 + $0x48] sm:$0xff]
      %s1073 = scalar_lea.vmem %s1, 1024
      %v1074 = vld [vmem:[%s1073] sm:$0xff]
      %v1075 = vld [vmem:[%s1073 + $0x8] sm:$0xff]
      %v1076 = vld [vmem:[%s1073 + $0x10] sm:$0xff]
      %v1077 = vld [vmem:[%s1073 + $0x18] sm:$0xff]
      %v1078 = vld [vmem:[%s1073 + $0x20] sm:$0xff]
      %v1079 = vld [vmem:[%s1073 + $0x28] sm:$0xff]
      %v1080 = vld [vmem:[%s1073 + $0x30] sm:$0xff]
      %v1081 = vld [vmem:[%s1073 + $0x38] sm:$0xff]
      %v1082 = vld [vmem:[%s1073 + $0x40] sm:$0xff]
      %v1083 = vld [vmem:[%s1073 + $0x48] sm:$0xff]
      %v1084 = vld [vmem:[%s1073 + $0x50] sm:$0xff]
      %v1085 = vld [vmem:[%s1073 + $0x58] sm:$0xff]
      %v1086 = vld [vmem:[%s1073 + $0x60] sm:$0xff]
      %v1087 = vld [vmem:[%s1073 + $0x68] sm:$0xff]
      %v1088 = vld [vmem:[%s1073 + $0x70] sm:$0xff]
      %v1089 = vld [vmem:[%s1073 + $0x78] sm:$0xff]
      %1090 = vmatpush.msra.mxu0 %v1089
      %1091 = vmatpush.msra.mxu0 %v1088
      %1092 = vmatpush.msra.mxu0 %v1087
      %1093 = vmatpush.msra.mxu0 %v1086
      %1094 = vmatpush.msra.mxu0 %v1085
      %1095 = vmatpush.msra.mxu0 %v1084
      %1096 = vmatpush.msra.mxu0 %v1083
      %1097 = vmatpush.msra.mxu0 %v1082
      %1098 = vmatpush.msra.mxu0 %v1081
      %1099 = vmatpush.msra.mxu0 %v1080
      %1100 = vmatpush.msra.mxu0 %v1079
      %1101 = vmatpush.msra.mxu0 %v1078
      %1102 = vmatpush.msra.mxu0 %v1077
      %1103 = vmatpush.msra.mxu0 %v1076
      %1104 = vmatpush.msra.mxu0 %v1075
      %1105 = vmatpush.msra.mxu0 %v1074
      %1106 = vmatmul.f32.gmra.mxu0 %v1053
      %v1107 = vpop.f32.mrf.mxu0
      %v1108 = vadd.f32 0.0, %v1107
      %1109 = vmatmul.f32.gmra.mxu0 %v1054
      %v1110 = vpop.f32.mrf.mxu0
      %v1111 = vadd.f32 0.0, %v1110
      %1112 = vmatmul.f32.gmra.mxu0 %v1055
      %v1113 = vpop.f32.mrf.mxu0
      %v1114 = vadd.f32 0.0, %v1113
      %1115 = vmatmul.f32.gmra.mxu0 %v1056
      %v1116 = vpop.f32.mrf.mxu0
      %v1117 = vadd.f32 0.0, %v1116
      %1118 = vmatmul.f32.gmra.mxu0 %v1057
      %v1119 = vpop.f32.mrf.mxu0
      %v1120 = vadd.f32 0.0, %v1119
      %1121 = vmatmul.f32.gmra.mxu0 %v1058
      %v1122 = vpop.f32.mrf.mxu0
      %v1123 = vadd.f32 0.0, %v1122
      %1124 = vmatmul.f32.gmra.mxu0 %v1059
      %v1125 = vpop.f32.mrf.mxu0
      %v1126 = vadd.f32 0.0, %v1125
      %1127 = vmatmul.f32.gmra.mxu0 %v1060
      %v1128 = vpop.f32.mrf.mxu0
      %v1129 = vadd.f32 0.0, %v1128
      %1130 = vmatmul.f32.gmra.mxu0 %v1061
      %v1131 = vpop.f32.mrf.mxu0
      %v1132 = vadd.f32 0.0, %v1131
      %1133 = vmatmul.f32.gmra.mxu0 %v1062
      %v1134 = vpop.f32.mrf.mxu0
      %v1135 = vadd.f32 0.0, %v1134
      %1136 = vdwg.mxu0
      %v1137 = vadd.f32 %v1063, %v1108
      %v1138 = vadd.f32 %v1064, %v1111
      %v1139 = vadd.f32 %v1065, %v1114
      %v1140 = vadd.f32 %v1066, %v1117
      %v1141 = vadd.f32 %v1067, %v1120
      %v1142 = vadd.f32 %v1068, %v1123
      %v1143 = vadd.f32 %v1069, %v1126
      %v1144 = vadd.f32 %v1070, %v1129
      %v1145 = vadd.f32 %v1071, %v1132
      %v1146 = vadd.f32 %v1072, %v1135
      %1147 = vst [vmem:[#allocation2] sm:$0xff] %v1137
      %1148 = vst [vmem:[#allocation2 + $0x8] sm:$0xff] %v1138
      %1149 = vst [vmem:[#allocation2 + $0x10] sm:$0xff] %v1139
      %1150 = vst [vmem:[#allocation2 + $0x18] sm:$0xff] %v1140
      %1151 = vst [vmem:[#allocation2 + $0x20] sm:$0xff] %v1141
      %1152 = vst [vmem:[#allocation2 + $0x28] sm:$0xff] %v1142
      %1153 = vst [vmem:[#allocation2 + $0x30] sm:$0xff] %v1143
      %1154 = vst [vmem:[#allocation2 + $0x38] sm:$0xff] %v1144
      %1155 = vst [vmem:[#allocation2 + $0x40] sm:$0xff] %v1145
      %1156 = vst [vmem:[#allocation2 + $0x48] sm:$0xff] %v1146
      %s1157 = sadd.s32 %s627, 208
      %s1158 = scalar_lea.vmem %s183, %s1157
      %v1159 = vld [vmem:[%s1158] sm:$0xff]
      %v1160 = vld [vmem:[%s1158 + $0x8] sm:$0xff]
      %v1161 = vld [vmem:[%s1158 + $0x10] sm:$0xff]
      %v1162 = vld [vmem:[%s1158 + $0x18] sm:$0xff]
      %v1163 = vld [vmem:[%s1158 + $0x20] sm:$0xff]
      %v1164 = vld [vmem:[%s1158 + $0x28] sm:$0xff]
      %v1165 = vld [vmem:[%s1158 + $0x30] sm:$0xff]
      %v1166 = vld [vmem:[%s1158 + $0x38] sm:$0xff]
      %v1167 = vld [vmem:[%s1158 + $0x40] sm:$0xff]
      %v1168 = vld [vmem:[%s1158 + $0x48] sm:$0xff]
      %v1169 = vld [vmem:[#allocation2] sm:$0xff]
      %v1170 = vld [vmem:[#allocation2 + $0x8] sm:$0xff]
      %v1171 = vld [vmem:[#allocation2 + $0x10] sm:$0xff]
      %v1172 = vld [vmem:[#allocation2 + $0x18] sm:$0xff]
      %v1173 = vld [vmem:[#allocation2 + $0x20] sm:$0xff]
      %v1174 = vld [vmem:[#allocation2 + $0x28] sm:$0xff]
      %v1175 = vld [vmem:[#allocation2 + $0x30] sm:$0xff]
      %v1176 = vld [vmem:[#allocation2 + $0x38] sm:$0xff]
      %v1177 = vld [vmem:[#allocation2 + $0x40] sm:$0xff]
      %v1178 = vld [vmem:[#allocation2 + $0x48] sm:$0xff]
      %s1179 = scalar_lea.vmem %s1, 1152
      %v1180 = vld [vmem:[%s1179] sm:$0xff]
      %v1181 = vld [vmem:[%s1179 + $0x8] sm:$0xff]
      %v1182 = vld [vmem:[%s1179 + $0x10] sm:$0xff]
      %v1183 = vld [vmem:[%s1179 + $0x18] sm:$0xff]
      %v1184 = vld [vmem:[%s1179 + $0x20] sm:$0xff]
      %v1185 = vld [vmem:[%s1179 + $0x28] sm:$0xff]
      %v1186 = vld [vmem:[%s1179 + $0x30] sm:$0xff]
      %v1187 = vld [vmem:[%s1179 + $0x38] sm:$0xff]
      %v1188 = vld [vmem:[%s1179 + $0x40] sm:$0xff]
      %v1189 = vld [vmem:[%s1179 + $0x48] sm:$0xff]
      %v1190 = vld [vmem:[%s1179 + $0x50] sm:$0xff]
      %v1191 = vld [vmem:[%s1179 + $0x58] sm:$0xff]
      %v1192 = vld [vmem:[%s1179 + $0x60] sm:$0xff]
      %v1193 = vld [vmem:[%s1179 + $0x68] sm:$0xff]
      %v1194 = vld [vmem:[%s1179 + $0x70] sm:$0xff]
      %v1195 = vld [vmem:[%s1179 + $0x78] sm:$0xff]
      %1196 = vmatpush.msra.mxu0 %v1195
      %1197 = vmatpush.msra.mxu0 %v1194
      %1198 = vmatpush.msra.mxu0 %v1193
      %1199 = vmatpush.msra.mxu0 %v1192
      %1200 = vmatpush.msra.mxu0 %v1191
      %1201 = vmatpush.msra.mxu0 %v1190
      %1202 = vmatpush.msra.mxu0 %v1189
      %1203 = vmatpush.msra.mxu0 %v1188
      %1204 = vmatpush.msra.mxu0 %v1187
      %1205 = vmatpush.msra.mxu0 %v1186
      %1206 = vmatpush.msra.mxu0 %v1185
      %1207 = vmatpush.msra.mxu0 %v1184
      %1208 = vmatpush.msra.mxu0 %v1183
      %1209 = vmatpush.msra.mxu0 %v1182
      %1210 = vmatpush.msra.mxu0 %v1181
      %1211 = vmatpush.msra.mxu0 %v1180
      %1212 = vmatmul.f32.gmra.mxu0 %v1159
      %v1213 = vpop.f32.mrf.mxu0
      %v1214 = vadd.f32 0.0, %v1213
      %1215 = vmatmul.f32.gmra.mxu0 %v1160
      %v1216 = vpop.f32.mrf.mxu0
      %v1217 = vadd.f32 0.0, %v1216
      %1218 = vmatmul.f32.gmra.mxu0 %v1161
      %v1219 = vpop.f32.mrf.mxu0
      %v1220 = vadd.f32 0.0, %v1219
      %1221 = vmatmul.f32.gmra.mxu0 %v1162
      %v1222 = vpop.f32.mrf.mxu0
      %v1223 = vadd.f32 0.0, %v1222
      %1224 = vmatmul.f32.gmra.mxu0 %v1163
      %v1225 = vpop.f32.mrf.mxu0
      %v1226 = vadd.f32 0.0, %v1225
      %1227 = vmatmul.f32.gmra.mxu0 %v1164
      %v1228 = vpop.f32.mrf.mxu0
      %v1229 = vadd.f32 0.0, %v1228
      %1230 = vmatmul.f32.gmra.mxu0 %v1165
      %v1231 = vpop.f32.mrf.mxu0
      %v1232 = vadd.f32 0.0, %v1231
      %1233 = vmatmul.f32.gmra.mxu0 %v1166
      %v1234 = vpop.f32.mrf.mxu0
      %v1235 = vadd.f32 0.0, %v1234
      %1236 = vmatmul.f32.gmra.mxu0 %v1167
      %v1237 = vpop.f32.mrf.mxu0
      %v1238 = vadd.f32 0.0, %v1237
      %1239 = vmatmul.f32.gmra.mxu0 %v1168
      %v1240 = vpop.f32.mrf.mxu0
      %v1241 = vadd.f32 0.0, %v1240
      %1242 = vdwg.mxu0
      %v1243 = vadd.f32 %v1169, %v1214
      %v1244 = vadd.f32 %v1170, %v1217
      %v1245 = vadd.f32 %v1171, %v1220
      %v1246 = vadd.f32 %v1172, %v1223
      %v1247 = vadd.f32 %v1173, %v1226
      %v1248 = vadd.f32 %v1174, %v1229
      %v1249 = vadd.f32 %v1175, %v1232
      %v1250 = vadd.f32 %v1176, %v1235
      %v1251 = vadd.f32 %v1177, %v1238
      %v1252 = vadd.f32 %v1178, %v1241
      %1253 = vst [vmem:[#allocation2] sm:$0xff] %v1243
      %1254 = vst [vmem:[#allocation2 + $0x8] sm:$0xff] %v1244
      %1255 = vst [vmem:[#allocation2 + $0x10] sm:$0xff] %v1245
      %1256 = vst [vmem:[#allocation2 + $0x18] sm:$0xff] %v1246
      %1257 = vst [vmem:[#allocation2 + $0x20] sm:$0xff] %v1247
      %1258 = vst [vmem:[#allocation2 + $0x28] sm:$0xff] %v1248
      %1259 = vst [vmem:[#allocation2 + $0x30] sm:$0xff] %v1249
      %1260 = vst [vmem:[#allocation2 + $0x38] sm:$0xff] %v1250
      %1261 = vst [vmem:[#allocation2 + $0x40] sm:$0xff] %v1251
      %1262 = vst [vmem:[#allocation2 + $0x48] sm:$0xff] %v1252
      %s1263 = sadd.s32 %s194, 10
      %s1264 = scalar_lea.vmem %s183, %s1263
      %v1265 = vld [vmem:[%s1264] sm:$0xff]
      %v1266 = vld [vmem:[%s1264 + $0x8] sm:$0xff]
      %v1267 = vld [vmem:[%s1264 + $0x10] sm:$0xff]
      %v1268 = vld [vmem:[%s1264 + $0x18] sm:$0xff]
      %v1269 = vld [vmem:[%s1264 + $0x20] sm:$0xff]
      %v1270 = vld [vmem:[%s1264 + $0x28] sm:$0xff]
      %v1271 = vld [vmem:[%s1264 + $0x30] sm:$0xff]
      %v1272 = vld [vmem:[%s1264 + $0x38] sm:$0xff]
      %v1273 = vld [vmem:[%s1264 + $0x40] sm:$0xff]
      %v1274 = vld [vmem:[%s1264 + $0x48] sm:$0xff]
      %v1275 = vld [vmem:[#allocation2] sm:$0xff]
      %v1276 = vld [vmem:[#allocation2 + $0x8] sm:$0xff]
      %v1277 = vld [vmem:[#allocation2 + $0x10] sm:$0xff]
      %v1278 = vld [vmem:[#allocation2 + $0x18] sm:$0xff]
      %v1279 = vld [vmem:[#allocation2 + $0x20] sm:$0xff]
      %v1280 = vld [vmem:[#allocation2 + $0x28] sm:$0xff]
      %v1281 = vld [vmem:[#allocation2 + $0x30] sm:$0xff]
      %v1282 = vld [vmem:[#allocation2 + $0x38] sm:$0xff]
      %v1283 = vld [vmem:[#allocation2 + $0x40] sm:$0xff]
      %v1284 = vld [vmem:[#allocation2 + $0x48] sm:$0xff]
      %s1285 = scalar_lea.vmem %s1, 1280
      %v1286 = vld [vmem:[%s1285] sm:$0xff]
      %v1287 = vld [vmem:[%s1285 + $0x8] sm:$0xff]
      %v1288 = vld [vmem:[%s1285 + $0x10] sm:$0xff]
      %v1289 = vld [vmem:[%s1285 + $0x18] sm:$0xff]
      %v1290 = vld [vmem:[%s1285 + $0x20] sm:$0xff]
      %v1291 = vld [vmem:[%s1285 + $0x28] sm:$0xff]
      %v1292 = vld [vmem:[%s1285 + $0x30] sm:$0xff]
      %v1293 = vld [vmem:[%s1285 + $0x38] sm:$0xff]
      %v1294 = vld [vmem:[%s1285 + $0x40] sm:$0xff]
      %v1295 = vld [vmem:[%s1285 + $0x48] sm:$0xff]
      %v1296 = vld [vmem:[%s1285 + $0x50] sm:$0xff]
      %v1297 = vld [vmem:[%s1285 + $0x58] sm:$0xff]
      %v1298 = vld [vmem:[%s1285 + $0x60] sm:$0xff]
      %v1299 = vld [vmem:[%s1285 + $0x68] sm:$0xff]
      %v1300 = vld [vmem:[%s1285 + $0x70] sm:$0xff]
      %v1301 = vld [vmem:[%s1285 + $0x78] sm:$0xff]
      %1302 = vmatpush.msra.mxu0 %v1301
      %1303 = vmatpush.msra.mxu0 %v1300
      %1304 = vmatpush.msra.mxu0 %v1299
      %1305 = vmatpush.msra.mxu0 %v1298
      %1306 = vmatpush.msra.mxu0 %v1297
      %1307 = vmatpush.msra.mxu0 %v1296
      %1308 = vmatpush.msra.mxu0 %v1295
      %1309 = vmatpush.msra.mxu0 %v1294
      %1310 = vmatpush.msra.mxu0 %v1293
      %1311 = vmatpush.msra.mxu0 %v1292
      %1312 = vmatpush.msra.mxu0 %v1291
      %1313 = vmatpush.msra.mxu0 %v1290
      %1314 = vmatpush.msra.mxu0 %v1289
      %1315 = vmatpush.msra.mxu0 %v1288
      %1316 = vmatpush.msra.mxu0 %v1287
      %1317 = vmatpush.msra.mxu0 %v1286
      %1318 = vmatmul.f32.gmra.mxu0 %v1265
      %v1319 = vpop.f32.mrf.mxu0
      %v1320 = vadd.f32 0.0, %v1319
      %1321 = vmatmul.f32.gmra.mxu0 %v1266
      %v1322 = vpop.f32.mrf.mxu0
      %v1323 = vadd.f32 0.0, %v1322
      %1324 = vmatmul.f32.gmra.mxu0 %v1267
      %v1325 = vpop.f32.mrf.mxu0
      %v1326 = vadd.f32 0.0, %v1325
      %1327 = vmatmul.f32.gmra.mxu0 %v1268
      %v1328 = vpop.f32.mrf.mxu0
      %v1329 = vadd.f32 0.0, %v1328
      %1330 = vmatmul.f32.gmra.mxu0 %v1269
      %v1331 = vpop.f32.mrf.mxu0
      %v1332 = vadd.f32 0.0, %v1331
      %1333 = vmatmul.f32.gmra.mxu0 %v1270
      %v1334 = vpop.f32.mrf.mxu0
      %v1335 = vadd.f32 0.0, %v1334
      %1336 = vmatmul.f32.gmra.mxu0 %v1271
      %v1337 = vpop.f32.mrf.mxu0
      %v1338 = vadd.f32 0.0, %v1337
      %1339 = vmatmul.f32.gmra.mxu0 %v1272
      %v1340 = vpop.f32.mrf.mxu0
      %v1341 = vadd.f32 0.0, %v1340
      %1342 = vmatmul.f32.gmra.mxu0 %v1273
      %v1343 = vpop.f32.mrf.mxu0
      %v1344 = vadd.f32 0.0, %v1343
      %1345 = vmatmul.f32.gmra.mxu0 %v1274
      %v1346 = vpop.f32.mrf.mxu0
      %v1347 = vadd.f32 0.0, %v1346
      %1348 = vdwg.mxu0
      %v1349 = vadd.f32 %v1275, %v1320
      %v1350 = vadd.f32 %v1276, %v1323
      %v1351 = vadd.f32 %v1277, %v1326
      %v1352 = vadd.f32 %v1278, %v1329
      %v1353 = vadd.f32 %v1279, %v1332
      %v1354 = vadd.f32 %v1280, %v1335
      %v1355 = vadd.f32 %v1281, %v1338
      %v1356 = vadd.f32 %v1282, %v1341
      %v1357 = vadd.f32 %v1283, %v1344
      %v1358 = vadd.f32 %v1284, %v1347
      %1359 = vst [vmem:[#allocation2] sm:$0xff] %v1349
      %1360 = vst [vmem:[#allocation2 + $0x8] sm:$0xff] %v1350
      %1361 = vst [vmem:[#allocation2 + $0x10] sm:$0xff] %v1351
      %1362 = vst [vmem:[#allocation2 + $0x18] sm:$0xff] %v1352
      %1363 = vst [vmem:[#allocation2 + $0x20] sm:$0xff] %v1353
      %1364 = vst [vmem:[#allocation2 + $0x28] sm:$0xff] %v1354
      %1365 = vst [vmem:[#allocation2 + $0x30] sm:$0xff] %v1355
      %1366 = vst [vmem:[#allocation2 + $0x38] sm:$0xff] %v1356
      %1367 = vst [vmem:[#allocation2 + $0x40] sm:$0xff] %v1357
      %1368 = vst [vmem:[#allocation2 + $0x48] sm:$0xff] %v1358
      %s1369 = sadd.s32 %s1263, 104
      %s1370 = scalar_lea.vmem %s183, %s1369
      %v1371 = vld [vmem:[%s1370] sm:$0xff]
      %v1372 = vld [vmem:[%s1370 + $0x8] sm:$0xff]
      %v1373 = vld [vmem:[%s1370 + $0x10] sm:$0xff]
      %v1374 = vld [vmem:[%s1370 + $0x18] sm:$0xff]
      %v1375 = vld [vmem:[%s1370 + $0x20] sm:$0xff]
      %v1376 = vld [vmem:[%s1370 + $0x28] sm:$0xff]
      %v1377 = vld [vmem:[%s1370 + $0x30] sm:$0xff]
      %v1378 = vld [vmem:[%s1370 + $0x38] sm:$0xff]
      %v1379 = vld [vmem:[%s1370 + $0x40] sm:$0xff]
      %v1380 = vld [vmem:[%s1370 + $0x48] sm:$0xff]
      %v1381 = vld [vmem:[#allocation2] sm:$0xff]
      %v1382 = vld [vmem:[#allocation2 + $0x8] sm:$0xff]
      %v1383 = vld [vmem:[#allocation2 + $0x10] sm:$0xff]
      %v1384 = vld [vmem:[#allocation2 + $0x18] sm:$0xff]
      %v1385 = vld [vmem:[#allocation2 + $0x20] sm:$0xff]
      %v1386 = vld [vmem:[#allocation2 + $0x28] sm:$0xff]
      %v1387 = vld [vmem:[#allocation2 + $0x30] sm:$0xff]
      %v1388 = vld [vmem:[#allocation2 + $0x38] sm:$0xff]
      %v1389 = vld [vmem:[#allocation2 + $0x40] sm:$0xff]
      %v1390 = vld [vmem:[#allocation2 + $0x48] sm:$0xff]
      %s1391 = scalar_lea.vmem %s1, 1408
      %v1392 = vld [vmem:[%s1391] sm:$0xff]
      %v1393 = vld [vmem:[%s1391 + $0x8] sm:$0xff]
      %v1394 = vld [vmem:[%s1391 + $0x10] sm:$0xff]
      %v1395 = vld [vmem:[%s1391 + $0x18] sm:$0xff]
      %v1396 = vld [vmem:[%s1391 + $0x20] sm:$0xff]
      %v1397 = vld [vmem:[%s1391 + $0x28] sm:$0xff]
      %v1398 = vld [vmem:[%s1391 + $0x30] sm:$0xff]
      %v1399 = vld [vmem:[%s1391 + $0x38] sm:$0xff]
      %v1400 = vld [vmem:[%s1391 + $0x40] sm:$0xff]
      %v1401 = vld [vmem:[%s1391 + $0x48] sm:$0xff]
      %v1402 = vld [vmem:[%s1391 + $0x50] sm:$0xff]
      %v1403 = vld [vmem:[%s1391 + $0x58] sm:$0xff]
      %v1404 = vld [vmem:[%s1391 + $0x60] sm:$0xff]
      %v1405 = vld [vmem:[%s1391 + $0x68] sm:$0xff]
      %v1406 = vld [vmem:[%s1391 + $0x70] sm:$0xff]
      %v1407 = vld [vmem:[%s1391 + $0x78] sm:$0xff]
      %1408 = vmatpush.msra.mxu0 %v1407
      %1409 = vmatpush.msra.mxu0 %v1406
      %1410 = vmatpush.msra.mxu0 %v1405
      %1411 = vmatpush.msra.mxu0 %v1404
      %1412 = vmatpush.msra.mxu0 %v1403
      %1413 = vmatpush.msra.mxu0 %v1402
      %1414 = vmatpush.msra.mxu0 %v1401
      %1415 = vmatpush.msra.mxu0 %v1400
      %1416 = vmatpush.msra.mxu0 %v1399
      %1417 = vmatpush.msra.mxu0 %v1398
      %1418 = vmatpush.msra.mxu0 %v1397
      %1419 = vmatpush.msra.mxu0 %v1396
      %1420 = vmatpush.msra.mxu0 %v1395
      %1421 = vmatpush.msra.mxu0 %v1394
      %1422 = vmatpush.msra.mxu0 %v1393
      %1423 = vmatpush.msra.mxu0 %v1392
      %1424 = vmatmul.f32.gmra.mxu0 %v1371
      %v1425 = vpop.f32.mrf.mxu0
      %v1426 = vadd.f32 0.0, %v1425
      %1427 = vmatmul.f32.gmra.mxu0 %v1372
      %v1428 = vpop.f32.mrf.mxu0
      %v1429 = vadd.f32 0.0, %v1428
      %1430 = vmatmul.f32.gmra.mxu0 %v1373
      %v1431 = vpop.f32.mrf.mxu0
      %v1432 = vadd.f32 0.0, %v1431
      %1433 = vmatmul.f32.gmra.mxu0 %v1374
      %v1434 = vpop.f32.mrf.mxu0
      %v1435 = vadd.f32 0.0, %v1434
      %1436 = vmatmul.f32.gmra.mxu0 %v1375
      %v1437 = vpop.f32.mrf.mxu0
      %v1438 = vadd.f32 0.0, %v1437
      %1439 = vmatmul.f32.gmra.mxu0 %v1376
      %v1440 = vpop.f32.mrf.mxu0
      %v1441 = vadd.f32 0.0, %v1440
      %1442 = vmatmul.f32.gmra.mxu0 %v1377
      %v1443 = vpop.f32.mrf.mxu0
      %v1444 = vadd.f32 0.0, %v1443
      %1445 = vmatmul.f32.gmra.mxu0 %v1378
      %v1446 = vpop.f32.mrf.mxu0
      %v1447 = vadd.f32 0.0, %v1446
      %1448 = vmatmul.f32.gmra.mxu0 %v1379
      %v1449 = vpop.f32.mrf.mxu0
      %v1450 = vadd.f32 0.0, %v1449
      %1451 = vmatmul.f32.gmra.mxu0 %v1380
      %v1452 = vpop.f32.mrf.mxu0
      %v1453 = vadd.f32 0.0, %v1452
      %1454 = vdwg.mxu0
      %v1455 = vadd.f32 %v1381, %v1426
      %v1456 = vadd.f32 %v1382, %v1429
      %v1457 = vadd.f32 %v1383, %v1432
      %v1458 = vadd.f32 %v1384, %v1435
      %v1459 = vadd.f32 %v1385, %v1438
      %v1460 = vadd.f32 %v1386, %v1441
      %v1461 = vadd.f32 %v1387, %v1444
      %v1462 = vadd.f32 %v1388, %v1447
      %v1463 = vadd.f32 %v1389, %v1450
      %v1464 = vadd.f32 %v1390, %v1453
      %1465 = vst [vmem:[#allocation2] sm:$0xff] %v1455
      %1466 = vst [vmem:[#allocation2 + $0x8] sm:$0xff] %v1456
      %1467 = vst [vmem:[#allocation2 + $0x10] sm:$0xff] %v1457
      %1468 = vst [vmem:[#allocation2 + $0x18] sm:$0xff] %v1458
      %1469 = vst [vmem:[#allocation2 + $0x20] sm:$0xff] %v1459
      %1470 = vst [vmem:[#allocation2 + $0x28] sm:$0xff] %v1460
      %1471 = vst [vmem:[#allocation2 + $0x30] sm:$0xff] %v1461
      %1472 = vst [vmem:[#allocation2 + $0x38] sm:$0xff] %v1462
      %1473 = vst [vmem:[#allocation2 + $0x40] sm:$0xff] %v1463
      %1474 = vst [vmem:[#allocation2 + $0x48] sm:$0xff] %v1464
      %s1475 = sadd.s32 %s194, 11
      %s1476 = scalar_lea.vmem %s183, %s1475
      %v1477 = vld [vmem:[%s1476] sm:$0xff]
      %v1478 = vld [vmem:[%s1476 + $0x8] sm:$0xff]
      %v1479 = vld [vmem:[%s1476 + $0x10] sm:$0xff]
      %v1480 = vld [vmem:[%s1476 + $0x18] sm:$0xff]
      %v1481 = vld [vmem:[%s1476 + $0x20] sm:$0xff]
      %v1482 = vld [vmem:[%s1476 + $0x28] sm:$0xff]
      %v1483 = vld [vmem:[%s1476 + $0x30] sm:$0xff]
      %v1484 = vld [vmem:[%s1476 + $0x38] sm:$0xff]
      %v1485 = vld [vmem:[%s1476 + $0x40] sm:$0xff]
      %v1486 = vld [vmem:[%s1476 + $0x48] sm:$0xff]
      %v1487 = vld [vmem:[#allocation2] sm:$0xff]
      %v1488 = vld [vmem:[#allocation2 + $0x8] sm:$0xff]
      %v1489 = vld [vmem:[#allocation2 + $0x10] sm:$0xff]
      %v1490 = vld [vmem:[#allocation2 + $0x18] sm:$0xff]
      %v1491 = vld [vmem:[#allocation2 + $0x20] sm:$0xff]
      %v1492 = vld [vmem:[#allocation2 + $0x28] sm:$0xff]
      %v1493 = vld [vmem:[#allocation2 + $0x30] sm:$0xff]
      %v1494 = vld [vmem:[#allocation2 + $0x38] sm:$0xff]
      %v1495 = vld [vmem:[#allocation2 + $0x40] sm:$0xff]
      %v1496 = vld [vmem:[#allocation2 + $0x48] sm:$0xff]
      %s1497 = scalar_lea.vmem %s1, 1536
      %v1498 = vld [vmem:[%s1497] sm:$0xff]
      %v1499 = vld [vmem:[%s1497 + $0x8] sm:$0xff]
      %v1500 = vld [vmem:[%s1497 + $0x10] sm:$0xff]
      %v1501 = vld [vmem:[%s1497 + $0x18] sm:$0xff]
      %v1502 = vld [vmem:[%s1497 + $0x20] sm:$0xff]
      %v1503 = vld [vmem:[%s1497 + $0x28] sm:$0xff]
      %v1504 = vld [vmem:[%s1497 + $0x30] sm:$0xff]
      %v1505 = vld [vmem:[%s1497 + $0x38] sm:$0xff]
      %v1506 = vld [vmem:[%s1497 + $0x40] sm:$0xff]
      %v1507 = vld [vmem:[%s1497 + $0x48] sm:$0xff]
      %v1508 = vld [vmem:[%s1497 + $0x50] sm:$0xff]
      %v1509 = vld [vmem:[%s1497 + $0x58] sm:$0xff]
      %v1510 = vld [vmem:[%s1497 + $0x60] sm:$0xff]
      %v1511 = vld [vmem:[%s1497 + $0x68] sm:$0xff]
      %v1512 = vld [vmem:[%s1497 + $0x70] sm:$0xff]
      %v1513 = vld [vmem:[%s1497 + $0x78] sm:$0xff]
      %1514 = vmatpush.msra.mxu0 %v1513
      %1515 = vmatpush.msra.mxu0 %v1512
      %1516 = vmatpush.msra.mxu0 %v1511
      %1517 = vmatpush.msra.mxu0 %v1510
      %1518 = vmatpush.msra.mxu0 %v1509
      %1519 = vmatpush.msra.mxu0 %v1508
      %1520 = vmatpush.msra.mxu0 %v1507
      %1521 = vmatpush.msra.mxu0 %v1506
      %1522 = vmatpush.msra.mxu0 %v1505
      %1523 = vmatpush.msra.mxu0 %v1504
      %1524 = vmatpush.msra.mxu0 %v1503
      %1525 = vmatpush.msra.mxu0 %v1502
      %1526 = vmatpush.msra.mxu0 %v1501
      %1527 = vmatpush.msra.mxu0 %v1500
      %1528 = vmatpush.msra.mxu0 %v1499
      %1529 = vmatpush.msra.mxu0 %v1498
      %1530 = vmatmul.f32.gmra.mxu0 %v1477
      %v1531 = vpop.f32.mrf.mxu0
      %v1532 = vadd.f32 0.0, %v1531
      %1533 = vmatmul.f32.gmra.mxu0 %v1478
      %v1534 = vpop.f32.mrf.mxu0
      %v1535 = vadd.f32 0.0, %v1534
      %1536 = vmatmul.f32.gmra.mxu0 %v1479
      %v1537 = vpop.f32.mrf.mxu0
      %v1538 = vadd.f32 0.0, %v1537
      %1539 = vmatmul.f32.gmra.mxu0 %v1480
      %v1540 = vpop.f32.mrf.mxu0
      %v1541 = vadd.f32 0.0, %v1540
      %1542 = vmatmul.f32.gmra.mxu0 %v1481
      %v1543 = vpop.f32.mrf.mxu0
      %v1544 = vadd.f32 0.0, %v1543
      %1545 = vmatmul.f32.gmra.mxu0 %v1482
      %v1546 = vpop.f32.mrf.mxu0
      %v1547 = vadd.f32 0.0, %v1546
      %1548 = vmatmul.f32.gmra.mxu0 %v1483
      %v1549 = vpop.f32.mrf.mxu0
      %v1550 = vadd.f32 0.0, %v1549
      %1551 = vmatmul.f32.gmra.mxu0 %v1484
      %v1552 = vpop.f32.mrf.mxu0
      %v1553 = vadd.f32 0.0, %v1552
      %1554 = vmatmul.f32.gmra.mxu0 %v1485
      %v1555 = vpop.f32.mrf.mxu0
      %v1556 = vadd.f32 0.0, %v1555
      %1557 = vmatmul.f32.gmra.mxu0 %v1486
      %v1558 = vpop.f32.mrf.mxu0
      %v1559 = vadd.f32 0.0, %v1558
      %1560 = vdwg.mxu0
      %v1561 = vadd.f32 %v1487, %v1532
      %v1562 = vadd.f32 %v1488, %v1535
      %v1563 = vadd.f32 %v1489, %v1538
      %v1564 = vadd.f32 %v1490, %v1541
      %v1565 = vadd.f32 %v1491, %v1544
      %v1566 = vadd.f32 %v1492, %v1547
      %v1567 = vadd.f32 %v1493, %v1550
      %v1568 = vadd.f32 %v1494, %v1553
      %v1569 = vadd.f32 %v1495, %v1556
      %v1570 = vadd.f32 %v1496, %v1559
      %1571 = vst [vmem:[#allocation2] sm:$0xff] %v1561
      %1572 = vst [vmem:[#allocation2 + $0x8] sm:$0xff] %v1562
      %1573 = vst [vmem:[#allocation2 + $0x10] sm:$0xff] %v1563
      %1574 = vst [vmem:[#allocation2 + $0x18] sm:$0xff] %v1564
      %1575 = vst [vmem:[#allocation2 + $0x20] sm:$0xff] %v1565
      %1576 = vst [vmem:[#allocation2 + $0x28] sm:$0xff] %v1566
      %1577 = vst [vmem:[#allocation2 + $0x30] sm:$0xff] %v1567
      %1578 = vst [vmem:[#allocation2 + $0x38] sm:$0xff] %v1568
      %1579 = vst [vmem:[#allocation2 + $0x40] sm:$0xff] %v1569
      %1580 = vst [vmem:[#allocation2 + $0x48] sm:$0xff] %v1570
      %s1581 = sadd.s32 %s1475, 104
      %s1582 = scalar_lea.vmem %s183, %s1581
      %v1583 = vld [vmem:[%s1582] sm:$0xff]
      %v1584 = vld [vmem:[%s1582 + $0x8] sm:$0xff]
      %v1585 = vld [vmem:[%s1582 + $0x10] sm:$0xff]
      %v1586 = vld [vmem:[%s1582 + $0x18] sm:$0xff]
      %v1587 = vld [vmem:[%s1582 + $0x20] sm:$0xff]
      %v1588 = vld [vmem:[%s1582 + $0x28] sm:$0xff]
      %v1589 = vld [vmem:[%s1582 + $0x30] sm:$0xff]
      %v1590 = vld [vmem:[%s1582 + $0x38] sm:$0xff]
      %v1591 = vld [vmem:[%s1582 + $0x40] sm:$0xff]
      %v1592 = vld [vmem:[%s1582 + $0x48] sm:$0xff]
      %v1593 = vld [vmem:[#allocation2] sm:$0xff]
      %v1594 = vld [vmem:[#allocation2 + $0x8] sm:$0xff]
      %v1595 = vld [vmem:[#allocation2 + $0x10] sm:$0xff]
      %v1596 = vld [vmem:[#allocation2 + $0x18] sm:$0xff]
      %v1597 = vld [vmem:[#allocation2 + $0x20] sm:$0xff]
      %v1598 = vld [vmem:[#allocation2 + $0x28] sm:$0xff]
      %v1599 = vld [vmem:[#allocation2 + $0x30] sm:$0xff]
      %v1600 = vld [vmem:[#allocation2 + $0x38] sm:$0xff]
      %v1601 = vld [vmem:[#allocation2 + $0x40] sm:$0xff]
      %v1602 = vld [vmem:[#allocation2 + $0x48] sm:$0xff]
      %s1603 = scalar_lea.vmem %s1, 1664
      %v1604 = vld [vmem:[%s1603] sm:$0xff]
      %v1605 = vld [vmem:[%s1603 + $0x8] sm:$0xff]
      %v1606 = vld [vmem:[%s1603 + $0x10] sm:$0xff]
      %v1607 = vld [vmem:[%s1603 + $0x18] sm:$0xff]
      %v1608 = vld [vmem:[%s1603 + $0x20] sm:$0xff]
      %v1609 = vld [vmem:[%s1603 + $0x28] sm:$0xff]
      %v1610 = vld [vmem:[%s1603 + $0x30] sm:$0xff]
      %v1611 = vld [vmem:[%s1603 + $0x38] sm:$0xff]
      %v1612 = vld [vmem:[%s1603 + $0x40] sm:$0xff]
      %v1613 = vld [vmem:[%s1603 + $0x48] sm:$0xff]
      %v1614 = vld [vmem:[%s1603 + $0x50] sm:$0xff]
      %v1615 = vld [vmem:[%s1603 + $0x58] sm:$0xff]
      %v1616 = vld [vmem:[%s1603 + $0x60] sm:$0xff]
      %v1617 = vld [vmem:[%s1603 + $0x68] sm:$0xff]
      %v1618 = vld [vmem:[%s1603 + $0x70] sm:$0xff]
      %v1619 = vld [vmem:[%s1603 + $0x78] sm:$0xff]
      %1620 = vmatpush.msra.mxu0 %v1619
      %1621 = vmatpush.msra.mxu0 %v1618
      %1622 = vmatpush.msra.mxu0 %v1617
      %1623 = vmatpush.msra.mxu0 %v1616
      %1624 = vmatpush.msra.mxu0 %v1615
      %1625 = vmatpush.msra.mxu0 %v1614
      %1626 = vmatpush.msra.mxu0 %v1613
      %1627 = vmatpush.msra.mxu0 %v1612
      %1628 = vmatpush.msra.mxu0 %v1611
      %1629 = vmatpush.msra.mxu0 %v1610
      %1630 = vmatpush.msra.mxu0 %v1609
      %1631 = vmatpush.msra.mxu0 %v1608
      %1632 = vmatpush.msra.mxu0 %v1607
      %1633 = vmatpush.msra.mxu0 %v1606
      %1634 = vmatpush.msra.mxu0 %v1605
      %1635 = vmatpush.msra.mxu0 %v1604
      %1636 = vmatmul.f32.gmra.mxu0 %v1583
      %v1637 = vpop.f32.mrf.mxu0
      %v1638 = vadd.f32 0.0, %v1637
      %1639 = vmatmul.f32.gmra.mxu0 %v1584
      %v1640 = vpop.f32.mrf.mxu0
      %v1641 = vadd.f32 0.0, %v1640
      %1642 = vmatmul.f32.gmra.mxu0 %v1585
      %v1643 = vpop.f32.mrf.mxu0
      %v1644 = vadd.f32 0.0, %v1643
      %1645 = vmatmul.f32.gmra.mxu0 %v1586
      %v1646 = vpop.f32.mrf.mxu0
      %v1647 = vadd.f32 0.0, %v1646
      %1648 = vmatmul.f32.gmra.mxu0 %v1587
      %v1649 = vpop.f32.mrf.mxu0
      %v1650 = vadd.f32 0.0, %v1649
      %1651 = vmatmul.f32.gmra.mxu0 %v1588
      %v1652 = vpop.f32.mrf.mxu0
      %v1653 = vadd.f32 0.0, %v1652
      %1654 = vmatmul.f32.gmra.mxu0 %v1589
      %v1655 = vpop.f32.mrf.mxu0
      %v1656 = vadd.f32 0.0, %v1655
      %1657 = vmatmul.f32.gmra.mxu0 %v1590
      %v1658 = vpop.f32.mrf.mxu0
      %v1659 = vadd.f32 0.0, %v1658
      %1660 = vmatmul.f32.gmra.mxu0 %v1591
      %v1661 = vpop.f32.mrf.mxu0
      %v1662 = vadd.f32 0.0, %v1661
      %1663 = vmatmul.f32.gmra.mxu0 %v1592
      %v1664 = vpop.f32.mrf.mxu0
      %v1665 = vadd.f32 0.0, %v1664
      %1666 = vdwg.mxu0
      %v1667 = vadd.f32 %v1593, %v1638
      %v1668 = vadd.f32 %v1594, %v1641
      %v1669 = vadd.f32 %v1595, %v1644
      %v1670 = vadd.f32 %v1596, %v1647
      %v1671 = vadd.f32 %v1597, %v1650
      %v1672 = vadd.f32 %v1598, %v1653
      %v1673 = vadd.f32 %v1599, %v1656
      %v1674 = vadd.f32 %v1600, %v1659
      %v1675 = vadd.f32 %v1601, %v1662
      %v1676 = vadd.f32 %v1602, %v1665
      %1677 = vst [vmem:[#allocation2] sm:$0xff] %v1667
      %1678 = vst [vmem:[#allocation2 + $0x8] sm:$0xff] %v1668
      %1679 = vst [vmem:[#allocation2 + $0x10] sm:$0xff] %v1669
      %1680 = vst [vmem:[#allocation2 + $0x18] sm:$0xff] %v1670
      %1681 = vst [vmem:[#allocation2 + $0x20] sm:$0xff] %v1671
      %1682 = vst [vmem:[#allocation2 + $0x28] sm:$0xff] %v1672
      %1683 = vst [vmem:[#allocation2 + $0x30] sm:$0xff] %v1673
      %1684 = vst [vmem:[#allocation2 + $0x38] sm:$0xff] %v1674
      %1685 = vst [vmem:[#allocation2 + $0x40] sm:$0xff] %v1675
      %1686 = vst [vmem:[#allocation2 + $0x48] sm:$0xff] %v1676
      %s1687 = sadd.s32 %s194, 12
      %s1688 = scalar_lea.vmem %s183, %s1687
      %v1689 = vld [vmem:[%s1688] sm:$0xff]
      %v1690 = vld [vmem:[%s1688 + $0x8] sm:$0xff]
      %v1691 = vld [vmem:[%s1688 + $0x10] sm:$0xff]
      %v1692 = vld [vmem:[%s1688 + $0x18] sm:$0xff]
      %v1693 = vld [vmem:[%s1688 + $0x20] sm:$0xff]
      %v1694 = vld [vmem:[%s1688 + $0x28] sm:$0xff]
      %v1695 = vld [vmem:[%s1688 + $0x30] sm:$0xff]
      %v1696 = vld [vmem:[%s1688 + $0x38] sm:$0xff]
      %v1697 = vld [vmem:[%s1688 + $0x40] sm:$0xff]
      %v1698 = vld [vmem:[%s1688 + $0x48] sm:$0xff]
      %v1699 = vld [vmem:[#allocation2] sm:$0xff]
      %v1700 = vld [vmem:[#allocation2 + $0x8] sm:$0xff]
      %v1701 = vld [vmem:[#allocation2 + $0x10] sm:$0xff]
      %v1702 = vld [vmem:[#allocation2 + $0x18] sm:$0xff]
      %v1703 = vld [vmem:[#allocation2 + $0x20] sm:$0xff]
      %v1704 = vld [vmem:[#allocation2 + $0x28] sm:$0xff]
      %v1705 = vld [vmem:[#allocation2 + $0x30] sm:$0xff]
      %v1706 = vld [vmem:[#allocation2 + $0x38] sm:$0xff]
      %v1707 = vld [vmem:[#allocation2 + $0x40] sm:$0xff]
      %v1708 = vld [vmem:[#allocation2 + $0x48] sm:$0xff]
      %s1709 = scalar_lea.vmem %s1, 1792
      %v1710 = vld [vmem:[%s1709] sm:$0xff]
      %v1711 = vld [vmem:[%s1709 + $0x8] sm:$0xff]
      %v1712 = vld [vmem:[%s1709 + $0x10] sm:$0xff]
      %v1713 = vld [vmem:[%s1709 + $0x18] sm:$0xff]
      %v1714 = vld [vmem:[%s1709 + $0x20] sm:$0xff]
      %v1715 = vld [vmem:[%s1709 + $0x28] sm:$0xff]
      %v1716 = vld [vmem:[%s1709 + $0x30] sm:$0xff]
      %v1717 = vld [vmem:[%s1709 + $0x38] sm:$0xff]
      %v1718 = vld [vmem:[%s1709 + $0x40] sm:$0xff]
      %v1719 = vld [vmem:[%s1709 + $0x48] sm:$0xff]
      %v1720 = vld [vmem:[%s1709 + $0x50] sm:$0xff]
      %v1721 = vld [vmem:[%s1709 + $0x58] sm:$0xff]
      %v1722 = vld [vmem:[%s1709 + $0x60] sm:$0xff]
      %v1723 = vld [vmem:[%s1709 + $0x68] sm:$0xff]
      %v1724 = vld [vmem:[%s1709 + $0x70] sm:$0xff]
      %v1725 = vld [vmem:[%s1709 + $0x78] sm:$0xff]
      %1726 = vmatpush.msra.mxu0 %v1725
      %1727 = vmatpush.msra.mxu0 %v1724
      %1728 = vmatpush.msra.mxu0 %v1723
      %1729 = vmatpush.msra.mxu0 %v1722
      %1730 = vmatpush.msra.mxu0 %v1721
      %1731 = vmatpush.msra.mxu0 %v1720
      %1732 = vmatpush.msra.mxu0 %v1719
      %1733 = vmatpush.msra.mxu0 %v1718
      %1734 = vmatpush.msra.mxu0 %v1717
      %1735 = vmatpush.msra.mxu0 %v1716
      %1736 = vmatpush.msra.mxu0 %v1715
      %1737 = vmatpush.msra.mxu0 %v1714
      %1738 = vmatpush.msra.mxu0 %v1713
      %1739 = vmatpush.msra.mxu0 %v1712
      %1740 = vmatpush.msra.mxu0 %v1711
      %1741 = vmatpush.msra.mxu0 %v1710
      %1742 = vmatmul.f32.gmra.mxu0 %v1689
      %v1743 = vpop.f32.mrf.mxu0
      %v1744 = vadd.f32 0.0, %v1743
      %1745 = vmatmul.f32.gmra.mxu0 %v1690
      %v1746 = vpop.f32.mrf.mxu0
      %v1747 = vadd.f32 0.0, %v1746
      %1748 = vmatmul.f32.gmra.mxu0 %v1691
      %v1749 = vpop.f32.mrf.mxu0
      %v1750 = vadd.f32 0.0, %v1749
      %1751 = vmatmul.f32.gmra.mxu0 %v1692
      %v1752 = vpop.f32.mrf.mxu0
      %v1753 = vadd.f32 0.0, %v1752
      %1754 = vmatmul.f32.gmra.mxu0 %v1693
      %v1755 = vpop.f32.mrf.mxu0
      %v1756 = vadd.f32 0.0, %v1755
      %1757 = vmatmul.f32.gmra.mxu0 %v1694
      %v1758 = vpop.f32.mrf.mxu0
      %v1759 = vadd.f32 0.0, %v1758
      %1760 = vmatmul.f32.gmra.mxu0 %v1695
      %v1761 = vpop.f32.mrf.mxu0
      %v1762 = vadd.f32 0.0, %v1761
      %1763 = vmatmul.f32.gmra.mxu0 %v1696
      %v1764 = vpop.f32.mrf.mxu0
      %v1765 = vadd.f32 0.0, %v1764
      %1766 = vmatmul.f32.gmra.mxu0 %v1697
      %v1767 = vpop.f32.mrf.mxu0
      %v1768 = vadd.f32 0.0, %v1767
      %1769 = vmatmul.f32.gmra.mxu0 %v1698
      %v1770 = vpop.f32.mrf.mxu0
      %v1771 = vadd.f32 0.0, %v1770
      %1772 = vdwg.mxu0
      %v1773 = vadd.f32 %v1699, %v1744
      %v1774 = vadd.f32 %v1700, %v1747
      %v1775 = vadd.f32 %v1701, %v1750
      %v1776 = vadd.f32 %v1702, %v1753
      %v1777 = vadd.f32 %v1703, %v1756
      %v1778 = vadd.f32 %v1704, %v1759
      %v1779 = vadd.f32 %v1705, %v1762
      %v1780 = vadd.f32 %v1706, %v1765
      %v1781 = vadd.f32 %v1707, %v1768
      %v1782 = vadd.f32 %v1708, %v1771
      %1783 = vst [vmem:[#allocation2] sm:$0xff] %v1773
      %1784 = vst [vmem:[#allocation2 + $0x8] sm:$0xff] %v1774
      %1785 = vst [vmem:[#allocation2 + $0x10] sm:$0xff] %v1775
      %1786 = vst [vmem:[#allocation2 + $0x18] sm:$0xff] %v1776
      %1787 = vst [vmem:[#allocation2 + $0x20] sm:$0xff] %v1777
      %1788 = vst [vmem:[#allocation2 + $0x28] sm:$0xff] %v1778
      %1789 = vst [vmem:[#allocation2 + $0x30] sm:$0xff] %v1779
      %1790 = vst [vmem:[#allocation2 + $0x38] sm:$0xff] %v1780
      %1791 = vst [vmem:[#allocation2 + $0x40] sm:$0xff] %v1781
      %1792 = vst [vmem:[#allocation2 + $0x48] sm:$0xff] %v1782
      %s1793 = sadd.s32 %s1263, 208
      %s1794 = scalar_lea.vmem %s183, %s1793
      %v1795 = vld [vmem:[%s1794] sm:$0xff]
      %v1796 = vld [vmem:[%s1794 + $0x8] sm:$0xff]
      %v1797 = vld [vmem:[%s1794 + $0x10] sm:$0xff]
      %v1798 = vld [vmem:[%s1794 + $0x18] sm:$0xff]
      %v1799 = vld [vmem:[%s1794 + $0x20] sm:$0xff]
      %v1800 = vld [vmem:[%s1794 + $0x28] sm:$0xff]
      %v1801 = vld [vmem:[%s1794 + $0x30] sm:$0xff]
      %v1802 = vld [vmem:[%s1794 + $0x38] sm:$0xff]
      %v1803 = vld [vmem:[%s1794 + $0x40] sm:$0xff]
      %v1804 = vld [vmem:[%s1794 + $0x48] sm:$0xff]
      %v1805 = vld [vmem:[#allocation2] sm:$0xff]
      %v1806 = vld [vmem:[#allocation2 + $0x8] sm:$0xff]
      %v1807 = vld [vmem:[#allocation2 + $0x10] sm:$0xff]
      %v1808 = vld [vmem:[#allocation2 + $0x18] sm:$0xff]
      %v1809 = vld [vmem:[#allocation2 + $0x20] sm:$0xff]
      %v1810 = vld [vmem:[#allocation2 + $0x28] sm:$0xff]
      %v1811 = vld [vmem:[#allocation2 + $0x30] sm:$0xff]
      %v1812 = vld [vmem:[#allocation2 + $0x38] sm:$0xff]
      %v1813 = vld [vmem:[#allocation2 + $0x40] sm:$0xff]
      %v1814 = vld [vmem:[#allocation2 + $0x48] sm:$0xff]
      %s1815 = scalar_lea.vmem %s1, 1920
      %v1816 = vld [vmem:[%s1815] sm:$0xff]
      %v1817 = vld [vmem:[%s1815 + $0x8] sm:$0xff]
      %v1818 = vld [vmem:[%s1815 + $0x10] sm:$0xff]
      %v1819 = vld [vmem:[%s1815 + $0x18] sm:$0xff]
      %v1820 = vld [vmem:[%s1815 + $0x20] sm:$0xff]
      %v1821 = vld [vmem:[%s1815 + $0x28] sm:$0xff]
      %v1822 = vld [vmem:[%s1815 + $0x30] sm:$0xff]
      %v1823 = vld [vmem:[%s1815 + $0x38] sm:$0xff]
      %v1824 = vld [vmem:[%s1815 + $0x40] sm:$0xff]
      %v1825 = vld [vmem:[%s1815 + $0x48] sm:$0xff]
      %v1826 = vld [vmem:[%s1815 + $0x50] sm:$0xff]
      %v1827 = vld [vmem:[%s1815 + $0x58] sm:$0xff]
      %v1828 = vld [vmem:[%s1815 + $0x60] sm:$0xff]
      %v1829 = vld [vmem:[%s1815 + $0x68] sm:$0xff]
      %v1830 = vld [vmem:[%s1815 + $0x70] sm:$0xff]
      %v1831 = vld [vmem:[%s1815 + $0x78] sm:$0xff]
      %1832 = vmatpush.msra.mxu0 %v1831
      %1833 = vmatpush.msra.mxu0 %v1830
      %1834 = vmatpush.msra.mxu0 %v1829
      %1835 = vmatpush.msra.mxu0 %v1828
      %1836 = vmatpush.msra.mxu0 %v1827
      %1837 = vmatpush.msra.mxu0 %v1826
      %1838 = vmatpush.msra.mxu0 %v1825
      %1839 = vmatpush.msra.mxu0 %v1824
      %1840 = vmatpush.msra.mxu0 %v1823
      %1841 = vmatpush.msra.mxu0 %v1822
      %1842 = vmatpush.msra.mxu0 %v1821
      %1843 = vmatpush.msra.mxu0 %v1820
      %1844 = vmatpush.msra.mxu0 %v1819
      %1845 = vmatpush.msra.mxu0 %v1818
      %1846 = vmatpush.msra.mxu0 %v1817
      %1847 = vmatpush.msra.mxu0 %v1816
      %1848 = vmatmul.f32.gmra.mxu0 %v1795
      %v1849 = vpop.f32.mrf.mxu0
      %v1850 = vadd.f32 0.0, %v1849
      %1851 = vmatmul.f32.gmra.mxu0 %v1796
      %v1852 = vpop.f32.mrf.mxu0
      %v1853 = vadd.f32 0.0, %v1852
      %1854 = vmatmul.f32.gmra.mxu0 %v1797
      %v1855 = vpop.f32.mrf.mxu0
      %v1856 = vadd.f32 0.0, %v1855
      %1857 = vmatmul.f32.gmra.mxu0 %v1798
      %v1858 = vpop.f32.mrf.mxu0
      %v1859 = vadd.f32 0.0, %v1858
      %1860 = vmatmul.f32.gmra.mxu0 %v1799
      %v1861 = vpop.f32.mrf.mxu0
      %v1862 = vadd.f32 0.0, %v1861
      %1863 = vmatmul.f32.gmra.mxu0 %v1800
      %v1864 = vpop.f32.mrf.mxu0
      %v1865 = vadd.f32 0.0, %v1864
      %1866 = vmatmul.f32.gmra.mxu0 %v1801
      %v1867 = vpop.f32.mrf.mxu0
      %v1868 = vadd.f32 0.0, %v1867
      %1869 = vmatmul.f32.gmra.mxu0 %v1802
      %v1870 = vpop.f32.mrf.mxu0
      %v1871 = vadd.f32 0.0, %v1870
      %1872 = vmatmul.f32.gmra.mxu0 %v1803
      %v1873 = vpop.f32.mrf.mxu0
      %v1874 = vadd.f32 0.0, %v1873
      %1875 = vmatmul.f32.gmra.mxu0 %v1804
      %v1876 = vpop.f32.mrf.mxu0
      %v1877 = vadd.f32 0.0, %v1876
      %1878 = vdwg.mxu0
      %v1879 = vadd.f32 %v1805, %v1850
      %v1880 = vadd.f32 %v1806, %v1853
      %v1881 = vadd.f32 %v1807, %v1856
      %v1882 = vadd.f32 %v1808, %v1859
      %v1883 = vadd.f32 %v1809, %v1862
      %v1884 = vadd.f32 %v1810, %v1865
      %v1885 = vadd.f32 %v1811, %v1868
      %v1886 = vadd.f32 %v1812, %v1871
      %v1887 = vadd.f32 %v1813, %v1874
      %v1888 = vadd.f32 %v1814, %v1877
      %1889 = vst [vmem:[#allocation2] sm:$0xff] %v1879
      %1890 = vst [vmem:[#allocation2 + $0x8] sm:$0xff] %v1880
      %1891 = vst [vmem:[#allocation2 + $0x10] sm:$0xff] %v1881
      %1892 = vst [vmem:[#allocation2 + $0x18] sm:$0xff] %v1882
      %1893 = vst [vmem:[#allocation2 + $0x20] sm:$0xff] %v1883
      %1894 = vst [vmem:[#allocation2 + $0x28] sm:$0xff] %v1884
      %1895 = vst [vmem:[#allocation2 + $0x30] sm:$0xff] %v1885
      %1896 = vst [vmem:[#allocation2 + $0x38] sm:$0xff] %v1886
      %1897 = vst [vmem:[#allocation2 + $0x40] sm:$0xff] %v1887
      %1898 = vst [vmem:[#allocation2 + $0x48] sm:$0xff] %v1888
      %s1899 = sadd.s32 %s1263, 312
      %s1900 = scalar_lea.vmem %s183, %s1899
      %v1901 = vld [vmem:[%s1900] sm:$0xff]
      %v1902 = vld [vmem:[%s1900 + $0x8] sm:$0xff]
      %v1903 = vld [vmem:[%s1900 + $0x10] sm:$0xff]
      %v1904 = vld [vmem:[%s1900 + $0x18] sm:$0xff]
      %v1905 = vld [vmem:[%s1900 + $0x20] sm:$0xff]
      %v1906 = vld [vmem:[%s1900 + $0x28] sm:$0xff]
      %v1907 = vld [vmem:[%s1900 + $0x30] sm:$0xff]
      %v1908 = vld [vmem:[%s1900 + $0x38] sm:$0xff]
      %v1909 = vld [vmem:[%s1900 + $0x40] sm:$0xff]
      %v1910 = vld [vmem:[%s1900 + $0x48] sm:$0xff]
      %v1911 = vld [vmem:[#allocation2] sm:$0xff]
      %v1912 = vld [vmem:[#allocation2 + $0x8] sm:$0xff]
      %v1913 = vld [vmem:[#allocation2 + $0x10] sm:$0xff]
      %v1914 = vld [vmem:[#allocation2 + $0x18] sm:$0xff]
      %v1915 = vld [vmem:[#allocation2 + $0x20] sm:$0xff]
      %v1916 = vld [vmem:[#allocation2 + $0x28] sm:$0xff]
      %v1917 = vld [vmem:[#allocation2 + $0x30] sm:$0xff]
      %v1918 = vld [vmem:[#allocation2 + $0x38] sm:$0xff]
      %v1919 = vld [vmem:[#allocation2 + $0x40] sm:$0xff]
      %v1920 = vld [vmem:[#allocation2 + $0x48] sm:$0xff]
      %s1921 = scalar_lea.vmem %s1, 2048
      %v1922 = vld [vmem:[%s1921] sm:$0xff]
      %v1923 = vld [vmem:[%s1921 + $0x8] sm:$0xff]
      %v1924 = vld [vmem:[%s1921 + $0x10] sm:$0xff]
      %v1925 = vld [vmem:[%s1921 + $0x18] sm:$0xff]
      %v1926 = vld [vmem:[%s1921 + $0x20] sm:$0xff]
      %v1927 = vld [vmem:[%s1921 + $0x28] sm:$0xff]
      %v1928 = vld [vmem:[%s1921 + $0x30] sm:$0xff]
      %v1929 = vld [vmem:[%s1921 + $0x38] sm:$0xff]
      %v1930 = vld [vmem:[%s1921 + $0x40] sm:$0xff]
      %v1931 = vld [vmem:[%s1921 + $0x48] sm:$0xff]
      %v1932 = vld [vmem:[%s1921 + $0x50] sm:$0xff]
      %v1933 = vld [vmem:[%s1921 + $0x58] sm:$0xff]
      %v1934 = vld [vmem:[%s1921 + $0x60] sm:$0xff]
      %v1935 = vld [vmem:[%s1921 + $0x68] sm:$0xff]
      %v1936 = vld [vmem:[%s1921 + $0x70] sm:$0xff]
      %v1937 = vld [vmem:[%s1921 + $0x78] sm:$0xff]
      %1938 = vmatpush.msra.mxu0 %v1937
      %1939 = vmatpush.msra.mxu0 %v1936
      %1940 = vmatpush.msra.mxu0 %v1935
      %1941 = vmatpush.msra.mxu0 %v1934
      %1942 = vmatpush.msra.mxu0 %v1933
      %1943 = vmatpush.msra.mxu0 %v1932
      %1944 = vmatpush.msra.mxu0 %v1931
      %1945 = vmatpush.msra.mxu0 %v1930
      %1946 = vmatpush.msra.mxu0 %v1929
      %1947 = vmatpush.msra.mxu0 %v1928
      %1948 = vmatpush.msra.mxu0 %v1927
      %1949 = vmatpush.msra.mxu0 %v1926
      %1950 = vmatpush.msra.mxu0 %v1925
      %1951 = vmatpush.msra.mxu0 %v1924
      %1952 = vmatpush.msra.mxu0 %v1923
      %1953 = vmatpush.msra.mxu0 %v1922
      %1954 = vmatmul.f32.gmra.mxu0 %v1901
      %v1955 = vpop.f32.mrf.mxu0
      %v1956 = vadd.f32 0.0, %v1955
      %1957 = vmatmul.f32.gmra.mxu0 %v1902
      %v1958 = vpop.f32.mrf.mxu0
      %v1959 = vadd.f32 0.0, %v1958
      %1960 = vmatmul.f32.gmra.mxu0 %v1903
      %v1961 = vpop.f32.mrf.mxu0
      %v1962 = vadd.f32 0.0, %v1961
      %1963 = vmatmul.f32.gmra.mxu0 %v1904
      %v1964 = vpop.f32.mrf.mxu0
      %v1965 = vadd.f32 0.0, %v1964
      %1966 = vmatmul.f32.gmra.mxu0 %v1905
      %v1967 = vpop.f32.mrf.mxu0
      %v1968 = vadd.f32 0.0, %v1967
      %1969 = vmatmul.f32.gmra.mxu0 %v1906
      %v1970 = vpop.f32.mrf.mxu0
      %v1971 = vadd.f32 0.0, %v1970
      %1972 = vmatmul.f32.gmra.mxu0 %v1907
      %v1973 = vpop.f32.mrf.mxu0
      %v1974 = vadd.f32 0.0, %v1973
      %1975 = vmatmul.f32.gmra.mxu0 %v1908
      %v1976 = vpop.f32.mrf.mxu0
      %v1977 = vadd.f32 0.0, %v1976
      %1978 = vmatmul.f32.gmra.mxu0 %v1909
      %v1979 = vpop.f32.mrf.mxu0
      %v1980 = vadd.f32 0.0, %v1979
      %1981 = vmatmul.f32.gmra.mxu0 %v1910
      %v1982 = vpop.f32.mrf.mxu0
      %v1983 = vadd.f32 0.0, %v1982
      %1984 = vdwg.mxu0
      %v1985 = vadd.f32 %v1911, %v1956
      %v1986 = vadd.f32 %v1912, %v1959
      %v1987 = vadd.f32 %v1913, %v1962
      %v1988 = vadd.f32 %v1914, %v1965
      %v1989 = vadd.f32 %v1915, %v1968
      %v1990 = vadd.f32 %v1916, %v1971
      %v1991 = vadd.f32 %v1917, %v1974
      %v1992 = vadd.f32 %v1918, %v1977
      %v1993 = vadd.f32 %v1919, %v1980
      %v1994 = vadd.f32 %v1920, %v1983
      %1995 = vst [vmem:[#allocation2] sm:$0xff] %v1985
      %1996 = vst [vmem:[#allocation2 + $0x8] sm:$0xff] %v1986
      %1997 = vst [vmem:[#allocation2 + $0x10] sm:$0xff] %v1987
      %1998 = vst [vmem:[#allocation2 + $0x18] sm:$0xff] %v1988
      %1999 = vst [vmem:[#allocation2 + $0x20] sm:$0xff] %v1989
      %2000 = vst [vmem:[#allocation2 + $0x28] sm:$0xff] %v1990
      %2001 = vst [vmem:[#allocation2 + $0x30] sm:$0xff] %v1991
      %2002 = vst [vmem:[#allocation2 + $0x38] sm:$0xff] %v1992
      %2003 = vst [vmem:[#allocation2 + $0x40] sm:$0xff] %v1993
      %2004 = vst [vmem:[#allocation2 + $0x48] sm:$0xff] %v1994
      %s2005 = sadd.s32 %s1475, 208
      %s2006 = scalar_lea.vmem %s183, %s2005
      %v2007 = vld [vmem:[%s2006] sm:$0xff]
      %v2008 = vld [vmem:[%s2006 + $0x8] sm:$0xff]
      %v2009 = vld [vmem:[%s2006 + $0x10] sm:$0xff]
      %v2010 = vld [vmem:[%s2006 + $0x18] sm:$0xff]
      %v2011 = vld [vmem:[%s2006 + $0x20] sm:$0xff]
      %v2012 = vld [vmem:[%s2006 + $0x28] sm:$0xff]
      %v2013 = vld [vmem:[%s2006 + $0x30] sm:$0xff]
      %v2014 = vld [vmem:[%s2006 + $0x38] sm:$0xff]
      %v2015 = vld [vmem:[%s2006 + $0x40] sm:$0xff]
      %v2016 = vld [vmem:[%s2006 + $0x48] sm:$0xff]
      %v2017 = vld [vmem:[#allocation2] sm:$0xff]
      %v2018 = vld [vmem:[#allocation2 + $0x8] sm:$0xff]
      %v2019 = vld [vmem:[#allocation2 + $0x10] sm:$0xff]
      %v2020 = vld [vmem:[#allocation2 + $0x18] sm:$0xff]
      %v2021 = vld [vmem:[#allocation2 + $0x20] sm:$0xff]
      %v2022 = vld [vmem:[#allocation2 + $0x28] sm:$0xff]
      %v2023 = vld [vmem:[#allocation2 + $0x30] sm:$0xff]
      %v2024 = vld [vmem:[#allocation2 + $0x38] sm:$0xff]
      %v2025 = vld [vmem:[#allocation2 + $0x40] sm:$0xff]
      %v2026 = vld [vmem:[#allocation2 + $0x48] sm:$0xff]
      %s2027 = scalar_lea.vmem %s1, 2176
      %v2028 = vld [vmem:[%s2027] sm:$0xff]
      %v2029 = vld [vmem:[%s2027 + $0x8] sm:$0xff]
      %v2030 = vld [vmem:[%s2027 + $0x10] sm:$0xff]
      %v2031 = vld [vmem:[%s2027 + $0x18] sm:$0xff]
      %v2032 = vld [vmem:[%s2027 + $0x20] sm:$0xff]
      %v2033 = vld [vmem:[%s2027 + $0x28] sm:$0xff]
      %v2034 = vld [vmem:[%s2027 + $0x30] sm:$0xff]
      %v2035 = vld [vmem:[%s2027 + $0x38] sm:$0xff]
      %v2036 = vld [vmem:[%s2027 + $0x40] sm:$0xff]
      %v2037 = vld [vmem:[%s2027 + $0x48] sm:$0xff]
      %v2038 = vld [vmem:[%s2027 + $0x50] sm:$0xff]
      %v2039 = vld [vmem:[%s2027 + $0x58] sm:$0xff]
      %v2040 = vld [vmem:[%s2027 + $0x60] sm:$0xff]
      %v2041 = vld [vmem:[%s2027 + $0x68] sm:$0xff]
      %v2042 = vld [vmem:[%s2027 + $0x70] sm:$0xff]
      %v2043 = vld [vmem:[%s2027 + $0x78] sm:$0xff]
      %2044 = vmatpush.msra.mxu0 %v2043
      %2045 = vmatpush.msra.mxu0 %v2042
      %2046 = vmatpush.msra.mxu0 %v2041
      %2047 = vmatpush.msra.mxu0 %v2040
      %2048 = vmatpush.msra.mxu0 %v2039
      %2049 = vmatpush.msra.mxu0 %v2038
      %2050 = vmatpush.msra.mxu0 %v2037
      %2051 = vmatpush.msra.mxu0 %v2036
      %2052 = vmatpush.msra.mxu0 %v2035
      %2053 = vmatpush.msra.mxu0 %v2034
      %2054 = vmatpush.msra.mxu0 %v2033
      %2055 = vmatpush.msra.mxu0 %v2032
      %2056 = vmatpush.msra.mxu0 %v2031
      %2057 = vmatpush.msra.mxu0 %v2030
      %2058 = vmatpush.msra.mxu0 %v2029
      %2059 = vmatpush.msra.mxu0 %v2028
      %2060 = vmatmul.f32.gmra.mxu0 %v2007
      %v2061 = vpop.f32.mrf.mxu0
      %v2062 = vadd.f32 0.0, %v2061
      %2063 = vmatmul.f32.gmra.mxu0 %v2008
      %v2064 = vpop.f32.mrf.mxu0
      %v2065 = vadd.f32 0.0, %v2064
      %2066 = vmatmul.f32.gmra.mxu0 %v2009
      %v2067 = vpop.f32.mrf.mxu0
      %v2068 = vadd.f32 0.0, %v2067
      %2069 = vmatmul.f32.gmra.mxu0 %v2010
      %v2070 = vpop.f32.mrf.mxu0
      %v2071 = vadd.f32 0.0, %v2070
      %2072 = vmatmul.f32.gmra.mxu0 %v2011
      %v2073 = vpop.f32.mrf.mxu0
      %v2074 = vadd.f32 0.0, %v2073
      %2075 = vmatmul.f32.gmra.mxu0 %v2012
      %v2076 = vpop.f32.mrf.mxu0
      %v2077 = vadd.f32 0.0, %v2076
      %2078 = vmatmul.f32.gmra.mxu0 %v2013
      %v2079 = vpop.f32.mrf.mxu0
      %v2080 = vadd.f32 0.0, %v2079
      %2081 = vmatmul.f32.gmra.mxu0 %v2014
      %v2082 = vpop.f32.mrf.mxu0
      %v2083 = vadd.f32 0.0, %v2082
      %2084 = vmatmul.f32.gmra.mxu0 %v2015
      %v2085 = vpop.f32.mrf.mxu0
      %v2086 = vadd.f32 0.0, %v2085
      %2087 = vmatmul.f32.gmra.mxu0 %v2016
      %v2088 = vpop.f32.mrf.mxu0
      %v2089 = vadd.f32 0.0, %v2088
      %2090 = vdwg.mxu0
      %v2091 = vadd.f32 %v2017, %v2062
      %v2092 = vadd.f32 %v2018, %v2065
      %v2093 = vadd.f32 %v2019, %v2068
      %v2094 = vadd.f32 %v2020, %v2071
      %v2095 = vadd.f32 %v2021, %v2074
      %v2096 = vadd.f32 %v2022, %v2077
      %v2097 = vadd.f32 %v2023, %v2080
      %v2098 = vadd.f32 %v2024, %v2083
      %v2099 = vadd.f32 %v2025, %v2086
      %v2100 = vadd.f32 %v2026, %v2089
      %2101 = vst [vmem:[#allocation2] sm:$0xff] %v2091
      %2102 = vst [vmem:[#allocation2 + $0x8] sm:$0xff] %v2092
      %2103 = vst [vmem:[#allocation2 + $0x10] sm:$0xff] %v2093
      %2104 = vst [vmem:[#allocation2 + $0x18] sm:$0xff] %v2094
      %2105 = vst [vmem:[#allocation2 + $0x20] sm:$0xff] %v2095
      %2106 = vst [vmem:[#allocation2 + $0x28] sm:$0xff] %v2096
      %2107 = vst [vmem:[#allocation2 + $0x30] sm:$0xff] %v2097
      %2108 = vst [vmem:[#allocation2 + $0x38] sm:$0xff] %v2098
      %2109 = vst [vmem:[#allocation2 + $0x40] sm:$0xff] %v2099
      %2110 = vst [vmem:[#allocation2 + $0x48] sm:$0xff] %v2100
      %s2111 = sadd.s32 %s1475, 312
      %s2112 = scalar_lea.vmem %s183, %s2111
      %v2113 = vld [vmem:[%s2112] sm:$0xff]
      %v2114 = vld [vmem:[%s2112 + $0x8] sm:$0xff]
      %v2115 = vld [vmem:[%s2112 + $0x10] sm:$0xff]
      %v2116 = vld [vmem:[%s2112 + $0x18] sm:$0xff]
      %v2117 = vld [vmem:[%s2112 + $0x20] sm:$0xff]
      %v2118 = vld [vmem:[%s2112 + $0x28] sm:$0xff]
      %v2119 = vld [vmem:[%s2112 + $0x30] sm:$0xff]
      %v2120 = vld [vmem:[%s2112 + $0x38] sm:$0xff]
      %v2121 = vld [vmem:[%s2112 + $0x40] sm:$0xff]
      %v2122 = vld [vmem:[%s2112 + $0x48] sm:$0xff]
      %v2123 = vld [vmem:[#allocation2] sm:$0xff]
      %v2124 = vld [vmem:[#allocation2 + $0x8] sm:$0xff]
      %v2125 = vld [vmem:[#allocation2 + $0x10] sm:$0xff]
      %v2126 = vld [vmem:[#allocation2 + $0x18] sm:$0xff]
      %v2127 = vld [vmem:[#allocation2 + $0x20] sm:$0xff]
      %v2128 = vld [vmem:[#allocation2 + $0x28] sm:$0xff]
      %v2129 = vld [vmem:[#allocation2 + $0x30] sm:$0xff]
      %v2130 = vld [vmem:[#allocation2 + $0x38] sm:$0xff]
      %v2131 = vld [vmem:[#allocation2 + $0x40] sm:$0xff]
      %v2132 = vld [vmem:[#allocation2 + $0x48] sm:$0xff]
      %s2133 = scalar_lea.vmem %s1, 2304
      %v2134 = vld [vmem:[%s2133] sm:$0xff]
      %v2135 = vld [vmem:[%s2133 + $0x8] sm:$0xff]
      %v2136 = vld [vmem:[%s2133 + $0x10] sm:$0xff]
      %v2137 = vld [vmem:[%s2133 + $0x18] sm:$0xff]
      %v2138 = vld [vmem:[%s2133 + $0x20] sm:$0xff]
      %v2139 = vld [vmem:[%s2133 + $0x28] sm:$0xff]
      %v2140 = vld [vmem:[%s2133 + $0x30] sm:$0xff]
      %v2141 = vld [vmem:[%s2133 + $0x38] sm:$0xff]
      %v2142 = vld [vmem:[%s2133 + $0x40] sm:$0xff]
      %v2143 = vld [vmem:[%s2133 + $0x48] sm:$0xff]
      %v2144 = vld [vmem:[%s2133 + $0x50] sm:$0xff]
      %v2145 = vld [vmem:[%s2133 + $0x58] sm:$0xff]
      %v2146 = vld [vmem:[%s2133 + $0x60] sm:$0xff]
      %v2147 = vld [vmem:[%s2133 + $0x68] sm:$0xff]
      %v2148 = vld [vmem:[%s2133 + $0x70] sm:$0xff]
      %v2149 = vld [vmem:[%s2133 + $0x78] sm:$0xff]
      %2150 = vmatpush.msra.mxu0 %v2149
      %2151 = vmatpush.msra.mxu0 %v2148
      %2152 = vmatpush.msra.mxu0 %v2147
      %2153 = vmatpush.msra.mxu0 %v2146
      %2154 = vmatpush.msra.mxu0 %v2145
      %2155 = vmatpush.msra.mxu0 %v2144
      %2156 = vmatpush.msra.mxu0 %v2143
      %2157 = vmatpush.msra.mxu0 %v2142
      %2158 = vmatpush.msra.mxu0 %v2141
      %2159 = vmatpush.msra.mxu0 %v2140
      %2160 = vmatpush.msra.mxu0 %v2139
      %2161 = vmatpush.msra.mxu0 %v2138
      %2162 = vmatpush.msra.mxu0 %v2137
      %2163 = vmatpush.msra.mxu0 %v2136
      %2164 = vmatpush.msra.mxu0 %v2135
      %2165 = vmatpush.msra.mxu0 %v2134
      %2166 = vmatmul.f32.gmra.mxu0 %v2113
      %v2167 = vpop.f32.mrf.mxu0
      %v2168 = vadd.f32 0.0, %v2167
      %2169 = vmatmul.f32.gmra.mxu0 %v2114
      %v2170 = vpop.f32.mrf.mxu0
      %v2171 = vadd.f32 0.0, %v2170
      %2172 = vmatmul.f32.gmra.mxu0 %v2115
      %v2173 = vpop.f32.mrf.mxu0
      %v2174 = vadd.f32 0.0, %v2173
      %2175 = vmatmul.f32.gmra.mxu0 %v2116
      %v2176 = vpop.f32.mrf.mxu0
      %v2177 = vadd.f32 0.0, %v2176
      %2178 = vmatmul.f32.gmra.mxu0 %v2117
      %v2179 = vpop.f32.mrf.mxu0
      %v2180 = vadd.f32 0.0, %v2179
      %2181 = vmatmul.f32.gmra.mxu0 %v2118
      %v2182 = vpop.f32.mrf.mxu0
      %v2183 = vadd.f32 0.0, %v2182
      %2184 = vmatmul.f32.gmra.mxu0 %v2119
      %v2185 = vpop.f32.mrf.mxu0
      %v2186 = vadd.f32 0.0, %v2185
      %2187 = vmatmul.f32.gmra.mxu0 %v2120
      %v2188 = vpop.f32.mrf.mxu0
      %v2189 = vadd.f32 0.0, %v2188
      %2190 = vmatmul.f32.gmra.mxu0 %v2121
      %v2191 = vpop.f32.mrf.mxu0
      %v2192 = vadd.f32 0.0, %v2191
      %2193 = vmatmul.f32.gmra.mxu0 %v2122
      %v2194 = vpop.f32.mrf.mxu0
      %v2195 = vadd.f32 0.0, %v2194
      %2196 = vdwg.mxu0
      %v2197 = vadd.f32 %v2123, %v2168
      %v2198 = vadd.f32 %v2124, %v2171
      %v2199 = vadd.f32 %v2125, %v2174
      %v2200 = vadd.f32 %v2126, %v2177
      %v2201 = vadd.f32 %v2127, %v2180
      %v2202 = vadd.f32 %v2128, %v2183
      %v2203 = vadd.f32 %v2129, %v2186
      %v2204 = vadd.f32 %v2130, %v2189
      %v2205 = vadd.f32 %v2131, %v2192
      %v2206 = vadd.f32 %v2132, %v2195
      %2207 = vst [vmem:[#allocation2] sm:$0xff] %v2197
      %2208 = vst [vmem:[#allocation2 + $0x8] sm:$0xff] %v2198
      %2209 = vst [vmem:[#allocation2 + $0x10] sm:$0xff] %v2199
      %2210 = vst [vmem:[#allocation2 + $0x18] sm:$0xff] %v2200
      %2211 = vst [vmem:[#allocation2 + $0x20] sm:$0xff] %v2201
      %2212 = vst [vmem:[#allocation2 + $0x28] sm:$0xff] %v2202
      %2213 = vst [vmem:[#allocation2 + $0x30] sm:$0xff] %v2203
      %2214 = vst [vmem:[#allocation2 + $0x38] sm:$0xff] %v2204
      %2215 = vst [vmem:[#allocation2 + $0x40] sm:$0xff] %v2205
      %2216 = vst [vmem:[#allocation2 + $0x48] sm:$0xff] %v2206
      %s2217 = sadd.s32 %s1687, 208
      %s2218 = scalar_lea.vmem %s183, %s2217
      %v2219 = vld [vmem:[%s2218] sm:$0xff]
      %v2220 = vld [vmem:[%s2218 + $0x8] sm:$0xff]
      %v2221 = vld [vmem:[%s2218 + $0x10] sm:$0xff]
      %v2222 = vld [vmem:[%s2218 + $0x18] sm:$0xff]
      %v2223 = vld [vmem:[%s2218 + $0x20] sm:$0xff]
      %v2224 = vld [vmem:[%s2218 + $0x28] sm:$0xff]
      %v2225 = vld [vmem:[%s2218 + $0x30] sm:$0xff]
      %v2226 = vld [vmem:[%s2218 + $0x38] sm:$0xff]
      %v2227 = vld [vmem:[%s2218 + $0x40] sm:$0xff]
      %v2228 = vld [vmem:[%s2218 + $0x48] sm:$0xff]
      %v2229 = vld [vmem:[#allocation2] sm:$0xff]
      %v2230 = vld [vmem:[#allocation2 + $0x8] sm:$0xff]
      %v2231 = vld [vmem:[#allocation2 + $0x10] sm:$0xff]
      %v2232 = vld [vmem:[#allocation2 + $0x18] sm:$0xff]
      %v2233 = vld [vmem:[#allocation2 + $0x20] sm:$0xff]
      %v2234 = vld [vmem:[#allocation2 + $0x28] sm:$0xff]
      %v2235 = vld [vmem:[#allocation2 + $0x30] sm:$0xff]
      %v2236 = vld [vmem:[#allocation2 + $0x38] sm:$0xff]
      %v2237 = vld [vmem:[#allocation2 + $0x40] sm:$0xff]
      %v2238 = vld [vmem:[#allocation2 + $0x48] sm:$0xff]
      %s2239 = scalar_lea.vmem %s1, 2432
      %v2240 = vld [vmem:[%s2239] sm:$0xff]
      %v2241 = vld [vmem:[%s2239 + $0x8] sm:$0xff]
      %v2242 = vld [vmem:[%s2239 + $0x10] sm:$0xff]
      %v2243 = vld [vmem:[%s2239 + $0x18] sm:$0xff]
      %v2244 = vld [vmem:[%s2239 + $0x20] sm:$0xff]
      %v2245 = vld [vmem:[%s2239 + $0x28] sm:$0xff]
      %v2246 = vld [vmem:[%s2239 + $0x30] sm:$0xff]
      %v2247 = vld [vmem:[%s2239 + $0x38] sm:$0xff]
      %v2248 = vld [vmem:[%s2239 + $0x40] sm:$0xff]
      %v2249 = vld [vmem:[%s2239 + $0x48] sm:$0xff]
      %v2250 = vld [vmem:[%s2239 + $0x50] sm:$0xff]
      %v2251 = vld [vmem:[%s2239 + $0x58] sm:$0xff]
      %v2252 = vld [vmem:[%s2239 + $0x60] sm:$0xff]
      %v2253 = vld [vmem:[%s2239 + $0x68] sm:$0xff]
      %v2254 = vld [vmem:[%s2239 + $0x70] sm:$0xff]
      %v2255 = vld [vmem:[%s2239 + $0x78] sm:$0xff]
      %2256 = vmatpush.msra.mxu0 %v2255
      %2257 = vmatpush.msra.mxu0 %v2254
      %2258 = vmatpush.msra.mxu0 %v2253
      %2259 = vmatpush.msra.mxu0 %v2252
      %2260 = vmatpush.msra.mxu0 %v2251
      %2261 = vmatpush.msra.mxu0 %v2250
      %2262 = vmatpush.msra.mxu0 %v2249
      %2263 = vmatpush.msra.mxu0 %v2248
      %2264 = vmatpush.msra.mxu0 %v2247
      %2265 = vmatpush.msra.mxu0 %v2246
      %2266 = vmatpush.msra.mxu0 %v2245
      %2267 = vmatpush.msra.mxu0 %v2244
      %2268 = vmatpush.msra.mxu0 %v2243
      %2269 = vmatpush.msra.mxu0 %v2242
      %2270 = vmatpush.msra.mxu0 %v2241
      %2271 = vmatpush.msra.mxu0 %v2240
      %2272 = vmatmul.f32.gmra.mxu0 %v2219
      %v2273 = vpop.f32.mrf.mxu0
      %v2274 = vadd.f32 0.0, %v2273
      %2275 = vmatmul.f32.gmra.mxu0 %v2220
      %v2276 = vpop.f32.mrf.mxu0
      %v2277 = vadd.f32 0.0, %v2276
      %2278 = vmatmul.f32.gmra.mxu0 %v2221
      %v2279 = vpop.f32.mrf.mxu0
      %v2280 = vadd.f32 0.0, %v2279
      %2281 = vmatmul.f32.gmra.mxu0 %v2222
      %v2282 = vpop.f32.mrf.mxu0
      %v2283 = vadd.f32 0.0, %v2282
      %2284 = vmatmul.f32.gmra.mxu0 %v2223
      %v2285 = vpop.f32.mrf.mxu0
      %v2286 = vadd.f32 0.0, %v2285
      %2287 = vmatmul.f32.gmra.mxu0 %v2224
      %v2288 = vpop.f32.mrf.mxu0
      %v2289 = vadd.f32 0.0, %v2288
      %2290 = vmatmul.f32.gmra.mxu0 %v2225
      %v2291 = vpop.f32.mrf.mxu0
      %v2292 = vadd.f32 0.0, %v2291
      %2293 = vmatmul.f32.gmra.mxu0 %v2226
      %v2294 = vpop.f32.mrf.mxu0
      %v2295 = vadd.f32 0.0, %v2294
      %2296 = vmatmul.f32.gmra.mxu0 %v2227
      %v2297 = vpop.f32.mrf.mxu0
      %v2298 = vadd.f32 0.0, %v2297
      %2299 = vmatmul.f32.gmra.mxu0 %v2228
      %v2300 = vpop.f32.mrf.mxu0
      %v2301 = vadd.f32 0.0, %v2300
      %2302 = vdwg.mxu0
      %v2303 = vadd.f32 %v2229, %v2274
      %v2304 = vadd.f32 %v2230, %v2277
      %v2305 = vadd.f32 %v2231, %v2280
      %v2306 = vadd.f32 %v2232, %v2283
      %v2307 = vadd.f32 %v2233, %v2286
      %v2308 = vadd.f32 %v2234, %v2289
      %v2309 = vadd.f32 %v2235, %v2292
      %v2310 = vadd.f32 %v2236, %v2295
      %v2311 = vadd.f32 %v2237, %v2298
      %v2312 = vadd.f32 %v2238, %v2301
      %2313 = vst [vmem:[#allocation2] sm:$0xff] %v2303
      %2314 = vst [vmem:[#allocation2 + $0x8] sm:$0xff] %v2304
      %2315 = vst [vmem:[#allocation2 + $0x10] sm:$0xff] %v2305
      %2316 = vst [vmem:[#allocation2 + $0x18] sm:$0xff] %v2306
      %2317 = vst [vmem:[#allocation2 + $0x20] sm:$0xff] %v2307
      %2318 = vst [vmem:[#allocation2 + $0x28] sm:$0xff] %v2308
      %2319 = vst [vmem:[#allocation2 + $0x30] sm:$0xff] %v2309
      %2320 = vst [vmem:[#allocation2 + $0x38] sm:$0xff] %v2310
      %2321 = vst [vmem:[#allocation2 + $0x40] sm:$0xff] %v2311
      %2322 = vst [vmem:[#allocation2 + $0x48] sm:$0xff] %v2312
      %s2323 = sadd.s32 %s194, 20
      %s2324 = scalar_lea.vmem %s183, %s2323
      %v2325 = vld [vmem:[%s2324] sm:$0xff]
      %v2326 = vld [vmem:[%s2324 + $0x8] sm:$0xff]
      %v2327 = vld [vmem:[%s2324 + $0x10] sm:$0xff]
      %v2328 = vld [vmem:[%s2324 + $0x18] sm:$0xff]
      %v2329 = vld [vmem:[%s2324 + $0x20] sm:$0xff]
      %v2330 = vld [vmem:[%s2324 + $0x28] sm:$0xff]
      %v2331 = vld [vmem:[%s2324 + $0x30] sm:$0xff]
      %v2332 = vld [vmem:[%s2324 + $0x38] sm:$0xff]
      %v2333 = vld [vmem:[%s2324 + $0x40] sm:$0xff]
      %v2334 = vld [vmem:[%s2324 + $0x48] sm:$0xff]
      %v2335 = vld [vmem:[#allocation2] sm:$0xff]
      %v2336 = vld [vmem:[#allocation2 + $0x8] sm:$0xff]
      %v2337 = vld [vmem:[#allocation2 + $0x10] sm:$0xff]
      %v2338 = vld [vmem:[#allocation2 + $0x18] sm:$0xff]
      %v2339 = vld [vmem:[#allocation2 + $0x20] sm:$0xff]
      %v2340 = vld [vmem:[#allocation2 + $0x28] sm:$0xff]
      %v2341 = vld [vmem:[#allocation2 + $0x30] sm:$0xff]
      %v2342 = vld [vmem:[#allocation2 + $0x38] sm:$0xff]
      %v2343 = vld [vmem:[#allocation2 + $0x40] sm:$0xff]
      %v2344 = vld [vmem:[#allocation2 + $0x48] sm:$0xff]
      %s2345 = scalar_lea.vmem %s1, 2560
      %v2346 = vld [vmem:[%s2345] sm:$0xff]
      %v2347 = vld [vmem:[%s2345 + $0x8] sm:$0xff]
      %v2348 = vld [vmem:[%s2345 + $0x10] sm:$0xff]
      %v2349 = vld [vmem:[%s2345 + $0x18] sm:$0xff]
      %v2350 = vld [vmem:[%s2345 + $0x20] sm:$0xff]
      %v2351 = vld [vmem:[%s2345 + $0x28] sm:$0xff]
      %v2352 = vld [vmem:[%s2345 + $0x30] sm:$0xff]
      %v2353 = vld [vmem:[%s2345 + $0x38] sm:$0xff]
      %v2354 = vld [vmem:[%s2345 + $0x40] sm:$0xff]
      %v2355 = vld [vmem:[%s2345 + $0x48] sm:$0xff]
      %v2356 = vld [vmem:[%s2345 + $0x50] sm:$0xff]
      %v2357 = vld [vmem:[%s2345 + $0x58] sm:$0xff]
      %v2358 = vld [vmem:[%s2345 + $0x60] sm:$0xff]
      %v2359 = vld [vmem:[%s2345 + $0x68] sm:$0xff]
      %v2360 = vld [vmem:[%s2345 + $0x70] sm:$0xff]
      %v2361 = vld [vmem:[%s2345 + $0x78] sm:$0xff]
      %2362 = vmatpush.msra.mxu0 %v2361
      %2363 = vmatpush.msra.mxu0 %v2360
      %2364 = vmatpush.msra.mxu0 %v2359
      %2365 = vmatpush.msra.mxu0 %v2358
      %2366 = vmatpush.msra.mxu0 %v2357
      %2367 = vmatpush.msra.mxu0 %v2356
      %2368 = vmatpush.msra.mxu0 %v2355
      %2369 = vmatpush.msra.mxu0 %v2354
      %2370 = vmatpush.msra.mxu0 %v2353
      %2371 = vmatpush.msra.mxu0 %v2352
      %2372 = vmatpush.msra.mxu0 %v2351
      %2373 = vmatpush.msra.mxu0 %v2350
      %2374 = vmatpush.msra.mxu0 %v2349
      %2375 = vmatpush.msra.mxu0 %v2348
      %2376 = vmatpush.msra.mxu0 %v2347
      %2377 = vmatpush.msra.mxu0 %v2346
      %2378 = vmatmul.f32.gmra.mxu0 %v2325
      %v2379 = vpop.f32.mrf.mxu0
      %v2380 = vadd.f32 0.0, %v2379
      %2381 = vmatmul.f32.gmra.mxu0 %v2326
      %v2382 = vpop.f32.mrf.mxu0
      %v2383 = vadd.f32 0.0, %v2382
      %2384 = vmatmul.f32.gmra.mxu0 %v2327
      %v2385 = vpop.f32.mrf.mxu0
      %v2386 = vadd.f32 0.0, %v2385
      %2387 = vmatmul.f32.gmra.mxu0 %v2328
      %v2388 = vpop.f32.mrf.mxu0
      %v2389 = vadd.f32 0.0, %v2388
      %2390 = vmatmul.f32.gmra.mxu0 %v2329
      %v2391 = vpop.f32.mrf.mxu0
      %v2392 = vadd.f32 0.0, %v2391
      %2393 = vmatmul.f32.gmra.mxu0 %v2330
      %v2394 = vpop.f32.mrf.mxu0
      %v2395 = vadd.f32 0.0, %v2394
      %2396 = vmatmul.f32.gmra.mxu0 %v2331
      %v2397 = vpop.f32.mrf.mxu0
      %v2398 = vadd.f32 0.0, %v2397
      %2399 = vmatmul.f32.gmra.mxu0 %v2332
      %v2400 = vpop.f32.mrf.mxu0
      %v2401 = vadd.f32 0.0, %v2400
      %2402 = vmatmul.f32.gmra.mxu0 %v2333
      %v2403 = vpop.f32.mrf.mxu0
      %v2404 = vadd.f32 0.0, %v2403
      %2405 = vmatmul.f32.gmra.mxu0 %v2334
      %v2406 = vpop.f32.mrf.mxu0
      %v2407 = vadd.f32 0.0, %v2406
      %2408 = vdwg.mxu0
      %v2409 = vadd.f32 %v2335, %v2380
      %v2410 = vadd.f32 %v2336, %v2383
      %v2411 = vadd.f32 %v2337, %v2386
      %v2412 = vadd.f32 %v2338, %v2389
      %v2413 = vadd.f32 %v2339, %v2392
      %v2414 = vadd.f32 %v2340, %v2395
      %v2415 = vadd.f32 %v2341, %v2398
      %v2416 = vadd.f32 %v2342, %v2401
      %v2417 = vadd.f32 %v2343, %v2404
      %v2418 = vadd.f32 %v2344, %v2407
      %2419 = vst [vmem:[#allocation2] sm:$0xff] %v2409
      %2420 = vst [vmem:[#allocation2 + $0x8] sm:$0xff] %v2410
      %2421 = vst [vmem:[#allocation2 + $0x10] sm:$0xff] %v2411
      %2422 = vst [vmem:[#allocation2 + $0x18] sm:$0xff] %v2412
      %2423 = vst [vmem:[#allocation2 + $0x20] sm:$0xff] %v2413
      %2424 = vst [vmem:[#allocation2 + $0x28] sm:$0xff] %v2414
      %2425 = vst [vmem:[#allocation2 + $0x30] sm:$0xff] %v2415
      %2426 = vst [vmem:[#allocation2 + $0x38] sm:$0xff] %v2416
      %2427 = vst [vmem:[#allocation2 + $0x40] sm:$0xff] %v2417
      %2428 = vst [vmem:[#allocation2 + $0x48] sm:$0xff] %v2418
      %s2429 = sadd.s32 %s2323, 104
      %s2430 = scalar_lea.vmem %s183, %s2429
      %v2431 = vld [vmem:[%s2430] sm:$0xff]
      %v2432 = vld [vmem:[%s2430 + $0x8] sm:$0xff]
      %v2433 = vld [vmem:[%s2430 + $0x10] sm:$0xff]
      %v2434 = vld [vmem:[%s2430 + $0x18] sm:$0xff]
      %v2435 = vld [vmem:[%s2430 + $0x20] sm:$0xff]
      %v2436 = vld [vmem:[%s2430 + $0x28] sm:$0xff]
      %v2437 = vld [vmem:[%s2430 + $0x30] sm:$0xff]
      %v2438 = vld [vmem:[%s2430 + $0x38] sm:$0xff]
      %v2439 = vld [vmem:[%s2430 + $0x40] sm:$0xff]
      %v2440 = vld [vmem:[%s2430 + $0x48] sm:$0xff]
      %v2441 = vld [vmem:[#allocation2] sm:$0xff]
      %v2442 = vld [vmem:[#allocation2 + $0x8] sm:$0xff]
      %v2443 = vld [vmem:[#allocation2 + $0x10] sm:$0xff]
      %v2444 = vld [vmem:[#allocation2 + $0x18] sm:$0xff]
      %v2445 = vld [vmem:[#allocation2 + $0x20] sm:$0xff]
      %v2446 = vld [vmem:[#allocation2 + $0x28] sm:$0xff]
      %v2447 = vld [vmem:[#allocation2 + $0x30] sm:$0xff]
      %v2448 = vld [vmem:[#allocation2 + $0x38] sm:$0xff]
      %v2449 = vld [vmem:[#allocation2 + $0x40] sm:$0xff]
      %v2450 = vld [vmem:[#allocation2 + $0x48] sm:$0xff]
      %s2451 = scalar_lea.vmem %s1, 2688
      %v2452 = vld [vmem:[%s2451] sm:$0xff]
      %v2453 = vld [vmem:[%s2451 + $0x8] sm:$0xff]
      %v2454 = vld [vmem:[%s2451 + $0x10] sm:$0xff]
      %v2455 = vld [vmem:[%s2451 + $0x18] sm:$0xff]
      %v2456 = vld [vmem:[%s2451 + $0x20] sm:$0xff]
      %v2457 = vld [vmem:[%s2451 + $0x28] sm:$0xff]
      %v2458 = vld [vmem:[%s2451 + $0x30] sm:$0xff]
      %v2459 = vld [vmem:[%s2451 + $0x38] sm:$0xff]
      %v2460 = vld [vmem:[%s2451 + $0x40] sm:$0xff]
      %v2461 = vld [vmem:[%s2451 + $0x48] sm:$0xff]
      %v2462 = vld [vmem:[%s2451 + $0x50] sm:$0xff]
      %v2463 = vld [vmem:[%s2451 + $0x58] sm:$0xff]
      %v2464 = vld [vmem:[%s2451 + $0x60] sm:$0xff]
      %v2465 = vld [vmem:[%s2451 + $0x68] sm:$0xff]
      %v2466 = vld [vmem:[%s2451 + $0x70] sm:$0xff]
      %v2467 = vld [vmem:[%s2451 + $0x78] sm:$0xff]
      %2468 = vmatpush.msra.mxu0 %v2467
      %2469 = vmatpush.msra.mxu0 %v2466
      %2470 = vmatpush.msra.mxu0 %v2465
      %2471 = vmatpush.msra.mxu0 %v2464
      %2472 = vmatpush.msra.mxu0 %v2463
      %2473 = vmatpush.msra.mxu0 %v2462
      %2474 = vmatpush.msra.mxu0 %v2461
      %2475 = vmatpush.msra.mxu0 %v2460
      %2476 = vmatpush.msra.mxu0 %v2459
      %2477 = vmatpush.msra.mxu0 %v2458
      %2478 = vmatpush.msra.mxu0 %v2457
      %2479 = vmatpush.msra.mxu0 %v2456
      %2480 = vmatpush.msra.mxu0 %v2455
      %2481 = vmatpush.msra.mxu0 %v2454
      %2482 = vmatpush.msra.mxu0 %v2453
      %2483 = vmatpush.msra.mxu0 %v2452
      %2484 = vmatmul.f32.gmra.mxu0 %v2431
      %v2485 = vpop.f32.mrf.mxu0
      %v2486 = vadd.f32 0.0, %v2485
      %2487 = vmatmul.f32.gmra.mxu0 %v2432
      %v2488 = vpop.f32.mrf.mxu0
      %v2489 = vadd.f32 0.0, %v2488
      %2490 = vmatmul.f32.gmra.mxu0 %v2433
      %v2491 = vpop.f32.mrf.mxu0
      %v2492 = vadd.f32 0.0, %v2491
      %2493 = vmatmul.f32.gmra.mxu0 %v2434
      %v2494 = vpop.f32.mrf.mxu0
      %v2495 = vadd.f32 0.0, %v2494
      %2496 = vmatmul.f32.gmra.mxu0 %v2435
      %v2497 = vpop.f32.mrf.mxu0
      %v2498 = vadd.f32 0.0, %v2497
      %2499 = vmatmul.f32.gmra.mxu0 %v2436
      %v2500 = vpop.f32.mrf.mxu0
      %v2501 = vadd.f32 0.0, %v2500
      %2502 = vmatmul.f32.gmra.mxu0 %v2437
      %v2503 = vpop.f32.mrf.mxu0
      %v2504 = vadd.f32 0.0, %v2503
      %2505 = vmatmul.f32.gmra.mxu0 %v2438
      %v2506 = vpop.f32.mrf.mxu0
      %v2507 = vadd.f32 0.0, %v2506
      %2508 = vmatmul.f32.gmra.mxu0 %v2439
      %v2509 = vpop.f32.mrf.mxu0
      %v2510 = vadd.f32 0.0, %v2509
      %2511 = vmatmul.f32.gmra.mxu0 %v2440
      %v2512 = vpop.f32.mrf.mxu0
      %v2513 = vadd.f32 0.0, %v2512
      %2514 = vdwg.mxu0
      %v2515 = vadd.f32 %v2441, %v2486
      %v2516 = vadd.f32 %v2442, %v2489
      %v2517 = vadd.f32 %v2443, %v2492
      %v2518 = vadd.f32 %v2444, %v2495
      %v2519 = vadd.f32 %v2445, %v2498
      %v2520 = vadd.f32 %v2446, %v2501
      %v2521 = vadd.f32 %v2447, %v2504
      %v2522 = vadd.f32 %v2448, %v2507
      %v2523 = vadd.f32 %v2449, %v2510
      %v2524 = vadd.f32 %v2450, %v2513
      %2525 = vst [vmem:[#allocation2] sm:$0xff] %v2515
      %2526 = vst [vmem:[#allocation2 + $0x8] sm:$0xff] %v2516
      %2527 = vst [vmem:[#allocation2 + $0x10] sm:$0xff] %v2517
      %2528 = vst [vmem:[#allocation2 + $0x18] sm:$0xff] %v2518
      %2529 = vst [vmem:[#allocation2 + $0x20] sm:$0xff] %v2519
      %2530 = vst [vmem:[#allocation2 + $0x28] sm:$0xff] %v2520
      %2531 = vst [vmem:[#allocation2 + $0x30] sm:$0xff] %v2521
      %2532 = vst [vmem:[#allocation2 + $0x38] sm:$0xff] %v2522
      %2533 = vst [vmem:[#allocation2 + $0x40] sm:$0xff] %v2523
      %2534 = vst [vmem:[#allocation2 + $0x48] sm:$0xff] %v2524
      %s2535 = sadd.s32 %s194, 21
      %s2536 = scalar_lea.vmem %s183, %s2535
      %v2537 = vld [vmem:[%s2536] sm:$0xff]
      %v2538 = vld [vmem:[%s2536 + $0x8] sm:$0xff]
      %v2539 = vld [vmem:[%s2536 + $0x10] sm:$0xff]
      %v2540 = vld [vmem:[%s2536 + $0x18] sm:$0xff]
      %v2541 = vld [vmem:[%s2536 + $0x20] sm:$0xff]
      %v2542 = vld [vmem:[%s2536 + $0x28] sm:$0xff]
      %v2543 = vld [vmem:[%s2536 + $0x30] sm:$0xff]
      %v2544 = vld [vmem:[%s2536 + $0x38] sm:$0xff]
      %v2545 = vld [vmem:[%s2536 + $0x40] sm:$0xff]
      %v2546 = vld [vmem:[%s2536 + $0x48] sm:$0xff]
      %v2547 = vld [vmem:[#allocation2] sm:$0xff]
      %v2548 = vld [vmem:[#allocation2 + $0x8] sm:$0xff]
      %v2549 = vld [vmem:[#allocation2 + $0x10] sm:$0xff]
      %v2550 = vld [vmem:[#allocation2 + $0x18] sm:$0xff]
      %v2551 = vld [vmem:[#allocation2 + $0x20] sm:$0xff]
      %v2552 = vld [vmem:[#allocation2 + $0x28] sm:$0xff]
      %v2553 = vld [vmem:[#allocation2 + $0x30] sm:$0xff]
      %v2554 = vld [vmem:[#allocation2 + $0x38] sm:$0xff]
      %v2555 = vld [vmem:[#allocation2 + $0x40] sm:$0xff]
      %v2556 = vld [vmem:[#allocation2 + $0x48] sm:$0xff]
      %s2557 = scalar_lea.vmem %s1, 2816
      %v2558 = vld [vmem:[%s2557] sm:$0xff]
      %v2559 = vld [vmem:[%s2557 + $0x8] sm:$0xff]
      %v2560 = vld [vmem:[%s2557 + $0x10] sm:$0xff]
      %v2561 = vld [vmem:[%s2557 + $0x18] sm:$0xff]
      %v2562 = vld [vmem:[%s2557 + $0x20] sm:$0xff]
      %v2563 = vld [vmem:[%s2557 + $0x28] sm:$0xff]
      %v2564 = vld [vmem:[%s2557 + $0x30] sm:$0xff]
      %v2565 = vld [vmem:[%s2557 + $0x38] sm:$0xff]
      %v2566 = vld [vmem:[%s2557 + $0x40] sm:$0xff]
      %v2567 = vld [vmem:[%s2557 + $0x48] sm:$0xff]
      %v2568 = vld [vmem:[%s2557 + $0x50] sm:$0xff]
      %v2569 = vld [vmem:[%s2557 + $0x58] sm:$0xff]
      %v2570 = vld [vmem:[%s2557 + $0x60] sm:$0xff]
      %v2571 = vld [vmem:[%s2557 + $0x68] sm:$0xff]
      %v2572 = vld [vmem:[%s2557 + $0x70] sm:$0xff]
      %v2573 = vld [vmem:[%s2557 + $0x78] sm:$0xff]
      %2574 = vmatpush.msra.mxu0 %v2573
      %2575 = vmatpush.msra.mxu0 %v2572
      %2576 = vmatpush.msra.mxu0 %v2571
      %2577 = vmatpush.msra.mxu0 %v2570
      %2578 = vmatpush.msra.mxu0 %v2569
      %2579 = vmatpush.msra.mxu0 %v2568
      %2580 = vmatpush.msra.mxu0 %v2567
      %2581 = vmatpush.msra.mxu0 %v2566
      %2582 = vmatpush.msra.mxu0 %v2565
      %2583 = vmatpush.msra.mxu0 %v2564
      %2584 = vmatpush.msra.mxu0 %v2563
      %2585 = vmatpush.msra.mxu0 %v2562
      %2586 = vmatpush.msra.mxu0 %v2561
      %2587 = vmatpush.msra.mxu0 %v2560
      %2588 = vmatpush.msra.mxu0 %v2559
      %2589 = vmatpush.msra.mxu0 %v2558
      %2590 = vmatmul.f32.gmra.mxu0 %v2537
      %v2591 = vpop.f32.mrf.mxu0
      %v2592 = vadd.f32 0.0, %v2591
      %2593 = vmatmul.f32.gmra.mxu0 %v2538
      %v2594 = vpop.f32.mrf.mxu0
      %v2595 = vadd.f32 0.0, %v2594
      %2596 = vmatmul.f32.gmra.mxu0 %v2539
      %v2597 = vpop.f32.mrf.mxu0
      %v2598 = vadd.f32 0.0, %v2597
      %2599 = vmatmul.f32.gmra.mxu0 %v2540
      %v2600 = vpop.f32.mrf.mxu0
      %v2601 = vadd.f32 0.0, %v2600
      %2602 = vmatmul.f32.gmra.mxu0 %v2541
      %v2603 = vpop.f32.mrf.mxu0
      %v2604 = vadd.f32 0.0, %v2603
      %2605 = vmatmul.f32.gmra.mxu0 %v2542
      %v2606 = vpop.f32.mrf.mxu0
      %v2607 = vadd.f32 0.0, %v2606
      %2608 = vmatmul.f32.gmra.mxu0 %v2543
      %v2609 = vpop.f32.mrf.mxu0
      %v2610 = vadd.f32 0.0, %v2609
      %2611 = vmatmul.f32.gmra.mxu0 %v2544
      %v2612 = vpop.f32.mrf.mxu0
      %v2613 = vadd.f32 0.0, %v2612
      %2614 = vmatmul.f32.gmra.mxu0 %v2545
      %v2615 = vpop.f32.mrf.mxu0
      %v2616 = vadd.f32 0.0, %v2615
      %2617 = vmatmul.f32.gmra.mxu0 %v2546
      %v2618 = vpop.f32.mrf.mxu0
      %v2619 = vadd.f32 0.0, %v2618
      %2620 = vdwg.mxu0
      %v2621 = vadd.f32 %v2547, %v2592
      %v2622 = vadd.f32 %v2548, %v2595
      %v2623 = vadd.f32 %v2549, %v2598
      %v2624 = vadd.f32 %v2550, %v2601
      %v2625 = vadd.f32 %v2551, %v2604
      %v2626 = vadd.f32 %v2552, %v2607
      %v2627 = vadd.f32 %v2553, %v2610
      %v2628 = vadd.f32 %v2554, %v2613
      %v2629 = vadd.f32 %v2555, %v2616
      %v2630 = vadd.f32 %v2556, %v2619
      %2631 = vst [vmem:[#allocation2] sm:$0xff] %v2621
      %2632 = vst [vmem:[#allocation2 + $0x8] sm:$0xff] %v2622
      %2633 = vst [vmem:[#allocation2 + $0x10] sm:$0xff] %v2623
      %2634 = vst [vmem:[#allocation2 + $0x18] sm:$0xff] %v2624
      %2635 = vst [vmem:[#allocation2 + $0x20] sm:$0xff] %v2625
      %2636 = vst [vmem:[#allocation2 + $0x28] sm:$0xff] %v2626
      %2637 = vst [vmem:[#allocation2 + $0x30] sm:$0xff] %v2627
      %2638 = vst [vmem:[#allocation2 + $0x38] sm:$0xff] %v2628
      %2639 = vst [vmem:[#allocation2 + $0x40] sm:$0xff] %v2629
      %2640 = vst [vmem:[#allocation2 + $0x48] sm:$0xff] %v2630
      %s2641 = sadd.s32 %s2535, 104
      %s2642 = scalar_lea.vmem %s183, %s2641
      %v2643 = vld [vmem:[%s2642] sm:$0xff]
      %v2644 = vld [vmem:[%s2642 + $0x8] sm:$0xff]
      %v2645 = vld [vmem:[%s2642 + $0x10] sm:$0xff]
      %v2646 = vld [vmem:[%s2642 + $0x18] sm:$0xff]
      %v2647 = vld [vmem:[%s2642 + $0x20] sm:$0xff]
      %v2648 = vld [vmem:[%s2642 + $0x28] sm:$0xff]
      %v2649 = vld [vmem:[%s2642 + $0x30] sm:$0xff]
      %v2650 = vld [vmem:[%s2642 + $0x38] sm:$0xff]
      %v2651 = vld [vmem:[%s2642 + $0x40] sm:$0xff]
      %v2652 = vld [vmem:[%s2642 + $0x48] sm:$0xff]
      %v2653 = vld [vmem:[#allocation2] sm:$0xff]
      %v2654 = vld [vmem:[#allocation2 + $0x8] sm:$0xff]
      %v2655 = vld [vmem:[#allocation2 + $0x10] sm:$0xff]
      %v2656 = vld [vmem:[#allocation2 + $0x18] sm:$0xff]
      %v2657 = vld [vmem:[#allocation2 + $0x20] sm:$0xff]
      %v2658 = vld [vmem:[#allocation2 + $0x28] sm:$0xff]
      %v2659 = vld [vmem:[#allocation2 + $0x30] sm:$0xff]
      %v2660 = vld [vmem:[#allocation2 + $0x38] sm:$0xff]
      %v2661 = vld [vmem:[#allocation2 + $0x40] sm:$0xff]
      %v2662 = vld [vmem:[#allocation2 + $0x48] sm:$0xff]
      %s2663 = scalar_lea.vmem %s1, 2944
      %v2664 = vld [vmem:[%s2663] sm:$0xff]
      %v2665 = vld [vmem:[%s2663 + $0x8] sm:$0xff]
      %v2666 = vld [vmem:[%s2663 + $0x10] sm:$0xff]
      %v2667 = vld [vmem:[%s2663 + $0x18] sm:$0xff]
      %v2668 = vld [vmem:[%s2663 + $0x20] sm:$0xff]
      %v2669 = vld [vmem:[%s2663 + $0x28] sm:$0xff]
      %v2670 = vld [vmem:[%s2663 + $0x30] sm:$0xff]
      %v2671 = vld [vmem:[%s2663 + $0x38] sm:$0xff]
      %v2672 = vld [vmem:[%s2663 + $0x40] sm:$0xff]
      %v2673 = vld [vmem:[%s2663 + $0x48] sm:$0xff]
      %v2674 = vld [vmem:[%s2663 + $0x50] sm:$0xff]
      %v2675 = vld [vmem:[%s2663 + $0x58] sm:$0xff]
      %v2676 = vld [vmem:[%s2663 + $0x60] sm:$0xff]
      %v2677 = vld [vmem:[%s2663 + $0x68] sm:$0xff]
      %v2678 = vld [vmem:[%s2663 + $0x70] sm:$0xff]
      %v2679 = vld [vmem:[%s2663 + $0x78] sm:$0xff]
      %2680 = vmatpush.msra.mxu0 %v2679
      %2681 = vmatpush.msra.mxu0 %v2678
      %2682 = vmatpush.msra.mxu0 %v2677
      %2683 = vmatpush.msra.mxu0 %v2676
      %2684 = vmatpush.msra.mxu0 %v2675
      %2685 = vmatpush.msra.mxu0 %v2674
      %2686 = vmatpush.msra.mxu0 %v2673
      %2687 = vmatpush.msra.mxu0 %v2672
      %2688 = vmatpush.msra.mxu0 %v2671
      %2689 = vmatpush.msra.mxu0 %v2670
      %2690 = vmatpush.msra.mxu0 %v2669
      %2691 = vmatpush.msra.mxu0 %v2668
      %2692 = vmatpush.msra.mxu0 %v2667
      %2693 = vmatpush.msra.mxu0 %v2666
      %2694 = vmatpush.msra.mxu0 %v2665
      %2695 = vmatpush.msra.mxu0 %v2664
      %2696 = vmatmul.f32.gmra.mxu0 %v2643
      %v2697 = vpop.f32.mrf.mxu0
      %v2698 = vadd.f32 0.0, %v2697
      %2699 = vmatmul.f32.gmra.mxu0 %v2644
      %v2700 = vpop.f32.mrf.mxu0
      %v2701 = vadd.f32 0.0, %v2700
      %2702 = vmatmul.f32.gmra.mxu0 %v2645
      %v2703 = vpop.f32.mrf.mxu0
      %v2704 = vadd.f32 0.0, %v2703
      %2705 = vmatmul.f32.gmra.mxu0 %v2646
      %v2706 = vpop.f32.mrf.mxu0
      %v2707 = vadd.f32 0.0, %v2706
      %2708 = vmatmul.f32.gmra.mxu0 %v2647
      %v2709 = vpop.f32.mrf.mxu0
      %v2710 = vadd.f32 0.0, %v2709
      %2711 = vmatmul.f32.gmra.mxu0 %v2648
      %v2712 = vpop.f32.mrf.mxu0
      %v2713 = vadd.f32 0.0, %v2712
      %2714 = vmatmul.f32.gmra.mxu0 %v2649
      %v2715 = vpop.f32.mrf.mxu0
      %v2716 = vadd.f32 0.0, %v2715
      %2717 = vmatmul.f32.gmra.mxu0 %v2650
      %v2718 = vpop.f32.mrf.mxu0
      %v2719 = vadd.f32 0.0, %v2718
      %2720 = vmatmul.f32.gmra.mxu0 %v2651
      %v2721 = vpop.f32.mrf.mxu0
      %v2722 = vadd.f32 0.0, %v2721
      %2723 = vmatmul.f32.gmra.mxu0 %v2652
      %v2724 = vpop.f32.mrf.mxu0
      %v2725 = vadd.f32 0.0, %v2724
      %2726 = vdwg.mxu0
      %v2727 = vadd.f32 %v2653, %v2698
      %v2728 = vadd.f32 %v2654, %v2701
      %v2729 = vadd.f32 %v2655, %v2704
      %v2730 = vadd.f32 %v2656, %v2707
      %v2731 = vadd.f32 %v2657, %v2710
      %v2732 = vadd.f32 %v2658, %v2713
      %v2733 = vadd.f32 %v2659, %v2716
      %v2734 = vadd.f32 %v2660, %v2719
      %v2735 = vadd.f32 %v2661, %v2722
      %v2736 = vadd.f32 %v2662, %v2725
      %2737 = vst [vmem:[#allocation2] sm:$0xff] %v2727
      %2738 = vst [vmem:[#allocation2 + $0x8] sm:$0xff] %v2728
      %2739 = vst [vmem:[#allocation2 + $0x10] sm:$0xff] %v2729
      %2740 = vst [vmem:[#allocation2 + $0x18] sm:$0xff] %v2730
      %2741 = vst [vmem:[#allocation2 + $0x20] sm:$0xff] %v2731
      %2742 = vst [vmem:[#allocation2 + $0x28] sm:$0xff] %v2732
      %2743 = vst [vmem:[#allocation2 + $0x30] sm:$0xff] %v2733
      %2744 = vst [vmem:[#allocation2 + $0x38] sm:$0xff] %v2734
      %2745 = vst [vmem:[#allocation2 + $0x40] sm:$0xff] %v2735
      %2746 = vst [vmem:[#allocation2 + $0x48] sm:$0xff] %v2736
      %s2747 = sadd.s32 %s194, 22
      %s2748 = scalar_lea.vmem %s183, %s2747
      %v2749 = vld [vmem:[%s2748] sm:$0xff]
      %v2750 = vld [vmem:[%s2748 + $0x8] sm:$0xff]
      %v2751 = vld [vmem:[%s2748 + $0x10] sm:$0xff]
      %v2752 = vld [vmem:[%s2748 + $0x18] sm:$0xff]
      %v2753 = vld [vmem:[%s2748 + $0x20] sm:$0xff]
      %v2754 = vld [vmem:[%s2748 + $0x28] sm:$0xff]
      %v2755 = vld [vmem:[%s2748 + $0x30] sm:$0xff]
      %v2756 = vld [vmem:[%s2748 + $0x38] sm:$0xff]
      %v2757 = vld [vmem:[%s2748 + $0x40] sm:$0xff]
      %v2758 = vld [vmem:[%s2748 + $0x48] sm:$0xff]
      %v2759 = vld [vmem:[#allocation2] sm:$0xff]
      %v2760 = vld [vmem:[#allocation2 + $0x8] sm:$0xff]
      %v2761 = vld [vmem:[#allocation2 + $0x10] sm:$0xff]
      %v2762 = vld [vmem:[#allocation2 + $0x18] sm:$0xff]
      %v2763 = vld [vmem:[#allocation2 + $0x20] sm:$0xff]
      %v2764 = vld [vmem:[#allocation2 + $0x28] sm:$0xff]
      %v2765 = vld [vmem:[#allocation2 + $0x30] sm:$0xff]
      %v2766 = vld [vmem:[#allocation2 + $0x38] sm:$0xff]
      %v2767 = vld [vmem:[#allocation2 + $0x40] sm:$0xff]
      %v2768 = vld [vmem:[#allocation2 + $0x48] sm:$0xff]
      %s2769 = scalar_lea.vmem %s1, 3072
      %v2770 = vld [vmem:[%s2769] sm:$0xff]
      %v2771 = vld [vmem:[%s2769 + $0x8] sm:$0xff]
      %v2772 = vld [vmem:[%s2769 + $0x10] sm:$0xff]
      %v2773 = vld [vmem:[%s2769 + $0x18] sm:$0xff]
      %v2774 = vld [vmem:[%s2769 + $0x20] sm:$0xff]
      %v2775 = vld [vmem:[%s2769 + $0x28] sm:$0xff]
      %v2776 = vld [vmem:[%s2769 + $0x30] sm:$0xff]
      %v2777 = vld [vmem:[%s2769 + $0x38] sm:$0xff]
      %v2778 = vld [vmem:[%s2769 + $0x40] sm:$0xff]
      %v2779 = vld [vmem:[%s2769 + $0x48] sm:$0xff]
      %v2780 = vld [vmem:[%s2769 + $0x50] sm:$0xff]
      %v2781 = vld [vmem:[%s2769 + $0x58] sm:$0xff]
      %v2782 = vld [vmem:[%s2769 + $0x60] sm:$0xff]
      %v2783 = vld [vmem:[%s2769 + $0x68] sm:$0xff]
      %v2784 = vld [vmem:[%s2769 + $0x70] sm:$0xff]
      %v2785 = vld [vmem:[%s2769 + $0x78] sm:$0xff]
      %2786 = vmatpush.msra.mxu0 %v2785
      %2787 = vmatpush.msra.mxu0 %v2784
      %2788 = vmatpush.msra.mxu0 %v2783
      %2789 = vmatpush.msra.mxu0 %v2782
      %2790 = vmatpush.msra.mxu0 %v2781
      %2791 = vmatpush.msra.mxu0 %v2780
      %2792 = vmatpush.msra.mxu0 %v2779
      %2793 = vmatpush.msra.mxu0 %v2778
      %2794 = vmatpush.msra.mxu0 %v2777
      %2795 = vmatpush.msra.mxu0 %v2776
      %2796 = vmatpush.msra.mxu0 %v2775
      %2797 = vmatpush.msra.mxu0 %v2774
      %2798 = vmatpush.msra.mxu0 %v2773
      %2799 = vmatpush.msra.mxu0 %v2772
      %2800 = vmatpush.msra.mxu0 %v2771
      %2801 = vmatpush.msra.mxu0 %v2770
      %2802 = vmatmul.f32.gmra.mxu0 %v2749
      %v2803 = vpop.f32.mrf.mxu0
      %v2804 = vadd.f32 0.0, %v2803
      %2805 = vmatmul.f32.gmra.mxu0 %v2750
      %v2806 = vpop.f32.mrf.mxu0
      %v2807 = vadd.f32 0.0, %v2806
      %2808 = vmatmul.f32.gmra.mxu0 %v2751
      %v2809 = vpop.f32.mrf.mxu0
      %v2810 = vadd.f32 0.0, %v2809
      %2811 = vmatmul.f32.gmra.mxu0 %v2752
      %v2812 = vpop.f32.mrf.mxu0
      %v2813 = vadd.f32 0.0, %v2812
      %2814 = vmatmul.f32.gmra.mxu0 %v2753
      %v2815 = vpop.f32.mrf.mxu0
      %v2816 = vadd.f32 0.0, %v2815
      %2817 = vmatmul.f32.gmra.mxu0 %v2754
      %v2818 = vpop.f32.mrf.mxu0
      %v2819 = vadd.f32 0.0, %v2818
      %2820 = vmatmul.f32.gmra.mxu0 %v2755
      %v2821 = vpop.f32.mrf.mxu0
      %v2822 = vadd.f32 0.0, %v2821
      %2823 = vmatmul.f32.gmra.mxu0 %v2756
      %v2824 = vpop.f32.mrf.mxu0
      %v2825 = vadd.f32 0.0, %v2824
      %2826 = vmatmul.f32.gmra.mxu0 %v2757
      %v2827 = vpop.f32.mrf.mxu0
      %v2828 = vadd.f32 0.0, %v2827
      %2829 = vmatmul.f32.gmra.mxu0 %v2758
      %v2830 = vpop.f32.mrf.mxu0
      %v2831 = vadd.f32 0.0, %v2830
      %2832 = vdwg.mxu0
      %v2833 = vadd.f32 %v2759, %v2804
      %v2834 = vadd.f32 %v2760, %v2807
      %v2835 = vadd.f32 %v2761, %v2810
      %v2836 = vadd.f32 %v2762, %v2813
      %v2837 = vadd.f32 %v2763, %v2816
      %v2838 = vadd.f32 %v2764, %v2819
      %v2839 = vadd.f32 %v2765, %v2822
      %v2840 = vadd.f32 %v2766, %v2825
      %v2841 = vadd.f32 %v2767, %v2828
      %v2842 = vadd.f32 %v2768, %v2831
      %2843 = vst [vmem:[#allocation2] sm:$0xff] %v2833
      %2844 = vst [vmem:[#allocation2 + $0x8] sm:$0xff] %v2834
      %2845 = vst [vmem:[#allocation2 + $0x10] sm:$0xff] %v2835
      %2846 = vst [vmem:[#allocation2 + $0x18] sm:$0xff] %v2836
      %2847 = vst [vmem:[#allocation2 + $0x20] sm:$0xff] %v2837
      %2848 = vst [vmem:[#allocation2 + $0x28] sm:$0xff] %v2838
      %2849 = vst [vmem:[#allocation2 + $0x30] sm:$0xff] %v2839
      %2850 = vst [vmem:[#allocation2 + $0x38] sm:$0xff] %v2840
      %2851 = vst [vmem:[#allocation2 + $0x40] sm:$0xff] %v2841
      %2852 = vst [vmem:[#allocation2 + $0x48] sm:$0xff] %v2842
      %v2853 = vld [vmem:[#allocation2] sm:$0xff]
      %v2854 = vld [vmem:[#allocation2 + $0x8] sm:$0xff]
      %v2855 = vld [vmem:[#allocation2 + $0x10] sm:$0xff]
      %v2856 = vld [vmem:[#allocation2 + $0x18] sm:$0xff]
      %v2857 = vld [vmem:[#allocation2 + $0x20] sm:$0xff]
      %v2858 = vld [vmem:[#allocation2 + $0x28] sm:$0xff]
      %v2859 = vld [vmem:[#allocation2 + $0x30] sm:$0xff]
      %v2860 = vld [vmem:[#allocation2 + $0x38] sm:$0xff]
      %v2861 = vld [vmem:[#allocation2 + $0x40] sm:$0xff]
      %v2862 = vld [vmem:[#allocation2 + $0x48] sm:$0xff]
      %v2863 = vld [vmem:[%s2] sm:$0x1]
      %v2865 = vperm.slane %v2863, 0
      %v2867 = vadd.f32 %v2853, %v2865
      %v2868 = vadd.f32 %v2854, %v2865
      %v2869 = vadd.f32 %v2855, %v2865
      %v2870 = vadd.f32 %v2856, %v2865
      %v2871 = vadd.f32 %v2857, %v2865
      %v2872 = vadd.f32 %v2858, %v2865
      %v2873 = vadd.f32 %v2859, %v2865
      %v2874 = vadd.f32 %v2860, %v2865
      %v2875 = vadd.f32 %v2861, %v2865
      %v2876 = vadd.f32 %v2862, %v2865
      %v2877 = vmax.f32 %v2867, 0.0
      %v2878 = vmax.f32 %v2868, 0.0
      %v2879 = vmax.f32 %v2869, 0.0
      %v2880 = vmax.f32 %v2870, 0.0
      %v2881 = vmax.f32 %v2871, 0.0
      %v2882 = vmax.f32 %v2872, 0.0
      %v2883 = vmax.f32 %v2873, 0.0
      %v2884 = vmax.f32 %v2874, 0.0
      %v2885 = vmax.f32 %v2875, 0.0
      %v2886 = vmax.f32 %v2876, 0.0
      %2887 = vst [vmem:[%s192] sm:$0xff] %v2877
      %2888 = vst [vmem:[%s192 + $0x8] sm:$0xff] %v2878
      %2889 = vst [vmem:[%s192 + $0x10] sm:$0xff] %v2879
      %2890 = vst [vmem:[%s192 + $0x18] sm:$0xff] %v2880
      %2891 = vst [vmem:[%s192 + $0x20] sm:$0xff] %v2881
      %2892 = vst [vmem:[%s192 + $0x28] sm:$0xff] %v2882
      %2893 = vst [vmem:[%s192 + $0x30] sm:$0xff] %v2883
      %2894 = vst [vmem:[%s192 + $0x38] sm:$0xff] %v2884
      %2895 = vst [vmem:[%s192 + $0x40] sm:$0xff] %v2885
      %2896 = vst [vmem:[%s192 + $0x48] sm:$0xff] %v2886
      %s2897 = smul.u32 10, %s19
      %p2898 = scmp.lt.s32.totalorder %s18, 1
      %s2899 = scalar_select %p2898, %s18, 1
      %p2900 = scmp.lt.s32.totalorder %s2897, 9
      %s2901 = scalar_select %p2900, %s2897, 9
      %s2902 = smul.addr %s2899, 10
      %s2903 = sadd.s32 %s2901, %s2902
      %s2904 = smul.addr %s2903, 8
      %s2905 = scalar_lea.vmem %s3, %s2904
      // Predicated region
      $region33: #{analysis_prior_net.4} parent=31 // pred_check
        %p2906 = pneg %p114
      $region34: #{analysis_prior_net.4} parent=31 // pred_check_branch
        %2908 = sbr.rel (%p2906) target = $region36
      $region35: #{analysis_prior_net.4} parent=31 // pred_region
        %s2909 = smul.u32 10, %s19
      $region36: #{analysis_prior_net.4} parent=31 // pred_fallthru
        _
    $region32: #{analysis_prior_net.4} parent=5 // pred_fallthru
      _
    %p2910 = scmp.le.s32.totalorder 2, %s9
    // Predicated region
    $region37: #{analysis_prior_net.4} parent=5 // pred_check
      %p2911 = pneg %p2910
    $region38: #{analysis_prior_net.4} parent=5 // pred_check_branch
      %2913 = sbr.rel (%p2911) target = $region40
    $region39: #{analysis_prior_net.4} parent=5 // pred_region
      %s2914 = ssub.s32 %s9, 2
      // Predicated region
      $region41: #{analysis_prior_net.4} parent=39 // pred_check
        %p2915 = pneg %p120
      $region42: #{analysis_prior_net.4} parent=39 // pred_check_branch
        %2917 = sbr.rel (%p2915) target = $region44
      $region43: #{analysis_prior_net.4} parent=39 // pred_region
        %s2918 = smul.u32 10, %s21
        %p2919 = scmp.lt.s32.totalorder %s20, 1
        %s2920 = scalar_select %p2919, %s20, 1
        %p2921 = scmp.lt.s32.totalorder %s2918, 9
        %s2922 = scalar_select %p2921, %s2918, 9
        %s2923 = smul.addr %s2920, 10
        %s2924 = sadd.s32 %s2922, %s2923
        %s2925 = smul.addr %s2924, 8
        %s2926 = scalar_lea.vmem %s3, %s2925
      $region44: #{analysis_prior_net.4} parent=39 // pred_fallthru
        _
    $region40: #{analysis_prior_net.4} parent=5 // pred_fallthru
      _
  $region6: #{analysis_prior_net.4} parent=0 // loop_footer
    %s13 = sadd.s32 1, %s9
  $region7: #{analysis_prior_net.4} parent=0 // loop_footer_branch
    %8 = sbr.rel target = $region3
  $region8: #{analysis_prior_net.4} parent=0 // loop_exit
    _

</llo_original>
